<compile_context>
chip_gen: v6e
topology: v6e:2x2x1
jax: 0.10.0
libtpu: 0.0.40
codegen_flags: <defaults>
</compile_context>

<pallas_src>
import jax
import jax.numpy as jnp
from jax.experimental import pallas as pl
from jax.experimental.pallas import tpu as pltpu


# --------------------------- fused ConvNeXtV2 block kernel ---------------------------
def _block_kernel(x_ref, dww_ref, dwb_ref, lng_ref, lnb_ref,
                  w1_ref, b1_ref, gg_ref, gb_ref, w2_ref, b2_ref,
                  o_ref, xpad_ref):
    # x_ref:    (1, H, W, C)  NHWC input, one batch element
    # dww_ref:  (49, C)       depthwise weights, row k = tap (k//7, k%7)
    # dwb_ref:  (1, C)        depthwise bias
    # lng/lnb:  (1, C)        LayerNorm gamma/beta
    # w1:(C,4C) b1:(1,4C)     pwconv1
    # gg/gb:    (1, 4C)       GRN gamma/beta
    # w2:(4C,C) b2:(1,C)      pwconv2
    # o_ref:    (1, N, C)     output (N = H*W), residual already added
    # xpad_ref: VMEM scratch (H+6, W+6, C) f32 — zero-padded halo buffer
    H, W, C = x_ref.shape[1], x_ref.shape[2], x_ref.shape[3]
    N = H * W

    x = x_ref[0].astype(jnp.float32)                                  # (H, W, C)

    # ---- depthwise 7x7 conv; halo built in VMEM (no wrapper-side padded HBM copy) ----
    xpad_ref[...] = jnp.zeros_like(xpad_ref)
    xpad_ref[pl.ds(3, H), pl.ds(3, W), :] = x

    # bias broadcast hoisted once into the accumulator init
    acc = jnp.zeros((H, W, C), jnp.float32) + dwb_ref[0, :].astype(jnp.float32)

    # 7 horizontal (sublane) shifts materialized once, each reused for 7 vertical taps
    for j in range(7):
        colj = xpad_ref[:, pl.ds(j, W), :]                            # (H+6, W, C) f32
        for i in range(7):
            tap = dww_ref[i * 7 + j, :].astype(jnp.float32)           # (C,)
            acc = acc + colj[i:i + H] * tap                           # cheap outer-dim slice

    y = acc.reshape(N, C)                                             # (N, C)
    xin = x.reshape(N, C)                                             # residual, already in VMEM

    # ---- LayerNorm over channels (eps = 1e-6, biased variance, like F.layer_norm) ----
    mu = jnp.mean(y, axis=-1, keepdims=True)
    var = jnp.mean((y - mu) ** 2, axis=-1, keepdims=True)
    yn = (y - mu) * jax.lax.rsqrt(var + 1e-6)
    yn = yn * lng_ref[0, :].astype(jnp.float32) + lnb_ref[0, :].astype(jnp.float32)

    # ---- pwconv1 (Linear C -> 4C) + exact (erf) GELU, f32 MXU accumulation ----
    h = jnp.dot(yn, w1_ref[...].astype(jnp.float32),
                preferred_element_type=jnp.float32) + b1_ref[0, :].astype(jnp.float32)
    h = 0.5 * h * (1.0 + jax.lax.erf(h * jnp.float32(0.7071067811865475)))

    # ---- GRN: global response norm over the spatial dim of this batch element ----
    gx = jnp.sqrt(jnp.sum(h * h, axis=0, keepdims=True))              # (1, 4C)
    nx = gx / (jnp.mean(gx, axis=-1, keepdims=True) + 1e-6)           # (1, 4C)
    h = gg_ref[0, :].astype(jnp.float32) * (h * nx) + gb_ref[0, :].astype(jnp.float32) + h

    # ---- pwconv2 (Linear 4C -> C) + residual (drop_path = 0.0 => identity) ----
    out = jnp.dot(h, w2_ref[...].astype(jnp.float32),
                  preferred_element_type=jnp.float32) + b2_ref[0, :].astype(jnp.float32)
    o_ref[0] = (xin + out).astype(o_ref.dtype)


# ----------------------------------- wrapper -----------------------------------
def convnext_block(x_nchw, params):
    B, C, H, W = x_nchw.shape
    N = H * W
    C4 = 4 * C

    x = jnp.transpose(x_nchw, (0, 2, 3, 1))                           # NHWC (interface glue)

    dw_w = params["dw_w"].reshape(49, C)                              # (7,7,C) -> (49,C)
    dw_b = params["dw_b"].reshape(1, C)

    out = pl.pallas_call(
        _block_kernel,
        out_shape=jax.ShapeDtypeStruct((B, N, C), x.dtype),
        grid_spec=pltpu.PrefetchScalarGridSpec(
            num_scalar_prefetch=0,
            grid=(B,),
            in_specs=[
                pl.BlockSpec((1, H, W, C), lambda b: (b, 0, 0, 0)),   # activation block
                pl.BlockSpec((49, C), lambda b: (0, 0)),              # dw weights
                pl.BlockSpec((1, C), lambda b: (0, 0)),               # dw bias
                pl.BlockSpec((1, C), lambda b: (0, 0)),               # ln gamma
                pl.BlockSpec((1, C), lambda b: (0, 0)),               # ln beta
                pl.BlockSpec((C, C4), lambda b: (0, 0)),              # w1
                pl.BlockSpec((1, C4), lambda b: (0, 0)),              # b1
                pl.BlockSpec((1, C4), lambda b: (0, 0)),              # grn gamma
                pl.BlockSpec((1, C4), lambda b: (0, 0)),              # grn beta
                pl.BlockSpec((C4, C), lambda b: (0, 0)),              # w2
                pl.BlockSpec((1, C), lambda b: (0, 0)),               # b2
            ],
            out_specs=pl.BlockSpec((1, N, C), lambda b: (b, 0, 0)),
            scratch_shapes=[pltpu.VMEM((H + 6, W + 6, C), jnp.float32)],
        ),
        compiler_params=pltpu.CompilerParams(
            dimension_semantics=("parallel",),
            vmem_limit_bytes=32 * 1024 * 1024,
        ),
    )(x, dw_w, dw_b,
      params["ln_g"].reshape(1, C), params["ln_b"].reshape(1, C),
      params["w1"], params["b1"].reshape(1, C4),
      params["grn_g"].reshape(1, C4), params["grn_b"].reshape(1, C4),
      params["w2"], params["b2"].reshape(1, C))

    out = out.reshape(B, H, W, C)
    return jnp.transpose(out, (0, 3, 1, 2))                           # back to NCHW


# ------------------------------- pure-JAX reference -------------------------------
def reference_block(x_nchw, params):
    x = jnp.transpose(x_nchw, (0, 2, 3, 1)).astype(jnp.float32)       # NHWC
    B, H, W, C = x.shape
    # depthwise conv
    w = params["dw_w"].reshape(7, 7, 1, C)                            # HWIO, I=1, groups=C
    y = jax.lax.conv_general_dilated(
        x, w, window_strides=(1, 1), padding=((3, 3), (3, 3)),
        dimension_numbers=("NHWC", "HWIO", "NHWC"), feature_group_count=C,
    ) + params["dw_b"]
    # LayerNorm
    mu = jnp.mean(y, axis=-1, keepdims=True)
    var = jnp.mean((y - mu) ** 2, axis=-1, keepdims=True)
    y = (y - mu) / jnp.sqrt(var + 1e-6) * params["ln_g"] + params["ln_b"]
    # pwconv1 + exact GELU
    h = y @ params["w1"] + params["b1"]
    h = jax.nn.gelu(h, approximate=False)
    # GRN
    gx = jnp.sqrt(jnp.sum(h * h, axis=(1, 2), keepdims=True))
    nx = gx / (jnp.mean(gx, axis=-1, keepdims=True) + 1e-6)
    h = params["grn_g"] * (h * nx) + params["grn_b"] + h
    # pwconv2 + residual
    out = h @ params["w2"] + params["b2"]
    out = x + out
    return jnp.transpose(out, (0, 3, 1, 2))


# ----------------------------------- main -----------------------------------
if __name__ == "__main__":
    B, dim, H, W = 2, 4, 16, 16
    key = jax.random.PRNGKey(0)
    ks = jax.random.split(key, 12)

    # Deterministic synthetic parameters (shapes per Block.__init__ with dim=4).
    # GRN gamma/beta are zero-init in the original module; small random values
    # here so the GRN path is actually exercised.
    params = {
        "dw_w":  0.1 * jax.random.normal(ks[0], (7, 7, dim), jnp.float32),      # Conv2d(dim,dim,7,groups=dim)
        "dw_b":  0.1 * jax.random.normal(ks[1], (dim,), jnp.float32),
        "ln_g":  1.0 + 0.1 * jax.random.normal(ks[2], (dim,), jnp.float32),      # LayerNorm(dim)
        "ln_b":  0.1 * jax.random.normal(ks[3], (dim,), jnp.float32),
        "w1":    0.1 * jax.random.normal(ks[4], (dim, 4 * dim), jnp.float32),    # Linear(dim, 4*dim)
        "b1":    0.1 * jax.random.normal(ks[5], (4 * dim,), jnp.float32),
        "grn_g": 0.1 * jax.random.normal(ks[6], (4 * dim,), jnp.float32),        # GRN(4*dim)
        "grn_b": 0.1 * jax.random.normal(ks[7], (4 * dim,), jnp.float32),
        "w2":    0.1 * jax.random.normal(ks[8], (4 * dim, dim), jnp.float32),    # Linear(4*dim, dim)
        "b2":    0.1 * jax.random.normal(ks[9], (dim,), jnp.float32),
    }

    x = jax.random.normal(ks[10], (B, dim, H, W), jnp.float32)        # NCHW, like PyTorch

    out = jax.block_until_ready(convnext_block(x, params))
    ref = jax.block_until_ready(reference_block(x, params))

    assert out.shape == (B, dim, H, W)
    assert jnp.allclose(out, ref, rtol=1e-4, atol=1e-4), float(jnp.max(jnp.abs(out - ref)))

    # TODO(synk): DropPath with drop_path > 0 (training-mode stochastic depth) not implemented;
    # module default drop_path=0.0 is an identity and is reproduced exactly.
    print("KERNEL_OK")
</pallas_src>

<mosaic_0001>
module attributes {stable_mosaic.version = 11 : i64} {
  func.func @_block_kernel(%arg0: i32, %arg1: memref<1x16x16x4xf32, #tpu.memory_space<vmem>>, %arg2: memref<49x4xf32, #tpu.memory_space<vmem>>, %arg3: memref<1x4xf32, #tpu.memory_space<vmem>>, %arg4: memref<1x4xf32, #tpu.memory_space<vmem>>, %arg5: memref<1x4xf32, #tpu.memory_space<vmem>>, %arg6: memref<4x16xf32, #tpu.memory_space<vmem>>, %arg7: memref<1x16xf32, #tpu.memory_space<vmem>>, %arg8: memref<1x16xf32, #tpu.memory_space<vmem>>, %arg9: memref<1x16xf32, #tpu.memory_space<vmem>>, %arg10: memref<16x4xf32, #tpu.memory_space<vmem>>, %arg11: memref<1x4xf32, #tpu.memory_space<vmem>>, %arg12: memref<1x256x4xf32, #tpu.memory_space<vmem>>, %arg13: memref<22x22x4xf32, #tpu.memory_space<vmem>>) attributes {dimension_semantics = [#tpu.dimension_semantics<parallel>], iteration_bounds = array<i64: 2>, scalar_prefetch = 0 : i64, scratch_operands = 1 : i64, tpu.core_type = #tpu.core_type<tc>, window_params = [{transform_indices = @transform_0, window_bounds = array<i64: 1, 16, 16, 4>}, {pipeline_mode = #tpu.pipeline_mode<synchronous>, transform_indices = @transform_1, window_bounds = array<i64: 49, 4>}, {pipeline_mode = #tpu.pipeline_mode<synchronous>, transform_indices = @transform_2, window_bounds = array<i64: 1, 4>}, {pipeline_mode = #tpu.pipeline_mode<synchronous>, transform_indices = @transform_3, window_bounds = array<i64: 1, 4>}, {pipeline_mode = #tpu.pipeline_mode<synchronous>, transform_indices = @transform_4, window_bounds = array<i64: 1, 4>}, {pipeline_mode = #tpu.pipeline_mode<synchronous>, transform_indices = @transform_5, window_bounds = array<i64: 4, 16>}, {pipeline_mode = #tpu.pipeline_mode<synchronous>, transform_indices = @transform_6, window_bounds = array<i64: 1, 16>}, {pipeline_mode = #tpu.pipeline_mode<synchronous>, transform_indices = @transform_7, window_bounds = array<i64: 1, 16>}, {pipeline_mode = #tpu.pipeline_mode<synchronous>, transform_indices = @transform_8, window_bounds = array<i64: 1, 16>}, {pipeline_mode = #tpu.pipeline_mode<synchronous>, transform_indices = @transform_9, window_bounds = array<i64: 16, 4>}, {pipeline_mode = #tpu.pipeline_mode<synchronous>, transform_indices = @transform_10, window_bounds = array<i64: 1, 4>}, {transform_indices = @transform_11, window_bounds = array<i64: 1, 256, 4>}]} {
    %c0 = arith.constant 0 : index
    %c0_0 = arith.constant 0 : index
    %c0_1 = arith.constant 0 : index
    %c0_2 = arith.constant 0 : index
    %0 = vector.load %arg1[%c0, %c0_0, %c0_1, %c0_2] : memref<1x16x16x4xf32, #tpu.memory_space<vmem>>, vector<1x16x16x4xf32>
    %1 = vector.shape_cast %0 : vector<1x16x16x4xf32> to vector<16x16x4xf32>
    %cst = arith.constant 0.000000e+00 : f32
    %2 = vector.broadcast %cst : f32 to vector<22x22x4xf32>
    %c0_3 = arith.constant 0 : index
    %c0_4 = arith.constant 0 : index
    %c0_5 = arith.constant 0 : index
    %3 = vector.load %arg13[%c0_3, %c0_4, %c0_5] : memref<22x22x4xf32, #tpu.memory_space<vmem>>, vector<22x22x4xf32>
    tpu.vector_store %arg13[%c0_3, %c0_4, %c0_5], %2 {strides = array<i32>} : memref<22x22x4xf32, #tpu.memory_space<vmem>>, vector<22x22x4xf32>,
    %c3 = arith.constant 3 : index
    %c3_6 = arith.constant 3 : index
    %c0_7 = arith.constant 0 : index
    %4 = vector.load %arg13[%c3, %c3_6, %c0_7] : memref<22x22x4xf32, #tpu.memory_space<vmem>>, vector<16x16x4xf32>
    tpu.vector_store %arg13[%c3, %c3_6, %c0_7], %1 {strides = array<i32>} : memref<22x22x4xf32, #tpu.memory_space<vmem>>, vector<16x16x4xf32>,
    %cst_8 = arith.constant 0.000000e+00 : f32
    %5 = vector.broadcast %cst_8 : f32 to vector<16x16x4xf32>
    %c0_9 = arith.constant 0 : index
    %c0_10 = arith.constant 0 : index
    %6 = vector.load %arg3[%c0_9, %c0_10] : memref<1x4xf32, #tpu.memory_space<vmem>>, vector<1x4xf32>
    %7 = vector.shape_cast %6 : vector<1x4xf32> to vector<4xf32>
    %8 = vector.shape_cast %7 : vector<4xf32> to vector<1x1x4xf32>
    %9 = vector.broadcast %8 : vector<1x1x4xf32> to vector<16x16x4xf32>
    %10 = arith.addf %5, %9 : vector<16x16x4xf32>
    %c0_11 = arith.constant 0 : index
    %c0_12 = arith.constant 0 : index
    %c0_13 = arith.constant 0 : index
    %11 = vector.load %arg13[%c0_11, %c0_12, %c0_13] : memref<22x22x4xf32, #tpu.memory_space<vmem>>, vector<22x16x4xf32>
    %c0_14 = arith.constant 0 : index
    %c0_15 = arith.constant 0 : index
    %12 = vector.load %arg2[%c0_14, %c0_15] : memref<49x4xf32, #tpu.memory_space<vmem>>, vector<1x4xf32>
    %13 = vector.shape_cast %12 : vector<1x4xf32> to vector<4xf32>
    %14 = vector.extract_strided_slice %11 {offsets = [0, 0, 0], sizes = [16, 16, 4], strides = [1, 1, 1]} : vector<22x16x4xf32> to vector<16x16x4xf32>
    %15 = vector.shape_cast %13 : vector<4xf32> to vector<1x1x4xf32>
    %16 = vector.broadcast %15 : vector<1x1x4xf32> to vector<16x16x4xf32>
    %17 = arith.mulf %14, %16 : vector<16x16x4xf32>
    %18 = arith.addf %10, %17 : vector<16x16x4xf32>
    %c7 = arith.constant 7 : index
    %c0_16 = arith.constant 0 : index
    %19 = vector.load %arg2[%c7, %c0_16] : memref<49x4xf32, #tpu.memory_space<vmem>>, vector<1x4xf32>
    %20 = vector.shape_cast %19 : vector<1x4xf32> to vector<4xf32>
    %21 = vector.extract_strided_slice %11 {offsets = [1, 0, 0], sizes = [16, 16, 4], strides = [1, 1, 1]} : vector<22x16x4xf32> to vector<16x16x4xf32>
    %22 = vector.shape_cast %20 : vector<4xf32> to vector<1x1x4xf32>
    %23 = vector.broadcast %22 : vector<1x1x4xf32> to vector<16x16x4xf32>
    %24 = arith.mulf %21, %23 : vector<16x16x4xf32>
    %25 = arith.addf %18, %24 : vector<16x16x4xf32>
    %c14 = arith.constant 14 : index
    %c0_17 = arith.constant 0 : index
    %26 = vector.load %arg2[%c14, %c0_17] : memref<49x4xf32, #tpu.memory_space<vmem>>, vector<1x4xf32>
    %27 = vector.shape_cast %26 : vector<1x4xf32> to vector<4xf32>
    %28 = vector.extract_strided_slice %11 {offsets = [2, 0, 0], sizes = [16, 16, 4], strides = [1, 1, 1]} : vector<22x16x4xf32> to vector<16x16x4xf32>
    %29 = vector.shape_cast %27 : vector<4xf32> to vector<1x1x4xf32>
    %30 = vector.broadcast %29 : vector<1x1x4xf32> to vector<16x16x4xf32>
    %31 = arith.mulf %28, %30 : vector<16x16x4xf32>
    %32 = arith.addf %25, %31 : vector<16x16x4xf32>
    %c21 = arith.constant 21 : index
    %c0_18 = arith.constant 0 : index
    %33 = vector.load %arg2[%c21, %c0_18] : memref<49x4xf32, #tpu.memory_space<vmem>>, vector<1x4xf32>
    %34 = vector.shape_cast %33 : vector<1x4xf32> to vector<4xf32>
    %35 = vector.extract_strided_slice %11 {offsets = [3, 0, 0], sizes = [16, 16, 4], strides = [1, 1, 1]} : vector<22x16x4xf32> to vector<16x16x4xf32>
    %36 = vector.shape_cast %34 : vector<4xf32> to vector<1x1x4xf32>
    %37 = vector.broadcast %36 : vector<1x1x4xf32> to vector<16x16x4xf32>
    %38 = arith.mulf %35, %37 : vector<16x16x4xf32>
    %39 = arith.addf %32, %38 : vector<16x16x4xf32>
    %c28 = arith.constant 28 : index
    %c0_19 = arith.constant 0 : index
    %40 = vector.load %arg2[%c28, %c0_19] : memref<49x4xf32, #tpu.memory_space<vmem>>, vector<1x4xf32>
    %41 = vector.shape_cast %40 : vector<1x4xf32> to vector<4xf32>
    %42 = vector.extract_strided_slice %11 {offsets = [4, 0, 0], sizes = [16, 16, 4], strides = [1, 1, 1]} : vector<22x16x4xf32> to vector<16x16x4xf32>
    %43 = vector.shape_cast %41 : vector<4xf32> to vector<1x1x4xf32>
    %44 = vector.broadcast %43 : vector<1x1x4xf32> to vector<16x16x4xf32>
    %45 = arith.mulf %42, %44 : vector<16x16x4xf32>
    %46 = arith.addf %39, %45 : vector<16x16x4xf32>
    %c35 = arith.constant 35 : index
    %c0_20 = arith.constant 0 : index
    %47 = vector.load %arg2[%c35, %c0_20] : memref<49x4xf32, #tpu.memory_space<vmem>>, vector<1x4xf32>
    %48 = vector.shape_cast %47 : vector<1x4xf32> to vector<4xf32>
    %49 = vector.extract_strided_slice %11 {offsets = [5, 0, 0], sizes = [16, 16, 4], strides = [1, 1, 1]} : vector<22x16x4xf32> to vector<16x16x4xf32>
    %50 = vector.shape_cast %48 : vector<4xf32> to vector<1x1x4xf32>
    %51 = vector.broadcast %50 : vector<1x1x4xf32> to vector<16x16x4xf32>
    %52 = arith.mulf %49, %51 : vector<16x16x4xf32>
    %53 = arith.addf %46, %52 : vector<16x16x4xf32>
    %c42 = arith.constant 42 : index
    %c0_21 = arith.constant 0 : index
    %54 = vector.load %arg2[%c42, %c0_21] : memref<49x4xf32, #tpu.memory_space<vmem>>, vector<1x4xf32>
    %55 = vector.shape_cast %54 : vector<1x4xf32> to vector<4xf32>
    %56 = vector.extract_strided_slice %11 {offsets = [6, 0, 0], sizes = [16, 16, 4], strides = [1, 1, 1]} : vector<22x16x4xf32> to vector<16x16x4xf32>
    %57 = vector.shape_cast %55 : vector<4xf32> to vector<1x1x4xf32>
    %58 = vector.broadcast %57 : vector<1x1x4xf32> to vector<16x16x4xf32>
    %59 = arith.mulf %56, %58 : vector<16x16x4xf32>
    %60 = arith.addf %53, %59 : vector<16x16x4xf32>
    %c0_22 = arith.constant 0 : index
    %c1 = arith.constant 1 : index
    %c0_23 = arith.constant 0 : index
    %61 = vector.load %arg13[%c0_22, %c1, %c0_23] : memref<22x22x4xf32, #tpu.memory_space<vmem>>, vector<22x16x4xf32>
    %c1_24 = arith.constant 1 : index
    %c0_25 = arith.constant 0 : index
    %62 = vector.load %arg2[%c1_24, %c0_25] : memref<49x4xf32, #tpu.memory_space<vmem>>, vector<1x4xf32>
    %63 = vector.shape_cast %62 : vector<1x4xf32> to vector<4xf32>
    %64 = vector.extract_strided_slice %61 {offsets = [0, 0, 0], sizes = [16, 16, 4], strides = [1, 1, 1]} : vector<22x16x4xf32> to vector<16x16x4xf32>
    %65 = vector.shape_cast %63 : vector<4xf32> to vector<1x1x4xf32>
    %66 = vector.broadcast %65 : vector<1x1x4xf32> to vector<16x16x4xf32>
    %67 = arith.mulf %64, %66 : vector<16x16x4xf32>
    %68 = arith.addf %60, %67 : vector<16x16x4xf32>
    %c8 = arith.constant 8 : index
    %c0_26 = arith.constant 0 : index
    %69 = vector.load %arg2[%c8, %c0_26] : memref<49x4xf32, #tpu.memory_space<vmem>>, vector<1x4xf32>
    %70 = vector.shape_cast %69 : vector<1x4xf32> to vector<4xf32>
    %71 = vector.extract_strided_slice %61 {offsets = [1, 0, 0], sizes = [16, 16, 4], strides = [1, 1, 1]} : vector<22x16x4xf32> to vector<16x16x4xf32>
    %72 = vector.shape_cast %70 : vector<4xf32> to vector<1x1x4xf32>
    %73 = vector.broadcast %72 : vector<1x1x4xf32> to vector<16x16x4xf32>
    %74 = arith.mulf %71, %73 : vector<16x16x4xf32>
    %75 = arith.addf %68, %74 : vector<16x16x4xf32>
    %c15 = arith.constant 15 : index
    %c0_27 = arith.constant 0 : index
    %76 = vector.load %arg2[%c15, %c0_27] : memref<49x4xf32, #tpu.memory_space<vmem>>, vector<1x4xf32>
    %77 = vector.shape_cast %76 : vector<1x4xf32> to vector<4xf32>
    %78 = vector.extract_strided_slice %61 {offsets = [2, 0, 0], sizes = [16, 16, 4], strides = [1, 1, 1]} : vector<22x16x4xf32> to vector<16x16x4xf32>
    %79 = vector.shape_cast %77 : vector<4xf32> to vector<1x1x4xf32>
    %80 = vector.broadcast %79 : vector<1x1x4xf32> to vector<16x16x4xf32>
    %81 = arith.mulf %78, %80 : vector<16x16x4xf32>
    %82 = arith.addf %75, %81 : vector<16x16x4xf32>
    %c22 = arith.constant 22 : index
    %c0_28 = arith.constant 0 : index
    %83 = vector.load %arg2[%c22, %c0_28] : memref<49x4xf32, #tpu.memory_space<vmem>>, vector<1x4xf32>
    %84 = vector.shape_cast %83 : vector<1x4xf32> to vector<4xf32>
    %85 = vector.extract_strided_slice %61 {offsets = [3, 0, 0], sizes = [16, 16, 4], strides = [1, 1, 1]} : vector<22x16x4xf32> to vector<16x16x4xf32>
    %86 = vector.shape_cast %84 : vector<4xf32> to vector<1x1x4xf32>
    %87 = vector.broadcast %86 : vector<1x1x4xf32> to vector<16x16x4xf32>
    %88 = arith.mulf %85, %87 : vector<16x16x4xf32>
    %89 = arith.addf %82, %88 : vector<16x16x4xf32>
    %c29 = arith.constant 29 : index
    %c0_29 = arith.constant 0 : index
    %90 = vector.load %arg2[%c29, %c0_29] : memref<49x4xf32, #tpu.memory_space<vmem>>, vector<1x4xf32>
    %91 = vector.shape_cast %90 : vector<1x4xf32> to vector<4xf32>
    %92 = vector.extract_strided_slice %61 {offsets = [4, 0, 0], sizes = [16, 16, 4], strides = [1, 1, 1]} : vector<22x16x4xf32> to vector<16x16x4xf32>
    %93 = vector.shape_cast %91 : vector<4xf32> to vector<1x1x4xf32>
    %94 = vector.broadcast %93 : vector<1x1x4xf32> to vector<16x16x4xf32>
    %95 = arith.mulf %92, %94 : vector<16x16x4xf32>
    %96 = arith.addf %89, %95 : vector<16x16x4xf32>
    %c36 = arith.constant 36 : index
    %c0_30 = arith.constant 0 : index
    %97 = vector.load %arg2[%c36, %c0_30] : memref<49x4xf32, #tpu.memory_space<vmem>>, vector<1x4xf32>
    %98 = vector.shape_cast %97 : vector<1x4xf32> to vector<4xf32>
    %99 = vector.extract_strided_slice %61 {offsets = [5, 0, 0], sizes = [16, 16, 4], strides = [1, 1, 1]} : vector<22x16x4xf32> to vector<16x16x4xf32>
    %100 = vector.shape_cast %98 : vector<4xf32> to vector<1x1x4xf32>
    %101 = vector.broadcast %100 : vector<1x1x4xf32> to vector<16x16x4xf32>
    %102 = arith.mulf %99, %101 : vector<16x16x4xf32>
    %103 = arith.addf %96, %102 : vector<16x16x4xf32>
    %c43 = arith.constant 43 : index
    %c0_31 = arith.constant 0 : index
    %104 = vector.load %arg2[%c43, %c0_31] : memref<49x4xf32, #tpu.memory_space<vmem>>, vector<1x4xf32>
    %105 = vector.shape_cast %104 : vector<1x4xf32> to vector<4xf32>
    %106 = vector.extract_strided_slice %61 {offsets = [6, 0, 0], sizes = [16, 16, 4], strides = [1, 1, 1]} : vector<22x16x4xf32> to vector<16x16x4xf32>
    %107 = vector.shape_cast %105 : vector<4xf32> to vector<1x1x4xf32>
    %108 = vector.broadcast %107 : vector<1x1x4xf32> to vector<16x16x4xf32>
    %109 = arith.mulf %106, %108 : vector<16x16x4xf32>
    %110 = arith.addf %103, %109 : vector<16x16x4xf32>
    %c0_32 = arith.constant 0 : index
    %c2 = arith.constant 2 : index
    %c0_33 = arith.constant 0 : index
    %111 = vector.load %arg13[%c0_32, %c2, %c0_33] : memref<22x22x4xf32, #tpu.memory_space<vmem>>, vector<22x16x4xf32>
    %c2_34 = arith.constant 2 : index
    %c0_35 = arith.constant 0 : index
    %112 = vector.load %arg2[%c2_34, %c0_35] : memref<49x4xf32, #tpu.memory_space<vmem>>, vector<1x4xf32>
    %113 = vector.shape_cast %112 : vector<1x4xf32> to vector<4xf32>
    %114 = vector.extract_strided_slice %111 {offsets = [0, 0, 0], sizes = [16, 16, 4], strides = [1, 1, 1]} : vector<22x16x4xf32> to vector<16x16x4xf32>
    %115 = vector.shape_cast %113 : vector<4xf32> to vector<1x1x4xf32>
    %116 = vector.broadcast %115 : vector<1x1x4xf32> to vector<16x16x4xf32>
    %117 = arith.mulf %114, %116 : vector<16x16x4xf32>
    %118 = arith.addf %110, %117 : vector<16x16x4xf32>
    %c9 = arith.constant 9 : index
    %c0_36 = arith.constant 0 : index
    %119 = vector.load %arg2[%c9, %c0_36] : memref<49x4xf32, #tpu.memory_space<vmem>>, vector<1x4xf32>
    %120 = vector.shape_cast %119 : vector<1x4xf32> to vector<4xf32>
    %121 = vector.extract_strided_slice %111 {offsets = [1, 0, 0], sizes = [16, 16, 4], strides = [1, 1, 1]} : vector<22x16x4xf32> to vector<16x16x4xf32>
    %122 = vector.shape_cast %120 : vector<4xf32> to vector<1x1x4xf32>
    %123 = vector.broadcast %122 : vector<1x1x4xf32> to vector<16x16x4xf32>
    %124 = arith.mulf %121, %123 : vector<16x16x4xf32>
    %125 = arith.addf %118, %124 : vector<16x16x4xf32>
    %c16 = arith.constant 16 : index
    %c0_37 = arith.constant 0 : index
    %126 = vector.load %arg2[%c16, %c0_37] : memref<49x4xf32, #tpu.memory_space<vmem>>, vector<1x4xf32>
    %127 = vector.shape_cast %126 : vector<1x4xf32> to vector<4xf32>
    %128 = vector.extract_strided_slice %111 {offsets = [2, 0, 0], sizes = [16, 16, 4], strides = [1, 1, 1]} : vector<22x16x4xf32> to vector<16x16x4xf32>
    %129 = vector.shape_cast %127 : vector<4xf32> to vector<1x1x4xf32>
    %130 = vector.broadcast %129 : vector<1x1x4xf32> to vector<16x16x4xf32>
    %131 = arith.mulf %128, %130 : vector<16x16x4xf32>
    %132 = arith.addf %125, %131 : vector<16x16x4xf32>
    %c23 = arith.constant 23 : index
    %c0_38 = arith.constant 0 : index
    %133 = vector.load %arg2[%c23, %c0_38] : memref<49x4xf32, #tpu.memory_space<vmem>>, vector<1x4xf32>
    %134 = vector.shape_cast %133 : vector<1x4xf32> to vector<4xf32>
    %135 = vector.extract_strided_slice %111 {offsets = [3, 0, 0], sizes = [16, 16, 4], strides = [1, 1, 1]} : vector<22x16x4xf32> to vector<16x16x4xf32>
    %136 = vector.shape_cast %134 : vector<4xf32> to vector<1x1x4xf32>
    %137 = vector.broadcast %136 : vector<1x1x4xf32> to vector<16x16x4xf32>
    %138 = arith.mulf %135, %137 : vector<16x16x4xf32>
    %139 = arith.addf %132, %138 : vector<16x16x4xf32>
    %c30 = arith.constant 30 : index
    %c0_39 = arith.constant 0 : index
    %140 = vector.load %arg2[%c30, %c0_39] : memref<49x4xf32, #tpu.memory_space<vmem>>, vector<1x4xf32>
    %141 = vector.shape_cast %140 : vector<1x4xf32> to vector<4xf32>
    %142 = vector.extract_strided_slice %111 {offsets = [4, 0, 0], sizes = [16, 16, 4], strides = [1, 1, 1]} : vector<22x16x4xf32> to vector<16x16x4xf32>
    %143 = vector.shape_cast %141 : vector<4xf32> to vector<1x1x4xf32>
    %144 = vector.broadcast %143 : vector<1x1x4xf32> to vector<16x16x4xf32>
    %145 = arith.mulf %142, %144 : vector<16x16x4xf32>
    %146 = arith.addf %139, %145 : vector<16x16x4xf32>
    %c37 = arith.constant 37 : index
    %c0_40 = arith.constant 0 : index
    %147 = vector.load %arg2[%c37, %c0_40] : memref<49x4xf32, #tpu.memory_space<vmem>>, vector<1x4xf32>
    %148 = vector.shape_cast %147 : vector<1x4xf32> to vector<4xf32>
    %149 = vector.extract_strided_slice %111 {offsets = [5, 0, 0], sizes = [16, 16, 4], strides = [1, 1, 1]} : vector<22x16x4xf32> to vector<16x16x4xf32>
    %150 = vector.shape_cast %148 : vector<4xf32> to vector<1x1x4xf32>
    %151 = vector.broadcast %150 : vector<1x1x4xf32> to vector<16x16x4xf32>
    %152 = arith.mulf %149, %151 : vector<16x16x4xf32>
    %153 = arith.addf %146, %152 : vector<16x16x4xf32>
    %c44 = arith.constant 44 : index
    %c0_41 = arith.constant 0 : index
    %154 = vector.load %arg2[%c44, %c0_41] : memref<49x4xf32, #tpu.memory_space<vmem>>, vector<1x4xf32>
    %155 = vector.shape_cast %154 : vector<1x4xf32> to vector<4xf32>
    %156 = vector.extract_strided_slice %111 {offsets = [6, 0, 0], sizes = [16, 16, 4], strides = [1, 1, 1]} : vector<22x16x4xf32> to vector<16x16x4xf32>
    %157 = vector.shape_cast %155 : vector<4xf32> to vector<1x1x4xf32>
    %158 = vector.broadcast %157 : vector<1x1x4xf32> to vector<16x16x4xf32>
    %159 = arith.mulf %156, %158 : vector<16x16x4xf32>
    %160 = arith.addf %153, %159 : vector<16x16x4xf32>
    %c0_42 = arith.constant 0 : index
    %c3_43 = arith.constant 3 : index
    %c0_44 = arith.constant 0 : index
    %161 = vector.load %arg13[%c0_42, %c3_43, %c0_44] : memref<22x22x4xf32, #tpu.memory_space<vmem>>, vector<22x16x4xf32>
    %c3_45 = arith.constant 3 : index
    %c0_46 = arith.constant 0 : index
    %162 = vector.load %arg2[%c3_45, %c0_46] : memref<49x4xf32, #tpu.memory_space<vmem>>, vector<1x4xf32>
    %163 = vector.shape_cast %162 : vector<1x4xf32> to vector<4xf32>
    %164 = vector.extract_strided_slice %161 {offsets = [0, 0, 0], sizes = [16, 16, 4], strides = [1, 1, 1]} : vector<22x16x4xf32> to vector<16x16x4xf32>
    %165 = vector.shape_cast %163 : vector<4xf32> to vector<1x1x4xf32>
    %166 = vector.broadcast %165 : vector<1x1x4xf32> to vector<16x16x4xf32>
    %167 = arith.mulf %164, %166 : vector<16x16x4xf32>
    %168 = arith.addf %160, %167 : vector<16x16x4xf32>
    %c10 = arith.constant 10 : index
    %c0_47 = arith.constant 0 : index
    %169 = vector.load %arg2[%c10, %c0_47] : memref<49x4xf32, #tpu.memory_space<vmem>>, vector<1x4xf32>
    %170 = vector.shape_cast %169 : vector<1x4xf32> to vector<4xf32>
    %171 = vector.extract_strided_slice %161 {offsets = [1, 0, 0], sizes = [16, 16, 4], strides = [1, 1, 1]} : vector<22x16x4xf32> to vector<16x16x4xf32>
    %172 = vector.shape_cast %170 : vector<4xf32> to vector<1x1x4xf32>
    %173 = vector.broadcast %172 : vector<1x1x4xf32> to vector<16x16x4xf32>
    %174 = arith.mulf %171, %173 : vector<16x16x4xf32>
    %175 = arith.addf %168, %174 : vector<16x16x4xf32>
    %c17 = arith.constant 17 : index
    %c0_48 = arith.constant 0 : index
    %176 = vector.load %arg2[%c17, %c0_48] : memref<49x4xf32, #tpu.memory_space<vmem>>, vector<1x4xf32>
    %177 = vector.shape_cast %176 : vector<1x4xf32> to vector<4xf32>
    %178 = vector.extract_strided_slice %161 {offsets = [2, 0, 0], sizes = [16, 16, 4], strides = [1, 1, 1]} : vector<22x16x4xf32> to vector<16x16x4xf32>
    %179 = vector.shape_cast %177 : vector<4xf32> to vector<1x1x4xf32>
    %180 = vector.broadcast %179 : vector<1x1x4xf32> to vector<16x16x4xf32>
    %181 = arith.mulf %178, %180 : vector<16x16x4xf32>
    %182 = arith.addf %175, %181 : vector<16x16x4xf32>
    %c24 = arith.constant 24 : index
    %c0_49 = arith.constant 0 : index
    %183 = vector.load %arg2[%c24, %c0_49] : memref<49x4xf32, #tpu.memory_space<vmem>>, vector<1x4xf32>
    %184 = vector.shape_cast %183 : vector<1x4xf32> to vector<4xf32>
    %185 = vector.extract_strided_slice %161 {offsets = [3, 0, 0], sizes = [16, 16, 4], strides = [1, 1, 1]} : vector<22x16x4xf32> to vector<16x16x4xf32>
    %186 = vector.shape_cast %184 : vector<4xf32> to vector<1x1x4xf32>
    %187 = vector.broadcast %186 : vector<1x1x4xf32> to vector<16x16x4xf32>
    %188 = arith.mulf %185, %187 : vector<16x16x4xf32>
    %189 = arith.addf %182, %188 : vector<16x16x4xf32>
    %c31 = arith.constant 31 : index
    %c0_50 = arith.constant 0 : index
    %190 = vector.load %arg2[%c31, %c0_50] : memref<49x4xf32, #tpu.memory_space<vmem>>, vector<1x4xf32>
    %191 = vector.shape_cast %190 : vector<1x4xf32> to vector<4xf32>
    %192 = vector.extract_strided_slice %161 {offsets = [4, 0, 0], sizes = [16, 16, 4], strides = [1, 1, 1]} : vector<22x16x4xf32> to vector<16x16x4xf32>
    %193 = vector.shape_cast %191 : vector<4xf32> to vector<1x1x4xf32>
    %194 = vector.broadcast %193 : vector<1x1x4xf32> to vector<16x16x4xf32>
    %195 = arith.mulf %192, %194 : vector<16x16x4xf32>
    %196 = arith.addf %189, %195 : vector<16x16x4xf32>
    %c38 = arith.constant 38 : index
    %c0_51 = arith.constant 0 : index
    %197 = vector.load %arg2[%c38, %c0_51] : memref<49x4xf32, #tpu.memory_space<vmem>>, vector<1x4xf32>
    %198 = vector.shape_cast %197 : vector<1x4xf32> to vector<4xf32>
    %199 = vector.extract_strided_slice %161 {offsets = [5, 0, 0], sizes = [16, 16, 4], strides = [1, 1, 1]} : vector<22x16x4xf32> to vector<16x16x4xf32>
    %200 = vector.shape_cast %198 : vector<4xf32> to vector<1x1x4xf32>
    %201 = vector.broadcast %200 : vector<1x1x4xf32> to vector<16x16x4xf32>
    %202 = arith.mulf %199, %201 : vector<16x16x4xf32>
    %203 = arith.addf %196, %202 : vector<16x16x4xf32>
    %c45 = arith.constant 45 : index
    %c0_52 = arith.constant 0 : index
    %204 = vector.load %arg2[%c45, %c0_52] : memref<49x4xf32, #tpu.memory_space<vmem>>, vector<1x4xf32>
    %205 = vector.shape_cast %204 : vector<1x4xf32> to vector<4xf32>
    %206 = vector.extract_strided_slice %161 {offsets = [6, 0, 0], sizes = [16, 16, 4], strides = [1, 1, 1]} : vector<22x16x4xf32> to vector<16x16x4xf32>
    %207 = vector.shape_cast %205 : vector<4xf32> to vector<1x1x4xf32>
    %208 = vector.broadcast %207 : vector<1x1x4xf32> to vector<16x16x4xf32>
    %209 = arith.mulf %206, %208 : vector<16x16x4xf32>
    %210 = arith.addf %203, %209 : vector<16x16x4xf32>
    %c0_53 = arith.constant 0 : index
    %c4 = arith.constant 4 : index
    %c0_54 = arith.constant 0 : index
    %211 = vector.load %arg13[%c0_53, %c4, %c0_54] : memref<22x22x4xf32, #tpu.memory_space<vmem>>, vector<22x16x4xf32>
    %c4_55 = arith.constant 4 : index
    %c0_56 = arith.constant 0 : index
    %212 = vector.load %arg2[%c4_55, %c0_56] : memref<49x4xf32, #tpu.memory_space<vmem>>, vector<1x4xf32>
    %213 = vector.shape_cast %212 : vector<1x4xf32> to vector<4xf32>
    %214 = vector.extract_strided_slice %211 {offsets = [0, 0, 0], sizes = [16, 16, 4], strides = [1, 1, 1]} : vector<22x16x4xf32> to vector<16x16x4xf32>
    %215 = vector.shape_cast %213 : vector<4xf32> to vector<1x1x4xf32>
    %216 = vector.broadcast %215 : vector<1x1x4xf32> to vector<16x16x4xf32>
    %217 = arith.mulf %214, %216 : vector<16x16x4xf32>
    %218 = arith.addf %210, %217 : vector<16x16x4xf32>
    %c11 = arith.constant 11 : index
    %c0_57 = arith.constant 0 : index
    %219 = vector.load %arg2[%c11, %c0_57] : memref<49x4xf32, #tpu.memory_space<vmem>>, vector<1x4xf32>
    %220 = vector.shape_cast %219 : vector<1x4xf32> to vector<4xf32>
    %221 = vector.extract_strided_slice %211 {offsets = [1, 0, 0], sizes = [16, 16, 4], strides = [1, 1, 1]} : vector<22x16x4xf32> to vector<16x16x4xf32>
    %222 = vector.shape_cast %220 : vector<4xf32> to vector<1x1x4xf32>
    %223 = vector.broadcast %222 : vector<1x1x4xf32> to vector<16x16x4xf32>
    %224 = arith.mulf %221, %223 : vector<16x16x4xf32>
    %225 = arith.addf %218, %224 : vector<16x16x4xf32>
    %c18 = arith.constant 18 : index
    %c0_58 = arith.constant 0 : index
    %226 = vector.load %arg2[%c18, %c0_58] : memref<49x4xf32, #tpu.memory_space<vmem>>, vector<1x4xf32>
    %227 = vector.shape_cast %226 : vector<1x4xf32> to vector<4xf32>
    %228 = vector.extract_strided_slice %211 {offsets = [2, 0, 0], sizes = [16, 16, 4], strides = [1, 1, 1]} : vector<22x16x4xf32> to vector<16x16x4xf32>
    %229 = vector.shape_cast %227 : vector<4xf32> to vector<1x1x4xf32>
    %230 = vector.broadcast %229 : vector<1x1x4xf32> to vector<16x16x4xf32>
    %231 = arith.mulf %228, %230 : vector<16x16x4xf32>
    %232 = arith.addf %225, %231 : vector<16x16x4xf32>
    %c25 = arith.constant 25 : index
    %c0_59 = arith.constant 0 : index
    %233 = vector.load %arg2[%c25, %c0_59] : memref<49x4xf32, #tpu.memory_space<vmem>>, vector<1x4xf32>
    %234 = vector.shape_cast %233 : vector<1x4xf32> to vector<4xf32>
    %235 = vector.extract_strided_slice %211 {offsets = [3, 0, 0], sizes = [16, 16, 4], strides = [1, 1, 1]} : vector<22x16x4xf32> to vector<16x16x4xf32>
    %236 = vector.shape_cast %234 : vector<4xf32> to vector<1x1x4xf32>
    %237 = vector.broadcast %236 : vector<1x1x4xf32> to vector<16x16x4xf32>
    %238 = arith.mulf %235, %237 : vector<16x16x4xf32>
    %239 = arith.addf %232, %238 : vector<16x16x4xf32>
    %c32 = arith.constant 32 : index
    %c0_60 = arith.constant 0 : index
    %240 = vector.load %arg2[%c32, %c0_60] : memref<49x4xf32, #tpu.memory_space<vmem>>, vector<1x4xf32>
    %241 = vector.shape_cast %240 : vector<1x4xf32> to vector<4xf32>
    %242 = vector.extract_strided_slice %211 {offsets = [4, 0, 0], sizes = [16, 16, 4], strides = [1, 1, 1]} : vector<22x16x4xf32> to vector<16x16x4xf32>
    %243 = vector.shape_cast %241 : vector<4xf32> to vector<1x1x4xf32>
    %244 = vector.broadcast %243 : vector<1x1x4xf32> to vector<16x16x4xf32>
    %245 = arith.mulf %242, %244 : vector<16x16x4xf32>
    %246 = arith.addf %239, %245 : vector<16x16x4xf32>
    %c39 = arith.constant 39 : index
    %c0_61 = arith.constant 0 : index
    %247 = vector.load %arg2[%c39, %c0_61] : memref<49x4xf32, #tpu.memory_space<vmem>>, vector<1x4xf32>
    %248 = vector.shape_cast %247 : vector<1x4xf32> to vector<4xf32>
    %249 = vector.extract_strided_slice %211 {offsets = [5, 0, 0], sizes = [16, 16, 4], strides = [1, 1, 1]} : vector<22x16x4xf32> to vector<16x16x4xf32>
    %250 = vector.shape_cast %248 : vector<4xf32> to vector<1x1x4xf32>
    %251 = vector.broadcast %250 : vector<1x1x4xf32> to vector<16x16x4xf32>
    %252 = arith.mulf %249, %251 : vector<16x16x4xf32>
    %253 = arith.addf %246, %252 : vector<16x16x4xf32>
    %c46 = arith.constant 46 : index
    %c0_62 = arith.constant 0 : index
    %254 = vector.load %arg2[%c46, %c0_62] : memref<49x4xf32, #tpu.memory_space<vmem>>, vector<1x4xf32>
    %255 = vector.shape_cast %254 : vector<1x4xf32> to vector<4xf32>
    %256 = vector.extract_strided_slice %211 {offsets = [6, 0, 0], sizes = [16, 16, 4], strides = [1, 1, 1]} : vector<22x16x4xf32> to vector<16x16x4xf32>
    %257 = vector.shape_cast %255 : vector<4xf32> to vector<1x1x4xf32>
    %258 = vector.broadcast %257 : vector<1x1x4xf32> to vector<16x16x4xf32>
    %259 = arith.mulf %256, %258 : vector<16x16x4xf32>
    %260 = arith.addf %253, %259 : vector<16x16x4xf32>
    %c0_63 = arith.constant 0 : index
    %c5 = arith.constant 5 : index
    %c0_64 = arith.constant 0 : index
    %261 = vector.load %arg13[%c0_63, %c5, %c0_64] : memref<22x22x4xf32, #tpu.memory_space<vmem>>, vector<22x16x4xf32>
    %c5_65 = arith.constant 5 : index
    %c0_66 = arith.constant 0 : index
    %262 = vector.load %arg2[%c5_65, %c0_66] : memref<49x4xf32, #tpu.memory_space<vmem>>, vector<1x4xf32>
    %263 = vector.shape_cast %262 : vector<1x4xf32> to vector<4xf32>
    %264 = vector.extract_strided_slice %261 {offsets = [0, 0, 0], sizes = [16, 16, 4], strides = [1, 1, 1]} : vector<22x16x4xf32> to vector<16x16x4xf32>
    %265 = vector.shape_cast %263 : vector<4xf32> to vector<1x1x4xf32>
    %266 = vector.broadcast %265 : vector<1x1x4xf32> to vector<16x16x4xf32>
    %267 = arith.mulf %264, %266 : vector<16x16x4xf32>
    %268 = arith.addf %260, %267 : vector<16x16x4xf32>
    %c12 = arith.constant 12 : index
    %c0_67 = arith.constant 0 : index
    %269 = vector.load %arg2[%c12, %c0_67] : memref<49x4xf32, #tpu.memory_space<vmem>>, vector<1x4xf32>
    %270 = vector.shape_cast %269 : vector<1x4xf32> to vector<4xf32>
    %271 = vector.extract_strided_slice %261 {offsets = [1, 0, 0], sizes = [16, 16, 4], strides = [1, 1, 1]} : vector<22x16x4xf32> to vector<16x16x4xf32>
    %272 = vector.shape_cast %270 : vector<4xf32> to vector<1x1x4xf32>
    %273 = vector.broadcast %272 : vector<1x1x4xf32> to vector<16x16x4xf32>
    %274 = arith.mulf %271, %273 : vector<16x16x4xf32>
    %275 = arith.addf %268, %274 : vector<16x16x4xf32>
    %c19 = arith.constant 19 : index
    %c0_68 = arith.constant 0 : index
    %276 = vector.load %arg2[%c19, %c0_68] : memref<49x4xf32, #tpu.memory_space<vmem>>, vector<1x4xf32>
    %277 = vector.shape_cast %276 : vector<1x4xf32> to vector<4xf32>
    %278 = vector.extract_strided_slice %261 {offsets = [2, 0, 0], sizes = [16, 16, 4], strides = [1, 1, 1]} : vector<22x16x4xf32> to vector<16x16x4xf32>
    %279 = vector.shape_cast %277 : vector<4xf32> to vector<1x1x4xf32>
    %280 = vector.broadcast %279 : vector<1x1x4xf32> to vector<16x16x4xf32>
    %281 = arith.mulf %278, %280 : vector<16x16x4xf32>
    %282 = arith.addf %275, %281 : vector<16x16x4xf32>
    %c26 = arith.constant 26 : index
    %c0_69 = arith.constant 0 : index
    %283 = vector.load %arg2[%c26, %c0_69] : memref<49x4xf32, #tpu.memory_space<vmem>>, vector<1x4xf32>
    %284 = vector.shape_cast %283 : vector<1x4xf32> to vector<4xf32>
    %285 = vector.extract_strided_slice %261 {offsets = [3, 0, 0], sizes = [16, 16, 4], strides = [1, 1, 1]} : vector<22x16x4xf32> to vector<16x16x4xf32>
    %286 = vector.shape_cast %284 : vector<4xf32> to vector<1x1x4xf32>
    %287 = vector.broadcast %286 : vector<1x1x4xf32> to vector<16x16x4xf32>
    %288 = arith.mulf %285, %287 : vector<16x16x4xf32>
    %289 = arith.addf %282, %288 : vector<16x16x4xf32>
    %c33 = arith.constant 33 : index
    %c0_70 = arith.constant 0 : index
    %290 = vector.load %arg2[%c33, %c0_70] : memref<49x4xf32, #tpu.memory_space<vmem>>, vector<1x4xf32>
    %291 = vector.shape_cast %290 : vector<1x4xf32> to vector<4xf32>
    %292 = vector.extract_strided_slice %261 {offsets = [4, 0, 0], sizes = [16, 16, 4], strides = [1, 1, 1]} : vector<22x16x4xf32> to vector<16x16x4xf32>
    %293 = vector.shape_cast %291 : vector<4xf32> to vector<1x1x4xf32>
    %294 = vector.broadcast %293 : vector<1x1x4xf32> to vector<16x16x4xf32>
    %295 = arith.mulf %292, %294 : vector<16x16x4xf32>
    %296 = arith.addf %289, %295 : vector<16x16x4xf32>
    %c40 = arith.constant 40 : index
    %c0_71 = arith.constant 0 : index
    %297 = vector.load %arg2[%c40, %c0_71] : memref<49x4xf32, #tpu.memory_space<vmem>>, vector<1x4xf32>
    %298 = vector.shape_cast %297 : vector<1x4xf32> to vector<4xf32>
    %299 = vector.extract_strided_slice %261 {offsets = [5, 0, 0], sizes = [16, 16, 4], strides = [1, 1, 1]} : vector<22x16x4xf32> to vector<16x16x4xf32>
    %300 = vector.shape_cast %298 : vector<4xf32> to vector<1x1x4xf32>
    %301 = vector.broadcast %300 : vector<1x1x4xf32> to vector<16x16x4xf32>
    %302 = arith.mulf %299, %301 : vector<16x16x4xf32>
    %303 = arith.addf %296, %302 : vector<16x16x4xf32>
    %c47 = arith.constant 47 : index
    %c0_72 = arith.constant 0 : index
    %304 = vector.load %arg2[%c47, %c0_72] : memref<49x4xf32, #tpu.memory_space<vmem>>, vector<1x4xf32>
    %305 = vector.shape_cast %304 : vector<1x4xf32> to vector<4xf32>
    %306 = vector.extract_strided_slice %261 {offsets = [6, 0, 0], sizes = [16, 16, 4], strides = [1, 1, 1]} : vector<22x16x4xf32> to vector<16x16x4xf32>
    %307 = vector.shape_cast %305 : vector<4xf32> to vector<1x1x4xf32>
    %308 = vector.broadcast %307 : vector<1x1x4xf32> to vector<16x16x4xf32>
    %309 = arith.mulf %306, %308 : vector<16x16x4xf32>
    %310 = arith.addf %303, %309 : vector<16x16x4xf32>
    %c0_73 = arith.constant 0 : index
    %c6 = arith.constant 6 : index
    %c0_74 = arith.constant 0 : index
    %311 = vector.load %arg13[%c0_73, %c6, %c0_74] : memref<22x22x4xf32, #tpu.memory_space<vmem>>, vector<22x16x4xf32>
    %c6_75 = arith.constant 6 : index
    %c0_76 = arith.constant 0 : index
    %312 = vector.load %arg2[%c6_75, %c0_76] : memref<49x4xf32, #tpu.memory_space<vmem>>, vector<1x4xf32>
    %313 = vector.shape_cast %312 : vector<1x4xf32> to vector<4xf32>
    %314 = vector.extract_strided_slice %311 {offsets = [0, 0, 0], sizes = [16, 16, 4], strides = [1, 1, 1]} : vector<22x16x4xf32> to vector<16x16x4xf32>
    %315 = vector.shape_cast %313 : vector<4xf32> to vector<1x1x4xf32>
    %316 = vector.broadcast %315 : vector<1x1x4xf32> to vector<16x16x4xf32>
    %317 = arith.mulf %314, %316 : vector<16x16x4xf32>
    %318 = arith.addf %310, %317 : vector<16x16x4xf32>
    %c13 = arith.constant 13 : index
    %c0_77 = arith.constant 0 : index
    %319 = vector.load %arg2[%c13, %c0_77] : memref<49x4xf32, #tpu.memory_space<vmem>>, vector<1x4xf32>
    %320 = vector.shape_cast %319 : vector<1x4xf32> to vector<4xf32>
    %321 = vector.extract_strided_slice %311 {offsets = [1, 0, 0], sizes = [16, 16, 4], strides = [1, 1, 1]} : vector<22x16x4xf32> to vector<16x16x4xf32>
    %322 = vector.shape_cast %320 : vector<4xf32> to vector<1x1x4xf32>
    %323 = vector.broadcast %322 : vector<1x1x4xf32> to vector<16x16x4xf32>
    %324 = arith.mulf %321, %323 : vector<16x16x4xf32>
    %325 = arith.addf %318, %324 : vector<16x16x4xf32>
    %c20 = arith.constant 20 : index
    %c0_78 = arith.constant 0 : index
    %326 = vector.load %arg2[%c20, %c0_78] : memref<49x4xf32, #tpu.memory_space<vmem>>, vector<1x4xf32>
    %327 = vector.shape_cast %326 : vector<1x4xf32> to vector<4xf32>
    %328 = vector.extract_strided_slice %311 {offsets = [2, 0, 0], sizes = [16, 16, 4], strides = [1, 1, 1]} : vector<22x16x4xf32> to vector<16x16x4xf32>
    %329 = vector.shape_cast %327 : vector<4xf32> to vector<1x1x4xf32>
    %330 = vector.broadcast %329 : vector<1x1x4xf32> to vector<16x16x4xf32>
    %331 = arith.mulf %328, %330 : vector<16x16x4xf32>
    %332 = arith.addf %325, %331 : vector<16x16x4xf32>
    %c27 = arith.constant 27 : index
    %c0_79 = arith.constant 0 : index
    %333 = vector.load %arg2[%c27, %c0_79] : memref<49x4xf32, #tpu.memory_space<vmem>>, vector<1x4xf32>
    %334 = vector.shape_cast %333 : vector<1x4xf32> to vector<4xf32>
    %335 = vector.extract_strided_slice %311 {offsets = [3, 0, 0], sizes = [16, 16, 4], strides = [1, 1, 1]} : vector<22x16x4xf32> to vector<16x16x4xf32>
    %336 = vector.shape_cast %334 : vector<4xf32> to vector<1x1x4xf32>
    %337 = vector.broadcast %336 : vector<1x1x4xf32> to vector<16x16x4xf32>
    %338 = arith.mulf %335, %337 : vector<16x16x4xf32>
    %339 = arith.addf %332, %338 : vector<16x16x4xf32>
    %c34 = arith.constant 34 : index
    %c0_80 = arith.constant 0 : index
    %340 = vector.load %arg2[%c34, %c0_80] : memref<49x4xf32, #tpu.memory_space<vmem>>, vector<1x4xf32>
    %341 = vector.shape_cast %340 : vector<1x4xf32> to vector<4xf32>
    %342 = vector.extract_strided_slice %311 {offsets = [4, 0, 0], sizes = [16, 16, 4], strides = [1, 1, 1]} : vector<22x16x4xf32> to vector<16x16x4xf32>
    %343 = vector.shape_cast %341 : vector<4xf32> to vector<1x1x4xf32>
    %344 = vector.broadcast %343 : vector<1x1x4xf32> to vector<16x16x4xf32>
    %345 = arith.mulf %342, %344 : vector<16x16x4xf32>
    %346 = arith.addf %339, %345 : vector<16x16x4xf32>
    %c41 = arith.constant 41 : index
    %c0_81 = arith.constant 0 : index
    %347 = vector.load %arg2[%c41, %c0_81] : memref<49x4xf32, #tpu.memory_space<vmem>>, vector<1x4xf32>
    %348 = vector.shape_cast %347 : vector<1x4xf32> to vector<4xf32>
    %349 = vector.extract_strided_slice %311 {offsets = [5, 0, 0], sizes = [16, 16, 4], strides = [1, 1, 1]} : vector<22x16x4xf32> to vector<16x16x4xf32>
    %350 = vector.shape_cast %348 : vector<4xf32> to vector<1x1x4xf32>
    %351 = vector.broadcast %350 : vector<1x1x4xf32> to vector<16x16x4xf32>
    %352 = arith.mulf %349, %351 : vector<16x16x4xf32>
    %353 = arith.addf %346, %352 : vector<16x16x4xf32>
    %c48 = arith.constant 48 : index
    %c0_82 = arith.constant 0 : index
    %354 = vector.load %arg2[%c48, %c0_82] : memref<49x4xf32, #tpu.memory_space<vmem>>, vector<1x4xf32>
    %355 = vector.shape_cast %354 : vector<1x4xf32> to vector<4xf32>
    %356 = vector.extract_strided_slice %311 {offsets = [6, 0, 0], sizes = [16, 16, 4], strides = [1, 1, 1]} : vector<22x16x4xf32> to vector<16x16x4xf32>
    %357 = vector.shape_cast %355 : vector<4xf32> to vector<1x1x4xf32>
    %358 = vector.broadcast %357 : vector<1x1x4xf32> to vector<16x16x4xf32>
    %359 = arith.mulf %356, %358 : vector<16x16x4xf32>
    %360 = arith.addf %353, %359 : vector<16x16x4xf32>
    %361 = vector.shape_cast %360 : vector<16x16x4xf32> to vector<256x4xf32>
    %362 = vector.shape_cast %1 : vector<16x16x4xf32> to vector<256x4xf32>
    %cst_83 = arith.constant dense<0.000000e+00> : vector<256xf32>
    %363 = vector.multi_reduction <add>, %361, %cst_83 [1] : vector<256x4xf32> to vector<256xf32>
    %364 = vector.shape_cast %363 : vector<256xf32> to vector<256x1xf32>
    %cst_84 = arith.constant 4.000000e+00 : f32
    %365 = vector.broadcast %cst_84 : f32 to vector<256x1xf32>
    %366 = arith.divf %364, %365 : vector<256x1xf32>
    %367 = vector.broadcast %366 : vector<256x1xf32> to vector<256x4xf32>
    %368 = arith.subf %361, %367 : vector<256x4xf32>
    %369 = arith.mulf %368, %368 : vector<256x4xf32>
    %cst_85 = arith.constant dense<0.000000e+00> : vector<256xf32>
    %370 = vector.multi_reduction <add>, %369, %cst_85 [1] : vector<256x4xf32> to vector<256xf32>
    %371 = vector.shape_cast %370 : vector<256xf32> to vector<256x1xf32>
    %cst_86 = arith.constant 4.000000e+00 : f32
    %372 = vector.broadcast %cst_86 : f32 to vector<256x1xf32>
    %373 = arith.divf %371, %372 : vector<256x1xf32>
    %374 = vector.broadcast %366 : vector<256x1xf32> to vector<256x4xf32>
    %375 = arith.subf %361, %374 : vector<256x4xf32>
    %cst_87 = arith.constant 9.99999997E-7 : f32
    %376 = vector.broadcast %cst_87 : f32 to vector<256x1xf32>
    %377 = arith.addf %373, %376 : vector<256x1xf32>
    %378 = math.rsqrt %377 : vector<256x1xf32>
    %379 = vector.broadcast %378 : vector<256x1xf32> to vector<256x4xf32>
    %380 = arith.mulf %375, %379 : vector<256x4xf32>
    %c0_88 = arith.constant 0 : index
    %c0_89 = arith.constant 0 : index
    %381 = vector.load %arg4[%c0_88, %c0_89] : memref<1x4xf32, #tpu.memory_space<vmem>>, vector<1x4xf32>
    %382 = vector.shape_cast %381 : vector<1x4xf32> to vector<4xf32>
    %383 = vector.shape_cast %382 : vector<4xf32> to vector<1x4xf32>
    %384 = vector.broadcast %383 : vector<1x4xf32> to vector<256x4xf32>
    %385 = arith.mulf %380, %384 : vector<256x4xf32>
    %c0_90 = arith.constant 0 : index
    %c0_91 = arith.constant 0 : index
    %386 = vector.load %arg5[%c0_90, %c0_91] : memref<1x4xf32, #tpu.memory_space<vmem>>, vector<1x4xf32>
    %387 = vector.shape_cast %386 : vector<1x4xf32> to vector<4xf32>
    %388 = vector.shape_cast %387 : vector<4xf32> to vector<1x4xf32>
    %389 = vector.broadcast %388 : vector<1x4xf32> to vector<256x4xf32>
    %390 = arith.addf %385, %389 : vector<256x4xf32>
    %c0_92 = arith.constant 0 : index
    %c0_93 = arith.constant 0 : index
    %391 = vector.load %arg6[%c0_92, %c0_93] : memref<4x16xf32, #tpu.memory_space<vmem>>, vector<4x16xf32>
    %cst_94 = arith.constant dense<0.000000e+00> : vector<256x16xf32>
    %392 = tpu.matmul %390, %391, %cst_94 {dimension_numbers = #tpu.dot_dimension_numbers<[1], [0], [0], [1], [0, 0, 1, 1], [], []>} : vector<256x4xf32>, vector<4x16xf32>, vector<256x16xf32> -> vector<256x16xf32>
    %c0_95 = arith.constant 0 : index
    %c0_96 = arith.constant 0 : index
    %393 = vector.load %arg7[%c0_95, %c0_96] : memref<1x16xf32, #tpu.memory_space<vmem>>, vector<1x16xf32>
    %394 = vector.shape_cast %393 : vector<1x16xf32> to vector<16xf32>
    %395 = vector.shape_cast %394 : vector<16xf32> to vector<1x16xf32>
    %396 = vector.broadcast %395 : vector<1x16xf32> to vector<256x16xf32>
    %397 = arith.addf %392, %396 : vector<256x16xf32>
    %cst_97 = arith.constant 5.000000e-01 : f32
    %398 = vector.broadcast %cst_97 : f32 to vector<256x16xf32>
    %399 = arith.mulf %398, %397 : vector<256x16xf32>
    %cst_98 = arith.constant 0.707106769 : f32
    %400 = vector.broadcast %cst_98 : f32 to vector<256x16xf32>
    %401 = arith.mulf %397, %400 : vector<256x16xf32>
    %402 = math.erf %401 : vector<256x16xf32>
    %cst_99 = arith.constant 1.000000e+00 : f32
    %403 = vector.broadcast %cst_99 : f32 to vector<256x16xf32>
    %404 = arith.addf %403, %402 : vector<256x16xf32>
    %405 = arith.mulf %399, %404 : vector<256x16xf32>
    %406 = arith.mulf %405, %405 : vector<256x16xf32>
    %cst_100 = arith.constant dense<0.000000e+00> : vector<16xf32>
    %407 = vector.multi_reduction <add>, %406, %cst_100 [0] : vector<256x16xf32> to vector<16xf32>
    %408 = vector.shape_cast %407 : vector<16xf32> to vector<1x16xf32>
    %409 = math.sqrt %408 : vector<1x16xf32>
    %cst_101 = arith.constant dense<0.000000e+00> : vector<1xf32>
    %410 = vector.multi_reduction <add>, %409, %cst_101 [1] : vector<1x16xf32> to vector<1xf32>
    %411 = vector.shape_cast %410 : vector<1xf32> to vector<1x1xf32>
    %cst_102 = arith.constant 1.600000e+01 : f32
    %412 = vector.broadcast %cst_102 : f32 to vector<1x1xf32>
    %413 = arith.divf %411, %412 : vector<1x1xf32>
    %cst_103 = arith.constant 9.99999997E-7 : f32
    %414 = vector.broadcast %cst_103 : f32 to vector<1x1xf32>
    %415 = arith.addf %413, %414 : vector<1x1xf32>
    %416 = vector.broadcast %415 : vector<1x1xf32> to vector<1x16xf32>
    %417 = arith.divf %409, %416 : vector<1x16xf32>
    %c0_104 = arith.constant 0 : index
    %c0_105 = arith.constant 0 : index
    %418 = vector.load %arg8[%c0_104, %c0_105] : memref<1x16xf32, #tpu.memory_space<vmem>>, vector<1x16xf32>
    %419 = vector.shape_cast %418 : vector<1x16xf32> to vector<16xf32>
    %420 = vector.broadcast %417 : vector<1x16xf32> to vector<256x16xf32>
    %421 = arith.mulf %405, %420 : vector<256x16xf32>
    %422 = vector.shape_cast %419 : vector<16xf32> to vector<1x16xf32>
    %423 = vector.broadcast %422 : vector<1x16xf32> to vector<256x16xf32>
    %424 = arith.mulf %423, %421 : vector<256x16xf32>
    %c0_106 = arith.constant 0 : index
    %c0_107 = arith.constant 0 : index
    %425 = vector.load %arg9[%c0_106, %c0_107] : memref<1x16xf32, #tpu.memory_space<vmem>>, vector<1x16xf32>
    %426 = vector.shape_cast %425 : vector<1x16xf32> to vector<16xf32>
    %427 = vector.shape_cast %426 : vector<16xf32> to vector<1x16xf32>
    %428 = vector.broadcast %427 : vector<1x16xf32> to vector<256x16xf32>
    %429 = arith.addf %424, %428 : vector<256x16xf32>
    %430 = arith.addf %429, %405 : vector<256x16xf32>
    %c0_108 = arith.constant 0 : index
    %c0_109 = arith.constant 0 : index
    %431 = vector.load %arg10[%c0_108, %c0_109] : memref<16x4xf32, #tpu.memory_space<vmem>>, vector<16x4xf32>
    %cst_110 = arith.constant dense<0.000000e+00> : vector<256x4xf32>
    %432 = tpu.matmul %430, %431, %cst_110 {dimension_numbers = #tpu.dot_dimension_numbers<[1], [0], [0], [1], [0, 0, 1, 1], [], []>} : vector<256x16xf32>, vector<16x4xf32>, vector<256x4xf32> -> vector<256x4xf32>
    %c0_111 = arith.constant 0 : index
    %c0_112 = arith.constant 0 : index
    %433 = vector.load %arg11[%c0_111, %c0_112] : memref<1x4xf32, #tpu.memory_space<vmem>>, vector<1x4xf32>
    %434 = vector.shape_cast %433 : vector<1x4xf32> to vector<4xf32>
    %435 = vector.shape_cast %434 : vector<4xf32> to vector<1x4xf32>
    %436 = vector.broadcast %435 : vector<1x4xf32> to vector<256x4xf32>
    %437 = arith.addf %432, %436 : vector<256x4xf32>
    %438 = arith.addf %362, %437 : vector<256x4xf32>
    %c0_113 = arith.constant 0 : index
    %c0_114 = arith.constant 0 : index
    %c0_115 = arith.constant 0 : index
    %439 = vector.load %arg12[%c0_113, %c0_114, %c0_115] : memref<1x256x4xf32, #tpu.memory_space<vmem>>, vector<1x256x4xf32>
    %440 = vector.shape_cast %439 : vector<1x256x4xf32> to vector<256x4xf32>
    %441 = vector.shape_cast %438 : vector<256x4xf32> to vector<1x256x4xf32>
    tpu.vector_store %arg12[%c0_113, %c0_114, %c0_115], %441 {strides = array<i32>} : memref<1x256x4xf32, #tpu.memory_space<vmem>>, vector<1x256x4xf32>,
    return
  }
  func.func @transform_0(%arg0: i32) -> (i32, i32, i32, i32) {
    %c0_i32 = arith.constant 0 : i32
    %c0_i32_0 = arith.constant 0 : i32
    %c0_i32_1 = arith.constant 0 : i32
    %c0_i32_2 = arith.constant 0 : i32
    return %arg0, %c0_i32, %c0_i32_0, %c0_i32_1 : i32, i32, i32, i32
  }
  func.func @transform_1(%arg0: i32) -> (i32, i32) {
    %c0_i32 = arith.constant 0 : i32
    %c0_i32_0 = arith.constant 0 : i32
    %c0_i32_1 = arith.constant 0 : i32
    return %c0_i32, %c0_i32_0 : i32, i32
  }
  func.func @transform_2(%arg0: i32) -> (i32, i32) {
    %c0_i32 = arith.constant 0 : i32
    %c0_i32_0 = arith.constant 0 : i32
    %c0_i32_1 = arith.constant 0 : i32
    return %c0_i32, %c0_i32_0 : i32, i32
  }
  func.func @transform_3(%arg0: i32) -> (i32, i32) {
    %c0_i32 = arith.constant 0 : i32
    %c0_i32_0 = arith.constant 0 : i32
    %c0_i32_1 = arith.constant 0 : i32
    return %c0_i32, %c0_i32_0 : i32, i32
  }
  func.func @transform_4(%arg0: i32) -> (i32, i32) {
    %c0_i32 = arith.constant 0 : i32
    %c0_i32_0 = arith.constant 0 : i32
    %c0_i32_1 = arith.constant 0 : i32
    return %c0_i32, %c0_i32_0 : i32, i32
  }
  func.func @transform_5(%arg0: i32) -> (i32, i32) {
    %c0_i32 = arith.constant 0 : i32
    %c0_i32_0 = arith.constant 0 : i32
    %c0_i32_1 = arith.constant 0 : i32
    return %c0_i32, %c0_i32_0 : i32, i32
  }
  func.func @transform_6(%arg0: i32) -> (i32, i32) {
    %c0_i32 = arith.constant 0 : i32
    %c0_i32_0 = arith.constant 0 : i32
    %c0_i32_1 = arith.constant 0 : i32
    return %c0_i32, %c0_i32_0 : i32, i32
  }
  func.func @transform_7(%arg0: i32) -> (i32, i32) {
    %c0_i32 = arith.constant 0 : i32
    %c0_i32_0 = arith.constant 0 : i32
    %c0_i32_1 = arith.constant 0 : i32
    return %c0_i32, %c0_i32_0 : i32, i32
  }
  func.func @transform_8(%arg0: i32) -> (i32, i32) {
    %c0_i32 = arith.constant 0 : i32
    %c0_i32_0 = arith.constant 0 : i32
    %c0_i32_1 = arith.constant 0 : i32
    return %c0_i32, %c0_i32_0 : i32, i32
  }
  func.func @transform_9(%arg0: i32) -> (i32, i32) {
    %c0_i32 = arith.constant 0 : i32
    %c0_i32_0 = arith.constant 0 : i32
    %c0_i32_1 = arith.constant 0 : i32
    return %c0_i32, %c0_i32_0 : i32, i32
  }
  func.func @transform_10(%arg0: i32) -> (i32, i32) {
    %c0_i32 = arith.constant 0 : i32
    %c0_i32_0 = arith.constant 0 : i32
    %c0_i32_1 = arith.constant 0 : i32
    return %c0_i32, %c0_i32_0 : i32, i32
  }
  func.func @transform_11(%arg0: i32) -> (i32, i32, i32) {
    %c0_i32 = arith.constant 0 : i32
    %c0_i32_0 = arith.constant 0 : i32
    %c0_i32_1 = arith.constant 0 : i32
    return %arg0, %c0_i32, %c0_i32_0 : i32, i32, i32
  }
}

</mosaic_0001>

<llo_original>
// kernel: tpu_custom_call.1
$region0: #{tpu_custom_call.1}
  #allocation0 [shape = 'u32[]', space=smem, size = 0x4, offset = 0x4, fixed_abs, tag = 'smem constant byte address 0x4 - core index']
  #allocation1 [shape = 'u32[144,128]{1,0:T(1,128)}', space=vmem, size = 0x12000, scoped, tag = 'internal scratch']
  #allocation2 [shape = 'f32[22,22,4]{2,1,0:T(8,128)}', space=vmem, size = 0x42000, scoped, tag = 'scratch operand']
  %s0 = inlined_call_operand.vmem [shape: f32[2,16,16,4], index: 0, kind: input, shape index: {}]
  %s1 = inlined_call_operand.vmem [shape: f32[49,4], index: 1, kind: input, shape index: {}]
  %s2 = inlined_call_operand.vmem [shape: f32[1,4], index: 2, kind: input, shape index: {}]
  %s3 = inlined_call_operand.vmem [shape: f32[1,4], index: 3, kind: input, shape index: {}]
  %s4 = inlined_call_operand.vmem [shape: f32[1,4], index: 4, kind: input, shape index: {}]
  %s5 = inlined_call_operand.vmem [shape: f32[4,16], index: 5, kind: input, shape index: {}]
  %s6 = inlined_call_operand.vmem [shape: f32[1,16], index: 6, kind: input, shape index: {}]
  %s7 = inlined_call_operand.vmem [shape: f32[1,16], index: 7, kind: input, shape index: {}]
  %s8 = inlined_call_operand.vmem [shape: f32[1,16], index: 8, kind: input, shape index: {}]
  %s9 = inlined_call_operand.vmem [shape: f32[16,4], index: 9, kind: input, shape index: {}]
  %s10 = inlined_call_operand.vmem [shape: f32[1,4], index: 10, kind: input, shape index: {}]
  %s11 = inlined_call_operand.vmem [shape: f32[2,256,4], index: 11, kind: output, shape index: {}]
  %s12 = sld [smem:[#allocation0]]
  $region77: #{tpu_custom_call.1} parent=0
    _
  %s14 = ssub.s32 1, %s12
  %s15 = scalar_select 0, %s14, %s12
  loop: start=0, step=1, limit=4
  $region2: #{tpu_custom_call.1} parent=0 // loop_pre_header
    _
  $region3: #{tpu_custom_call.1} parent=0 // loop_header
    %s17 = sphi 0, %s21
    %p18 = scmp.ge.s32.totalorder %s17, 4
    %s27 = sphi 0, %s29
    %s30 = sphi 0, %s27
    %s31 = sphi 0, %s30
    %s47 = sphi 0, %s31
    %s51 = sphi 0, %s51
    %s53 = sphi 0, %s51
    %s54 = sphi 0, %s53
    %s68 = sphi 0, %s54
    %s72 = sphi 0, %s72
    %s74 = sphi 0, %s72
    %s75 = sphi 0, %s74
    %s89 = sphi 0, %s75
    %s93 = sphi 0, %s93
    %s95 = sphi 0, %s93
    %s96 = sphi 0, %s95
    %s110 = sphi 0, %s96
    %s114 = sphi 0, %s114
    %s116 = sphi 0, %s114
    %s117 = sphi 0, %s116
    %s131 = sphi 0, %s117
    %s135 = sphi 0, %s135
    %s137 = sphi 0, %s135
    %s138 = sphi 0, %s137
    %s152 = sphi 0, %s138
    %s156 = sphi 0, %s156
    %s158 = sphi 0, %s156
    %s159 = sphi 0, %s158
    %s173 = sphi 0, %s159
    %s177 = sphi 0, %s177
    %s179 = sphi 0, %s177
    %s180 = sphi 0, %s179
    %s194 = sphi 0, %s180
    %s198 = sphi 0, %s198
    %s200 = sphi 0, %s198
    %s201 = sphi 0, %s200
    %s215 = sphi 0, %s201
    %s219 = sphi 0, %s219
    %s221 = sphi 0, %s219
    %s222 = sphi 0, %s221
    %s236 = sphi 0, %s222
    %s240 = sphi 0, %s240
    %s242 = sphi 0, %s240
    %s243 = sphi 0, %s242
    %s257 = sphi 0, %s243
    %s263 = sphi 0, %s265
    %s266 = sphi 0, %s263
    %s267 = sphi 0, %s266
    %s283 = sphi 0, %s267
  $region4: #{tpu_custom_call.1} parent=0 // loop_header_branch
    %20 = sbr.rel (%p18) target = $region8
  $region5: #{tpu_custom_call.1} parent=0 // loop_body
    %s22 = ssub.s32 %s17, 1
    %s23 = ssub.s32 %s17, 2
    %s24 = sadd.s32 %s17, 1
    %s25 = ssub.s32 %s17, %s24
    %p26 = scmp.eq.s32.totalorder %s25, 0
    %s28 = sadd.s32 %s27, 1
    %s29 = scalar_select %p26, %s27, %s28
    %p32 = pneg %p26
    %p33 = scmp.eq.s32.totalorder %s17, 1
    %p34 = por %p32, %p33
    %p35 = scmp.ne.s32.totalorder %s27, %s30
    %p36 = scmp.eq.s32.totalorder %s17, 0
    %p37 = por %p35, %p36
    %p38 = scmp.ne.s32.totalorder %s27, %s30
    %p39 = scmp.eq.s32.totalorder %s22, 1
    %p40 = por %p38, %p39
    %p41 = scmp.ne.s32.totalorder %s30, %s31
    %p42 = scmp.eq.s32.totalorder %s22, 0
    %p43 = por %p41, %p42
    %p44 = scmp.ne.s32.totalorder %s30, %s31
    %p45 = scmp.eq.s32.totalorder %s23, 1
    %p46 = por %p44, %p45
    %p48 = scmp.ne.s32.totalorder %s31, %s47
    %p49 = scmp.eq.s32.totalorder %s23, 0
    %p50 = por %p48, %p49
    %s52 = sadd.s32 %s51, 1
    %p55 = scmp.eq.s32.totalorder %s17, 1
    %p56 = scmp.ne.s32.totalorder %s51, %s53
    %p57 = scmp.eq.s32.totalorder %s17, 0
    %p58 = por %p56, %p57
    %p59 = scmp.ne.s32.totalorder %s51, %s53
    %p60 = scmp.eq.s32.totalorder %s22, 1
    %p61 = por %p59, %p60
    %p62 = scmp.ne.s32.totalorder %s53, %s54
    %p63 = scmp.eq.s32.totalorder %s22, 0
    %p64 = por %p62, %p63
    %p65 = scmp.ne.s32.totalorder %s53, %s54
    %p66 = scmp.eq.s32.totalorder %s23, 1
    %p67 = por %p65, %p66
    %p69 = scmp.ne.s32.totalorder %s54, %s68
    %p70 = scmp.eq.s32.totalorder %s23, 0
    %p71 = por %p69, %p70
    %s73 = sadd.s32 %s72, 1
    %p76 = scmp.eq.s32.totalorder %s17, 1
    %p77 = scmp.ne.s32.totalorder %s72, %s74
    %p78 = scmp.eq.s32.totalorder %s17, 0
    %p79 = por %p77, %p78
    %p80 = scmp.ne.s32.totalorder %s72, %s74
    %p81 = scmp.eq.s32.totalorder %s22, 1
    %p82 = por %p80, %p81
    %p83 = scmp.ne.s32.totalorder %s74, %s75
    %p84 = scmp.eq.s32.totalorder %s22, 0
    %p85 = por %p83, %p84
    %p86 = scmp.ne.s32.totalorder %s74, %s75
    %p87 = scmp.eq.s32.totalorder %s23, 1
    %p88 = por %p86, %p87
    %p90 = scmp.ne.s32.totalorder %s75, %s89
    %p91 = scmp.eq.s32.totalorder %s23, 0
    %p92 = por %p90, %p91
    %s94 = sadd.s32 %s93, 1
    %p97 = scmp.eq.s32.totalorder %s17, 1
    %p98 = scmp.ne.s32.totalorder %s93, %s95
    %p99 = scmp.eq.s32.totalorder %s17, 0
    %p100 = por %p98, %p99
    %p101 = scmp.ne.s32.totalorder %s93, %s95
    %p102 = scmp.eq.s32.totalorder %s22, 1
    %p103 = por %p101, %p102
    %p104 = scmp.ne.s32.totalorder %s95, %s96
    %p105 = scmp.eq.s32.totalorder %s22, 0
    %p106 = por %p104, %p105
    %p107 = scmp.ne.s32.totalorder %s95, %s96
    %p108 = scmp.eq.s32.totalorder %s23, 1
    %p109 = por %p107, %p108
    %p111 = scmp.ne.s32.totalorder %s96, %s110
    %p112 = scmp.eq.s32.totalorder %s23, 0
    %p113 = por %p111, %p112
    %s115 = sadd.s32 %s114, 1
    %p118 = scmp.eq.s32.totalorder %s17, 1
    %p119 = scmp.ne.s32.totalorder %s114, %s116
    %p120 = scmp.eq.s32.totalorder %s17, 0
    %p121 = por %p119, %p120
    %p122 = scmp.ne.s32.totalorder %s114, %s116
    %p123 = scmp.eq.s32.totalorder %s22, 1
    %p124 = por %p122, %p123
    %p125 = scmp.ne.s32.totalorder %s116, %s117
    %p126 = scmp.eq.s32.totalorder %s22, 0
    %p127 = por %p125, %p126
    %p128 = scmp.ne.s32.totalorder %s116, %s117
    %p129 = scmp.eq.s32.totalorder %s23, 1
    %p130 = por %p128, %p129
    %p132 = scmp.ne.s32.totalorder %s117, %s131
    %p133 = scmp.eq.s32.totalorder %s23, 0
    %p134 = por %p132, %p133
    %s136 = sadd.s32 %s135, 1
    %p139 = scmp.eq.s32.totalorder %s17, 1
    %p140 = scmp.ne.s32.totalorder %s135, %s137
    %p141 = scmp.eq.s32.totalorder %s17, 0
    %p142 = por %p140, %p141
    %p143 = scmp.ne.s32.totalorder %s135, %s137
    %p144 = scmp.eq.s32.totalorder %s22, 1
    %p145 = por %p143, %p144
    %p146 = scmp.ne.s32.totalorder %s137, %s138
    %p147 = scmp.eq.s32.totalorder %s22, 0
    %p148 = por %p146, %p147
    %p149 = scmp.ne.s32.totalorder %s137, %s138
    %p150 = scmp.eq.s32.totalorder %s23, 1
    %p151 = por %p149, %p150
    %p153 = scmp.ne.s32.totalorder %s138, %s152
    %p154 = scmp.eq.s32.totalorder %s23, 0
    %p155 = por %p153, %p154
    %s157 = sadd.s32 %s156, 1
    %p160 = scmp.eq.s32.totalorder %s17, 1
    %p161 = scmp.ne.s32.totalorder %s156, %s158
    %p162 = scmp.eq.s32.totalorder %s17, 0
    %p163 = por %p161, %p162
    %p164 = scmp.ne.s32.totalorder %s156, %s158
    %p165 = scmp.eq.s32.totalorder %s22, 1
    %p166 = por %p164, %p165
    %p167 = scmp.ne.s32.totalorder %s158, %s159
    %p168 = scmp.eq.s32.totalorder %s22, 0
    %p169 = por %p167, %p168
    %p170 = scmp.ne.s32.totalorder %s158, %s159
    %p171 = scmp.eq.s32.totalorder %s23, 1
    %p172 = por %p170, %p171
    %p174 = scmp.ne.s32.totalorder %s159, %s173
    %p175 = scmp.eq.s32.totalorder %s23, 0
    %p176 = por %p174, %p175
    %s178 = sadd.s32 %s177, 1
    %p181 = scmp.eq.s32.totalorder %s17, 1
    %p182 = scmp.ne.s32.totalorder %s177, %s179
    %p183 = scmp.eq.s32.totalorder %s17, 0
    %p184 = por %p182, %p183
    %p185 = scmp.ne.s32.totalorder %s177, %s179
    %p186 = scmp.eq.s32.totalorder %s22, 1
    %p187 = por %p185, %p186
    %p188 = scmp.ne.s32.totalorder %s179, %s180
    %p189 = scmp.eq.s32.totalorder %s22, 0
    %p190 = por %p188, %p189
    %p191 = scmp.ne.s32.totalorder %s179, %s180
    %p192 = scmp.eq.s32.totalorder %s23, 1
    %p193 = por %p191, %p192
    %p195 = scmp.ne.s32.totalorder %s180, %s194
    %p196 = scmp.eq.s32.totalorder %s23, 0
    %p197 = por %p195, %p196
    %s199 = sadd.s32 %s198, 1
    %p202 = scmp.eq.s32.totalorder %s17, 1
    %p203 = scmp.ne.s32.totalorder %s198, %s200
    %p204 = scmp.eq.s32.totalorder %s17, 0
    %p205 = por %p203, %p204
    %p206 = scmp.ne.s32.totalorder %s198, %s200
    %p207 = scmp.eq.s32.totalorder %s22, 1
    %p208 = por %p206, %p207
    %p209 = scmp.ne.s32.totalorder %s200, %s201
    %p210 = scmp.eq.s32.totalorder %s22, 0
    %p211 = por %p209, %p210
    %p212 = scmp.ne.s32.totalorder %s200, %s201
    %p213 = scmp.eq.s32.totalorder %s23, 1
    %p214 = por %p212, %p213
    %p216 = scmp.ne.s32.totalorder %s201, %s215
    %p217 = scmp.eq.s32.totalorder %s23, 0
    %p218 = por %p216, %p217
    %s220 = sadd.s32 %s219, 1
    %p223 = scmp.eq.s32.totalorder %s17, 1
    %p224 = scmp.ne.s32.totalorder %s219, %s221
    %p225 = scmp.eq.s32.totalorder %s17, 0
    %p226 = por %p224, %p225
    %p227 = scmp.ne.s32.totalorder %s219, %s221
    %p228 = scmp.eq.s32.totalorder %s22, 1
    %p229 = por %p227, %p228
    %p230 = scmp.ne.s32.totalorder %s221, %s222
    %p231 = scmp.eq.s32.totalorder %s22, 0
    %p232 = por %p230, %p231
    %p233 = scmp.ne.s32.totalorder %s221, %s222
    %p234 = scmp.eq.s32.totalorder %s23, 1
    %p235 = por %p233, %p234
    %p237 = scmp.ne.s32.totalorder %s222, %s236
    %p238 = scmp.eq.s32.totalorder %s23, 0
    %p239 = por %p237, %p238
    %s241 = sadd.s32 %s240, 1
    %p244 = scmp.eq.s32.totalorder %s17, 1
    %p245 = scmp.ne.s32.totalorder %s240, %s242
    %p246 = scmp.eq.s32.totalorder %s17, 0
    %p247 = por %p245, %p246
    %p248 = scmp.ne.s32.totalorder %s240, %s242
    %p249 = scmp.eq.s32.totalorder %s22, 1
    %p250 = por %p248, %p249
    %p251 = scmp.ne.s32.totalorder %s242, %s243
    %p252 = scmp.eq.s32.totalorder %s22, 0
    %p253 = por %p251, %p252
    %p254 = scmp.ne.s32.totalorder %s242, %s243
    %p255 = scmp.eq.s32.totalorder %s23, 1
    %p256 = por %p254, %p255
    %p258 = scmp.ne.s32.totalorder %s243, %s257
    %p259 = scmp.eq.s32.totalorder %s23, 0
    %p260 = por %p258, %p259
    %s261 = ssub.s32 %s17, %s24
    %p262 = scmp.eq.s32.totalorder %s261, 0
    %s264 = sadd.s32 %s263, 1
    %s265 = scalar_select %p262, %s263, %s264
    %p268 = pneg %p262
    %p269 = scmp.eq.s32.totalorder %s17, 1
    %p270 = por %p268, %p269
    %p271 = scmp.ne.s32.totalorder %s263, %s266
    %p272 = scmp.eq.s32.totalorder %s17, 0
    %p273 = por %p271, %p272
    %p274 = scmp.ne.s32.totalorder %s263, %s266
    %p275 = scmp.eq.s32.totalorder %s22, 1
    %p276 = por %p274, %p275
    %p277 = scmp.ne.s32.totalorder %s266, %s267
    %p278 = scmp.eq.s32.totalorder %s22, 0
    %p279 = por %p277, %p278
    %p280 = scmp.ne.s32.totalorder %s266, %s267
    %p281 = scmp.eq.s32.totalorder %s23, 1
    %p282 = por %p280, %p281
    %p284 = scmp.ne.s32.totalorder %s267, %s283
    %p285 = scmp.eq.s32.totalorder %s23, 0
    %p286 = por %p284, %p285
    %p287 = scmp.le.s32.totalorder 1, %s17
    %p288 = scmp.lt.s32.totalorder %s17, 3
    %p289 = pnand %p287, %p288
    %p290 = pneg %p289
    // Predicated region
    $region9: #{tpu_custom_call.1} parent=5 // pred_check
      _
    $region10: #{tpu_custom_call.1} parent=5 // pred_check_branch
      %292 = sbr.rel (%p289) target = $region12
    $region11: #{tpu_custom_call.1} parent=5 // pred_region
      %s293 = ssub.s32 %s17, 1
      // Predicated region
      $region13: #{tpu_custom_call.1} parent=11 // pred_check
        %p294 = pneg %p64
      $region14: #{tpu_custom_call.1} parent=11 // pred_check_branch
        %296 = sbr.rel (%p294) target = $region16
      $region15: #{tpu_custom_call.1} parent=11 // pred_region
        _
      $region16: #{tpu_custom_call.1} parent=11 // pred_fallthru
        _
      // Predicated region
      $region17: #{tpu_custom_call.1} parent=11 // pred_check
        %p297 = pneg %p85
      $region18: #{tpu_custom_call.1} parent=11 // pred_check_branch
        %299 = sbr.rel (%p297) target = $region20
      $region19: #{tpu_custom_call.1} parent=11 // pred_region
        _
      $region20: #{tpu_custom_call.1} parent=11 // pred_fallthru
        _
      // Predicated region
      $region21: #{tpu_custom_call.1} parent=11 // pred_check
        %p300 = pneg %p106
      $region22: #{tpu_custom_call.1} parent=11 // pred_check_branch
        %302 = sbr.rel (%p300) target = $region24
      $region23: #{tpu_custom_call.1} parent=11 // pred_region
        _
      $region24: #{tpu_custom_call.1} parent=11 // pred_fallthru
        _
      // Predicated region
      $region25: #{tpu_custom_call.1} parent=11 // pred_check
        %p303 = pneg %p127
      $region26: #{tpu_custom_call.1} parent=11 // pred_check_branch
        %305 = sbr.rel (%p303) target = $region28
      $region27: #{tpu_custom_call.1} parent=11 // pred_region
        _
      $region28: #{tpu_custom_call.1} parent=11 // pred_fallthru
        _
      // Predicated region
      $region29: #{tpu_custom_call.1} parent=11 // pred_check
        %p306 = pneg %p148
      $region30: #{tpu_custom_call.1} parent=11 // pred_check_branch
        %308 = sbr.rel (%p306) target = $region32
      $region31: #{tpu_custom_call.1} parent=11 // pred_region
        _
      $region32: #{tpu_custom_call.1} parent=11 // pred_fallthru
        _
      // Predicated region
      $region33: #{tpu_custom_call.1} parent=11 // pred_check
        %p309 = pneg %p169
      $region34: #{tpu_custom_call.1} parent=11 // pred_check_branch
        %311 = sbr.rel (%p309) target = $region36
      $region35: #{tpu_custom_call.1} parent=11 // pred_region
        _
      $region36: #{tpu_custom_call.1} parent=11 // pred_fallthru
        _
      // Predicated region
      $region37: #{tpu_custom_call.1} parent=11 // pred_check
        %p312 = pneg %p190
      $region38: #{tpu_custom_call.1} parent=11 // pred_check_branch
        %314 = sbr.rel (%p312) target = $region40
      $region39: #{tpu_custom_call.1} parent=11 // pred_region
        _
      $region40: #{tpu_custom_call.1} parent=11 // pred_fallthru
        _
      // Predicated region
      $region41: #{tpu_custom_call.1} parent=11 // pred_check
        %p315 = pneg %p211
      $region42: #{tpu_custom_call.1} parent=11 // pred_check_branch
        %317 = sbr.rel (%p315) target = $region44
      $region43: #{tpu_custom_call.1} parent=11 // pred_region
        _
      $region44: #{tpu_custom_call.1} parent=11 // pred_fallthru
        _
      // Predicated region
      $region45: #{tpu_custom_call.1} parent=11 // pred_check
        %p318 = pneg %p232
      $region46: #{tpu_custom_call.1} parent=11 // pred_check_branch
        %320 = sbr.rel (%p318) target = $region48
      $region47: #{tpu_custom_call.1} parent=11 // pred_region
        _
      $region48: #{tpu_custom_call.1} parent=11 // pred_fallthru
        _
      // Predicated region
      $region49: #{tpu_custom_call.1} parent=11 // pred_check
        %p321 = pneg %p253
      $region50: #{tpu_custom_call.1} parent=11 // pred_check_branch
        %323 = sbr.rel (%p321) target = $region52
      $region51: #{tpu_custom_call.1} parent=11 // pred_region
        _
      $region52: #{tpu_custom_call.1} parent=11 // pred_fallthru
        _
    $region12: #{tpu_custom_call.1} parent=5 // pred_fallthru
      _
    %p324 = scmp.lt.s32.totalorder %s17, 2
    // Predicated region
    $region53: #{tpu_custom_call.1} parent=5 // pred_check
      %p325 = pneg %p324
    $region54: #{tpu_custom_call.1} parent=5 // pred_check_branch
      %327 = sbr.rel (%p325) target = $region56
    $region55: #{tpu_custom_call.1} parent=5 // pred_region
      // Predicated region
      $region57: #{tpu_custom_call.1} parent=55 // pred_check
        %p328 = pneg %p37
      $region58: #{tpu_custom_call.1} parent=55 // pred_check_branch
        %330 = sbr.rel (%p328) target = $region60
      $region59: #{tpu_custom_call.1} parent=55 // pred_region
        %p331 = scmp.lt.s32.totalorder %s17, 1
        %s332 = scalar_select %p331, %s17, 1
        %s333 = smul.addr %s332, 32
        %s334 = smul.addr %s333, 8
        %s335 = scalar_lea.vmem %s0, %s334
      $region60: #{tpu_custom_call.1} parent=55 // pred_fallthru
        _
    $region56: #{tpu_custom_call.1} parent=5 // pred_fallthru
      _
    %p336 = scmp.le.s32.totalorder 1, %s17
    %p337 = scmp.lt.s32.totalorder %s17, 3
    %p338 = pnand %p336, %p337
    %p339 = pneg %p338
    // Predicated region
    $region61: #{tpu_custom_call.1} parent=5 // pred_check
      _
    $region62: #{tpu_custom_call.1} parent=5 // pred_check_branch
      %341 = sbr.rel (%p338) target = $region64
    $region63: #{tpu_custom_call.1} parent=5 // pred_region
      %s342 = ssub.s32 %s17, 1
      %p343 = scmp.lt.s32.totalorder %s22, 1
      %s344 = scalar_select %p343, %s22, 1
      %s345 = smul.addr %s344, 32
      %s346 = smul.addr %s345, 8
      %s347 = scalar_lea.vmem %s0, %s346
      %p348 = pneg %p43
      %p349 = pneg %p40
      %p350 = pneg %p64
      %p351 = pneg %p61
      %p352 = pneg %p85
      %p353 = pneg %p82
      %p354 = pneg %p106
      %p355 = pneg %p103
      %p356 = pneg %p127
      %p357 = pneg %p124
      %p358 = pneg %p148
      %p359 = pneg %p145
      %p360 = pneg %p169
      %p361 = pneg %p166
      %p362 = pneg %p190
      %p363 = pneg %p187
      %p364 = pneg %p211
      %p365 = pneg %p208
      %p366 = pneg %p232
      %p367 = pneg %p229
      %p368 = pneg %p253
      %p369 = pneg %p250
      %p370 = pneg %p279
      %p371 = pneg %p276
      %p372 = scmp.lt.s32.totalorder %s22, 1
      %s373 = scalar_select %p372, %s22, 1
      %s374 = smul.addr %s373, 32
      %s375 = smul.addr %s374, 8
      %s376 = scalar_lea.vmem %s11, %s375
      %p377 = scmp.lt.s32.totalorder %s22, 1
      %s378 = scalar_select %p377, %s22, 1
      %s379 = smul.addr %s378, 32
      %s380 = smul.addr %s379, 8
      %s381 = scalar_lea.vmem %s0, %s380
      %p382 = scmp.lt.s32.totalorder %s22, 1
      %s383 = scalar_select %p382, %s22, 1
      %s384 = smul.addr %s383, 32
      %s385 = smul.addr %s384, 8
      %s386 = scalar_lea.vmem %s11, %s385
      %v387 = vld [vmem:[%s381] sm:$0xff]
      %v388 = vld [vmem:[%s381 + $0x8] sm:$0xff]
      %v389 = vld [vmem:[%s381 + $0x10] sm:$0xff]
      %v390 = vld [vmem:[%s381 + $0x18] sm:$0xff]
      %v391 = vld [vmem:[%s381 + $0x20] sm:$0xff]
      %v392 = vld [vmem:[%s381 + $0x28] sm:$0xff]
      %v393 = vld [vmem:[%s381 + $0x30] sm:$0xff]
      %v394 = vld [vmem:[%s381 + $0x38] sm:$0xff]
      %v395 = vld [vmem:[%s381 + $0x40] sm:$0xff]
      %v396 = vld [vmem:[%s381 + $0x48] sm:$0xff]
      %v397 = vld [vmem:[%s381 + $0x50] sm:$0xff]
      %v398 = vld [vmem:[%s381 + $0x58] sm:$0xff]
      %v399 = vld [vmem:[%s381 + $0x60] sm:$0xff]
      %v400 = vld [vmem:[%s381 + $0x68] sm:$0xff]
      %v401 = vld [vmem:[%s381 + $0x70] sm:$0xff]
      %v402 = vld [vmem:[%s381 + $0x78] sm:$0xff]
      %v403 = vld [vmem:[%s381 + $0x80] sm:$0xff]
      %v404 = vld [vmem:[%s381 + $0x88] sm:$0xff]
      %v405 = vld [vmem:[%s381 + $0x90] sm:$0xff]
      %v406 = vld [vmem:[%s381 + $0x98] sm:$0xff]
      %v407 = vld [vmem:[%s381 + $0xa0] sm:$0xff]
      %v408 = vld [vmem:[%s381 + $0xa8] sm:$0xff]
      %v409 = vld [vmem:[%s381 + $0xb0] sm:$0xff]
      %v410 = vld [vmem:[%s381 + $0xb8] sm:$0xff]
      %v411 = vld [vmem:[%s381 + $0xc0] sm:$0xff]
      %v412 = vld [vmem:[%s381 + $0xc8] sm:$0xff]
      %v413 = vld [vmem:[%s381 + $0xd0] sm:$0xff]
      %v414 = vld [vmem:[%s381 + $0xd8] sm:$0xff]
      %v415 = vld [vmem:[%s381 + $0xe0] sm:$0xff]
      %v416 = vld [vmem:[%s381 + $0xe8] sm:$0xff]
      %v417 = vld [vmem:[%s381 + $0xf0] sm:$0xff]
      %v418 = vld [vmem:[%s381 + $0xf8] sm:$0xff]
      %vm419 = vcmask 31744
      %420 = vst.msk [vmem:[#allocation2] sm:$0xff] %vm419, 0.0
      %421 = vst.msk [vmem:[#allocation2 + $0x8] sm:$0xff] %vm419, 0.0
      %vm422 = vcmask 29696
      %423 = vst.msk [vmem:[#allocation2 + $0x10] sm:$0x3f] %vm422, 0.0
      %424 = vst.msk [vmem:[#allocation2 + $0x18] sm:$0xff] %vm419, 0.0
      %425 = vst.msk [vmem:[#allocation2 + $0x20] sm:$0xff] %vm419, 0.0
      %426 = vst.msk [vmem:[#allocation2 + $0x28] sm:$0x3f] %vm422, 0.0
      %427 = vst.msk [vmem:[#allocation2 + $0x30] sm:$0xff] %vm419, 0.0
      %428 = vst.msk [vmem:[#allocation2 + $0x38] sm:$0xff] %vm419, 0.0
      %429 = vst.msk [vmem:[#allocation2 + $0x40] sm:$0x3f] %vm422, 0.0
      %430 = vst.msk [vmem:[#allocation2 + $0x48] sm:$0xff] %vm419, 0.0
      %431 = vst.msk [vmem:[#allocation2 + $0x50] sm:$0xff] %vm419, 0.0
      %432 = vst.msk [vmem:[#allocation2 + $0x58] sm:$0x3f] %vm422, 0.0
      %433 = vst.msk [vmem:[#allocation2 + $0x60] sm:$0xff] %vm419, 0.0
      %434 = vst.msk [vmem:[#allocation2 + $0x68] sm:$0xff] %vm419, 0.0
      %435 = vst.msk [vmem:[#allocation2 + $0x70] sm:$0x3f] %vm422, 0.0
      %436 = vst.msk [vmem:[#allocation2 + $0x78] sm:$0xff] %vm419, 0.0
      %437 = vst.msk [vmem:[#allocation2 + $0x80] sm:$0xff] %vm419, 0.0
      %438 = vst.msk [vmem:[#allocation2 + $0x88] sm:$0x3f] %vm422, 0.0
      %439 = vst.msk [vmem:[#allocation2 + $0x90] sm:$0xff] %vm419, 0.0
      %440 = vst.msk [vmem:[#allocation2 + $0x98] sm:$0xff] %vm419, 0.0
      %441 = vst.msk [vmem:[#allocation2 + $0xa0] sm:$0x3f] %vm422, 0.0
      %442 = vst.msk [vmem:[#allocation2 + $0xa8] sm:$0xff] %vm419, 0.0
      %443 = vst.msk [vmem:[#allocation2 + $0xb0] sm:$0xff] %vm419, 0.0
      %444 = vst.msk [vmem:[#allocation2 + $0xb8] sm:$0x3f] %vm422, 0.0
      %445 = vst.msk [vmem:[#allocation2 + $0xc0] sm:$0xff] %vm419, 0.0
      %446 = vst.msk [vmem:[#allocation2 + $0xc8] sm:$0xff] %vm419, 0.0
      %447 = vst.msk [vmem:[#allocation2 + $0xd0] sm:$0x3f] %vm422, 0.0
      %448 = vst.msk [vmem:[#allocation2 + $0xd8] sm:$0xff] %vm419, 0.0
      %449 = vst.msk [vmem:[#allocation2 + $0xe0] sm:$0xff] %vm419, 0.0
      %450 = vst.msk [vmem:[#allocation2 + $0xe8] sm:$0x3f] %vm422, 0.0
      %451 = vst.msk [vmem:[#allocation2 + $0xf0] sm:$0xff] %vm419, 0.0
      %452 = vst.msk [vmem:[#allocation2 + $0xf8] sm:$0xff] %vm419, 0.0
      %453 = vst.msk [vmem:[#allocation2 + $0x100] sm:$0x3f] %vm422, 0.0
      %454 = vst.msk [vmem:[#allocation2 + $0x108] sm:$0xff] %vm419, 0.0
      %455 = vst.msk [vmem:[#allocation2 + $0x110] sm:$0xff] %vm419, 0.0
      %456 = vst.msk [vmem:[#allocation2 + $0x118] sm:$0x3f] %vm422, 0.0
      %457 = vst.msk [vmem:[#allocation2 + $0x120] sm:$0xff] %vm419, 0.0
      %458 = vst.msk [vmem:[#allocation2 + $0x128] sm:$0xff] %vm419, 0.0
      %459 = vst.msk [vmem:[#allocation2 + $0x130] sm:$0x3f] %vm422, 0.0
      %460 = vst.msk [vmem:[#allocation2 + $0x138] sm:$0xff] %vm419, 0.0
      %461 = vst.msk [vmem:[#allocation2 + $0x140] sm:$0xff] %vm419, 0.0
      %462 = vst.msk [vmem:[#allocation2 + $0x148] sm:$0x3f] %vm422, 0.0
      %463 = vst.msk [vmem:[#allocation2 + $0x150] sm:$0xff] %vm419, 0.0
      %464 = vst.msk [vmem:[#allocation2 + $0x158] sm:$0xff] %vm419, 0.0
      %465 = vst.msk [vmem:[#allocation2 + $0x160] sm:$0x3f] %vm422, 0.0
      %466 = vst.msk [vmem:[#allocation2 + $0x168] sm:$0xff] %vm419, 0.0
      %467 = vst.msk [vmem:[#allocation2 + $0x170] sm:$0xff] %vm419, 0.0
      %468 = vst.msk [vmem:[#allocation2 + $0x178] sm:$0x3f] %vm422, 0.0
      %469 = vst.msk [vmem:[#allocation2 + $0x180] sm:$0xff] %vm419, 0.0
      %470 = vst.msk [vmem:[#allocation2 + $0x188] sm:$0xff] %vm419, 0.0
      %471 = vst.msk [vmem:[#allocation2 + $0x190] sm:$0x3f] %vm422, 0.0
      %472 = vst.msk [vmem:[#allocation2 + $0x198] sm:$0xff] %vm419, 0.0
      %473 = vst.msk [vmem:[#allocation2 + $0x1a0] sm:$0xff] %vm419, 0.0
      %474 = vst.msk [vmem:[#allocation2 + $0x1a8] sm:$0x3f] %vm422, 0.0
      %475 = vst.msk [vmem:[#allocation2 + $0x1b0] sm:$0xff] %vm419, 0.0
      %476 = vst.msk [vmem:[#allocation2 + $0x1b8] sm:$0xff] %vm419, 0.0
      %477 = vst.msk [vmem:[#allocation2 + $0x1c0] sm:$0x3f] %vm422, 0.0
      %478 = vst.msk [vmem:[#allocation2 + $0x1c8] sm:$0xff] %vm419, 0.0
      %479 = vst.msk [vmem:[#allocation2 + $0x1d0] sm:$0xff] %vm419, 0.0
      %480 = vst.msk [vmem:[#allocation2 + $0x1d8] sm:$0x3f] %vm422, 0.0
      %481 = vst.msk [vmem:[#allocation2 + $0x1e0] sm:$0xff] %vm419, 0.0
      %482 = vst.msk [vmem:[#allocation2 + $0x1e8] sm:$0xff] %vm419, 0.0
      %483 = vst.msk [vmem:[#allocation2 + $0x1f0] sm:$0x3f] %vm422, 0.0
      %484 = vst.msk [vmem:[#allocation2 + $0x1f8] sm:$0xff] %vm419, 0.0
      %485 = vst.msk [vmem:[#allocation2 + $0x200] sm:$0xff] %vm419, 0.0
      %486 = vst.msk [vmem:[#allocation2 + $0x208] sm:$0x3f] %vm422, 0.0
      %s487 = scalar_lea.vmem [#allocation2], 72
      %488 = vst.msk [vmem:[%s487 + $0x3] sm:$0xff] %vm419, %v387
      %489 = vst.msk [vmem:[%s487 + $0xb] sm:$0xff] %vm419, %v388
      %490 = vst.msk [vmem:[%s487 + $0x1b] sm:$0xff] %vm419, %v389
      %491 = vst.msk [vmem:[%s487 + $0x23] sm:$0xff] %vm419, %v390
      %492 = vst.msk [vmem:[%s487 + $0x33] sm:$0xff] %vm419, %v391
      %493 = vst.msk [vmem:[%s487 + $0x3b] sm:$0xff] %vm419, %v392
      %494 = vst.msk [vmem:[%s487 + $0x4b] sm:$0xff] %vm419, %v393
      %495 = vst.msk [vmem:[%s487 + $0x53] sm:$0xff] %vm419, %v394
      %496 = vst.msk [vmem:[%s487 + $0x63] sm:$0xff] %vm419, %v395
      %497 = vst.msk [vmem:[%s487 + $0x6b] sm:$0xff] %vm419, %v396
      %498 = vst.msk [vmem:[%s487 + $0x7b] sm:$0xff] %vm419, %v397
      %499 = vst.msk [vmem:[%s487 + $0x83] sm:$0xff] %vm419, %v398
      %500 = vst.msk [vmem:[%s487 + $0x93] sm:$0xff] %vm419, %v399
      %501 = vst.msk [vmem:[%s487 + $0x9b] sm:$0xff] %vm419, %v400
      %502 = vst.msk [vmem:[%s487 + $0xab] sm:$0xff] %vm419, %v401
      %503 = vst.msk [vmem:[%s487 + $0xb3] sm:$0xff] %vm419, %v402
      %504 = vst.msk [vmem:[%s487 + $0xc3] sm:$0xff] %vm419, %v403
      %505 = vst.msk [vmem:[%s487 + $0xcb] sm:$0xff] %vm419, %v404
      %506 = vst.msk [vmem:[%s487 + $0xdb] sm:$0xff] %vm419, %v405
      %507 = vst.msk [vmem:[%s487 + $0xe3] sm:$0xff] %vm419, %v406
      %508 = vst.msk [vmem:[%s487 + $0xf3] sm:$0xff] %vm419, %v407
      %509 = vst.msk [vmem:[%s487 + $0xfb] sm:$0xff] %vm419, %v408
      %510 = vst.msk [vmem:[%s487 + $0x10b] sm:$0xff] %vm419, %v409
      %511 = vst.msk [vmem:[%s487 + $0x113] sm:$0xff] %vm419, %v410
      %512 = vst.msk [vmem:[%s487 + $0x123] sm:$0xff] %vm419, %v411
      %513 = vst.msk [vmem:[%s487 + $0x12b] sm:$0xff] %vm419, %v412
      %514 = vst.msk [vmem:[%s487 + $0x13b] sm:$0xff] %vm419, %v413
      %515 = vst.msk [vmem:[%s487 + $0x143] sm:$0xff] %vm419, %v414
      %516 = vst.msk [vmem:[%s487 + $0x153] sm:$0xff] %vm419, %v415
      %517 = vst.msk [vmem:[%s487 + $0x15b] sm:$0xff] %vm419, %v416
      %518 = vst.msk [vmem:[%s487 + $0x16b] sm:$0xff] %vm419, %v417
      %519 = vst.msk [vmem:[%s487 + $0x173] sm:$0xff] %vm419, %v418
      %v520 = vld [vmem:[%s2] sm:$0x1]
      %v522 = vlaneseq
      %v523 = vshrl.u32 %v522, 7
      %v524 = vsub.s32 0, %v523
      %v525 = vrot.slane %v520, %v524
      %v527 = vadd.f32 %v525, 0.0
      %v528 = vld [vmem:[#allocation2] sm:$0xff]
      %v529 = vld [vmem:[#allocation2 + $0x8] sm:$0xff]
      %v530 = vld [vmem:[#allocation2 + $0x18] sm:$0xff]
      %v531 = vld [vmem:[#allocation2 + $0x20] sm:$0xff]
      %v532 = vld [vmem:[#allocation2 + $0x30] sm:$0xff]
      %v533 = vld [vmem:[#allocation2 + $0x38] sm:$0xff]
      %v534 = vld [vmem:[#allocation2 + $0x48] sm:$0xff]
      %v535 = vld [vmem:[#allocation2 + $0x50] sm:$0xff]
      %v536 = vld [vmem:[#allocation2 + $0x60] sm:$0xff]
      %v537 = vld [vmem:[#allocation2 + $0x68] sm:$0xff]
      %v538 = vld [vmem:[#allocation2 + $0x78] sm:$0xff]
      %v539 = vld [vmem:[#allocation2 + $0x80] sm:$0xff]
      %v540 = vld [vmem:[#allocation2 + $0x90] sm:$0xff]
      %v541 = vld [vmem:[#allocation2 + $0x98] sm:$0xff]
      %v542 = vld [vmem:[#allocation2 + $0xa8] sm:$0xff]
      %v543 = vld [vmem:[#allocation2 + $0xb0] sm:$0xff]
      %v544 = vld [vmem:[#allocation2 + $0xc0] sm:$0xff]
      %v545 = vld [vmem:[#allocation2 + $0xc8] sm:$0xff]
      %v546 = vld [vmem:[#allocation2 + $0xd8] sm:$0xff]
      %v547 = vld [vmem:[#allocation2 + $0xe0] sm:$0xff]
      %v548 = vld [vmem:[#allocation2 + $0xf0] sm:$0xff]
      %v549 = vld [vmem:[#allocation2 + $0xf8] sm:$0xff]
      %v550 = vld [vmem:[#allocation2 + $0x108] sm:$0xff]
      %v551 = vld [vmem:[#allocation2 + $0x110] sm:$0xff]
      %v552 = vld [vmem:[#allocation2 + $0x120] sm:$0xff]
      %v553 = vld [vmem:[#allocation2 + $0x128] sm:$0xff]
      %v554 = vld [vmem:[#allocation2 + $0x138] sm:$0xff]
      %v555 = vld [vmem:[#allocation2 + $0x140] sm:$0xff]
      %v556 = vld [vmem:[#allocation2 + $0x150] sm:$0xff]
      %v557 = vld [vmem:[#allocation2 + $0x158] sm:$0xff]
      %v558 = vld [vmem:[#allocation2 + $0x168] sm:$0xff]
      %v559 = vld [vmem:[#allocation2 + $0x170] sm:$0xff]
      %v560 = vld [vmem:[#allocation2 + $0x180] sm:$0xff]
      %v561 = vld [vmem:[#allocation2 + $0x188] sm:$0xff]
      %v562 = vld [vmem:[#allocation2 + $0x198] sm:$0xff]
      %v563 = vld [vmem:[#allocation2 + $0x1a0] sm:$0xff]
      %v564 = vld [vmem:[#allocation2 + $0x1b0] sm:$0xff]
      %v565 = vld [vmem:[#allocation2 + $0x1b8] sm:$0xff]
      %v566 = vld [vmem:[#allocation2 + $0x1c8] sm:$0xff]
      %v567 = vld [vmem:[#allocation2 + $0x1d0] sm:$0xff]
      %v568 = vld [vmem:[#allocation2 + $0x1e0] sm:$0xff]
      %v569 = vld [vmem:[#allocation2 + $0x1e8] sm:$0xff]
      %v570 = vld [vmem:[#allocation2 + $0x1f8] sm:$0xff]
      %v571 = vld [vmem:[#allocation2 + $0x200] sm:$0xff]
      %v572 = vld [vmem:[%s1] sm:$0x1]
      %v573 = vlaneseq
      %v574 = vshrl.u32 %v573, 7
      %v575 = vsub.s32 0, %v574
      %v576 = vrot.slane %v572, %v575
      %v577 = vmul.f32 %v528, %v576
      %v578 = vmul.f32 %v529, %v576
      %v579 = vmul.f32 %v530, %v576
      %v580 = vmul.f32 %v531, %v576
      %v581 = vmul.f32 %v532, %v576
      %v582 = vmul.f32 %v533, %v576
      %v583 = vmul.f32 %v534, %v576
      %v584 = vmul.f32 %v535, %v576
      %v585 = vmul.f32 %v536, %v576
      %v586 = vmul.f32 %v537, %v576
      %v587 = vmul.f32 %v538, %v576
      %v588 = vmul.f32 %v539, %v576
      %v589 = vmul.f32 %v540, %v576
      %v590 = vmul.f32 %v541, %v576
      %v591 = vmul.f32 %v542, %v576
      %v592 = vmul.f32 %v543, %v576
      %v593 = vmul.f32 %v544, %v576
      %v594 = vmul.f32 %v545, %v576
      %v595 = vmul.f32 %v546, %v576
      %v596 = vmul.f32 %v547, %v576
      %v597 = vmul.f32 %v548, %v576
      %v598 = vmul.f32 %v549, %v576
      %v599 = vmul.f32 %v550, %v576
      %v600 = vmul.f32 %v551, %v576
      %v601 = vmul.f32 %v552, %v576
      %v602 = vmul.f32 %v553, %v576
      %v603 = vmul.f32 %v554, %v576
      %v604 = vmul.f32 %v555, %v576
      %v605 = vmul.f32 %v556, %v576
      %v606 = vmul.f32 %v557, %v576
      %v607 = vmul.f32 %v558, %v576
      %v608 = vmul.f32 %v559, %v576
      %v609 = vadd.f32 %v527, %v577
      %v610 = vadd.f32 %v527, %v578
      %v611 = vadd.f32 %v527, %v579
      %v612 = vadd.f32 %v527, %v580
      %v613 = vadd.f32 %v527, %v581
      %v614 = vadd.f32 %v527, %v582
      %v615 = vadd.f32 %v527, %v583
      %v616 = vadd.f32 %v527, %v584
      %v617 = vadd.f32 %v527, %v585
      %v618 = vadd.f32 %v527, %v586
      %v619 = vadd.f32 %v527, %v587
      %v620 = vadd.f32 %v527, %v588
      %v621 = vadd.f32 %v527, %v589
      %v622 = vadd.f32 %v527, %v590
      %v623 = vadd.f32 %v527, %v591
      %v624 = vadd.f32 %v527, %v592
      %v625 = vadd.f32 %v527, %v593
      %v626 = vadd.f32 %v527, %v594
      %v627 = vadd.f32 %v527, %v595
      %v628 = vadd.f32 %v527, %v596
      %v629 = vadd.f32 %v527, %v597
      %v630 = vadd.f32 %v527, %v598
      %v631 = vadd.f32 %v527, %v599
      %v632 = vadd.f32 %v527, %v600
      %v633 = vadd.f32 %v527, %v601
      %v634 = vadd.f32 %v527, %v602
      %v635 = vadd.f32 %v527, %v603
      %v636 = vadd.f32 %v527, %v604
      %v637 = vadd.f32 %v527, %v605
      %v638 = vadd.f32 %v527, %v606
      %v639 = vadd.f32 %v527, %v607
      %v640 = vadd.f32 %v527, %v608
      %v641 = vld [vmem:[%s1 + $0x7] sm:$0x1]
      %v642 = vlaneseq
      %v643 = vshrl.u32 %v642, 7
      %v644 = vsub.s32 0, %v643
      %v645 = vrot.slane %v641, %v644
      %v646 = vmul.f32 %v530, %v645
      %v647 = vmul.f32 %v531, %v645
      %v648 = vmul.f32 %v532, %v645
      %v649 = vmul.f32 %v533, %v645
      %v650 = vmul.f32 %v534, %v645
      %v651 = vmul.f32 %v535, %v645
      %v652 = vmul.f32 %v536, %v645
      %v653 = vmul.f32 %v537, %v645
      %v654 = vmul.f32 %v538, %v645
      %v655 = vmul.f32 %v539, %v645
      %v656 = vmul.f32 %v540, %v645
      %v657 = vmul.f32 %v541, %v645
      %v658 = vmul.f32 %v542, %v645
      %v659 = vmul.f32 %v543, %v645
      %v660 = vmul.f32 %v544, %v645
      %v661 = vmul.f32 %v545, %v645
      %v662 = vmul.f32 %v546, %v645
      %v663 = vmul.f32 %v547, %v645
      %v664 = vmul.f32 %v548, %v645
      %v665 = vmul.f32 %v549, %v645
      %v666 = vmul.f32 %v550, %v645
      %v667 = vmul.f32 %v551, %v645
      %v668 = vmul.f32 %v552, %v645
      %v669 = vmul.f32 %v553, %v645
      %v670 = vmul.f32 %v554, %v645
      %v671 = vmul.f32 %v555, %v645
      %v672 = vmul.f32 %v556, %v645
      %v673 = vmul.f32 %v557, %v645
      %v674 = vmul.f32 %v558, %v645
      %v675 = vmul.f32 %v559, %v645
      %v676 = vmul.f32 %v560, %v645
      %v677 = vmul.f32 %v561, %v645
      %v678 = vadd.f32 %v609, %v646
      %v679 = vadd.f32 %v610, %v647
      %v680 = vadd.f32 %v611, %v648
      %v681 = vadd.f32 %v612, %v649
      %v682 = vadd.f32 %v613, %v650
      %v683 = vadd.f32 %v614, %v651
      %v684 = vadd.f32 %v615, %v652
      %v685 = vadd.f32 %v616, %v653
      %v686 = vadd.f32 %v617, %v654
      %v687 = vadd.f32 %v618, %v655
      %v688 = vadd.f32 %v619, %v656
      %v689 = vadd.f32 %v620, %v657
      %v690 = vadd.f32 %v621, %v658
      %v691 = vadd.f32 %v622, %v659
      %v692 = vadd.f32 %v623, %v660
      %v693 = vadd.f32 %v624, %v661
      %v694 = vadd.f32 %v625, %v662
      %v695 = vadd.f32 %v626, %v663
      %v696 = vadd.f32 %v627, %v664
      %v697 = vadd.f32 %v628, %v665
      %v698 = vadd.f32 %v629, %v666
      %v699 = vadd.f32 %v630, %v667
      %v700 = vadd.f32 %v631, %v668
      %v701 = vadd.f32 %v632, %v669
      %v702 = vadd.f32 %v633, %v670
      %v703 = vadd.f32 %v634, %v671
      %v704 = vadd.f32 %v635, %v672
      %v705 = vadd.f32 %v636, %v673
      %v706 = vadd.f32 %v637, %v674
      %v707 = vadd.f32 %v638, %v675
      %v708 = vadd.f32 %v639, %v676
      %v709 = vadd.f32 %v640, %v677
      %v710 = vld [vmem:[%s1 + $0xe] sm:$0x1]
      %v711 = vlaneseq
      %v712 = vshrl.u32 %v711, 7
      %v713 = vsub.s32 0, %v712
      %v714 = vrot.slane %v710, %v713
      %v715 = vmul.f32 %v532, %v714
      %v716 = vmul.f32 %v533, %v714
      %v717 = vmul.f32 %v534, %v714
      %v718 = vmul.f32 %v535, %v714
      %v719 = vmul.f32 %v536, %v714
      %v720 = vmul.f32 %v537, %v714
      %v721 = vmul.f32 %v538, %v714
      %v722 = vmul.f32 %v539, %v714
      %v723 = vmul.f32 %v540, %v714
      %v724 = vmul.f32 %v541, %v714
      %v725 = vmul.f32 %v542, %v714
      %v726 = vmul.f32 %v543, %v714
      %v727 = vmul.f32 %v544, %v714
      %v728 = vmul.f32 %v545, %v714
      %v729 = vmul.f32 %v546, %v714
      %v730 = vmul.f32 %v547, %v714
      %v731 = vmul.f32 %v548, %v714
      %v732 = vmul.f32 %v549, %v714
      %v733 = vmul.f32 %v550, %v714
      %v734 = vmul.f32 %v551, %v714
      %v735 = vmul.f32 %v552, %v714
      %v736 = vmul.f32 %v553, %v714
      %v737 = vmul.f32 %v554, %v714
      %v738 = vmul.f32 %v555, %v714
      %v739 = vmul.f32 %v556, %v714
      %v740 = vmul.f32 %v557, %v714
      %v741 = vmul.f32 %v558, %v714
      %v742 = vmul.f32 %v559, %v714
      %v743 = vmul.f32 %v560, %v714
      %v744 = vmul.f32 %v561, %v714
      %v745 = vmul.f32 %v562, %v714
      %v746 = vmul.f32 %v563, %v714
      %v747 = vadd.f32 %v678, %v715
      %v748 = vadd.f32 %v679, %v716
      %v749 = vadd.f32 %v680, %v717
      %v750 = vadd.f32 %v681, %v718
      %v751 = vadd.f32 %v682, %v719
      %v752 = vadd.f32 %v683, %v720
      %v753 = vadd.f32 %v684, %v721
      %v754 = vadd.f32 %v685, %v722
      %v755 = vadd.f32 %v686, %v723
      %v756 = vadd.f32 %v687, %v724
      %v757 = vadd.f32 %v688, %v725
      %v758 = vadd.f32 %v689, %v726
      %v759 = vadd.f32 %v690, %v727
      %v760 = vadd.f32 %v691, %v728
      %v761 = vadd.f32 %v692, %v729
      %v762 = vadd.f32 %v693, %v730
      %v763 = vadd.f32 %v694, %v731
      %v764 = vadd.f32 %v695, %v732
      %v765 = vadd.f32 %v696, %v733
      %v766 = vadd.f32 %v697, %v734
      %v767 = vadd.f32 %v698, %v735
      %v768 = vadd.f32 %v699, %v736
      %v769 = vadd.f32 %v700, %v737
      %v770 = vadd.f32 %v701, %v738
      %v771 = vadd.f32 %v702, %v739
      %v772 = vadd.f32 %v703, %v740
      %v773 = vadd.f32 %v704, %v741
      %v774 = vadd.f32 %v705, %v742
      %v775 = vadd.f32 %v706, %v743
      %v776 = vadd.f32 %v707, %v744
      %v777 = vadd.f32 %v708, %v745
      %v778 = vadd.f32 %v709, %v746
      %v779 = vld [vmem:[%s1 + $0x15] sm:$0x1]
      %v780 = vlaneseq
      %v781 = vshrl.u32 %v780, 7
      %v782 = vsub.s32 0, %v781
      %v783 = vrot.slane %v779, %v782
      %v784 = vmul.f32 %v534, %v783
      %v785 = vmul.f32 %v535, %v783
      %v786 = vmul.f32 %v536, %v783
      %v787 = vmul.f32 %v537, %v783
      %v788 = vmul.f32 %v538, %v783
      %v789 = vmul.f32 %v539, %v783
      %v790 = vmul.f32 %v540, %v783
      %v791 = vmul.f32 %v541, %v783
      %v792 = vmul.f32 %v542, %v783
      %v793 = vmul.f32 %v543, %v783
      %v794 = vmul.f32 %v544, %v783
      %v795 = vmul.f32 %v545, %v783
      %v796 = vmul.f32 %v546, %v783
      %v797 = vmul.f32 %v547, %v783
      %v798 = vmul.f32 %v548, %v783
      %v799 = vmul.f32 %v549, %v783
      %v800 = vmul.f32 %v550, %v783
      %v801 = vmul.f32 %v551, %v783
      %v802 = vmul.f32 %v552, %v783
      %v803 = vmul.f32 %v553, %v783
      %v804 = vmul.f32 %v554, %v783
      %v805 = vmul.f32 %v555, %v783
      %v806 = vmul.f32 %v556, %v783
      %v807 = vmul.f32 %v557, %v783
      %v808 = vmul.f32 %v558, %v783
      %v809 = vmul.f32 %v559, %v783
      %v810 = vmul.f32 %v560, %v783
      %v811 = vmul.f32 %v561, %v783
      %v812 = vmul.f32 %v562, %v783
      %v813 = vmul.f32 %v563, %v783
      %v814 = vmul.f32 %v564, %v783
      %v815 = vmul.f32 %v565, %v783
      %v816 = vadd.f32 %v747, %v784
      %v817 = vadd.f32 %v748, %v785
      %v818 = vadd.f32 %v749, %v786
      %v819 = vadd.f32 %v750, %v787
      %v820 = vadd.f32 %v751, %v788
      %v821 = vadd.f32 %v752, %v789
      %v822 = vadd.f32 %v753, %v790
      %v823 = vadd.f32 %v754, %v791
      %v824 = vadd.f32 %v755, %v792
      %v825 = vadd.f32 %v756, %v793
      %v826 = vadd.f32 %v757, %v794
      %v827 = vadd.f32 %v758, %v795
      %v828 = vadd.f32 %v759, %v796
      %v829 = vadd.f32 %v760, %v797
      %v830 = vadd.f32 %v761, %v798
      %v831 = vadd.f32 %v762, %v799
      %v832 = vadd.f32 %v763, %v800
      %v833 = vadd.f32 %v764, %v801
      %v834 = vadd.f32 %v765, %v802
      %v835 = vadd.f32 %v766, %v803
      %v836 = vadd.f32 %v767, %v804
      %v837 = vadd.f32 %v768, %v805
      %v838 = vadd.f32 %v769, %v806
      %v839 = vadd.f32 %v770, %v807
      %v840 = vadd.f32 %v771, %v808
      %v841 = vadd.f32 %v772, %v809
      %v842 = vadd.f32 %v773, %v810
      %v843 = vadd.f32 %v774, %v811
      %v844 = vadd.f32 %v775, %v812
      %v845 = vadd.f32 %v776, %v813
      %v846 = vadd.f32 %v777, %v814
      %v847 = vadd.f32 %v778, %v815
      %v848 = vld [vmem:[%s1 + $0x1c] sm:$0x1]
      %v849 = vlaneseq
      %v850 = vshrl.u32 %v849, 7
      %v851 = vsub.s32 0, %v850
      %v852 = vrot.slane %v848, %v851
      %v853 = vmul.f32 %v536, %v852
      %v854 = vmul.f32 %v537, %v852
      %v855 = vmul.f32 %v538, %v852
      %v856 = vmul.f32 %v539, %v852
      %v857 = vmul.f32 %v540, %v852
      %v858 = vmul.f32 %v541, %v852
      %v859 = vmul.f32 %v542, %v852
      %v860 = vmul.f32 %v543, %v852
      %v861 = vmul.f32 %v544, %v852
      %v862 = vmul.f32 %v545, %v852
      %v863 = vmul.f32 %v546, %v852
      %v864 = vmul.f32 %v547, %v852
      %v865 = vmul.f32 %v548, %v852
      %v866 = vmul.f32 %v549, %v852
      %v867 = vmul.f32 %v550, %v852
      %v868 = vmul.f32 %v551, %v852
      %v869 = vmul.f32 %v552, %v852
      %v870 = vmul.f32 %v553, %v852
      %v871 = vmul.f32 %v554, %v852
      %v872 = vmul.f32 %v555, %v852
      %v873 = vmul.f32 %v556, %v852
      %v874 = vmul.f32 %v557, %v852
      %v875 = vmul.f32 %v558, %v852
      %v876 = vmul.f32 %v559, %v852
      %v877 = vmul.f32 %v560, %v852
      %v878 = vmul.f32 %v561, %v852
      %v879 = vmul.f32 %v562, %v852
      %v880 = vmul.f32 %v563, %v852
      %v881 = vmul.f32 %v564, %v852
      %v882 = vmul.f32 %v565, %v852
      %v883 = vmul.f32 %v566, %v852
      %v884 = vmul.f32 %v567, %v852
      %v885 = vadd.f32 %v816, %v853
      %v886 = vadd.f32 %v817, %v854
      %v887 = vadd.f32 %v818, %v855
      %v888 = vadd.f32 %v819, %v856
      %v889 = vadd.f32 %v820, %v857
      %v890 = vadd.f32 %v821, %v858
      %v891 = vadd.f32 %v822, %v859
      %v892 = vadd.f32 %v823, %v860
      %v893 = vadd.f32 %v824, %v861
      %v894 = vadd.f32 %v825, %v862
      %v895 = vadd.f32 %v826, %v863
      %v896 = vadd.f32 %v827, %v864
      %v897 = vadd.f32 %v828, %v865
      %v898 = vadd.f32 %v829, %v866
      %v899 = vadd.f32 %v830, %v867
      %v900 = vadd.f32 %v831, %v868
      %v901 = vadd.f32 %v832, %v869
      %v902 = vadd.f32 %v833, %v870
      %v903 = vadd.f32 %v834, %v871
      %v904 = vadd.f32 %v835, %v872
      %v905 = vadd.f32 %v836, %v873
      %v906 = vadd.f32 %v837, %v874
      %v907 = vadd.f32 %v838, %v875
      %v908 = vadd.f32 %v839, %v876
      %v909 = vadd.f32 %v840, %v877
      %v910 = vadd.f32 %v841, %v878
      %v911 = vadd.f32 %v842, %v879
      %v912 = vadd.f32 %v843, %v880
      %v913 = vadd.f32 %v844, %v881
      %v914 = vadd.f32 %v845, %v882
      %v915 = vadd.f32 %v846, %v883
      %v916 = vadd.f32 %v847, %v884
      %v917 = vld [vmem:[%s1 + $0x23] sm:$0x1]
      %v918 = vlaneseq
      %v919 = vshrl.u32 %v918, 7
      %v920 = vsub.s32 0, %v919
      %v921 = vrot.slane %v917, %v920
      %v922 = vmul.f32 %v538, %v921
      %v923 = vmul.f32 %v539, %v921
      %v924 = vmul.f32 %v540, %v921
      %v925 = vmul.f32 %v541, %v921
      %v926 = vmul.f32 %v542, %v921
      %v927 = vmul.f32 %v543, %v921
      %v928 = vmul.f32 %v544, %v921
      %v929 = vmul.f32 %v545, %v921
      %v930 = vmul.f32 %v546, %v921
      %v931 = vmul.f32 %v547, %v921
      %v932 = vmul.f32 %v548, %v921
      %v933 = vmul.f32 %v549, %v921
      %v934 = vmul.f32 %v550, %v921
      %v935 = vmul.f32 %v551, %v921
      %v936 = vmul.f32 %v552, %v921
      %v937 = vmul.f32 %v553, %v921
      %v938 = vmul.f32 %v554, %v921
      %v939 = vmul.f32 %v555, %v921
      %v940 = vmul.f32 %v556, %v921
      %v941 = vmul.f32 %v557, %v921
      %v942 = vmul.f32 %v558, %v921
      %v943 = vmul.f32 %v559, %v921
      %v944 = vmul.f32 %v560, %v921
      %v945 = vmul.f32 %v561, %v921
      %v946 = vmul.f32 %v562, %v921
      %v947 = vmul.f32 %v563, %v921
      %v948 = vmul.f32 %v564, %v921
      %v949 = vmul.f32 %v565, %v921
      %v950 = vmul.f32 %v566, %v921
      %v951 = vmul.f32 %v567, %v921
      %v952 = vmul.f32 %v568, %v921
      %v953 = vmul.f32 %v569, %v921
      %v954 = vadd.f32 %v885, %v922
      %v955 = vadd.f32 %v886, %v923
      %v956 = vadd.f32 %v887, %v924
      %v957 = vadd.f32 %v888, %v925
      %v958 = vadd.f32 %v889, %v926
      %v959 = vadd.f32 %v890, %v927
      %v960 = vadd.f32 %v891, %v928
      %v961 = vadd.f32 %v892, %v929
      %v962 = vadd.f32 %v893, %v930
      %v963 = vadd.f32 %v894, %v931
      %v964 = vadd.f32 %v895, %v932
      %v965 = vadd.f32 %v896, %v933
      %v966 = vadd.f32 %v897, %v934
      %v967 = vadd.f32 %v898, %v935
      %v968 = vadd.f32 %v899, %v936
      %v969 = vadd.f32 %v900, %v937
      %v970 = vadd.f32 %v901, %v938
      %v971 = vadd.f32 %v902, %v939
      %v972 = vadd.f32 %v903, %v940
      %v973 = vadd.f32 %v904, %v941
      %v974 = vadd.f32 %v905, %v942
      %v975 = vadd.f32 %v906, %v943
      %v976 = vadd.f32 %v907, %v944
      %v977 = vadd.f32 %v908, %v945
      %v978 = vadd.f32 %v909, %v946
      %v979 = vadd.f32 %v910, %v947
      %v980 = vadd.f32 %v911, %v948
      %v981 = vadd.f32 %v912, %v949
      %v982 = vadd.f32 %v913, %v950
      %v983 = vadd.f32 %v914, %v951
      %v984 = vadd.f32 %v915, %v952
      %v985 = vadd.f32 %v916, %v953
      %v986 = vld [vmem:[%s1 + $0x2a] sm:$0x1]
      %v987 = vlaneseq
      %v988 = vshrl.u32 %v987, 7
      %v989 = vsub.s32 0, %v988
      %v990 = vrot.slane %v986, %v989
      %v991 = vmul.f32 %v540, %v990
      %v992 = vmul.f32 %v541, %v990
      %v993 = vmul.f32 %v542, %v990
      %v994 = vmul.f32 %v543, %v990
      %v995 = vmul.f32 %v544, %v990
      %v996 = vmul.f32 %v545, %v990
      %v997 = vmul.f32 %v546, %v990
      %v998 = vmul.f32 %v547, %v990
      %v999 = vmul.f32 %v548, %v990
      %v1000 = vmul.f32 %v549, %v990
      %v1001 = vmul.f32 %v550, %v990
      %v1002 = vmul.f32 %v551, %v990
      %v1003 = vmul.f32 %v552, %v990
      %v1004 = vmul.f32 %v553, %v990
      %v1005 = vmul.f32 %v554, %v990
      %v1006 = vmul.f32 %v555, %v990
      %v1007 = vmul.f32 %v556, %v990
      %v1008 = vmul.f32 %v557, %v990
      %v1009 = vmul.f32 %v558, %v990
      %v1010 = vmul.f32 %v559, %v990
      %v1011 = vmul.f32 %v560, %v990
      %v1012 = vmul.f32 %v561, %v990
      %v1013 = vmul.f32 %v562, %v990
      %v1014 = vmul.f32 %v563, %v990
      %v1015 = vmul.f32 %v564, %v990
      %v1016 = vmul.f32 %v565, %v990
      %v1017 = vmul.f32 %v566, %v990
      %v1018 = vmul.f32 %v567, %v990
      %v1019 = vmul.f32 %v568, %v990
      %v1020 = vmul.f32 %v569, %v990
      %v1021 = vmul.f32 %v570, %v990
      %v1022 = vmul.f32 %v571, %v990
      %v1023 = vadd.f32 %v954, %v991
      %v1024 = vadd.f32 %v955, %v992
      %v1025 = vadd.f32 %v956, %v993
      %v1026 = vadd.f32 %v957, %v994
      %v1027 = vadd.f32 %v958, %v995
      %v1028 = vadd.f32 %v959, %v996
      %v1029 = vadd.f32 %v960, %v997
      %v1030 = vadd.f32 %v961, %v998
      %v1031 = vadd.f32 %v962, %v999
      %v1032 = vadd.f32 %v963, %v1000
      %v1033 = vadd.f32 %v964, %v1001
      %v1034 = vadd.f32 %v965, %v1002
      %v1035 = vadd.f32 %v966, %v1003
      %v1036 = vadd.f32 %v967, %v1004
      %v1037 = vadd.f32 %v968, %v1005
      %v1038 = vadd.f32 %v969, %v1006
      %v1039 = vadd.f32 %v970, %v1007
      %v1040 = vadd.f32 %v971, %v1008
      %v1041 = vadd.f32 %v972, %v1009
      %v1042 = vadd.f32 %v973, %v1010
      %v1043 = vadd.f32 %v974, %v1011
      %v1044 = vadd.f32 %v975, %v1012
      %v1045 = vadd.f32 %v976, %v1013
      %v1046 = vadd.f32 %v977, %v1014
      %v1047 = vadd.f32 %v978, %v1015
      %v1048 = vadd.f32 %v979, %v1016
      %v1049 = vadd.f32 %v980, %v1017
      %v1050 = vadd.f32 %v981, %v1018
      %v1051 = vadd.f32 %v982, %v1019
      %v1052 = vadd.f32 %v983, %v1020
      %v1053 = vadd.f32 %v984, %v1021
      %v1054 = vadd.f32 %v985, %v1022
      %v1055 = vld [vmem:[#allocation2 + $0x1] sm:$0xff]
      %v1056 = vld [vmem:[#allocation2 + $0x9] sm:$0xff]
      %v1057 = vld [vmem:[#allocation2 + $0x19] sm:$0xff]
      %v1058 = vld [vmem:[#allocation2 + $0x21] sm:$0xff]
      %v1059 = vld [vmem:[#allocation2 + $0x31] sm:$0xff]
      %v1060 = vld [vmem:[#allocation2 + $0x39] sm:$0xff]
      %v1061 = vld [vmem:[#allocation2 + $0x49] sm:$0xff]
      %v1062 = vld [vmem:[#allocation2 + $0x51] sm:$0xff]
      %v1063 = vld [vmem:[#allocation2 + $0x61] sm:$0xff]
      %v1064 = vld [vmem:[#allocation2 + $0x69] sm:$0xff]
      %v1065 = vld [vmem:[#allocation2 + $0x79] sm:$0xff]
      %v1066 = vld [vmem:[#allocation2 + $0x81] sm:$0xff]
      %v1067 = vld [vmem:[#allocation2 + $0x91] sm:$0xff]
      %v1068 = vld [vmem:[#allocation2 + $0x99] sm:$0xff]
      %v1069 = vld [vmem:[#allocation2 + $0xa9] sm:$0xff]
      %v1070 = vld [vmem:[#allocation2 + $0xb1] sm:$0xff]
      %v1071 = vld [vmem:[#allocation2 + $0xc1] sm:$0xff]
      %v1072 = vld [vmem:[#allocation2 + $0xc9] sm:$0xff]
      %v1073 = vld [vmem:[#allocation2 + $0xd9] sm:$0xff]
      %v1074 = vld [vmem:[#allocation2 + $0xe1] sm:$0xff]
      %v1075 = vld [vmem:[#allocation2 + $0xf1] sm:$0xff]
      %v1076 = vld [vmem:[#allocation2 + $0xf9] sm:$0xff]
      %v1077 = vld [vmem:[#allocation2 + $0x109] sm:$0xff]
      %v1078 = vld [vmem:[#allocation2 + $0x111] sm:$0xff]
      %v1079 = vld [vmem:[#allocation2 + $0x121] sm:$0xff]
      %v1080 = vld [vmem:[#allocation2 + $0x129] sm:$0xff]
      %v1081 = vld [vmem:[#allocation2 + $0x139] sm:$0xff]
      %v1082 = vld [vmem:[#allocation2 + $0x141] sm:$0xff]
      %v1083 = vld [vmem:[#allocation2 + $0x151] sm:$0xff]
      %v1084 = vld [vmem:[#allocation2 + $0x159] sm:$0xff]
      %v1085 = vld [vmem:[#allocation2 + $0x169] sm:$0xff]
      %v1086 = vld [vmem:[#allocation2 + $0x171] sm:$0xff]
      %v1087 = vld [vmem:[#allocation2 + $0x181] sm:$0xff]
      %v1088 = vld [vmem:[#allocation2 + $0x189] sm:$0xff]
      %v1089 = vld [vmem:[#allocation2 + $0x199] sm:$0xff]
      %v1090 = vld [vmem:[#allocation2 + $0x1a1] sm:$0xff]
      %v1091 = vld [vmem:[#allocation2 + $0x1b1] sm:$0xff]
      %v1092 = vld [vmem:[#allocation2 + $0x1b9] sm:$0xff]
      %v1093 = vld [vmem:[#allocation2 + $0x1c9] sm:$0xff]
      %v1094 = vld [vmem:[#allocation2 + $0x1d1] sm:$0xff]
      %v1095 = vld [vmem:[#allocation2 + $0x1e1] sm:$0xff]
      %v1096 = vld [vmem:[#allocation2 + $0x1e9] sm:$0xff]
      %v1097 = vld [vmem:[#allocation2 + $0x1f9] sm:$0xff]
      %v1098 = vld [vmem:[#allocation2 + $0x201] sm:$0xff]
      %v1099 = vld [vmem:[%s1 + $0x1] sm:$0x1]
      %v1100 = vlaneseq
      %v1101 = vshrl.u32 %v1100, 7
      %v1102 = vsub.s32 0, %v1101
      %v1103 = vrot.slane %v1099, %v1102
      %v1104 = vmul.f32 %v1055, %v1103
      %v1105 = vmul.f32 %v1056, %v1103
      %v1106 = vmul.f32 %v1057, %v1103
      %v1107 = vmul.f32 %v1058, %v1103
      %v1108 = vmul.f32 %v1059, %v1103
      %v1109 = vmul.f32 %v1060, %v1103
      %v1110 = vmul.f32 %v1061, %v1103
      %v1111 = vmul.f32 %v1062, %v1103
      %v1112 = vmul.f32 %v1063, %v1103
      %v1113 = vmul.f32 %v1064, %v1103
      %v1114 = vmul.f32 %v1065, %v1103
      %v1115 = vmul.f32 %v1066, %v1103
      %v1116 = vmul.f32 %v1067, %v1103
      %v1117 = vmul.f32 %v1068, %v1103
      %v1118 = vmul.f32 %v1069, %v1103
      %v1119 = vmul.f32 %v1070, %v1103
      %v1120 = vmul.f32 %v1071, %v1103
      %v1121 = vmul.f32 %v1072, %v1103
      %v1122 = vmul.f32 %v1073, %v1103
      %v1123 = vmul.f32 %v1074, %v1103
      %v1124 = vmul.f32 %v1075, %v1103
      %v1125 = vmul.f32 %v1076, %v1103
      %v1126 = vmul.f32 %v1077, %v1103
      %v1127 = vmul.f32 %v1078, %v1103
      %v1128 = vmul.f32 %v1079, %v1103
      %v1129 = vmul.f32 %v1080, %v1103
      %v1130 = vmul.f32 %v1081, %v1103
      %v1131 = vmul.f32 %v1082, %v1103
      %v1132 = vmul.f32 %v1083, %v1103
      %v1133 = vmul.f32 %v1084, %v1103
      %v1134 = vmul.f32 %v1085, %v1103
      %v1135 = vmul.f32 %v1086, %v1103
      %v1136 = vadd.f32 %v1023, %v1104
      %v1137 = vadd.f32 %v1024, %v1105
      %v1138 = vadd.f32 %v1025, %v1106
      %v1139 = vadd.f32 %v1026, %v1107
      %v1140 = vadd.f32 %v1027, %v1108
      %v1141 = vadd.f32 %v1028, %v1109
      %v1142 = vadd.f32 %v1029, %v1110
      %v1143 = vadd.f32 %v1030, %v1111
      %v1144 = vadd.f32 %v1031, %v1112
      %v1145 = vadd.f32 %v1032, %v1113
      %v1146 = vadd.f32 %v1033, %v1114
      %v1147 = vadd.f32 %v1034, %v1115
      %v1148 = vadd.f32 %v1035, %v1116
      %v1149 = vadd.f32 %v1036, %v1117
      %v1150 = vadd.f32 %v1037, %v1118
      %v1151 = vadd.f32 %v1038, %v1119
      %v1152 = vadd.f32 %v1039, %v1120
      %v1153 = vadd.f32 %v1040, %v1121
      %v1154 = vadd.f32 %v1041, %v1122
      %v1155 = vadd.f32 %v1042, %v1123
      %v1156 = vadd.f32 %v1043, %v1124
      %v1157 = vadd.f32 %v1044, %v1125
      %v1158 = vadd.f32 %v1045, %v1126
      %v1159 = vadd.f32 %v1046, %v1127
      %v1160 = vadd.f32 %v1047, %v1128
      %v1161 = vadd.f32 %v1048, %v1129
      %v1162 = vadd.f32 %v1049, %v1130
      %v1163 = vadd.f32 %v1050, %v1131
      %v1164 = vadd.f32 %v1051, %v1132
      %v1165 = vadd.f32 %v1052, %v1133
      %v1166 = vadd.f32 %v1053, %v1134
      %v1167 = vadd.f32 %v1054, %v1135
      %v1168 = vld [vmem:[%s1 + $0x8] sm:$0x1]
      %v1169 = vlaneseq
      %v1170 = vshrl.u32 %v1169, 7
      %v1171 = vsub.s32 0, %v1170
      %v1172 = vrot.slane %v1168, %v1171
      %v1173 = vmul.f32 %v1057, %v1172
      %v1174 = vmul.f32 %v1058, %v1172
      %v1175 = vmul.f32 %v1059, %v1172
      %v1176 = vmul.f32 %v1060, %v1172
      %v1177 = vmul.f32 %v1061, %v1172
      %v1178 = vmul.f32 %v1062, %v1172
      %v1179 = vmul.f32 %v1063, %v1172
      %v1180 = vmul.f32 %v1064, %v1172
      %v1181 = vmul.f32 %v1065, %v1172
      %v1182 = vmul.f32 %v1066, %v1172
      %v1183 = vmul.f32 %v1067, %v1172
      %v1184 = vmul.f32 %v1068, %v1172
      %v1185 = vmul.f32 %v1069, %v1172
      %v1186 = vmul.f32 %v1070, %v1172
      %v1187 = vmul.f32 %v1071, %v1172
      %v1188 = vmul.f32 %v1072, %v1172
      %v1189 = vmul.f32 %v1073, %v1172
      %v1190 = vmul.f32 %v1074, %v1172
      %v1191 = vmul.f32 %v1075, %v1172
      %v1192 = vmul.f32 %v1076, %v1172
      %v1193 = vmul.f32 %v1077, %v1172
      %v1194 = vmul.f32 %v1078, %v1172
      %v1195 = vmul.f32 %v1079, %v1172
      %v1196 = vmul.f32 %v1080, %v1172
      %v1197 = vmul.f32 %v1081, %v1172
      %v1198 = vmul.f32 %v1082, %v1172
      %v1199 = vmul.f32 %v1083, %v1172
      %v1200 = vmul.f32 %v1084, %v1172
      %v1201 = vmul.f32 %v1085, %v1172
      %v1202 = vmul.f32 %v1086, %v1172
      %v1203 = vmul.f32 %v1087, %v1172
      %v1204 = vmul.f32 %v1088, %v1172
      %v1205 = vadd.f32 %v1136, %v1173
      %v1206 = vadd.f32 %v1137, %v1174
      %v1207 = vadd.f32 %v1138, %v1175
      %v1208 = vadd.f32 %v1139, %v1176
      %v1209 = vadd.f32 %v1140, %v1177
      %v1210 = vadd.f32 %v1141, %v1178
      %v1211 = vadd.f32 %v1142, %v1179
      %v1212 = vadd.f32 %v1143, %v1180
      %v1213 = vadd.f32 %v1144, %v1181
      %v1214 = vadd.f32 %v1145, %v1182
      %v1215 = vadd.f32 %v1146, %v1183
      %v1216 = vadd.f32 %v1147, %v1184
      %v1217 = vadd.f32 %v1148, %v1185
      %v1218 = vadd.f32 %v1149, %v1186
      %v1219 = vadd.f32 %v1150, %v1187
      %v1220 = vadd.f32 %v1151, %v1188
      %v1221 = vadd.f32 %v1152, %v1189
      %v1222 = vadd.f32 %v1153, %v1190
      %v1223 = vadd.f32 %v1154, %v1191
      %v1224 = vadd.f32 %v1155, %v1192
      %v1225 = vadd.f32 %v1156, %v1193
      %v1226 = vadd.f32 %v1157, %v1194
      %v1227 = vadd.f32 %v1158, %v1195
      %v1228 = vadd.f32 %v1159, %v1196
      %v1229 = vadd.f32 %v1160, %v1197
      %v1230 = vadd.f32 %v1161, %v1198
      %v1231 = vadd.f32 %v1162, %v1199
      %v1232 = vadd.f32 %v1163, %v1200
      %v1233 = vadd.f32 %v1164, %v1201
      %v1234 = vadd.f32 %v1165, %v1202
      %v1235 = vadd.f32 %v1166, %v1203
      %v1236 = vadd.f32 %v1167, %v1204
      %v1237 = vld [vmem:[%s1 + $0xf] sm:$0x1]
      %v1238 = vlaneseq
      %v1239 = vshrl.u32 %v1238, 7
      %v1240 = vsub.s32 0, %v1239
      %v1241 = vrot.slane %v1237, %v1240
      %v1242 = vmul.f32 %v1059, %v1241
      %v1243 = vmul.f32 %v1060, %v1241
      %v1244 = vmul.f32 %v1061, %v1241
      %v1245 = vmul.f32 %v1062, %v1241
      %v1246 = vmul.f32 %v1063, %v1241
      %v1247 = vmul.f32 %v1064, %v1241
      %v1248 = vmul.f32 %v1065, %v1241
      %v1249 = vmul.f32 %v1066, %v1241
      %v1250 = vmul.f32 %v1067, %v1241
      %v1251 = vmul.f32 %v1068, %v1241
      %v1252 = vmul.f32 %v1069, %v1241
      %v1253 = vmul.f32 %v1070, %v1241
      %v1254 = vmul.f32 %v1071, %v1241
      %v1255 = vmul.f32 %v1072, %v1241
      %v1256 = vmul.f32 %v1073, %v1241
      %v1257 = vmul.f32 %v1074, %v1241
      %v1258 = vmul.f32 %v1075, %v1241
      %v1259 = vmul.f32 %v1076, %v1241
      %v1260 = vmul.f32 %v1077, %v1241
      %v1261 = vmul.f32 %v1078, %v1241
      %v1262 = vmul.f32 %v1079, %v1241
      %v1263 = vmul.f32 %v1080, %v1241
      %v1264 = vmul.f32 %v1081, %v1241
      %v1265 = vmul.f32 %v1082, %v1241
      %v1266 = vmul.f32 %v1083, %v1241
      %v1267 = vmul.f32 %v1084, %v1241
      %v1268 = vmul.f32 %v1085, %v1241
      %v1269 = vmul.f32 %v1086, %v1241
      %v1270 = vmul.f32 %v1087, %v1241
      %v1271 = vmul.f32 %v1088, %v1241
      %v1272 = vmul.f32 %v1089, %v1241
      %v1273 = vmul.f32 %v1090, %v1241
      %v1274 = vadd.f32 %v1205, %v1242
      %v1275 = vadd.f32 %v1206, %v1243
      %v1276 = vadd.f32 %v1207, %v1244
      %v1277 = vadd.f32 %v1208, %v1245
      %v1278 = vadd.f32 %v1209, %v1246
      %v1279 = vadd.f32 %v1210, %v1247
      %v1280 = vadd.f32 %v1211, %v1248
      %v1281 = vadd.f32 %v1212, %v1249
      %v1282 = vadd.f32 %v1213, %v1250
      %v1283 = vadd.f32 %v1214, %v1251
      %v1284 = vadd.f32 %v1215, %v1252
      %v1285 = vadd.f32 %v1216, %v1253
      %v1286 = vadd.f32 %v1217, %v1254
      %v1287 = vadd.f32 %v1218, %v1255
      %v1288 = vadd.f32 %v1219, %v1256
      %v1289 = vadd.f32 %v1220, %v1257
      %v1290 = vadd.f32 %v1221, %v1258
      %v1291 = vadd.f32 %v1222, %v1259
      %v1292 = vadd.f32 %v1223, %v1260
      %v1293 = vadd.f32 %v1224, %v1261
      %v1294 = vadd.f32 %v1225, %v1262
      %v1295 = vadd.f32 %v1226, %v1263
      %v1296 = vadd.f32 %v1227, %v1264
      %v1297 = vadd.f32 %v1228, %v1265
      %v1298 = vadd.f32 %v1229, %v1266
      %v1299 = vadd.f32 %v1230, %v1267
      %v1300 = vadd.f32 %v1231, %v1268
      %v1301 = vadd.f32 %v1232, %v1269
      %v1302 = vadd.f32 %v1233, %v1270
      %v1303 = vadd.f32 %v1234, %v1271
      %v1304 = vadd.f32 %v1235, %v1272
      %v1305 = vadd.f32 %v1236, %v1273
      %v1306 = vld [vmem:[%s1 + $0x16] sm:$0x1]
      %v1307 = vlaneseq
      %v1308 = vshrl.u32 %v1307, 7
      %v1309 = vsub.s32 0, %v1308
      %v1310 = vrot.slane %v1306, %v1309
      %v1311 = vmul.f32 %v1061, %v1310
      %v1312 = vmul.f32 %v1062, %v1310
      %v1313 = vmul.f32 %v1063, %v1310
      %v1314 = vmul.f32 %v1064, %v1310
      %v1315 = vmul.f32 %v1065, %v1310
      %v1316 = vmul.f32 %v1066, %v1310
      %v1317 = vmul.f32 %v1067, %v1310
      %v1318 = vmul.f32 %v1068, %v1310
      %v1319 = vmul.f32 %v1069, %v1310
      %v1320 = vmul.f32 %v1070, %v1310
      %v1321 = vmul.f32 %v1071, %v1310
      %v1322 = vmul.f32 %v1072, %v1310
      %v1323 = vmul.f32 %v1073, %v1310
      %v1324 = vmul.f32 %v1074, %v1310
      %v1325 = vmul.f32 %v1075, %v1310
      %v1326 = vmul.f32 %v1076, %v1310
      %v1327 = vmul.f32 %v1077, %v1310
      %v1328 = vmul.f32 %v1078, %v1310
      %v1329 = vmul.f32 %v1079, %v1310
      %v1330 = vmul.f32 %v1080, %v1310
      %v1331 = vmul.f32 %v1081, %v1310
      %v1332 = vmul.f32 %v1082, %v1310
      %v1333 = vmul.f32 %v1083, %v1310
      %v1334 = vmul.f32 %v1084, %v1310
      %v1335 = vmul.f32 %v1085, %v1310
      %v1336 = vmul.f32 %v1086, %v1310
      %v1337 = vmul.f32 %v1087, %v1310
      %v1338 = vmul.f32 %v1088, %v1310
      %v1339 = vmul.f32 %v1089, %v1310
      %v1340 = vmul.f32 %v1090, %v1310
      %v1341 = vmul.f32 %v1091, %v1310
      %v1342 = vmul.f32 %v1092, %v1310
      %v1343 = vadd.f32 %v1274, %v1311
      %v1344 = vadd.f32 %v1275, %v1312
      %v1345 = vadd.f32 %v1276, %v1313
      %v1346 = vadd.f32 %v1277, %v1314
      %v1347 = vadd.f32 %v1278, %v1315
      %v1348 = vadd.f32 %v1279, %v1316
      %v1349 = vadd.f32 %v1280, %v1317
      %v1350 = vadd.f32 %v1281, %v1318
      %v1351 = vadd.f32 %v1282, %v1319
      %v1352 = vadd.f32 %v1283, %v1320
      %v1353 = vadd.f32 %v1284, %v1321
      %v1354 = vadd.f32 %v1285, %v1322
      %v1355 = vadd.f32 %v1286, %v1323
      %v1356 = vadd.f32 %v1287, %v1324
      %v1357 = vadd.f32 %v1288, %v1325
      %v1358 = vadd.f32 %v1289, %v1326
      %v1359 = vadd.f32 %v1290, %v1327
      %v1360 = vadd.f32 %v1291, %v1328
      %v1361 = vadd.f32 %v1292, %v1329
      %v1362 = vadd.f32 %v1293, %v1330
      %v1363 = vadd.f32 %v1294, %v1331
      %v1364 = vadd.f32 %v1295, %v1332
      %v1365 = vadd.f32 %v1296, %v1333
      %v1366 = vadd.f32 %v1297, %v1334
      %v1367 = vadd.f32 %v1298, %v1335
      %v1368 = vadd.f32 %v1299, %v1336
      %v1369 = vadd.f32 %v1300, %v1337
      %v1370 = vadd.f32 %v1301, %v1338
      %v1371 = vadd.f32 %v1302, %v1339
      %v1372 = vadd.f32 %v1303, %v1340
      %v1373 = vadd.f32 %v1304, %v1341
      %v1374 = vadd.f32 %v1305, %v1342
      %v1375 = vld [vmem:[%s1 + $0x1d] sm:$0x1]
      %v1376 = vlaneseq
      %v1377 = vshrl.u32 %v1376, 7
      %v1378 = vsub.s32 0, %v1377
      %v1379 = vrot.slane %v1375, %v1378
      %v1380 = vmul.f32 %v1063, %v1379
      %v1381 = vmul.f32 %v1064, %v1379
      %v1382 = vmul.f32 %v1065, %v1379
      %v1383 = vmul.f32 %v1066, %v1379
      %v1384 = vmul.f32 %v1067, %v1379
      %v1385 = vmul.f32 %v1068, %v1379
      %v1386 = vmul.f32 %v1069, %v1379
      %v1387 = vmul.f32 %v1070, %v1379
      %v1388 = vmul.f32 %v1071, %v1379
      %v1389 = vmul.f32 %v1072, %v1379
      %v1390 = vmul.f32 %v1073, %v1379
      %v1391 = vmul.f32 %v1074, %v1379
      %v1392 = vmul.f32 %v1075, %v1379
      %v1393 = vmul.f32 %v1076, %v1379
      %v1394 = vmul.f32 %v1077, %v1379
      %v1395 = vmul.f32 %v1078, %v1379
      %v1396 = vmul.f32 %v1079, %v1379
      %v1397 = vmul.f32 %v1080, %v1379
      %v1398 = vmul.f32 %v1081, %v1379
      %v1399 = vmul.f32 %v1082, %v1379
      %v1400 = vmul.f32 %v1083, %v1379
      %v1401 = vmul.f32 %v1084, %v1379
      %v1402 = vmul.f32 %v1085, %v1379
      %v1403 = vmul.f32 %v1086, %v1379
      %v1404 = vmul.f32 %v1087, %v1379
      %v1405 = vmul.f32 %v1088, %v1379
      %v1406 = vmul.f32 %v1089, %v1379
      %v1407 = vmul.f32 %v1090, %v1379
      %v1408 = vmul.f32 %v1091, %v1379
      %v1409 = vmul.f32 %v1092, %v1379
      %v1410 = vmul.f32 %v1093, %v1379
      %v1411 = vmul.f32 %v1094, %v1379
      %v1412 = vadd.f32 %v1343, %v1380
      %v1413 = vadd.f32 %v1344, %v1381
      %v1414 = vadd.f32 %v1345, %v1382
      %v1415 = vadd.f32 %v1346, %v1383
      %v1416 = vadd.f32 %v1347, %v1384
      %v1417 = vadd.f32 %v1348, %v1385
      %v1418 = vadd.f32 %v1349, %v1386
      %v1419 = vadd.f32 %v1350, %v1387
      %v1420 = vadd.f32 %v1351, %v1388
      %v1421 = vadd.f32 %v1352, %v1389
      %v1422 = vadd.f32 %v1353, %v1390
      %v1423 = vadd.f32 %v1354, %v1391
      %v1424 = vadd.f32 %v1355, %v1392
      %v1425 = vadd.f32 %v1356, %v1393
      %v1426 = vadd.f32 %v1357, %v1394
      %v1427 = vadd.f32 %v1358, %v1395
      %v1428 = vadd.f32 %v1359, %v1396
      %v1429 = vadd.f32 %v1360, %v1397
      %v1430 = vadd.f32 %v1361, %v1398
      %v1431 = vadd.f32 %v1362, %v1399
      %v1432 = vadd.f32 %v1363, %v1400
      %v1433 = vadd.f32 %v1364, %v1401
      %v1434 = vadd.f32 %v1365, %v1402
      %v1435 = vadd.f32 %v1366, %v1403
      %v1436 = vadd.f32 %v1367, %v1404
      %v1437 = vadd.f32 %v1368, %v1405
      %v1438 = vadd.f32 %v1369, %v1406
      %v1439 = vadd.f32 %v1370, %v1407
      %v1440 = vadd.f32 %v1371, %v1408
      %v1441 = vadd.f32 %v1372, %v1409
      %v1442 = vadd.f32 %v1373, %v1410
      %v1443 = vadd.f32 %v1374, %v1411
      %v1444 = vld [vmem:[%s1 + $0x24] sm:$0x1]
      %v1445 = vlaneseq
      %v1446 = vshrl.u32 %v1445, 7
      %v1447 = vsub.s32 0, %v1446
      %v1448 = vrot.slane %v1444, %v1447
      %v1449 = vmul.f32 %v1065, %v1448
      %v1450 = vmul.f32 %v1066, %v1448
      %v1451 = vmul.f32 %v1067, %v1448
      %v1452 = vmul.f32 %v1068, %v1448
      %v1453 = vmul.f32 %v1069, %v1448
      %v1454 = vmul.f32 %v1070, %v1448
      %v1455 = vmul.f32 %v1071, %v1448
      %v1456 = vmul.f32 %v1072, %v1448
      %v1457 = vmul.f32 %v1073, %v1448
      %v1458 = vmul.f32 %v1074, %v1448
      %v1459 = vmul.f32 %v1075, %v1448
      %v1460 = vmul.f32 %v1076, %v1448
      %v1461 = vmul.f32 %v1077, %v1448
      %v1462 = vmul.f32 %v1078, %v1448
      %v1463 = vmul.f32 %v1079, %v1448
      %v1464 = vmul.f32 %v1080, %v1448
      %v1465 = vmul.f32 %v1081, %v1448
      %v1466 = vmul.f32 %v1082, %v1448
      %v1467 = vmul.f32 %v1083, %v1448
      %v1468 = vmul.f32 %v1084, %v1448
      %v1469 = vmul.f32 %v1085, %v1448
      %v1470 = vmul.f32 %v1086, %v1448
      %v1471 = vmul.f32 %v1087, %v1448
      %v1472 = vmul.f32 %v1088, %v1448
      %v1473 = vmul.f32 %v1089, %v1448
      %v1474 = vmul.f32 %v1090, %v1448
      %v1475 = vmul.f32 %v1091, %v1448
      %v1476 = vmul.f32 %v1092, %v1448
      %v1477 = vmul.f32 %v1093, %v1448
      %v1478 = vmul.f32 %v1094, %v1448
      %v1479 = vmul.f32 %v1095, %v1448
      %v1480 = vmul.f32 %v1096, %v1448
      %v1481 = vadd.f32 %v1412, %v1449
      %v1482 = vadd.f32 %v1413, %v1450
      %v1483 = vadd.f32 %v1414, %v1451
      %v1484 = vadd.f32 %v1415, %v1452
      %v1485 = vadd.f32 %v1416, %v1453
      %v1486 = vadd.f32 %v1417, %v1454
      %v1487 = vadd.f32 %v1418, %v1455
      %v1488 = vadd.f32 %v1419, %v1456
      %v1489 = vadd.f32 %v1420, %v1457
      %v1490 = vadd.f32 %v1421, %v1458
      %v1491 = vadd.f32 %v1422, %v1459
      %v1492 = vadd.f32 %v1423, %v1460
      %v1493 = vadd.f32 %v1424, %v1461
      %v1494 = vadd.f32 %v1425, %v1462
      %v1495 = vadd.f32 %v1426, %v1463
      %v1496 = vadd.f32 %v1427, %v1464
      %v1497 = vadd.f32 %v1428, %v1465
      %v1498 = vadd.f32 %v1429, %v1466
      %v1499 = vadd.f32 %v1430, %v1467
      %v1500 = vadd.f32 %v1431, %v1468
      %v1501 = vadd.f32 %v1432, %v1469
      %v1502 = vadd.f32 %v1433, %v1470
      %v1503 = vadd.f32 %v1434, %v1471
      %v1504 = vadd.f32 %v1435, %v1472
      %v1505 = vadd.f32 %v1436, %v1473
      %v1506 = vadd.f32 %v1437, %v1474
      %v1507 = vadd.f32 %v1438, %v1475
      %v1508 = vadd.f32 %v1439, %v1476
      %v1509 = vadd.f32 %v1440, %v1477
      %v1510 = vadd.f32 %v1441, %v1478
      %v1511 = vadd.f32 %v1442, %v1479
      %v1512 = vadd.f32 %v1443, %v1480
      %v1513 = vld [vmem:[%s1 + $0x2b] sm:$0x1]
      %v1514 = vlaneseq
      %v1515 = vshrl.u32 %v1514, 7
      %v1516 = vsub.s32 0, %v1515
      %v1517 = vrot.slane %v1513, %v1516
      %v1518 = vmul.f32 %v1067, %v1517
      %v1519 = vmul.f32 %v1068, %v1517
      %v1520 = vmul.f32 %v1069, %v1517
      %v1521 = vmul.f32 %v1070, %v1517
      %v1522 = vmul.f32 %v1071, %v1517
      %v1523 = vmul.f32 %v1072, %v1517
      %v1524 = vmul.f32 %v1073, %v1517
      %v1525 = vmul.f32 %v1074, %v1517
      %v1526 = vmul.f32 %v1075, %v1517
      %v1527 = vmul.f32 %v1076, %v1517
      %v1528 = vmul.f32 %v1077, %v1517
      %v1529 = vmul.f32 %v1078, %v1517
      %v1530 = vmul.f32 %v1079, %v1517
      %v1531 = vmul.f32 %v1080, %v1517
      %v1532 = vmul.f32 %v1081, %v1517
      %v1533 = vmul.f32 %v1082, %v1517
      %v1534 = vmul.f32 %v1083, %v1517
      %v1535 = vmul.f32 %v1084, %v1517
      %v1536 = vmul.f32 %v1085, %v1517
      %v1537 = vmul.f32 %v1086, %v1517
      %v1538 = vmul.f32 %v1087, %v1517
      %v1539 = vmul.f32 %v1088, %v1517
      %v1540 = vmul.f32 %v1089, %v1517
      %v1541 = vmul.f32 %v1090, %v1517
      %v1542 = vmul.f32 %v1091, %v1517
      %v1543 = vmul.f32 %v1092, %v1517
      %v1544 = vmul.f32 %v1093, %v1517
      %v1545 = vmul.f32 %v1094, %v1517
      %v1546 = vmul.f32 %v1095, %v1517
      %v1547 = vmul.f32 %v1096, %v1517
      %v1548 = vmul.f32 %v1097, %v1517
      %v1549 = vmul.f32 %v1098, %v1517
      %v1550 = vadd.f32 %v1481, %v1518
      %v1551 = vadd.f32 %v1482, %v1519
      %v1552 = vadd.f32 %v1483, %v1520
      %v1553 = vadd.f32 %v1484, %v1521
      %v1554 = vadd.f32 %v1485, %v1522
      %v1555 = vadd.f32 %v1486, %v1523
      %v1556 = vadd.f32 %v1487, %v1524
      %v1557 = vadd.f32 %v1488, %v1525
      %v1558 = vadd.f32 %v1489, %v1526
      %v1559 = vadd.f32 %v1490, %v1527
      %v1560 = vadd.f32 %v1491, %v1528
      %v1561 = vadd.f32 %v1492, %v1529
      %v1562 = vadd.f32 %v1493, %v1530
      %v1563 = vadd.f32 %v1494, %v1531
      %v1564 = vadd.f32 %v1495, %v1532
      %v1565 = vadd.f32 %v1496, %v1533
      %v1566 = vadd.f32 %v1497, %v1534
      %v1567 = vadd.f32 %v1498, %v1535
      %v1568 = vadd.f32 %v1499, %v1536
      %v1569 = vadd.f32 %v1500, %v1537
      %v1570 = vadd.f32 %v1501, %v1538
      %v1571 = vadd.f32 %v1502, %v1539
      %v1572 = vadd.f32 %v1503, %v1540
      %v1573 = vadd.f32 %v1504, %v1541
      %v1574 = vadd.f32 %v1505, %v1542
      %v1575 = vadd.f32 %v1506, %v1543
      %v1576 = vadd.f32 %v1507, %v1544
      %v1577 = vadd.f32 %v1508, %v1545
      %v1578 = vadd.f32 %v1509, %v1546
      %v1579 = vadd.f32 %v1510, %v1547
      %v1580 = vadd.f32 %v1511, %v1548
      %v1581 = vadd.f32 %v1512, %v1549
      %v1582 = vld [vmem:[#allocation2 + $0x2] sm:$0xff]
      %v1583 = vld [vmem:[#allocation2 + $0xa] sm:$0xff]
      %v1584 = vld [vmem:[#allocation2 + $0x1a] sm:$0xff]
      %v1585 = vld [vmem:[#allocation2 + $0x22] sm:$0xff]
      %v1586 = vld [vmem:[#allocation2 + $0x32] sm:$0xff]
      %v1587 = vld [vmem:[#allocation2 + $0x3a] sm:$0xff]
      %v1588 = vld [vmem:[#allocation2 + $0x4a] sm:$0xff]
      %v1589 = vld [vmem:[#allocation2 + $0x52] sm:$0xff]
      %v1590 = vld [vmem:[#allocation2 + $0x62] sm:$0xff]
      %v1591 = vld [vmem:[#allocation2 + $0x6a] sm:$0xff]
      %v1592 = vld [vmem:[#allocation2 + $0x7a] sm:$0xff]
      %v1593 = vld [vmem:[#allocation2 + $0x82] sm:$0xff]
      %v1594 = vld [vmem:[#allocation2 + $0x92] sm:$0xff]
      %v1595 = vld [vmem:[#allocation2 + $0x9a] sm:$0xff]
      %v1596 = vld [vmem:[#allocation2 + $0xaa] sm:$0xff]
      %v1597 = vld [vmem:[#allocation2 + $0xb2] sm:$0xff]
      %v1598 = vld [vmem:[#allocation2 + $0xc2] sm:$0xff]
      %v1599 = vld [vmem:[#allocation2 + $0xca] sm:$0xff]
      %v1600 = vld [vmem:[#allocation2 + $0xda] sm:$0xff]
      %v1601 = vld [vmem:[#allocation2 + $0xe2] sm:$0xff]
      %v1602 = vld [vmem:[#allocation2 + $0xf2] sm:$0xff]
      %v1603 = vld [vmem:[#allocation2 + $0xfa] sm:$0xff]
      %v1604 = vld [vmem:[#allocation2 + $0x10a] sm:$0xff]
      %v1605 = vld [vmem:[#allocation2 + $0x112] sm:$0xff]
      %v1606 = vld [vmem:[#allocation2 + $0x122] sm:$0xff]
      %v1607 = vld [vmem:[#allocation2 + $0x12a] sm:$0xff]
      %v1608 = vld [vmem:[#allocation2 + $0x13a] sm:$0xff]
      %v1609 = vld [vmem:[#allocation2 + $0x142] sm:$0xff]
      %v1610 = vld [vmem:[#allocation2 + $0x152] sm:$0xff]
      %v1611 = vld [vmem:[#allocation2 + $0x15a] sm:$0xff]
      %v1612 = vld [vmem:[#allocation2 + $0x16a] sm:$0xff]
      %v1613 = vld [vmem:[#allocation2 + $0x172] sm:$0xff]
      %v1614 = vld [vmem:[#allocation2 + $0x182] sm:$0xff]
      %v1615 = vld [vmem:[#allocation2 + $0x18a] sm:$0xff]
      %v1616 = vld [vmem:[#allocation2 + $0x19a] sm:$0xff]
      %v1617 = vld [vmem:[#allocation2 + $0x1a2] sm:$0xff]
      %v1618 = vld [vmem:[#allocation2 + $0x1b2] sm:$0xff]
      %v1619 = vld [vmem:[#allocation2 + $0x1ba] sm:$0xff]
      %v1620 = vld [vmem:[#allocation2 + $0x1ca] sm:$0xff]
      %v1621 = vld [vmem:[#allocation2 + $0x1d2] sm:$0xff]
      %v1622 = vld [vmem:[#allocation2 + $0x1e2] sm:$0xff]
      %v1623 = vld [vmem:[#allocation2 + $0x1ea] sm:$0xff]
      %v1624 = vld [vmem:[#allocation2 + $0x1fa] sm:$0xff]
      %v1625 = vld [vmem:[#allocation2 + $0x202] sm:$0xff]
      %v1626 = vld [vmem:[%s1 + $0x2] sm:$0x1]
      %v1627 = vlaneseq
      %v1628 = vshrl.u32 %v1627, 7
      %v1629 = vsub.s32 0, %v1628
      %v1630 = vrot.slane %v1626, %v1629
      %v1631 = vmul.f32 %v1582, %v1630
      %v1632 = vmul.f32 %v1583, %v1630
      %v1633 = vmul.f32 %v1584, %v1630
      %v1634 = vmul.f32 %v1585, %v1630
      %v1635 = vmul.f32 %v1586, %v1630
      %v1636 = vmul.f32 %v1587, %v1630
      %v1637 = vmul.f32 %v1588, %v1630
      %v1638 = vmul.f32 %v1589, %v1630
      %v1639 = vmul.f32 %v1590, %v1630
      %v1640 = vmul.f32 %v1591, %v1630
      %v1641 = vmul.f32 %v1592, %v1630
      %v1642 = vmul.f32 %v1593, %v1630
      %v1643 = vmul.f32 %v1594, %v1630
      %v1644 = vmul.f32 %v1595, %v1630
      %v1645 = vmul.f32 %v1596, %v1630
      %v1646 = vmul.f32 %v1597, %v1630
      %v1647 = vmul.f32 %v1598, %v1630
      %v1648 = vmul.f32 %v1599, %v1630
      %v1649 = vmul.f32 %v1600, %v1630
      %v1650 = vmul.f32 %v1601, %v1630
      %v1651 = vmul.f32 %v1602, %v1630
      %v1652 = vmul.f32 %v1603, %v1630
      %v1653 = vmul.f32 %v1604, %v1630
      %v1654 = vmul.f32 %v1605, %v1630
      %v1655 = vmul.f32 %v1606, %v1630
      %v1656 = vmul.f32 %v1607, %v1630
      %v1657 = vmul.f32 %v1608, %v1630
      %v1658 = vmul.f32 %v1609, %v1630
      %v1659 = vmul.f32 %v1610, %v1630
      %v1660 = vmul.f32 %v1611, %v1630
      %v1661 = vmul.f32 %v1612, %v1630
      %v1662 = vmul.f32 %v1613, %v1630
      %v1663 = vadd.f32 %v1550, %v1631
      %v1664 = vadd.f32 %v1551, %v1632
      %v1665 = vadd.f32 %v1552, %v1633
      %v1666 = vadd.f32 %v1553, %v1634
      %v1667 = vadd.f32 %v1554, %v1635
      %v1668 = vadd.f32 %v1555, %v1636
      %v1669 = vadd.f32 %v1556, %v1637
      %v1670 = vadd.f32 %v1557, %v1638
      %v1671 = vadd.f32 %v1558, %v1639
      %v1672 = vadd.f32 %v1559, %v1640
      %v1673 = vadd.f32 %v1560, %v1641
      %v1674 = vadd.f32 %v1561, %v1642
      %v1675 = vadd.f32 %v1562, %v1643
      %v1676 = vadd.f32 %v1563, %v1644
      %v1677 = vadd.f32 %v1564, %v1645
      %v1678 = vadd.f32 %v1565, %v1646
      %v1679 = vadd.f32 %v1566, %v1647
      %v1680 = vadd.f32 %v1567, %v1648
      %v1681 = vadd.f32 %v1568, %v1649
      %v1682 = vadd.f32 %v1569, %v1650
      %v1683 = vadd.f32 %v1570, %v1651
      %v1684 = vadd.f32 %v1571, %v1652
      %v1685 = vadd.f32 %v1572, %v1653
      %v1686 = vadd.f32 %v1573, %v1654
      %v1687 = vadd.f32 %v1574, %v1655
      %v1688 = vadd.f32 %v1575, %v1656
      %v1689 = vadd.f32 %v1576, %v1657
      %v1690 = vadd.f32 %v1577, %v1658
      %v1691 = vadd.f32 %v1578, %v1659
      %v1692 = vadd.f32 %v1579, %v1660
      %v1693 = vadd.f32 %v1580, %v1661
      %v1694 = vadd.f32 %v1581, %v1662
      %v1695 = vld [vmem:[%s1 + $0x9] sm:$0x1]
      %v1696 = vlaneseq
      %v1697 = vshrl.u32 %v1696, 7
      %v1698 = vsub.s32 0, %v1697
      %v1699 = vrot.slane %v1695, %v1698
      %v1700 = vmul.f32 %v1584, %v1699
      %v1701 = vmul.f32 %v1585, %v1699
      %v1702 = vmul.f32 %v1586, %v1699
      %v1703 = vmul.f32 %v1587, %v1699
      %v1704 = vmul.f32 %v1588, %v1699
      %v1705 = vmul.f32 %v1589, %v1699
      %v1706 = vmul.f32 %v1590, %v1699
      %v1707 = vmul.f32 %v1591, %v1699
      %v1708 = vmul.f32 %v1592, %v1699
      %v1709 = vmul.f32 %v1593, %v1699
      %v1710 = vmul.f32 %v1594, %v1699
      %v1711 = vmul.f32 %v1595, %v1699
      %v1712 = vmul.f32 %v1596, %v1699
      %v1713 = vmul.f32 %v1597, %v1699
      %v1714 = vmul.f32 %v1598, %v1699
      %v1715 = vmul.f32 %v1599, %v1699
      %v1716 = vmul.f32 %v1600, %v1699
      %v1717 = vmul.f32 %v1601, %v1699
      %v1718 = vmul.f32 %v1602, %v1699
      %v1719 = vmul.f32 %v1603, %v1699
      %v1720 = vmul.f32 %v1604, %v1699
      %v1721 = vmul.f32 %v1605, %v1699
      %v1722 = vmul.f32 %v1606, %v1699
      %v1723 = vmul.f32 %v1607, %v1699
      %v1724 = vmul.f32 %v1608, %v1699
      %v1725 = vmul.f32 %v1609, %v1699
      %v1726 = vmul.f32 %v1610, %v1699
      %v1727 = vmul.f32 %v1611, %v1699
      %v1728 = vmul.f32 %v1612, %v1699
      %v1729 = vmul.f32 %v1613, %v1699
      %v1730 = vmul.f32 %v1614, %v1699
      %v1731 = vmul.f32 %v1615, %v1699
      %v1732 = vadd.f32 %v1663, %v1700
      %v1733 = vadd.f32 %v1664, %v1701
      %v1734 = vadd.f32 %v1665, %v1702
      %v1735 = vadd.f32 %v1666, %v1703
      %v1736 = vadd.f32 %v1667, %v1704
      %v1737 = vadd.f32 %v1668, %v1705
      %v1738 = vadd.f32 %v1669, %v1706
      %v1739 = vadd.f32 %v1670, %v1707
      %v1740 = vadd.f32 %v1671, %v1708
      %v1741 = vadd.f32 %v1672, %v1709
      %v1742 = vadd.f32 %v1673, %v1710
      %v1743 = vadd.f32 %v1674, %v1711
      %v1744 = vadd.f32 %v1675, %v1712
      %v1745 = vadd.f32 %v1676, %v1713
      %v1746 = vadd.f32 %v1677, %v1714
      %v1747 = vadd.f32 %v1678, %v1715
      %v1748 = vadd.f32 %v1679, %v1716
      %v1749 = vadd.f32 %v1680, %v1717
      %v1750 = vadd.f32 %v1681, %v1718
      %v1751 = vadd.f32 %v1682, %v1719
      %v1752 = vadd.f32 %v1683, %v1720
      %v1753 = vadd.f32 %v1684, %v1721
      %v1754 = vadd.f32 %v1685, %v1722
      %v1755 = vadd.f32 %v1686, %v1723
      %v1756 = vadd.f32 %v1687, %v1724
      %v1757 = vadd.f32 %v1688, %v1725
      %v1758 = vadd.f32 %v1689, %v1726
      %v1759 = vadd.f32 %v1690, %v1727
      %v1760 = vadd.f32 %v1691, %v1728
      %v1761 = vadd.f32 %v1692, %v1729
      %v1762 = vadd.f32 %v1693, %v1730
      %v1763 = vadd.f32 %v1694, %v1731
      %v1764 = vld [vmem:[%s1 + $0x10] sm:$0x1]
      %v1765 = vlaneseq
      %v1766 = vshrl.u32 %v1765, 7
      %v1767 = vsub.s32 0, %v1766
      %v1768 = vrot.slane %v1764, %v1767
      %v1769 = vmul.f32 %v1586, %v1768
      %v1770 = vmul.f32 %v1587, %v1768
      %v1771 = vmul.f32 %v1588, %v1768
      %v1772 = vmul.f32 %v1589, %v1768
      %v1773 = vmul.f32 %v1590, %v1768
      %v1774 = vmul.f32 %v1591, %v1768
      %v1775 = vmul.f32 %v1592, %v1768
      %v1776 = vmul.f32 %v1593, %v1768
      %v1777 = vmul.f32 %v1594, %v1768
      %v1778 = vmul.f32 %v1595, %v1768
      %v1779 = vmul.f32 %v1596, %v1768
      %v1780 = vmul.f32 %v1597, %v1768
      %v1781 = vmul.f32 %v1598, %v1768
      %v1782 = vmul.f32 %v1599, %v1768
      %v1783 = vmul.f32 %v1600, %v1768
      %v1784 = vmul.f32 %v1601, %v1768
      %v1785 = vmul.f32 %v1602, %v1768
      %v1786 = vmul.f32 %v1603, %v1768
      %v1787 = vmul.f32 %v1604, %v1768
      %v1788 = vmul.f32 %v1605, %v1768
      %v1789 = vmul.f32 %v1606, %v1768
      %v1790 = vmul.f32 %v1607, %v1768
      %v1791 = vmul.f32 %v1608, %v1768
      %v1792 = vmul.f32 %v1609, %v1768
      %v1793 = vmul.f32 %v1610, %v1768
      %v1794 = vmul.f32 %v1611, %v1768
      %v1795 = vmul.f32 %v1612, %v1768
      %v1796 = vmul.f32 %v1613, %v1768
      %v1797 = vmul.f32 %v1614, %v1768
      %v1798 = vmul.f32 %v1615, %v1768
      %v1799 = vmul.f32 %v1616, %v1768
      %v1800 = vmul.f32 %v1617, %v1768
      %v1801 = vadd.f32 %v1732, %v1769
      %v1802 = vadd.f32 %v1733, %v1770
      %v1803 = vadd.f32 %v1734, %v1771
      %v1804 = vadd.f32 %v1735, %v1772
      %v1805 = vadd.f32 %v1736, %v1773
      %v1806 = vadd.f32 %v1737, %v1774
      %v1807 = vadd.f32 %v1738, %v1775
      %v1808 = vadd.f32 %v1739, %v1776
      %v1809 = vadd.f32 %v1740, %v1777
      %v1810 = vadd.f32 %v1741, %v1778
      %v1811 = vadd.f32 %v1742, %v1779
      %v1812 = vadd.f32 %v1743, %v1780
      %v1813 = vadd.f32 %v1744, %v1781
      %v1814 = vadd.f32 %v1745, %v1782
      %v1815 = vadd.f32 %v1746, %v1783
      %v1816 = vadd.f32 %v1747, %v1784
      %v1817 = vadd.f32 %v1748, %v1785
      %v1818 = vadd.f32 %v1749, %v1786
      %v1819 = vadd.f32 %v1750, %v1787
      %v1820 = vadd.f32 %v1751, %v1788
      %v1821 = vadd.f32 %v1752, %v1789
      %v1822 = vadd.f32 %v1753, %v1790
      %v1823 = vadd.f32 %v1754, %v1791
      %v1824 = vadd.f32 %v1755, %v1792
      %v1825 = vadd.f32 %v1756, %v1793
      %v1826 = vadd.f32 %v1757, %v1794
      %v1827 = vadd.f32 %v1758, %v1795
      %v1828 = vadd.f32 %v1759, %v1796
      %v1829 = vadd.f32 %v1760, %v1797
      %v1830 = vadd.f32 %v1761, %v1798
      %v1831 = vadd.f32 %v1762, %v1799
      %v1832 = vadd.f32 %v1763, %v1800
      %v1833 = vld [vmem:[%s1 + $0x17] sm:$0x1]
      %v1834 = vlaneseq
      %v1835 = vshrl.u32 %v1834, 7
      %v1836 = vsub.s32 0, %v1835
      %v1837 = vrot.slane %v1833, %v1836
      %v1838 = vmul.f32 %v1588, %v1837
      %v1839 = vmul.f32 %v1589, %v1837
      %v1840 = vmul.f32 %v1590, %v1837
      %v1841 = vmul.f32 %v1591, %v1837
      %v1842 = vmul.f32 %v1592, %v1837
      %v1843 = vmul.f32 %v1593, %v1837
      %v1844 = vmul.f32 %v1594, %v1837
      %v1845 = vmul.f32 %v1595, %v1837
      %v1846 = vmul.f32 %v1596, %v1837
      %v1847 = vmul.f32 %v1597, %v1837
      %v1848 = vmul.f32 %v1598, %v1837
      %v1849 = vmul.f32 %v1599, %v1837
      %v1850 = vmul.f32 %v1600, %v1837
      %v1851 = vmul.f32 %v1601, %v1837
      %v1852 = vmul.f32 %v1602, %v1837
      %v1853 = vmul.f32 %v1603, %v1837
      %v1854 = vmul.f32 %v1604, %v1837
      %v1855 = vmul.f32 %v1605, %v1837
      %v1856 = vmul.f32 %v1606, %v1837
      %v1857 = vmul.f32 %v1607, %v1837
      %v1858 = vmul.f32 %v1608, %v1837
      %v1859 = vmul.f32 %v1609, %v1837
      %v1860 = vmul.f32 %v1610, %v1837
      %v1861 = vmul.f32 %v1611, %v1837
      %v1862 = vmul.f32 %v1612, %v1837
      %v1863 = vmul.f32 %v1613, %v1837
      %v1864 = vmul.f32 %v1614, %v1837
      %v1865 = vmul.f32 %v1615, %v1837
      %v1866 = vmul.f32 %v1616, %v1837
      %v1867 = vmul.f32 %v1617, %v1837
      %v1868 = vmul.f32 %v1618, %v1837
      %v1869 = vmul.f32 %v1619, %v1837
      %v1870 = vadd.f32 %v1801, %v1838
      %v1871 = vadd.f32 %v1802, %v1839
      %v1872 = vadd.f32 %v1803, %v1840
      %v1873 = vadd.f32 %v1804, %v1841
      %v1874 = vadd.f32 %v1805, %v1842
      %v1875 = vadd.f32 %v1806, %v1843
      %v1876 = vadd.f32 %v1807, %v1844
      %v1877 = vadd.f32 %v1808, %v1845
      %v1878 = vadd.f32 %v1809, %v1846
      %v1879 = vadd.f32 %v1810, %v1847
      %v1880 = vadd.f32 %v1811, %v1848
      %v1881 = vadd.f32 %v1812, %v1849
      %v1882 = vadd.f32 %v1813, %v1850
      %v1883 = vadd.f32 %v1814, %v1851
      %v1884 = vadd.f32 %v1815, %v1852
      %v1885 = vadd.f32 %v1816, %v1853
      %v1886 = vadd.f32 %v1817, %v1854
      %v1887 = vadd.f32 %v1818, %v1855
      %v1888 = vadd.f32 %v1819, %v1856
      %v1889 = vadd.f32 %v1820, %v1857
      %v1890 = vadd.f32 %v1821, %v1858
      %v1891 = vadd.f32 %v1822, %v1859
      %v1892 = vadd.f32 %v1823, %v1860
      %v1893 = vadd.f32 %v1824, %v1861
      %v1894 = vadd.f32 %v1825, %v1862
      %v1895 = vadd.f32 %v1826, %v1863
      %v1896 = vadd.f32 %v1827, %v1864
      %v1897 = vadd.f32 %v1828, %v1865
      %v1898 = vadd.f32 %v1829, %v1866
      %v1899 = vadd.f32 %v1830, %v1867
      %v1900 = vadd.f32 %v1831, %v1868
      %v1901 = vadd.f32 %v1832, %v1869
      %v1902 = vld [vmem:[%s1 + $0x1e] sm:$0x1]
      %v1903 = vlaneseq
      %v1904 = vshrl.u32 %v1903, 7
      %v1905 = vsub.s32 0, %v1904
      %v1906 = vrot.slane %v1902, %v1905
      %v1907 = vmul.f32 %v1590, %v1906
      %v1908 = vmul.f32 %v1591, %v1906
      %v1909 = vmul.f32 %v1592, %v1906
      %v1910 = vmul.f32 %v1593, %v1906
      %v1911 = vmul.f32 %v1594, %v1906
      %v1912 = vmul.f32 %v1595, %v1906
      %v1913 = vmul.f32 %v1596, %v1906
      %v1914 = vmul.f32 %v1597, %v1906
      %v1915 = vmul.f32 %v1598, %v1906
      %v1916 = vmul.f32 %v1599, %v1906
      %v1917 = vmul.f32 %v1600, %v1906
      %v1918 = vmul.f32 %v1601, %v1906
      %v1919 = vmul.f32 %v1602, %v1906
      %v1920 = vmul.f32 %v1603, %v1906
      %v1921 = vmul.f32 %v1604, %v1906
      %v1922 = vmul.f32 %v1605, %v1906
      %v1923 = vmul.f32 %v1606, %v1906
      %v1924 = vmul.f32 %v1607, %v1906
      %v1925 = vmul.f32 %v1608, %v1906
      %v1926 = vmul.f32 %v1609, %v1906
      %v1927 = vmul.f32 %v1610, %v1906
      %v1928 = vmul.f32 %v1611, %v1906
      %v1929 = vmul.f32 %v1612, %v1906
      %v1930 = vmul.f32 %v1613, %v1906
      %v1931 = vmul.f32 %v1614, %v1906
      %v1932 = vmul.f32 %v1615, %v1906
      %v1933 = vmul.f32 %v1616, %v1906
      %v1934 = vmul.f32 %v1617, %v1906
      %v1935 = vmul.f32 %v1618, %v1906
      %v1936 = vmul.f32 %v1619, %v1906
      %v1937 = vmul.f32 %v1620, %v1906
      %v1938 = vmul.f32 %v1621, %v1906
      %v1939 = vadd.f32 %v1870, %v1907
      %v1940 = vadd.f32 %v1871, %v1908
      %v1941 = vadd.f32 %v1872, %v1909
      %v1942 = vadd.f32 %v1873, %v1910
      %v1943 = vadd.f32 %v1874, %v1911
      %v1944 = vadd.f32 %v1875, %v1912
      %v1945 = vadd.f32 %v1876, %v1913
      %v1946 = vadd.f32 %v1877, %v1914
      %v1947 = vadd.f32 %v1878, %v1915
      %v1948 = vadd.f32 %v1879, %v1916
      %v1949 = vadd.f32 %v1880, %v1917
      %v1950 = vadd.f32 %v1881, %v1918
      %v1951 = vadd.f32 %v1882, %v1919
      %v1952 = vadd.f32 %v1883, %v1920
      %v1953 = vadd.f32 %v1884, %v1921
      %v1954 = vadd.f32 %v1885, %v1922
      %v1955 = vadd.f32 %v1886, %v1923
      %v1956 = vadd.f32 %v1887, %v1924
      %v1957 = vadd.f32 %v1888, %v1925
      %v1958 = vadd.f32 %v1889, %v1926
      %v1959 = vadd.f32 %v1890, %v1927
      %v1960 = vadd.f32 %v1891, %v1928
      %v1961 = vadd.f32 %v1892, %v1929
      %v1962 = vadd.f32 %v1893, %v1930
      %v1963 = vadd.f32 %v1894, %v1931
      %v1964 = vadd.f32 %v1895, %v1932
      %v1965 = vadd.f32 %v1896, %v1933
      %v1966 = vadd.f32 %v1897, %v1934
      %v1967 = vadd.f32 %v1898, %v1935
      %v1968 = vadd.f32 %v1899, %v1936
      %v1969 = vadd.f32 %v1900, %v1937
      %v1970 = vadd.f32 %v1901, %v1938
      %v1971 = vld [vmem:[%s1 + $0x25] sm:$0x1]
      %v1972 = vlaneseq
      %v1973 = vshrl.u32 %v1972, 7
      %v1974 = vsub.s32 0, %v1973
      %v1975 = vrot.slane %v1971, %v1974
      %v1976 = vmul.f32 %v1592, %v1975
      %v1977 = vmul.f32 %v1593, %v1975
      %v1978 = vmul.f32 %v1594, %v1975
      %v1979 = vmul.f32 %v1595, %v1975
      %v1980 = vmul.f32 %v1596, %v1975
      %v1981 = vmul.f32 %v1597, %v1975
      %v1982 = vmul.f32 %v1598, %v1975
      %v1983 = vmul.f32 %v1599, %v1975
      %v1984 = vmul.f32 %v1600, %v1975
      %v1985 = vmul.f32 %v1601, %v1975
      %v1986 = vmul.f32 %v1602, %v1975
      %v1987 = vmul.f32 %v1603, %v1975
      %v1988 = vmul.f32 %v1604, %v1975
      %v1989 = vmul.f32 %v1605, %v1975
      %v1990 = vmul.f32 %v1606, %v1975
      %v1991 = vmul.f32 %v1607, %v1975
      %v1992 = vmul.f32 %v1608, %v1975
      %v1993 = vmul.f32 %v1609, %v1975
      %v1994 = vmul.f32 %v1610, %v1975
      %v1995 = vmul.f32 %v1611, %v1975
      %v1996 = vmul.f32 %v1612, %v1975
      %v1997 = vmul.f32 %v1613, %v1975
      %v1998 = vmul.f32 %v1614, %v1975
      %v1999 = vmul.f32 %v1615, %v1975
      %v2000 = vmul.f32 %v1616, %v1975
      %v2001 = vmul.f32 %v1617, %v1975
      %v2002 = vmul.f32 %v1618, %v1975
      %v2003 = vmul.f32 %v1619, %v1975
      %v2004 = vmul.f32 %v1620, %v1975
      %v2005 = vmul.f32 %v1621, %v1975
      %v2006 = vmul.f32 %v1622, %v1975
      %v2007 = vmul.f32 %v1623, %v1975
      %v2008 = vadd.f32 %v1939, %v1976
      %v2009 = vadd.f32 %v1940, %v1977
      %v2010 = vadd.f32 %v1941, %v1978
      %v2011 = vadd.f32 %v1942, %v1979
      %v2012 = vadd.f32 %v1943, %v1980
      %v2013 = vadd.f32 %v1944, %v1981
      %v2014 = vadd.f32 %v1945, %v1982
      %v2015 = vadd.f32 %v1946, %v1983
      %v2016 = vadd.f32 %v1947, %v1984
      %v2017 = vadd.f32 %v1948, %v1985
      %v2018 = vadd.f32 %v1949, %v1986
      %v2019 = vadd.f32 %v1950, %v1987
      %v2020 = vadd.f32 %v1951, %v1988
      %v2021 = vadd.f32 %v1952, %v1989
      %v2022 = vadd.f32 %v1953, %v1990
      %v2023 = vadd.f32 %v1954, %v1991
      %v2024 = vadd.f32 %v1955, %v1992
      %v2025 = vadd.f32 %v1956, %v1993
      %v2026 = vadd.f32 %v1957, %v1994
      %v2027 = vadd.f32 %v1958, %v1995
      %v2028 = vadd.f32 %v1959, %v1996
      %v2029 = vadd.f32 %v1960, %v1997
      %v2030 = vadd.f32 %v1961, %v1998
      %v2031 = vadd.f32 %v1962, %v1999
      %v2032 = vadd.f32 %v1963, %v2000
      %v2033 = vadd.f32 %v1964, %v2001
      %v2034 = vadd.f32 %v1965, %v2002
      %v2035 = vadd.f32 %v1966, %v2003
      %v2036 = vadd.f32 %v1967, %v2004
      %v2037 = vadd.f32 %v1968, %v2005
      %v2038 = vadd.f32 %v1969, %v2006
      %v2039 = vadd.f32 %v1970, %v2007
      %v2040 = vld [vmem:[%s1 + $0x2c] sm:$0x1]
      %v2041 = vlaneseq
      %v2042 = vshrl.u32 %v2041, 7
      %v2043 = vsub.s32 0, %v2042
      %v2044 = vrot.slane %v2040, %v2043
      %v2045 = vmul.f32 %v1594, %v2044
      %v2046 = vmul.f32 %v1595, %v2044
      %v2047 = vmul.f32 %v1596, %v2044
      %v2048 = vmul.f32 %v1597, %v2044
      %v2049 = vmul.f32 %v1598, %v2044
      %v2050 = vmul.f32 %v1599, %v2044
      %v2051 = vmul.f32 %v1600, %v2044
      %v2052 = vmul.f32 %v1601, %v2044
      %v2053 = vmul.f32 %v1602, %v2044
      %v2054 = vmul.f32 %v1603, %v2044
      %v2055 = vmul.f32 %v1604, %v2044
      %v2056 = vmul.f32 %v1605, %v2044
      %v2057 = vmul.f32 %v1606, %v2044
      %v2058 = vmul.f32 %v1607, %v2044
      %v2059 = vmul.f32 %v1608, %v2044
      %v2060 = vmul.f32 %v1609, %v2044
      %v2061 = vmul.f32 %v1610, %v2044
      %v2062 = vmul.f32 %v1611, %v2044
      %v2063 = vmul.f32 %v1612, %v2044
      %v2064 = vmul.f32 %v1613, %v2044
      %v2065 = vmul.f32 %v1614, %v2044
      %v2066 = vmul.f32 %v1615, %v2044
      %v2067 = vmul.f32 %v1616, %v2044
      %v2068 = vmul.f32 %v1617, %v2044
      %v2069 = vmul.f32 %v1618, %v2044
      %v2070 = vmul.f32 %v1619, %v2044
      %v2071 = vmul.f32 %v1620, %v2044
      %v2072 = vmul.f32 %v1621, %v2044
      %v2073 = vmul.f32 %v1622, %v2044
      %v2074 = vmul.f32 %v1623, %v2044
      %v2075 = vmul.f32 %v1624, %v2044
      %v2076 = vmul.f32 %v1625, %v2044
      %v2077 = vadd.f32 %v2008, %v2045
      %v2078 = vadd.f32 %v2009, %v2046
      %v2079 = vadd.f32 %v2010, %v2047
      %v2080 = vadd.f32 %v2011, %v2048
      %v2081 = vadd.f32 %v2012, %v2049
      %v2082 = vadd.f32 %v2013, %v2050
      %v2083 = vadd.f32 %v2014, %v2051
      %v2084 = vadd.f32 %v2015, %v2052
      %v2085 = vadd.f32 %v2016, %v2053
      %v2086 = vadd.f32 %v2017, %v2054
      %v2087 = vadd.f32 %v2018, %v2055
      %v2088 = vadd.f32 %v2019, %v2056
      %v2089 = vadd.f32 %v2020, %v2057
      %v2090 = vadd.f32 %v2021, %v2058
      %v2091 = vadd.f32 %v2022, %v2059
      %v2092 = vadd.f32 %v2023, %v2060
      %v2093 = vadd.f32 %v2024, %v2061
      %v2094 = vadd.f32 %v2025, %v2062
      %v2095 = vadd.f32 %v2026, %v2063
      %v2096 = vadd.f32 %v2027, %v2064
      %v2097 = vadd.f32 %v2028, %v2065
      %v2098 = vadd.f32 %v2029, %v2066
      %v2099 = vadd.f32 %v2030, %v2067
      %v2100 = vadd.f32 %v2031, %v2068
      %v2101 = vadd.f32 %v2032, %v2069
      %v2102 = vadd.f32 %v2033, %v2070
      %v2103 = vadd.f32 %v2034, %v2071
      %v2104 = vadd.f32 %v2035, %v2072
      %v2105 = vadd.f32 %v2036, %v2073
      %v2106 = vadd.f32 %v2037, %v2074
      %v2107 = vadd.f32 %v2038, %v2075
      %v2108 = vadd.f32 %v2039, %v2076
      %v2109 = vld [vmem:[#allocation2 + $0x3] sm:$0xff]
      %v2110 = vld [vmem:[#allocation2 + $0xb] sm:$0xff]
      %v2111 = vld [vmem:[#allocation2 + $0x1b] sm:$0xff]
      %v2112 = vld [vmem:[#allocation2 + $0x23] sm:$0xff]
      %v2113 = vld [vmem:[#allocation2 + $0x33] sm:$0xff]
      %v2114 = vld [vmem:[#allocation2 + $0x3b] sm:$0xff]
      %v2115 = vld [vmem:[#allocation2 + $0x4b] sm:$0xff]
      %v2116 = vld [vmem:[#allocation2 + $0x53] sm:$0xff]
      %v2117 = vld [vmem:[#allocation2 + $0x63] sm:$0xff]
      %v2118 = vld [vmem:[#allocation2 + $0x6b] sm:$0xff]
      %v2119 = vld [vmem:[#allocation2 + $0x7b] sm:$0xff]
      %v2120 = vld [vmem:[#allocation2 + $0x83] sm:$0xff]
      %v2121 = vld [vmem:[#allocation2 + $0x93] sm:$0xff]
      %v2122 = vld [vmem:[#allocation2 + $0x9b] sm:$0xff]
      %v2123 = vld [vmem:[#allocation2 + $0xab] sm:$0xff]
      %v2124 = vld [vmem:[#allocation2 + $0xb3] sm:$0xff]
      %v2125 = vld [vmem:[#allocation2 + $0xc3] sm:$0xff]
      %v2126 = vld [vmem:[#allocation2 + $0xcb] sm:$0xff]
      %v2127 = vld [vmem:[#allocation2 + $0xdb] sm:$0xff]
      %v2128 = vld [vmem:[#allocation2 + $0xe3] sm:$0xff]
      %v2129 = vld [vmem:[#allocation2 + $0xf3] sm:$0xff]
      %v2130 = vld [vmem:[#allocation2 + $0xfb] sm:$0xff]
      %v2131 = vld [vmem:[#allocation2 + $0x10b] sm:$0xff]
      %v2132 = vld [vmem:[#allocation2 + $0x113] sm:$0xff]
      %v2133 = vld [vmem:[#allocation2 + $0x123] sm:$0xff]
      %v2134 = vld [vmem:[#allocation2 + $0x12b] sm:$0xff]
      %v2135 = vld [vmem:[#allocation2 + $0x13b] sm:$0xff]
      %v2136 = vld [vmem:[#allocation2 + $0x143] sm:$0xff]
      %v2137 = vld [vmem:[#allocation2 + $0x153] sm:$0xff]
      %v2138 = vld [vmem:[#allocation2 + $0x15b] sm:$0xff]
      %v2139 = vld [vmem:[#allocation2 + $0x16b] sm:$0xff]
      %v2140 = vld [vmem:[#allocation2 + $0x173] sm:$0xff]
      %v2141 = vld [vmem:[#allocation2 + $0x183] sm:$0xff]
      %v2142 = vld [vmem:[#allocation2 + $0x18b] sm:$0xff]
      %v2143 = vld [vmem:[#allocation2 + $0x19b] sm:$0xff]
      %v2144 = vld [vmem:[#allocation2 + $0x1a3] sm:$0xff]
      %v2145 = vld [vmem:[#allocation2 + $0x1b3] sm:$0xff]
      %v2146 = vld [vmem:[#allocation2 + $0x1bb] sm:$0xff]
      %v2147 = vld [vmem:[#allocation2 + $0x1cb] sm:$0xff]
      %v2148 = vld [vmem:[#allocation2 + $0x1d3] sm:$0xff]
      %v2149 = vld [vmem:[#allocation2 + $0x1e3] sm:$0xff]
      %v2150 = vld [vmem:[#allocation2 + $0x1eb] sm:$0xff]
      %v2151 = vld [vmem:[#allocation2 + $0x1fb] sm:$0xff]
      %v2152 = vld [vmem:[#allocation2 + $0x203] sm:$0xff]
      %v2153 = vld [vmem:[%s1 + $0x3] sm:$0x1]
      %v2154 = vlaneseq
      %v2155 = vshrl.u32 %v2154, 7
      %v2156 = vsub.s32 0, %v2155
      %v2157 = vrot.slane %v2153, %v2156
      %v2158 = vmul.f32 %v2109, %v2157
      %v2159 = vmul.f32 %v2110, %v2157
      %v2160 = vmul.f32 %v2111, %v2157
      %v2161 = vmul.f32 %v2112, %v2157
      %v2162 = vmul.f32 %v2113, %v2157
      %v2163 = vmul.f32 %v2114, %v2157
      %v2164 = vmul.f32 %v2115, %v2157
      %v2165 = vmul.f32 %v2116, %v2157
      %v2166 = vmul.f32 %v2117, %v2157
      %v2167 = vmul.f32 %v2118, %v2157
      %v2168 = vmul.f32 %v2119, %v2157
      %v2169 = vmul.f32 %v2120, %v2157
      %v2170 = vmul.f32 %v2121, %v2157
      %v2171 = vmul.f32 %v2122, %v2157
      %v2172 = vmul.f32 %v2123, %v2157
      %v2173 = vmul.f32 %v2124, %v2157
      %v2174 = vmul.f32 %v2125, %v2157
      %v2175 = vmul.f32 %v2126, %v2157
      %v2176 = vmul.f32 %v2127, %v2157
      %v2177 = vmul.f32 %v2128, %v2157
      %v2178 = vmul.f32 %v2129, %v2157
      %v2179 = vmul.f32 %v2130, %v2157
      %v2180 = vmul.f32 %v2131, %v2157
      %v2181 = vmul.f32 %v2132, %v2157
      %v2182 = vmul.f32 %v2133, %v2157
      %v2183 = vmul.f32 %v2134, %v2157
      %v2184 = vmul.f32 %v2135, %v2157
      %v2185 = vmul.f32 %v2136, %v2157
      %v2186 = vmul.f32 %v2137, %v2157
      %v2187 = vmul.f32 %v2138, %v2157
      %v2188 = vmul.f32 %v2139, %v2157
      %v2189 = vmul.f32 %v2140, %v2157
      %v2190 = vadd.f32 %v2077, %v2158
      %v2191 = vadd.f32 %v2078, %v2159
      %v2192 = vadd.f32 %v2079, %v2160
      %v2193 = vadd.f32 %v2080, %v2161
      %v2194 = vadd.f32 %v2081, %v2162
      %v2195 = vadd.f32 %v2082, %v2163
      %v2196 = vadd.f32 %v2083, %v2164
      %v2197 = vadd.f32 %v2084, %v2165
      %v2198 = vadd.f32 %v2085, %v2166
      %v2199 = vadd.f32 %v2086, %v2167
      %v2200 = vadd.f32 %v2087, %v2168
      %v2201 = vadd.f32 %v2088, %v2169
      %v2202 = vadd.f32 %v2089, %v2170
      %v2203 = vadd.f32 %v2090, %v2171
      %v2204 = vadd.f32 %v2091, %v2172
      %v2205 = vadd.f32 %v2092, %v2173
      %v2206 = vadd.f32 %v2093, %v2174
      %v2207 = vadd.f32 %v2094, %v2175
      %v2208 = vadd.f32 %v2095, %v2176
      %v2209 = vadd.f32 %v2096, %v2177
      %v2210 = vadd.f32 %v2097, %v2178
      %v2211 = vadd.f32 %v2098, %v2179
      %v2212 = vadd.f32 %v2099, %v2180
      %v2213 = vadd.f32 %v2100, %v2181
      %v2214 = vadd.f32 %v2101, %v2182
      %v2215 = vadd.f32 %v2102, %v2183
      %v2216 = vadd.f32 %v2103, %v2184
      %v2217 = vadd.f32 %v2104, %v2185
      %v2218 = vadd.f32 %v2105, %v2186
      %v2219 = vadd.f32 %v2106, %v2187
      %v2220 = vadd.f32 %v2107, %v2188
      %v2221 = vadd.f32 %v2108, %v2189
      %v2222 = vld [vmem:[%s1 + $0xa] sm:$0x1]
      %v2223 = vlaneseq
      %v2224 = vshrl.u32 %v2223, 7
      %v2225 = vsub.s32 0, %v2224
      %v2226 = vrot.slane %v2222, %v2225
      %v2227 = vmul.f32 %v2111, %v2226
      %v2228 = vmul.f32 %v2112, %v2226
      %v2229 = vmul.f32 %v2113, %v2226
      %v2230 = vmul.f32 %v2114, %v2226
      %v2231 = vmul.f32 %v2115, %v2226
      %v2232 = vmul.f32 %v2116, %v2226
      %v2233 = vmul.f32 %v2117, %v2226
      %v2234 = vmul.f32 %v2118, %v2226
      %v2235 = vmul.f32 %v2119, %v2226
      %v2236 = vmul.f32 %v2120, %v2226
      %v2237 = vmul.f32 %v2121, %v2226
      %v2238 = vmul.f32 %v2122, %v2226
      %v2239 = vmul.f32 %v2123, %v2226
      %v2240 = vmul.f32 %v2124, %v2226
      %v2241 = vmul.f32 %v2125, %v2226
      %v2242 = vmul.f32 %v2126, %v2226
      %v2243 = vmul.f32 %v2127, %v2226
      %v2244 = vmul.f32 %v2128, %v2226
      %v2245 = vmul.f32 %v2129, %v2226
      %v2246 = vmul.f32 %v2130, %v2226
      %v2247 = vmul.f32 %v2131, %v2226
      %v2248 = vmul.f32 %v2132, %v2226
      %v2249 = vmul.f32 %v2133, %v2226
      %v2250 = vmul.f32 %v2134, %v2226
      %v2251 = vmul.f32 %v2135, %v2226
      %v2252 = vmul.f32 %v2136, %v2226
      %v2253 = vmul.f32 %v2137, %v2226
      %v2254 = vmul.f32 %v2138, %v2226
      %v2255 = vmul.f32 %v2139, %v2226
      %v2256 = vmul.f32 %v2140, %v2226
      %v2257 = vmul.f32 %v2141, %v2226
      %v2258 = vmul.f32 %v2142, %v2226
      %v2259 = vadd.f32 %v2190, %v2227
      %v2260 = vadd.f32 %v2191, %v2228
      %v2261 = vadd.f32 %v2192, %v2229
      %v2262 = vadd.f32 %v2193, %v2230
      %v2263 = vadd.f32 %v2194, %v2231
      %v2264 = vadd.f32 %v2195, %v2232
      %v2265 = vadd.f32 %v2196, %v2233
      %v2266 = vadd.f32 %v2197, %v2234
      %v2267 = vadd.f32 %v2198, %v2235
      %v2268 = vadd.f32 %v2199, %v2236
      %v2269 = vadd.f32 %v2200, %v2237
      %v2270 = vadd.f32 %v2201, %v2238
      %v2271 = vadd.f32 %v2202, %v2239
      %v2272 = vadd.f32 %v2203, %v2240
      %v2273 = vadd.f32 %v2204, %v2241
      %v2274 = vadd.f32 %v2205, %v2242
      %v2275 = vadd.f32 %v2206, %v2243
      %v2276 = vadd.f32 %v2207, %v2244
      %v2277 = vadd.f32 %v2208, %v2245
      %v2278 = vadd.f32 %v2209, %v2246
      %v2279 = vadd.f32 %v2210, %v2247
      %v2280 = vadd.f32 %v2211, %v2248
      %v2281 = vadd.f32 %v2212, %v2249
      %v2282 = vadd.f32 %v2213, %v2250
      %v2283 = vadd.f32 %v2214, %v2251
      %v2284 = vadd.f32 %v2215, %v2252
      %v2285 = vadd.f32 %v2216, %v2253
      %v2286 = vadd.f32 %v2217, %v2254
      %v2287 = vadd.f32 %v2218, %v2255
      %v2288 = vadd.f32 %v2219, %v2256
      %v2289 = vadd.f32 %v2220, %v2257
      %v2290 = vadd.f32 %v2221, %v2258
      %v2291 = vld [vmem:[%s1 + $0x11] sm:$0x1]
      %v2292 = vlaneseq
      %v2293 = vshrl.u32 %v2292, 7
      %v2294 = vsub.s32 0, %v2293
      %v2295 = vrot.slane %v2291, %v2294
      %v2296 = vmul.f32 %v2113, %v2295
      %v2297 = vmul.f32 %v2114, %v2295
      %v2298 = vmul.f32 %v2115, %v2295
      %v2299 = vmul.f32 %v2116, %v2295
      %v2300 = vmul.f32 %v2117, %v2295
      %v2301 = vmul.f32 %v2118, %v2295
      %v2302 = vmul.f32 %v2119, %v2295
      %v2303 = vmul.f32 %v2120, %v2295
      %v2304 = vmul.f32 %v2121, %v2295
      %v2305 = vmul.f32 %v2122, %v2295
      %v2306 = vmul.f32 %v2123, %v2295
      %v2307 = vmul.f32 %v2124, %v2295
      %v2308 = vmul.f32 %v2125, %v2295
      %v2309 = vmul.f32 %v2126, %v2295
      %v2310 = vmul.f32 %v2127, %v2295
      %v2311 = vmul.f32 %v2128, %v2295
      %v2312 = vmul.f32 %v2129, %v2295
      %v2313 = vmul.f32 %v2130, %v2295
      %v2314 = vmul.f32 %v2131, %v2295
      %v2315 = vmul.f32 %v2132, %v2295
      %v2316 = vmul.f32 %v2133, %v2295
      %v2317 = vmul.f32 %v2134, %v2295
      %v2318 = vmul.f32 %v2135, %v2295
      %v2319 = vmul.f32 %v2136, %v2295
      %v2320 = vmul.f32 %v2137, %v2295
      %v2321 = vmul.f32 %v2138, %v2295
      %v2322 = vmul.f32 %v2139, %v2295
      %v2323 = vmul.f32 %v2140, %v2295
      %v2324 = vmul.f32 %v2141, %v2295
      %v2325 = vmul.f32 %v2142, %v2295
      %v2326 = vmul.f32 %v2143, %v2295
      %v2327 = vmul.f32 %v2144, %v2295
      %v2328 = vadd.f32 %v2259, %v2296
      %v2329 = vadd.f32 %v2260, %v2297
      %v2330 = vadd.f32 %v2261, %v2298
      %v2331 = vadd.f32 %v2262, %v2299
      %v2332 = vadd.f32 %v2263, %v2300
      %v2333 = vadd.f32 %v2264, %v2301
      %v2334 = vadd.f32 %v2265, %v2302
      %v2335 = vadd.f32 %v2266, %v2303
      %v2336 = vadd.f32 %v2267, %v2304
      %v2337 = vadd.f32 %v2268, %v2305
      %v2338 = vadd.f32 %v2269, %v2306
      %v2339 = vadd.f32 %v2270, %v2307
      %v2340 = vadd.f32 %v2271, %v2308
      %v2341 = vadd.f32 %v2272, %v2309
      %v2342 = vadd.f32 %v2273, %v2310
      %v2343 = vadd.f32 %v2274, %v2311
      %v2344 = vadd.f32 %v2275, %v2312
      %v2345 = vadd.f32 %v2276, %v2313
      %v2346 = vadd.f32 %v2277, %v2314
      %v2347 = vadd.f32 %v2278, %v2315
      %v2348 = vadd.f32 %v2279, %v2316
      %v2349 = vadd.f32 %v2280, %v2317
      %v2350 = vadd.f32 %v2281, %v2318
      %v2351 = vadd.f32 %v2282, %v2319
      %v2352 = vadd.f32 %v2283, %v2320
      %v2353 = vadd.f32 %v2284, %v2321
      %v2354 = vadd.f32 %v2285, %v2322
      %v2355 = vadd.f32 %v2286, %v2323
      %v2356 = vadd.f32 %v2287, %v2324
      %v2357 = vadd.f32 %v2288, %v2325
      %v2358 = vadd.f32 %v2289, %v2326
      %v2359 = vadd.f32 %v2290, %v2327
      %v2360 = vld [vmem:[%s1 + $0x18] sm:$0x1]
      %v2361 = vlaneseq
      %v2362 = vshrl.u32 %v2361, 7
      %v2363 = vsub.s32 0, %v2362
      %v2364 = vrot.slane %v2360, %v2363
      %v2365 = vmul.f32 %v2115, %v2364
      %v2366 = vmul.f32 %v2116, %v2364
      %v2367 = vmul.f32 %v2117, %v2364
      %v2368 = vmul.f32 %v2118, %v2364
      %v2369 = vmul.f32 %v2119, %v2364
      %v2370 = vmul.f32 %v2120, %v2364
      %v2371 = vmul.f32 %v2121, %v2364
      %v2372 = vmul.f32 %v2122, %v2364
      %v2373 = vmul.f32 %v2123, %v2364
      %v2374 = vmul.f32 %v2124, %v2364
      %v2375 = vmul.f32 %v2125, %v2364
      %v2376 = vmul.f32 %v2126, %v2364
      %v2377 = vmul.f32 %v2127, %v2364
      %v2378 = vmul.f32 %v2128, %v2364
      %v2379 = vmul.f32 %v2129, %v2364
      %v2380 = vmul.f32 %v2130, %v2364
      %v2381 = vmul.f32 %v2131, %v2364
      %v2382 = vmul.f32 %v2132, %v2364
      %v2383 = vmul.f32 %v2133, %v2364
      %v2384 = vmul.f32 %v2134, %v2364
      %v2385 = vmul.f32 %v2135, %v2364
      %v2386 = vmul.f32 %v2136, %v2364
      %v2387 = vmul.f32 %v2137, %v2364
      %v2388 = vmul.f32 %v2138, %v2364
      %v2389 = vmul.f32 %v2139, %v2364
      %v2390 = vmul.f32 %v2140, %v2364
      %v2391 = vmul.f32 %v2141, %v2364
      %v2392 = vmul.f32 %v2142, %v2364
      %v2393 = vmul.f32 %v2143, %v2364
      %v2394 = vmul.f32 %v2144, %v2364
      %v2395 = vmul.f32 %v2145, %v2364
      %v2396 = vmul.f32 %v2146, %v2364
      %v2397 = vadd.f32 %v2328, %v2365
      %v2398 = vadd.f32 %v2329, %v2366
      %v2399 = vadd.f32 %v2330, %v2367
      %v2400 = vadd.f32 %v2331, %v2368
      %v2401 = vadd.f32 %v2332, %v2369
      %v2402 = vadd.f32 %v2333, %v2370
      %v2403 = vadd.f32 %v2334, %v2371
      %v2404 = vadd.f32 %v2335, %v2372
      %v2405 = vadd.f32 %v2336, %v2373
      %v2406 = vadd.f32 %v2337, %v2374
      %v2407 = vadd.f32 %v2338, %v2375
      %v2408 = vadd.f32 %v2339, %v2376
      %v2409 = vadd.f32 %v2340, %v2377
      %v2410 = vadd.f32 %v2341, %v2378
      %v2411 = vadd.f32 %v2342, %v2379
      %v2412 = vadd.f32 %v2343, %v2380
      %v2413 = vadd.f32 %v2344, %v2381
      %v2414 = vadd.f32 %v2345, %v2382
      %v2415 = vadd.f32 %v2346, %v2383
      %v2416 = vadd.f32 %v2347, %v2384
      %v2417 = vadd.f32 %v2348, %v2385
      %v2418 = vadd.f32 %v2349, %v2386
      %v2419 = vadd.f32 %v2350, %v2387
      %v2420 = vadd.f32 %v2351, %v2388
      %v2421 = vadd.f32 %v2352, %v2389
      %v2422 = vadd.f32 %v2353, %v2390
      %v2423 = vadd.f32 %v2354, %v2391
      %v2424 = vadd.f32 %v2355, %v2392
      %v2425 = vadd.f32 %v2356, %v2393
      %v2426 = vadd.f32 %v2357, %v2394
      %v2427 = vadd.f32 %v2358, %v2395
      %v2428 = vadd.f32 %v2359, %v2396
      %v2429 = vld [vmem:[%s1 + $0x1f] sm:$0x1]
      %v2430 = vlaneseq
      %v2431 = vshrl.u32 %v2430, 7
      %v2432 = vsub.s32 0, %v2431
      %v2433 = vrot.slane %v2429, %v2432
      %v2434 = vmul.f32 %v2117, %v2433
      %v2435 = vmul.f32 %v2118, %v2433
      %v2436 = vmul.f32 %v2119, %v2433
      %v2437 = vmul.f32 %v2120, %v2433
      %v2438 = vmul.f32 %v2121, %v2433
      %v2439 = vmul.f32 %v2122, %v2433
      %v2440 = vmul.f32 %v2123, %v2433
      %v2441 = vmul.f32 %v2124, %v2433
      %v2442 = vmul.f32 %v2125, %v2433
      %v2443 = vmul.f32 %v2126, %v2433
      %v2444 = vmul.f32 %v2127, %v2433
      %v2445 = vmul.f32 %v2128, %v2433
      %v2446 = vmul.f32 %v2129, %v2433
      %v2447 = vmul.f32 %v2130, %v2433
      %v2448 = vmul.f32 %v2131, %v2433
      %v2449 = vmul.f32 %v2132, %v2433
      %v2450 = vmul.f32 %v2133, %v2433
      %v2451 = vmul.f32 %v2134, %v2433
      %v2452 = vmul.f32 %v2135, %v2433
      %v2453 = vmul.f32 %v2136, %v2433
      %v2454 = vmul.f32 %v2137, %v2433
      %v2455 = vmul.f32 %v2138, %v2433
      %v2456 = vmul.f32 %v2139, %v2433
      %v2457 = vmul.f32 %v2140, %v2433
      %v2458 = vmul.f32 %v2141, %v2433
      %v2459 = vmul.f32 %v2142, %v2433
      %v2460 = vmul.f32 %v2143, %v2433
      %v2461 = vmul.f32 %v2144, %v2433
      %v2462 = vmul.f32 %v2145, %v2433
      %v2463 = vmul.f32 %v2146, %v2433
      %v2464 = vmul.f32 %v2147, %v2433
      %v2465 = vmul.f32 %v2148, %v2433
      %v2466 = vadd.f32 %v2397, %v2434
      %v2467 = vadd.f32 %v2398, %v2435
      %v2468 = vadd.f32 %v2399, %v2436
      %v2469 = vadd.f32 %v2400, %v2437
      %v2470 = vadd.f32 %v2401, %v2438
      %v2471 = vadd.f32 %v2402, %v2439
      %v2472 = vadd.f32 %v2403, %v2440
      %v2473 = vadd.f32 %v2404, %v2441
      %v2474 = vadd.f32 %v2405, %v2442
      %v2475 = vadd.f32 %v2406, %v2443
      %v2476 = vadd.f32 %v2407, %v2444
      %v2477 = vadd.f32 %v2408, %v2445
      %v2478 = vadd.f32 %v2409, %v2446
      %v2479 = vadd.f32 %v2410, %v2447
      %v2480 = vadd.f32 %v2411, %v2448
      %v2481 = vadd.f32 %v2412, %v2449
      %v2482 = vadd.f32 %v2413, %v2450
      %v2483 = vadd.f32 %v2414, %v2451
      %v2484 = vadd.f32 %v2415, %v2452
      %v2485 = vadd.f32 %v2416, %v2453
      %v2486 = vadd.f32 %v2417, %v2454
      %v2487 = vadd.f32 %v2418, %v2455
      %v2488 = vadd.f32 %v2419, %v2456
      %v2489 = vadd.f32 %v2420, %v2457
      %v2490 = vadd.f32 %v2421, %v2458
      %v2491 = vadd.f32 %v2422, %v2459
      %v2492 = vadd.f32 %v2423, %v2460
      %v2493 = vadd.f32 %v2424, %v2461
      %v2494 = vadd.f32 %v2425, %v2462
      %v2495 = vadd.f32 %v2426, %v2463
      %v2496 = vadd.f32 %v2427, %v2464
      %v2497 = vadd.f32 %v2428, %v2465
      %v2498 = vld [vmem:[%s1 + $0x26] sm:$0x1]
      %v2499 = vlaneseq
      %v2500 = vshrl.u32 %v2499, 7
      %v2501 = vsub.s32 0, %v2500
      %v2502 = vrot.slane %v2498, %v2501
      %v2503 = vmul.f32 %v2119, %v2502
      %v2504 = vmul.f32 %v2120, %v2502
      %v2505 = vmul.f32 %v2121, %v2502
      %v2506 = vmul.f32 %v2122, %v2502
      %v2507 = vmul.f32 %v2123, %v2502
      %v2508 = vmul.f32 %v2124, %v2502
      %v2509 = vmul.f32 %v2125, %v2502
      %v2510 = vmul.f32 %v2126, %v2502
      %v2511 = vmul.f32 %v2127, %v2502
      %v2512 = vmul.f32 %v2128, %v2502
      %v2513 = vmul.f32 %v2129, %v2502
      %v2514 = vmul.f32 %v2130, %v2502
      %v2515 = vmul.f32 %v2131, %v2502
      %v2516 = vmul.f32 %v2132, %v2502
      %v2517 = vmul.f32 %v2133, %v2502
      %v2518 = vmul.f32 %v2134, %v2502
      %v2519 = vmul.f32 %v2135, %v2502
      %v2520 = vmul.f32 %v2136, %v2502
      %v2521 = vmul.f32 %v2137, %v2502
      %v2522 = vmul.f32 %v2138, %v2502
      %v2523 = vmul.f32 %v2139, %v2502
      %v2524 = vmul.f32 %v2140, %v2502
      %v2525 = vmul.f32 %v2141, %v2502
      %v2526 = vmul.f32 %v2142, %v2502
      %v2527 = vmul.f32 %v2143, %v2502
      %v2528 = vmul.f32 %v2144, %v2502
      %v2529 = vmul.f32 %v2145, %v2502
      %v2530 = vmul.f32 %v2146, %v2502
      %v2531 = vmul.f32 %v2147, %v2502
      %v2532 = vmul.f32 %v2148, %v2502
      %v2533 = vmul.f32 %v2149, %v2502
      %v2534 = vmul.f32 %v2150, %v2502
      %v2535 = vadd.f32 %v2466, %v2503
      %v2536 = vadd.f32 %v2467, %v2504
      %v2537 = vadd.f32 %v2468, %v2505
      %v2538 = vadd.f32 %v2469, %v2506
      %v2539 = vadd.f32 %v2470, %v2507
      %v2540 = vadd.f32 %v2471, %v2508
      %v2541 = vadd.f32 %v2472, %v2509
      %v2542 = vadd.f32 %v2473, %v2510
      %v2543 = vadd.f32 %v2474, %v2511
      %v2544 = vadd.f32 %v2475, %v2512
      %v2545 = vadd.f32 %v2476, %v2513
      %v2546 = vadd.f32 %v2477, %v2514
      %v2547 = vadd.f32 %v2478, %v2515
      %v2548 = vadd.f32 %v2479, %v2516
      %v2549 = vadd.f32 %v2480, %v2517
      %v2550 = vadd.f32 %v2481, %v2518
      %v2551 = vadd.f32 %v2482, %v2519
      %v2552 = vadd.f32 %v2483, %v2520
      %v2553 = vadd.f32 %v2484, %v2521
      %v2554 = vadd.f32 %v2485, %v2522
      %v2555 = vadd.f32 %v2486, %v2523
      %v2556 = vadd.f32 %v2487, %v2524
      %v2557 = vadd.f32 %v2488, %v2525
      %v2558 = vadd.f32 %v2489, %v2526
      %v2559 = vadd.f32 %v2490, %v2527
      %v2560 = vadd.f32 %v2491, %v2528
      %v2561 = vadd.f32 %v2492, %v2529
      %v2562 = vadd.f32 %v2493, %v2530
      %v2563 = vadd.f32 %v2494, %v2531
      %v2564 = vadd.f32 %v2495, %v2532
      %v2565 = vadd.f32 %v2496, %v2533
      %v2566 = vadd.f32 %v2497, %v2534
      %v2567 = vld [vmem:[%s1 + $0x2d] sm:$0x1]
      %v2568 = vlaneseq
      %v2569 = vshrl.u32 %v2568, 7
      %v2570 = vsub.s32 0, %v2569
      %v2571 = vrot.slane %v2567, %v2570
      %v2572 = vmul.f32 %v2121, %v2571
      %v2573 = vmul.f32 %v2122, %v2571
      %v2574 = vmul.f32 %v2123, %v2571
      %v2575 = vmul.f32 %v2124, %v2571
      %v2576 = vmul.f32 %v2125, %v2571
      %v2577 = vmul.f32 %v2126, %v2571
      %v2578 = vmul.f32 %v2127, %v2571
      %v2579 = vmul.f32 %v2128, %v2571
      %v2580 = vmul.f32 %v2129, %v2571
      %v2581 = vmul.f32 %v2130, %v2571
      %v2582 = vmul.f32 %v2131, %v2571
      %v2583 = vmul.f32 %v2132, %v2571
      %v2584 = vmul.f32 %v2133, %v2571
      %v2585 = vmul.f32 %v2134, %v2571
      %v2586 = vmul.f32 %v2135, %v2571
      %v2587 = vmul.f32 %v2136, %v2571
      %v2588 = vmul.f32 %v2137, %v2571
      %v2589 = vmul.f32 %v2138, %v2571
      %v2590 = vmul.f32 %v2139, %v2571
      %v2591 = vmul.f32 %v2140, %v2571
      %v2592 = vmul.f32 %v2141, %v2571
      %v2593 = vmul.f32 %v2142, %v2571
      %v2594 = vmul.f32 %v2143, %v2571
      %v2595 = vmul.f32 %v2144, %v2571
      %v2596 = vmul.f32 %v2145, %v2571
      %v2597 = vmul.f32 %v2146, %v2571
      %v2598 = vmul.f32 %v2147, %v2571
      %v2599 = vmul.f32 %v2148, %v2571
      %v2600 = vmul.f32 %v2149, %v2571
      %v2601 = vmul.f32 %v2150, %v2571
      %v2602 = vmul.f32 %v2151, %v2571
      %v2603 = vmul.f32 %v2152, %v2571
      %v2604 = vadd.f32 %v2535, %v2572
      %v2605 = vadd.f32 %v2536, %v2573
      %v2606 = vadd.f32 %v2537, %v2574
      %v2607 = vadd.f32 %v2538, %v2575
      %v2608 = vadd.f32 %v2539, %v2576
      %v2609 = vadd.f32 %v2540, %v2577
      %v2610 = vadd.f32 %v2541, %v2578
      %v2611 = vadd.f32 %v2542, %v2579
      %v2612 = vadd.f32 %v2543, %v2580
      %v2613 = vadd.f32 %v2544, %v2581
      %v2614 = vadd.f32 %v2545, %v2582
      %v2615 = vadd.f32 %v2546, %v2583
      %v2616 = vadd.f32 %v2547, %v2584
      %v2617 = vadd.f32 %v2548, %v2585
      %v2618 = vadd.f32 %v2549, %v2586
      %v2619 = vadd.f32 %v2550, %v2587
      %v2620 = vadd.f32 %v2551, %v2588
      %v2621 = vadd.f32 %v2552, %v2589
      %v2622 = vadd.f32 %v2553, %v2590
      %v2623 = vadd.f32 %v2554, %v2591
      %v2624 = vadd.f32 %v2555, %v2592
      %v2625 = vadd.f32 %v2556, %v2593
      %v2626 = vadd.f32 %v2557, %v2594
      %v2627 = vadd.f32 %v2558, %v2595
      %v2628 = vadd.f32 %v2559, %v2596
      %v2629 = vadd.f32 %v2560, %v2597
      %v2630 = vadd.f32 %v2561, %v2598
      %v2631 = vadd.f32 %v2562, %v2599
      %v2632 = vadd.f32 %v2563, %v2600
      %v2633 = vadd.f32 %v2564, %v2601
      %v2634 = vadd.f32 %v2565, %v2602
      %v2635 = vadd.f32 %v2566, %v2603
      %v2636 = vld [vmem:[#allocation2 + $0x4] sm:$0xff]
      %v2637 = vld [vmem:[#allocation2 + $0xc] sm:$0xff]
      %v2638 = vld [vmem:[#allocation2 + $0x1c] sm:$0xff]
      %v2639 = vld [vmem:[#allocation2 + $0x24] sm:$0xff]
      %v2640 = vld [vmem:[#allocation2 + $0x34] sm:$0xff]
      %v2641 = vld [vmem:[#allocation2 + $0x3c] sm:$0xff]
      %v2642 = vld [vmem:[#allocation2 + $0x4c] sm:$0xff]
      %v2643 = vld [vmem:[#allocation2 + $0x54] sm:$0xff]
      %v2644 = vld [vmem:[#allocation2 + $0x64] sm:$0xff]
      %v2645 = vld [vmem:[#allocation2 + $0x6c] sm:$0xff]
      %v2646 = vld [vmem:[#allocation2 + $0x7c] sm:$0xff]
      %v2647 = vld [vmem:[#allocation2 + $0x84] sm:$0xff]
      %v2648 = vld [vmem:[#allocation2 + $0x94] sm:$0xff]
      %v2649 = vld [vmem:[#allocation2 + $0x9c] sm:$0xff]
      %v2650 = vld [vmem:[#allocation2 + $0xac] sm:$0xff]
      %v2651 = vld [vmem:[#allocation2 + $0xb4] sm:$0xff]
      %v2652 = vld [vmem:[#allocation2 + $0xc4] sm:$0xff]
      %v2653 = vld [vmem:[#allocation2 + $0xcc] sm:$0xff]
      %v2654 = vld [vmem:[#allocation2 + $0xdc] sm:$0xff]
      %v2655 = vld [vmem:[#allocation2 + $0xe4] sm:$0xff]
      %v2656 = vld [vmem:[#allocation2 + $0xf4] sm:$0xff]
      %v2657 = vld [vmem:[#allocation2 + $0xfc] sm:$0xff]
      %v2658 = vld [vmem:[#allocation2 + $0x10c] sm:$0xff]
      %v2659 = vld [vmem:[#allocation2 + $0x114] sm:$0xff]
      %v2660 = vld [vmem:[#allocation2 + $0x124] sm:$0xff]
      %v2661 = vld [vmem:[#allocation2 + $0x12c] sm:$0xff]
      %v2662 = vld [vmem:[#allocation2 + $0x13c] sm:$0xff]
      %v2663 = vld [vmem:[#allocation2 + $0x144] sm:$0xff]
      %v2664 = vld [vmem:[#allocation2 + $0x154] sm:$0xff]
      %v2665 = vld [vmem:[#allocation2 + $0x15c] sm:$0xff]
      %v2666 = vld [vmem:[#allocation2 + $0x16c] sm:$0xff]
      %v2667 = vld [vmem:[#allocation2 + $0x174] sm:$0xff]
      %v2668 = vld [vmem:[#allocation2 + $0x184] sm:$0xff]
      %v2669 = vld [vmem:[#allocation2 + $0x18c] sm:$0xff]
      %v2670 = vld [vmem:[#allocation2 + $0x19c] sm:$0xff]
      %v2671 = vld [vmem:[#allocation2 + $0x1a4] sm:$0xff]
      %v2672 = vld [vmem:[#allocation2 + $0x1b4] sm:$0xff]
      %v2673 = vld [vmem:[#allocation2 + $0x1bc] sm:$0xff]
      %v2674 = vld [vmem:[#allocation2 + $0x1cc] sm:$0xff]
      %v2675 = vld [vmem:[#allocation2 + $0x1d4] sm:$0xff]
      %v2676 = vld [vmem:[#allocation2 + $0x1e4] sm:$0xff]
      %v2677 = vld [vmem:[#allocation2 + $0x1ec] sm:$0xff]
      %v2678 = vld [vmem:[#allocation2 + $0x1fc] sm:$0xff]
      %v2679 = vld [vmem:[#allocation2 + $0x204] sm:$0xff]
      %v2680 = vld [vmem:[%s1 + $0x4] sm:$0x1]
      %v2681 = vlaneseq
      %v2682 = vshrl.u32 %v2681, 7
      %v2683 = vsub.s32 0, %v2682
      %v2684 = vrot.slane %v2680, %v2683
      %v2685 = vmul.f32 %v2636, %v2684
      %v2686 = vmul.f32 %v2637, %v2684
      %v2687 = vmul.f32 %v2638, %v2684
      %v2688 = vmul.f32 %v2639, %v2684
      %v2689 = vmul.f32 %v2640, %v2684
      %v2690 = vmul.f32 %v2641, %v2684
      %v2691 = vmul.f32 %v2642, %v2684
      %v2692 = vmul.f32 %v2643, %v2684
      %v2693 = vmul.f32 %v2644, %v2684
      %v2694 = vmul.f32 %v2645, %v2684
      %v2695 = vmul.f32 %v2646, %v2684
      %v2696 = vmul.f32 %v2647, %v2684
      %v2697 = vmul.f32 %v2648, %v2684
      %v2698 = vmul.f32 %v2649, %v2684
      %v2699 = vmul.f32 %v2650, %v2684
      %v2700 = vmul.f32 %v2651, %v2684
      %v2701 = vmul.f32 %v2652, %v2684
      %v2702 = vmul.f32 %v2653, %v2684
      %v2703 = vmul.f32 %v2654, %v2684
      %v2704 = vmul.f32 %v2655, %v2684
      %v2705 = vmul.f32 %v2656, %v2684
      %v2706 = vmul.f32 %v2657, %v2684
      %v2707 = vmul.f32 %v2658, %v2684
      %v2708 = vmul.f32 %v2659, %v2684
      %v2709 = vmul.f32 %v2660, %v2684
      %v2710 = vmul.f32 %v2661, %v2684
      %v2711 = vmul.f32 %v2662, %v2684
      %v2712 = vmul.f32 %v2663, %v2684
      %v2713 = vmul.f32 %v2664, %v2684
      %v2714 = vmul.f32 %v2665, %v2684
      %v2715 = vmul.f32 %v2666, %v2684
      %v2716 = vmul.f32 %v2667, %v2684
      %v2717 = vadd.f32 %v2604, %v2685
      %v2718 = vadd.f32 %v2605, %v2686
      %v2719 = vadd.f32 %v2606, %v2687
      %v2720 = vadd.f32 %v2607, %v2688
      %v2721 = vadd.f32 %v2608, %v2689
      %v2722 = vadd.f32 %v2609, %v2690
      %v2723 = vadd.f32 %v2610, %v2691
      %v2724 = vadd.f32 %v2611, %v2692
      %v2725 = vadd.f32 %v2612, %v2693
      %v2726 = vadd.f32 %v2613, %v2694
      %v2727 = vadd.f32 %v2614, %v2695
      %v2728 = vadd.f32 %v2615, %v2696
      %v2729 = vadd.f32 %v2616, %v2697
      %v2730 = vadd.f32 %v2617, %v2698
      %v2731 = vadd.f32 %v2618, %v2699
      %v2732 = vadd.f32 %v2619, %v2700
      %v2733 = vadd.f32 %v2620, %v2701
      %v2734 = vadd.f32 %v2621, %v2702
      %v2735 = vadd.f32 %v2622, %v2703
      %v2736 = vadd.f32 %v2623, %v2704
      %v2737 = vadd.f32 %v2624, %v2705
      %v2738 = vadd.f32 %v2625, %v2706
      %v2739 = vadd.f32 %v2626, %v2707
      %v2740 = vadd.f32 %v2627, %v2708
      %v2741 = vadd.f32 %v2628, %v2709
      %v2742 = vadd.f32 %v2629, %v2710
      %v2743 = vadd.f32 %v2630, %v2711
      %v2744 = vadd.f32 %v2631, %v2712
      %v2745 = vadd.f32 %v2632, %v2713
      %v2746 = vadd.f32 %v2633, %v2714
      %v2747 = vadd.f32 %v2634, %v2715
      %v2748 = vadd.f32 %v2635, %v2716
      %v2749 = vld [vmem:[%s1 + $0xb] sm:$0x1]
      %v2750 = vlaneseq
      %v2751 = vshrl.u32 %v2750, 7
      %v2752 = vsub.s32 0, %v2751
      %v2753 = vrot.slane %v2749, %v2752
      %v2754 = vmul.f32 %v2638, %v2753
      %v2755 = vmul.f32 %v2639, %v2753
      %v2756 = vmul.f32 %v2640, %v2753
      %v2757 = vmul.f32 %v2641, %v2753
      %v2758 = vmul.f32 %v2642, %v2753
      %v2759 = vmul.f32 %v2643, %v2753
      %v2760 = vmul.f32 %v2644, %v2753
      %v2761 = vmul.f32 %v2645, %v2753
      %v2762 = vmul.f32 %v2646, %v2753
      %v2763 = vmul.f32 %v2647, %v2753
      %v2764 = vmul.f32 %v2648, %v2753
      %v2765 = vmul.f32 %v2649, %v2753
      %v2766 = vmul.f32 %v2650, %v2753
      %v2767 = vmul.f32 %v2651, %v2753
      %v2768 = vmul.f32 %v2652, %v2753
      %v2769 = vmul.f32 %v2653, %v2753
      %v2770 = vmul.f32 %v2654, %v2753
      %v2771 = vmul.f32 %v2655, %v2753
      %v2772 = vmul.f32 %v2656, %v2753
      %v2773 = vmul.f32 %v2657, %v2753
      %v2774 = vmul.f32 %v2658, %v2753
      %v2775 = vmul.f32 %v2659, %v2753
      %v2776 = vmul.f32 %v2660, %v2753
      %v2777 = vmul.f32 %v2661, %v2753
      %v2778 = vmul.f32 %v2662, %v2753
      %v2779 = vmul.f32 %v2663, %v2753
      %v2780 = vmul.f32 %v2664, %v2753
      %v2781 = vmul.f32 %v2665, %v2753
      %v2782 = vmul.f32 %v2666, %v2753
      %v2783 = vmul.f32 %v2667, %v2753
      %v2784 = vmul.f32 %v2668, %v2753
      %v2785 = vmul.f32 %v2669, %v2753
      %v2786 = vadd.f32 %v2717, %v2754
      %v2787 = vadd.f32 %v2718, %v2755
      %v2788 = vadd.f32 %v2719, %v2756
      %v2789 = vadd.f32 %v2720, %v2757
      %v2790 = vadd.f32 %v2721, %v2758
      %v2791 = vadd.f32 %v2722, %v2759
      %v2792 = vadd.f32 %v2723, %v2760
      %v2793 = vadd.f32 %v2724, %v2761
      %v2794 = vadd.f32 %v2725, %v2762
      %v2795 = vadd.f32 %v2726, %v2763
      %v2796 = vadd.f32 %v2727, %v2764
      %v2797 = vadd.f32 %v2728, %v2765
      %v2798 = vadd.f32 %v2729, %v2766
      %v2799 = vadd.f32 %v2730, %v2767
      %v2800 = vadd.f32 %v2731, %v2768
      %v2801 = vadd.f32 %v2732, %v2769
      %v2802 = vadd.f32 %v2733, %v2770
      %v2803 = vadd.f32 %v2734, %v2771
      %v2804 = vadd.f32 %v2735, %v2772
      %v2805 = vadd.f32 %v2736, %v2773
      %v2806 = vadd.f32 %v2737, %v2774
      %v2807 = vadd.f32 %v2738, %v2775
      %v2808 = vadd.f32 %v2739, %v2776
      %v2809 = vadd.f32 %v2740, %v2777
      %v2810 = vadd.f32 %v2741, %v2778
      %v2811 = vadd.f32 %v2742, %v2779
      %v2812 = vadd.f32 %v2743, %v2780
      %v2813 = vadd.f32 %v2744, %v2781
      %v2814 = vadd.f32 %v2745, %v2782
      %v2815 = vadd.f32 %v2746, %v2783
      %v2816 = vadd.f32 %v2747, %v2784
      %v2817 = vadd.f32 %v2748, %v2785
      %v2818 = vld [vmem:[%s1 + $0x12] sm:$0x1]
      %v2819 = vlaneseq
      %v2820 = vshrl.u32 %v2819, 7
      %v2821 = vsub.s32 0, %v2820
      %v2822 = vrot.slane %v2818, %v2821
      %v2823 = vmul.f32 %v2640, %v2822
      %v2824 = vmul.f32 %v2641, %v2822
      %v2825 = vmul.f32 %v2642, %v2822
      %v2826 = vmul.f32 %v2643, %v2822
      %v2827 = vmul.f32 %v2644, %v2822
      %v2828 = vmul.f32 %v2645, %v2822
      %v2829 = vmul.f32 %v2646, %v2822
      %v2830 = vmul.f32 %v2647, %v2822
      %v2831 = vmul.f32 %v2648, %v2822
      %v2832 = vmul.f32 %v2649, %v2822
      %v2833 = vmul.f32 %v2650, %v2822
      %v2834 = vmul.f32 %v2651, %v2822
      %v2835 = vmul.f32 %v2652, %v2822
      %v2836 = vmul.f32 %v2653, %v2822
      %v2837 = vmul.f32 %v2654, %v2822
      %v2838 = vmul.f32 %v2655, %v2822
      %v2839 = vmul.f32 %v2656, %v2822
      %v2840 = vmul.f32 %v2657, %v2822
      %v2841 = vmul.f32 %v2658, %v2822
      %v2842 = vmul.f32 %v2659, %v2822
      %v2843 = vmul.f32 %v2660, %v2822
      %v2844 = vmul.f32 %v2661, %v2822
      %v2845 = vmul.f32 %v2662, %v2822
      %v2846 = vmul.f32 %v2663, %v2822
      %v2847 = vmul.f32 %v2664, %v2822
      %v2848 = vmul.f32 %v2665, %v2822
      %v2849 = vmul.f32 %v2666, %v2822
      %v2850 = vmul.f32 %v2667, %v2822
      %v2851 = vmul.f32 %v2668, %v2822
      %v2852 = vmul.f32 %v2669, %v2822
      %v2853 = vmul.f32 %v2670, %v2822
      %v2854 = vmul.f32 %v2671, %v2822
      %v2855 = vadd.f32 %v2786, %v2823
      %v2856 = vadd.f32 %v2787, %v2824
      %v2857 = vadd.f32 %v2788, %v2825
      %v2858 = vadd.f32 %v2789, %v2826
      %v2859 = vadd.f32 %v2790, %v2827
      %v2860 = vadd.f32 %v2791, %v2828
      %v2861 = vadd.f32 %v2792, %v2829
      %v2862 = vadd.f32 %v2793, %v2830
      %v2863 = vadd.f32 %v2794, %v2831
      %v2864 = vadd.f32 %v2795, %v2832
      %v2865 = vadd.f32 %v2796, %v2833
      %v2866 = vadd.f32 %v2797, %v2834
      %v2867 = vadd.f32 %v2798, %v2835
      %v2868 = vadd.f32 %v2799, %v2836
      %v2869 = vadd.f32 %v2800, %v2837
      %v2870 = vadd.f32 %v2801, %v2838
      %v2871 = vadd.f32 %v2802, %v2839
      %v2872 = vadd.f32 %v2803, %v2840
      %v2873 = vadd.f32 %v2804, %v2841
      %v2874 = vadd.f32 %v2805, %v2842
      %v2875 = vadd.f32 %v2806, %v2843
      %v2876 = vadd.f32 %v2807, %v2844
      %v2877 = vadd.f32 %v2808, %v2845
      %v2878 = vadd.f32 %v2809, %v2846
      %v2879 = vadd.f32 %v2810, %v2847
      %v2880 = vadd.f32 %v2811, %v2848
      %v2881 = vadd.f32 %v2812, %v2849
      %v2882 = vadd.f32 %v2813, %v2850
      %v2883 = vadd.f32 %v2814, %v2851
      %v2884 = vadd.f32 %v2815, %v2852
      %v2885 = vadd.f32 %v2816, %v2853
      %v2886 = vadd.f32 %v2817, %v2854
      %v2887 = vld [vmem:[%s1 + $0x19] sm:$0x1]
      %v2888 = vlaneseq
      %v2889 = vshrl.u32 %v2888, 7
      %v2890 = vsub.s32 0, %v2889
      %v2891 = vrot.slane %v2887, %v2890
      %v2892 = vmul.f32 %v2642, %v2891
      %v2893 = vmul.f32 %v2643, %v2891
      %v2894 = vmul.f32 %v2644, %v2891
      %v2895 = vmul.f32 %v2645, %v2891
      %v2896 = vmul.f32 %v2646, %v2891
      %v2897 = vmul.f32 %v2647, %v2891
      %v2898 = vmul.f32 %v2648, %v2891
      %v2899 = vmul.f32 %v2649, %v2891
      %v2900 = vmul.f32 %v2650, %v2891
      %v2901 = vmul.f32 %v2651, %v2891
      %v2902 = vmul.f32 %v2652, %v2891
      %v2903 = vmul.f32 %v2653, %v2891
      %v2904 = vmul.f32 %v2654, %v2891
      %v2905 = vmul.f32 %v2655, %v2891
      %v2906 = vmul.f32 %v2656, %v2891
      %v2907 = vmul.f32 %v2657, %v2891
      %v2908 = vmul.f32 %v2658, %v2891
      %v2909 = vmul.f32 %v2659, %v2891
      %v2910 = vmul.f32 %v2660, %v2891
      %v2911 = vmul.f32 %v2661, %v2891
      %v2912 = vmul.f32 %v2662, %v2891
      %v2913 = vmul.f32 %v2663, %v2891
      %v2914 = vmul.f32 %v2664, %v2891
      %v2915 = vmul.f32 %v2665, %v2891
      %v2916 = vmul.f32 %v2666, %v2891
      %v2917 = vmul.f32 %v2667, %v2891
      %v2918 = vmul.f32 %v2668, %v2891
      %v2919 = vmul.f32 %v2669, %v2891
      %v2920 = vmul.f32 %v2670, %v2891
      %v2921 = vmul.f32 %v2671, %v2891
      %v2922 = vmul.f32 %v2672, %v2891
      %v2923 = vmul.f32 %v2673, %v2891
      %v2924 = vadd.f32 %v2855, %v2892
      %v2925 = vadd.f32 %v2856, %v2893
      %v2926 = vadd.f32 %v2857, %v2894
      %v2927 = vadd.f32 %v2858, %v2895
      %v2928 = vadd.f32 %v2859, %v2896
      %v2929 = vadd.f32 %v2860, %v2897
      %v2930 = vadd.f32 %v2861, %v2898
      %v2931 = vadd.f32 %v2862, %v2899
      %v2932 = vadd.f32 %v2863, %v2900
      %v2933 = vadd.f32 %v2864, %v2901
      %v2934 = vadd.f32 %v2865, %v2902
      %v2935 = vadd.f32 %v2866, %v2903
      %v2936 = vadd.f32 %v2867, %v2904
      %v2937 = vadd.f32 %v2868, %v2905
      %v2938 = vadd.f32 %v2869, %v2906
      %v2939 = vadd.f32 %v2870, %v2907
      %v2940 = vadd.f32 %v2871, %v2908
      %v2941 = vadd.f32 %v2872, %v2909
      %v2942 = vadd.f32 %v2873, %v2910
      %v2943 = vadd.f32 %v2874, %v2911
      %v2944 = vadd.f32 %v2875, %v2912
      %v2945 = vadd.f32 %v2876, %v2913
      %v2946 = vadd.f32 %v2877, %v2914
      %v2947 = vadd.f32 %v2878, %v2915
      %v2948 = vadd.f32 %v2879, %v2916
      %v2949 = vadd.f32 %v2880, %v2917
      %v2950 = vadd.f32 %v2881, %v2918
      %v2951 = vadd.f32 %v2882, %v2919
      %v2952 = vadd.f32 %v2883, %v2920
      %v2953 = vadd.f32 %v2884, %v2921
      %v2954 = vadd.f32 %v2885, %v2922
      %v2955 = vadd.f32 %v2886, %v2923
      %v2956 = vld [vmem:[%s1 + $0x20] sm:$0x1]
      %v2957 = vlaneseq
      %v2958 = vshrl.u32 %v2957, 7
      %v2959 = vsub.s32 0, %v2958
      %v2960 = vrot.slane %v2956, %v2959
      %v2961 = vmul.f32 %v2644, %v2960
      %v2962 = vmul.f32 %v2645, %v2960
      %v2963 = vmul.f32 %v2646, %v2960
      %v2964 = vmul.f32 %v2647, %v2960
      %v2965 = vmul.f32 %v2648, %v2960
      %v2966 = vmul.f32 %v2649, %v2960
      %v2967 = vmul.f32 %v2650, %v2960
      %v2968 = vmul.f32 %v2651, %v2960
      %v2969 = vmul.f32 %v2652, %v2960
      %v2970 = vmul.f32 %v2653, %v2960
      %v2971 = vmul.f32 %v2654, %v2960
      %v2972 = vmul.f32 %v2655, %v2960
      %v2973 = vmul.f32 %v2656, %v2960
      %v2974 = vmul.f32 %v2657, %v2960
      %v2975 = vmul.f32 %v2658, %v2960
      %v2976 = vmul.f32 %v2659, %v2960
      %v2977 = vmul.f32 %v2660, %v2960
      %v2978 = vmul.f32 %v2661, %v2960
      %v2979 = vmul.f32 %v2662, %v2960
      %v2980 = vmul.f32 %v2663, %v2960
      %v2981 = vmul.f32 %v2664, %v2960
      %v2982 = vmul.f32 %v2665, %v2960
      %v2983 = vmul.f32 %v2666, %v2960
      %v2984 = vmul.f32 %v2667, %v2960
      %v2985 = vmul.f32 %v2668, %v2960
      %v2986 = vmul.f32 %v2669, %v2960
      %v2987 = vmul.f32 %v2670, %v2960
      %v2988 = vmul.f32 %v2671, %v2960
      %v2989 = vmul.f32 %v2672, %v2960
      %v2990 = vmul.f32 %v2673, %v2960
      %v2991 = vmul.f32 %v2674, %v2960
      %v2992 = vmul.f32 %v2675, %v2960
      %v2993 = vadd.f32 %v2924, %v2961
      %v2994 = vadd.f32 %v2925, %v2962
      %v2995 = vadd.f32 %v2926, %v2963
      %v2996 = vadd.f32 %v2927, %v2964
      %v2997 = vadd.f32 %v2928, %v2965
      %v2998 = vadd.f32 %v2929, %v2966
      %v2999 = vadd.f32 %v2930, %v2967
      %v3000 = vadd.f32 %v2931, %v2968
      %v3001 = vadd.f32 %v2932, %v2969
      %v3002 = vadd.f32 %v2933, %v2970
      %v3003 = vadd.f32 %v2934, %v2971
      %v3004 = vadd.f32 %v2935, %v2972
      %v3005 = vadd.f32 %v2936, %v2973
      %v3006 = vadd.f32 %v2937, %v2974
      %v3007 = vadd.f32 %v2938, %v2975
      %v3008 = vadd.f32 %v2939, %v2976
      %v3009 = vadd.f32 %v2940, %v2977
      %v3010 = vadd.f32 %v2941, %v2978
      %v3011 = vadd.f32 %v2942, %v2979
      %v3012 = vadd.f32 %v2943, %v2980
      %v3013 = vadd.f32 %v2944, %v2981
      %v3014 = vadd.f32 %v2945, %v2982
      %v3015 = vadd.f32 %v2946, %v2983
      %v3016 = vadd.f32 %v2947, %v2984
      %v3017 = vadd.f32 %v2948, %v2985
      %v3018 = vadd.f32 %v2949, %v2986
      %v3019 = vadd.f32 %v2950, %v2987
      %v3020 = vadd.f32 %v2951, %v2988
      %v3021 = vadd.f32 %v2952, %v2989
      %v3022 = vadd.f32 %v2953, %v2990
      %v3023 = vadd.f32 %v2954, %v2991
      %v3024 = vadd.f32 %v2955, %v2992
      %v3025 = vld [vmem:[%s1 + $0x27] sm:$0x1]
      %v3026 = vlaneseq
      %v3027 = vshrl.u32 %v3026, 7
      %v3028 = vsub.s32 0, %v3027
      %v3029 = vrot.slane %v3025, %v3028
      %v3030 = vmul.f32 %v2646, %v3029
      %v3031 = vmul.f32 %v2647, %v3029
      %v3032 = vmul.f32 %v2648, %v3029
      %v3033 = vmul.f32 %v2649, %v3029
      %v3034 = vmul.f32 %v2650, %v3029
      %v3035 = vmul.f32 %v2651, %v3029
      %v3036 = vmul.f32 %v2652, %v3029
      %v3037 = vmul.f32 %v2653, %v3029
      %v3038 = vmul.f32 %v2654, %v3029
      %v3039 = vmul.f32 %v2655, %v3029
      %v3040 = vmul.f32 %v2656, %v3029
      %v3041 = vmul.f32 %v2657, %v3029
      %v3042 = vmul.f32 %v2658, %v3029
      %v3043 = vmul.f32 %v2659, %v3029
      %v3044 = vmul.f32 %v2660, %v3029
      %v3045 = vmul.f32 %v2661, %v3029
      %v3046 = vmul.f32 %v2662, %v3029
      %v3047 = vmul.f32 %v2663, %v3029
      %v3048 = vmul.f32 %v2664, %v3029
      %v3049 = vmul.f32 %v2665, %v3029
      %v3050 = vmul.f32 %v2666, %v3029
      %v3051 = vmul.f32 %v2667, %v3029
      %v3052 = vmul.f32 %v2668, %v3029
      %v3053 = vmul.f32 %v2669, %v3029
      %v3054 = vmul.f32 %v2670, %v3029
      %v3055 = vmul.f32 %v2671, %v3029
      %v3056 = vmul.f32 %v2672, %v3029
      %v3057 = vmul.f32 %v2673, %v3029
      %v3058 = vmul.f32 %v2674, %v3029
      %v3059 = vmul.f32 %v2675, %v3029
      %v3060 = vmul.f32 %v2676, %v3029
      %v3061 = vmul.f32 %v2677, %v3029
      %v3062 = vadd.f32 %v2993, %v3030
      %v3063 = vadd.f32 %v2994, %v3031
      %v3064 = vadd.f32 %v2995, %v3032
      %v3065 = vadd.f32 %v2996, %v3033
      %v3066 = vadd.f32 %v2997, %v3034
      %v3067 = vadd.f32 %v2998, %v3035
      %v3068 = vadd.f32 %v2999, %v3036
      %v3069 = vadd.f32 %v3000, %v3037
      %v3070 = vadd.f32 %v3001, %v3038
      %v3071 = vadd.f32 %v3002, %v3039
      %v3072 = vadd.f32 %v3003, %v3040
      %v3073 = vadd.f32 %v3004, %v3041
      %v3074 = vadd.f32 %v3005, %v3042
      %v3075 = vadd.f32 %v3006, %v3043
      %v3076 = vadd.f32 %v3007, %v3044
      %v3077 = vadd.f32 %v3008, %v3045
      %v3078 = vadd.f32 %v3009, %v3046
      %v3079 = vadd.f32 %v3010, %v3047
      %v3080 = vadd.f32 %v3011, %v3048
      %v3081 = vadd.f32 %v3012, %v3049
      %v3082 = vadd.f32 %v3013, %v3050
      %v3083 = vadd.f32 %v3014, %v3051
      %v3084 = vadd.f32 %v3015, %v3052
      %v3085 = vadd.f32 %v3016, %v3053
      %v3086 = vadd.f32 %v3017, %v3054
      %v3087 = vadd.f32 %v3018, %v3055
      %v3088 = vadd.f32 %v3019, %v3056
      %v3089 = vadd.f32 %v3020, %v3057
      %v3090 = vadd.f32 %v3021, %v3058
      %v3091 = vadd.f32 %v3022, %v3059
      %v3092 = vadd.f32 %v3023, %v3060
      %v3093 = vadd.f32 %v3024, %v3061
      %v3094 = vld [vmem:[%s1 + $0x2e] sm:$0x1]
      %v3095 = vlaneseq
      %v3096 = vshrl.u32 %v3095, 7
      %v3097 = vsub.s32 0, %v3096
      %v3098 = vrot.slane %v3094, %v3097
      %v3099 = vmul.f32 %v2648, %v3098
      %v3100 = vmul.f32 %v2649, %v3098
      %v3101 = vmul.f32 %v2650, %v3098
      %v3102 = vmul.f32 %v2651, %v3098
      %v3103 = vmul.f32 %v2652, %v3098
      %v3104 = vmul.f32 %v2653, %v3098
      %v3105 = vmul.f32 %v2654, %v3098
      %v3106 = vmul.f32 %v2655, %v3098
      %v3107 = vmul.f32 %v2656, %v3098
      %v3108 = vmul.f32 %v2657, %v3098
      %v3109 = vmul.f32 %v2658, %v3098
      %v3110 = vmul.f32 %v2659, %v3098
      %v3111 = vmul.f32 %v2660, %v3098
      %v3112 = vmul.f32 %v2661, %v3098
      %v3113 = vmul.f32 %v2662, %v3098
      %v3114 = vmul.f32 %v2663, %v3098
      %v3115 = vmul.f32 %v2664, %v3098
      %v3116 = vmul.f32 %v2665, %v3098
      %v3117 = vmul.f32 %v2666, %v3098
      %v3118 = vmul.f32 %v2667, %v3098
      %v3119 = vmul.f32 %v2668, %v3098
      %v3120 = vmul.f32 %v2669, %v3098
      %v3121 = vmul.f32 %v2670, %v3098
      %v3122 = vmul.f32 %v2671, %v3098
      %v3123 = vmul.f32 %v2672, %v3098
      %v3124 = vmul.f32 %v2673, %v3098
      %v3125 = vmul.f32 %v2674, %v3098
      %v3126 = vmul.f32 %v2675, %v3098
      %v3127 = vmul.f32 %v2676, %v3098
      %v3128 = vmul.f32 %v2677, %v3098
      %v3129 = vmul.f32 %v2678, %v3098
      %v3130 = vmul.f32 %v2679, %v3098
      %v3131 = vadd.f32 %v3062, %v3099
      %v3132 = vadd.f32 %v3063, %v3100
      %v3133 = vadd.f32 %v3064, %v3101
      %v3134 = vadd.f32 %v3065, %v3102
      %v3135 = vadd.f32 %v3066, %v3103
      %v3136 = vadd.f32 %v3067, %v3104
      %v3137 = vadd.f32 %v3068, %v3105
      %v3138 = vadd.f32 %v3069, %v3106
      %v3139 = vadd.f32 %v3070, %v3107
      %v3140 = vadd.f32 %v3071, %v3108
      %v3141 = vadd.f32 %v3072, %v3109
      %v3142 = vadd.f32 %v3073, %v3110
      %v3143 = vadd.f32 %v3074, %v3111
      %v3144 = vadd.f32 %v3075, %v3112
      %v3145 = vadd.f32 %v3076, %v3113
      %v3146 = vadd.f32 %v3077, %v3114
      %v3147 = vadd.f32 %v3078, %v3115
      %v3148 = vadd.f32 %v3079, %v3116
      %v3149 = vadd.f32 %v3080, %v3117
      %v3150 = vadd.f32 %v3081, %v3118
      %v3151 = vadd.f32 %v3082, %v3119
      %v3152 = vadd.f32 %v3083, %v3120
      %v3153 = vadd.f32 %v3084, %v3121
      %v3154 = vadd.f32 %v3085, %v3122
      %v3155 = vadd.f32 %v3086, %v3123
      %v3156 = vadd.f32 %v3087, %v3124
      %v3157 = vadd.f32 %v3088, %v3125
      %v3158 = vadd.f32 %v3089, %v3126
      %v3159 = vadd.f32 %v3090, %v3127
      %v3160 = vadd.f32 %v3091, %v3128
      %v3161 = vadd.f32 %v3092, %v3129
      %v3162 = vadd.f32 %v3093, %v3130
      %v3163 = vld [vmem:[#allocation2 + $0x5] sm:$0xff]
      %v3164 = vld [vmem:[#allocation2 + $0xd] sm:$0xff]
      %v3165 = vld [vmem:[#allocation2 + $0x1d] sm:$0xff]
      %v3166 = vld [vmem:[#allocation2 + $0x25] sm:$0xff]
      %v3167 = vld [vmem:[#allocation2 + $0x35] sm:$0xff]
      %v3168 = vld [vmem:[#allocation2 + $0x3d] sm:$0xff]
      %v3169 = vld [vmem:[#allocation2 + $0x4d] sm:$0xff]
      %v3170 = vld [vmem:[#allocation2 + $0x55] sm:$0xff]
      %v3171 = vld [vmem:[#allocation2 + $0x65] sm:$0xff]
      %v3172 = vld [vmem:[#allocation2 + $0x6d] sm:$0xff]
      %v3173 = vld [vmem:[#allocation2 + $0x7d] sm:$0xff]
      %v3174 = vld [vmem:[#allocation2 + $0x85] sm:$0xff]
      %v3175 = vld [vmem:[#allocation2 + $0x95] sm:$0xff]
      %v3176 = vld [vmem:[#allocation2 + $0x9d] sm:$0xff]
      %v3177 = vld [vmem:[#allocation2 + $0xad] sm:$0xff]
      %v3178 = vld [vmem:[#allocation2 + $0xb5] sm:$0xff]
      %v3179 = vld [vmem:[#allocation2 + $0xc5] sm:$0xff]
      %v3180 = vld [vmem:[#allocation2 + $0xcd] sm:$0xff]
      %v3181 = vld [vmem:[#allocation2 + $0xdd] sm:$0xff]
      %v3182 = vld [vmem:[#allocation2 + $0xe5] sm:$0xff]
      %v3183 = vld [vmem:[#allocation2 + $0xf5] sm:$0xff]
      %v3184 = vld [vmem:[#allocation2 + $0xfd] sm:$0xff]
      %v3185 = vld [vmem:[#allocation2 + $0x10d] sm:$0xff]
      %v3186 = vld [vmem:[#allocation2 + $0x115] sm:$0xff]
      %v3187 = vld [vmem:[#allocation2 + $0x125] sm:$0xff]
      %v3188 = vld [vmem:[#allocation2 + $0x12d] sm:$0xff]
      %v3189 = vld [vmem:[#allocation2 + $0x13d] sm:$0xff]
      %v3190 = vld [vmem:[#allocation2 + $0x145] sm:$0xff]
      %v3191 = vld [vmem:[#allocation2 + $0x155] sm:$0xff]
      %v3192 = vld [vmem:[#allocation2 + $0x15d] sm:$0xff]
      %v3193 = vld [vmem:[#allocation2 + $0x16d] sm:$0xff]
      %v3194 = vld [vmem:[#allocation2 + $0x175] sm:$0xff]
      %v3195 = vld [vmem:[#allocation2 + $0x185] sm:$0xff]
      %v3196 = vld [vmem:[#allocation2 + $0x18d] sm:$0xff]
      %v3197 = vld [vmem:[#allocation2 + $0x19d] sm:$0xff]
      %v3198 = vld [vmem:[#allocation2 + $0x1a5] sm:$0xff]
      %v3199 = vld [vmem:[#allocation2 + $0x1b5] sm:$0xff]
      %v3200 = vld [vmem:[#allocation2 + $0x1bd] sm:$0xff]
      %v3201 = vld [vmem:[#allocation2 + $0x1cd] sm:$0xff]
      %v3202 = vld [vmem:[#allocation2 + $0x1d5] sm:$0xff]
      %v3203 = vld [vmem:[#allocation2 + $0x1e5] sm:$0xff]
      %v3204 = vld [vmem:[#allocation2 + $0x1ed] sm:$0xff]
      %v3205 = vld [vmem:[#allocation2 + $0x1fd] sm:$0xff]
      %v3206 = vld [vmem:[#allocation2 + $0x205] sm:$0xff]
      %v3207 = vld [vmem:[%s1 + $0x5] sm:$0x1]
      %v3208 = vlaneseq
      %v3209 = vshrl.u32 %v3208, 7
      %v3210 = vsub.s32 0, %v3209
      %v3211 = vrot.slane %v3207, %v3210
      %v3212 = vmul.f32 %v3163, %v3211
      %v3213 = vmul.f32 %v3164, %v3211
      %v3214 = vmul.f32 %v3165, %v3211
      %v3215 = vmul.f32 %v3166, %v3211
      %v3216 = vmul.f32 %v3167, %v3211
      %v3217 = vmul.f32 %v3168, %v3211
      %v3218 = vmul.f32 %v3169, %v3211
      %v3219 = vmul.f32 %v3170, %v3211
      %v3220 = vmul.f32 %v3171, %v3211
      %v3221 = vmul.f32 %v3172, %v3211
      %v3222 = vmul.f32 %v3173, %v3211
      %v3223 = vmul.f32 %v3174, %v3211
      %v3224 = vmul.f32 %v3175, %v3211
      %v3225 = vmul.f32 %v3176, %v3211
      %v3226 = vmul.f32 %v3177, %v3211
      %v3227 = vmul.f32 %v3178, %v3211
      %v3228 = vmul.f32 %v3179, %v3211
      %v3229 = vmul.f32 %v3180, %v3211
      %v3230 = vmul.f32 %v3181, %v3211
      %v3231 = vmul.f32 %v3182, %v3211
      %v3232 = vmul.f32 %v3183, %v3211
      %v3233 = vmul.f32 %v3184, %v3211
      %v3234 = vmul.f32 %v3185, %v3211
      %v3235 = vmul.f32 %v3186, %v3211
      %v3236 = vmul.f32 %v3187, %v3211
      %v3237 = vmul.f32 %v3188, %v3211
      %v3238 = vmul.f32 %v3189, %v3211
      %v3239 = vmul.f32 %v3190, %v3211
      %v3240 = vmul.f32 %v3191, %v3211
      %v3241 = vmul.f32 %v3192, %v3211
      %v3242 = vmul.f32 %v3193, %v3211
      %v3243 = vmul.f32 %v3194, %v3211
      %v3244 = vadd.f32 %v3131, %v3212
      %v3245 = vadd.f32 %v3132, %v3213
      %v3246 = vadd.f32 %v3133, %v3214
      %v3247 = vadd.f32 %v3134, %v3215
      %v3248 = vadd.f32 %v3135, %v3216
      %v3249 = vadd.f32 %v3136, %v3217
      %v3250 = vadd.f32 %v3137, %v3218
      %v3251 = vadd.f32 %v3138, %v3219
      %v3252 = vadd.f32 %v3139, %v3220
      %v3253 = vadd.f32 %v3140, %v3221
      %v3254 = vadd.f32 %v3141, %v3222
      %v3255 = vadd.f32 %v3142, %v3223
      %v3256 = vadd.f32 %v3143, %v3224
      %v3257 = vadd.f32 %v3144, %v3225
      %v3258 = vadd.f32 %v3145, %v3226
      %v3259 = vadd.f32 %v3146, %v3227
      %v3260 = vadd.f32 %v3147, %v3228
      %v3261 = vadd.f32 %v3148, %v3229
      %v3262 = vadd.f32 %v3149, %v3230
      %v3263 = vadd.f32 %v3150, %v3231
      %v3264 = vadd.f32 %v3151, %v3232
      %v3265 = vadd.f32 %v3152, %v3233
      %v3266 = vadd.f32 %v3153, %v3234
      %v3267 = vadd.f32 %v3154, %v3235
      %v3268 = vadd.f32 %v3155, %v3236
      %v3269 = vadd.f32 %v3156, %v3237
      %v3270 = vadd.f32 %v3157, %v3238
      %v3271 = vadd.f32 %v3158, %v3239
      %v3272 = vadd.f32 %v3159, %v3240
      %v3273 = vadd.f32 %v3160, %v3241
      %v3274 = vadd.f32 %v3161, %v3242
      %v3275 = vadd.f32 %v3162, %v3243
      %v3276 = vld [vmem:[%s1 + $0xc] sm:$0x1]
      %v3277 = vlaneseq
      %v3278 = vshrl.u32 %v3277, 7
      %v3279 = vsub.s32 0, %v3278
      %v3280 = vrot.slane %v3276, %v3279
      %v3281 = vmul.f32 %v3165, %v3280
      %v3282 = vmul.f32 %v3166, %v3280
      %v3283 = vmul.f32 %v3167, %v3280
      %v3284 = vmul.f32 %v3168, %v3280
      %v3285 = vmul.f32 %v3169, %v3280
      %v3286 = vmul.f32 %v3170, %v3280
      %v3287 = vmul.f32 %v3171, %v3280
      %v3288 = vmul.f32 %v3172, %v3280
      %v3289 = vmul.f32 %v3173, %v3280
      %v3290 = vmul.f32 %v3174, %v3280
      %v3291 = vmul.f32 %v3175, %v3280
      %v3292 = vmul.f32 %v3176, %v3280
      %v3293 = vmul.f32 %v3177, %v3280
      %v3294 = vmul.f32 %v3178, %v3280
      %v3295 = vmul.f32 %v3179, %v3280
      %v3296 = vmul.f32 %v3180, %v3280
      %v3297 = vmul.f32 %v3181, %v3280
      %v3298 = vmul.f32 %v3182, %v3280
      %v3299 = vmul.f32 %v3183, %v3280
      %v3300 = vmul.f32 %v3184, %v3280
      %v3301 = vmul.f32 %v3185, %v3280
      %v3302 = vmul.f32 %v3186, %v3280
      %v3303 = vmul.f32 %v3187, %v3280
      %v3304 = vmul.f32 %v3188, %v3280
      %v3305 = vmul.f32 %v3189, %v3280
      %v3306 = vmul.f32 %v3190, %v3280
      %v3307 = vmul.f32 %v3191, %v3280
      %v3308 = vmul.f32 %v3192, %v3280
      %v3309 = vmul.f32 %v3193, %v3280
      %v3310 = vmul.f32 %v3194, %v3280
      %v3311 = vmul.f32 %v3195, %v3280
      %v3312 = vmul.f32 %v3196, %v3280
      %v3313 = vadd.f32 %v3244, %v3281
      %v3314 = vadd.f32 %v3245, %v3282
      %v3315 = vadd.f32 %v3246, %v3283
      %v3316 = vadd.f32 %v3247, %v3284
      %v3317 = vadd.f32 %v3248, %v3285
      %v3318 = vadd.f32 %v3249, %v3286
      %v3319 = vadd.f32 %v3250, %v3287
      %v3320 = vadd.f32 %v3251, %v3288
      %v3321 = vadd.f32 %v3252, %v3289
      %v3322 = vadd.f32 %v3253, %v3290
      %v3323 = vadd.f32 %v3254, %v3291
      %v3324 = vadd.f32 %v3255, %v3292
      %v3325 = vadd.f32 %v3256, %v3293
      %v3326 = vadd.f32 %v3257, %v3294
      %v3327 = vadd.f32 %v3258, %v3295
      %v3328 = vadd.f32 %v3259, %v3296
      %v3329 = vadd.f32 %v3260, %v3297
      %v3330 = vadd.f32 %v3261, %v3298
      %v3331 = vadd.f32 %v3262, %v3299
      %v3332 = vadd.f32 %v3263, %v3300
      %v3333 = vadd.f32 %v3264, %v3301
      %v3334 = vadd.f32 %v3265, %v3302
      %v3335 = vadd.f32 %v3266, %v3303
      %v3336 = vadd.f32 %v3267, %v3304
      %v3337 = vadd.f32 %v3268, %v3305
      %v3338 = vadd.f32 %v3269, %v3306
      %v3339 = vadd.f32 %v3270, %v3307
      %v3340 = vadd.f32 %v3271, %v3308
      %v3341 = vadd.f32 %v3272, %v3309
      %v3342 = vadd.f32 %v3273, %v3310
      %v3343 = vadd.f32 %v3274, %v3311
      %v3344 = vadd.f32 %v3275, %v3312
      %v3345 = vld [vmem:[%s1 + $0x13] sm:$0x1]
      %v3346 = vlaneseq
      %v3347 = vshrl.u32 %v3346, 7
      %v3348 = vsub.s32 0, %v3347
      %v3349 = vrot.slane %v3345, %v3348
      %v3350 = vmul.f32 %v3167, %v3349
      %v3351 = vmul.f32 %v3168, %v3349
      %v3352 = vmul.f32 %v3169, %v3349
      %v3353 = vmul.f32 %v3170, %v3349
      %v3354 = vmul.f32 %v3171, %v3349
      %v3355 = vmul.f32 %v3172, %v3349
      %v3356 = vmul.f32 %v3173, %v3349
      %v3357 = vmul.f32 %v3174, %v3349
      %v3358 = vmul.f32 %v3175, %v3349
      %v3359 = vmul.f32 %v3176, %v3349
      %v3360 = vmul.f32 %v3177, %v3349
      %v3361 = vmul.f32 %v3178, %v3349
      %v3362 = vmul.f32 %v3179, %v3349
      %v3363 = vmul.f32 %v3180, %v3349
      %v3364 = vmul.f32 %v3181, %v3349
      %v3365 = vmul.f32 %v3182, %v3349
      %v3366 = vmul.f32 %v3183, %v3349
      %v3367 = vmul.f32 %v3184, %v3349
      %v3368 = vmul.f32 %v3185, %v3349
      %v3369 = vmul.f32 %v3186, %v3349
      %v3370 = vmul.f32 %v3187, %v3349
      %v3371 = vmul.f32 %v3188, %v3349
      %v3372 = vmul.f32 %v3189, %v3349
      %v3373 = vmul.f32 %v3190, %v3349
      %v3374 = vmul.f32 %v3191, %v3349
      %v3375 = vmul.f32 %v3192, %v3349
      %v3376 = vmul.f32 %v3193, %v3349
      %v3377 = vmul.f32 %v3194, %v3349
      %v3378 = vmul.f32 %v3195, %v3349
      %v3379 = vmul.f32 %v3196, %v3349
      %v3380 = vmul.f32 %v3197, %v3349
      %v3381 = vmul.f32 %v3198, %v3349
      %v3382 = vadd.f32 %v3313, %v3350
      %v3383 = vadd.f32 %v3314, %v3351
      %v3384 = vadd.f32 %v3315, %v3352
      %v3385 = vadd.f32 %v3316, %v3353
      %v3386 = vadd.f32 %v3317, %v3354
      %v3387 = vadd.f32 %v3318, %v3355
      %v3388 = vadd.f32 %v3319, %v3356
      %v3389 = vadd.f32 %v3320, %v3357
      %v3390 = vadd.f32 %v3321, %v3358
      %v3391 = vadd.f32 %v3322, %v3359
      %v3392 = vadd.f32 %v3323, %v3360
      %v3393 = vadd.f32 %v3324, %v3361
      %v3394 = vadd.f32 %v3325, %v3362
      %v3395 = vadd.f32 %v3326, %v3363
      %v3396 = vadd.f32 %v3327, %v3364
      %v3397 = vadd.f32 %v3328, %v3365
      %v3398 = vadd.f32 %v3329, %v3366
      %v3399 = vadd.f32 %v3330, %v3367
      %v3400 = vadd.f32 %v3331, %v3368
      %v3401 = vadd.f32 %v3332, %v3369
      %v3402 = vadd.f32 %v3333, %v3370
      %v3403 = vadd.f32 %v3334, %v3371
      %v3404 = vadd.f32 %v3335, %v3372
      %v3405 = vadd.f32 %v3336, %v3373
      %v3406 = vadd.f32 %v3337, %v3374
      %v3407 = vadd.f32 %v3338, %v3375
      %v3408 = vadd.f32 %v3339, %v3376
      %v3409 = vadd.f32 %v3340, %v3377
      %v3410 = vadd.f32 %v3341, %v3378
      %v3411 = vadd.f32 %v3342, %v3379
      %v3412 = vadd.f32 %v3343, %v3380
      %v3413 = vadd.f32 %v3344, %v3381
      %v3414 = vld [vmem:[%s1 + $0x1a] sm:$0x1]
      %v3415 = vlaneseq
      %v3416 = vshrl.u32 %v3415, 7
      %v3417 = vsub.s32 0, %v3416
      %v3418 = vrot.slane %v3414, %v3417
      %v3419 = vmul.f32 %v3169, %v3418
      %v3420 = vmul.f32 %v3170, %v3418
      %v3421 = vmul.f32 %v3171, %v3418
      %v3422 = vmul.f32 %v3172, %v3418
      %v3423 = vmul.f32 %v3173, %v3418
      %v3424 = vmul.f32 %v3174, %v3418
      %v3425 = vmul.f32 %v3175, %v3418
      %v3426 = vmul.f32 %v3176, %v3418
      %v3427 = vmul.f32 %v3177, %v3418
      %v3428 = vmul.f32 %v3178, %v3418
      %v3429 = vmul.f32 %v3179, %v3418
      %v3430 = vmul.f32 %v3180, %v3418
      %v3431 = vmul.f32 %v3181, %v3418
      %v3432 = vmul.f32 %v3182, %v3418
      %v3433 = vmul.f32 %v3183, %v3418
      %v3434 = vmul.f32 %v3184, %v3418
      %v3435 = vmul.f32 %v3185, %v3418
      %v3436 = vmul.f32 %v3186, %v3418
      %v3437 = vmul.f32 %v3187, %v3418
      %v3438 = vmul.f32 %v3188, %v3418
      %v3439 = vmul.f32 %v3189, %v3418
      %v3440 = vmul.f32 %v3190, %v3418
      %v3441 = vmul.f32 %v3191, %v3418
      %v3442 = vmul.f32 %v3192, %v3418
      %v3443 = vmul.f32 %v3193, %v3418
      %v3444 = vmul.f32 %v3194, %v3418
      %v3445 = vmul.f32 %v3195, %v3418
      %v3446 = vmul.f32 %v3196, %v3418
      %v3447 = vmul.f32 %v3197, %v3418
      %v3448 = vmul.f32 %v3198, %v3418
      %v3449 = vmul.f32 %v3199, %v3418
      %v3450 = vmul.f32 %v3200, %v3418
      %v3451 = vadd.f32 %v3382, %v3419
      %v3452 = vadd.f32 %v3383, %v3420
      %v3453 = vadd.f32 %v3384, %v3421
      %v3454 = vadd.f32 %v3385, %v3422
      %v3455 = vadd.f32 %v3386, %v3423
      %v3456 = vadd.f32 %v3387, %v3424
      %v3457 = vadd.f32 %v3388, %v3425
      %v3458 = vadd.f32 %v3389, %v3426
      %v3459 = vadd.f32 %v3390, %v3427
      %v3460 = vadd.f32 %v3391, %v3428
      %v3461 = vadd.f32 %v3392, %v3429
      %v3462 = vadd.f32 %v3393, %v3430
      %v3463 = vadd.f32 %v3394, %v3431
      %v3464 = vadd.f32 %v3395, %v3432
      %v3465 = vadd.f32 %v3396, %v3433
      %v3466 = vadd.f32 %v3397, %v3434
      %v3467 = vadd.f32 %v3398, %v3435
      %v3468 = vadd.f32 %v3399, %v3436
      %v3469 = vadd.f32 %v3400, %v3437
      %v3470 = vadd.f32 %v3401, %v3438
      %v3471 = vadd.f32 %v3402, %v3439
      %v3472 = vadd.f32 %v3403, %v3440
      %v3473 = vadd.f32 %v3404, %v3441
      %v3474 = vadd.f32 %v3405, %v3442
      %v3475 = vadd.f32 %v3406, %v3443
      %v3476 = vadd.f32 %v3407, %v3444
      %v3477 = vadd.f32 %v3408, %v3445
      %v3478 = vadd.f32 %v3409, %v3446
      %v3479 = vadd.f32 %v3410, %v3447
      %v3480 = vadd.f32 %v3411, %v3448
      %v3481 = vadd.f32 %v3412, %v3449
      %v3482 = vadd.f32 %v3413, %v3450
      %v3483 = vld [vmem:[%s1 + $0x21] sm:$0x1]
      %v3484 = vlaneseq
      %v3485 = vshrl.u32 %v3484, 7
      %v3486 = vsub.s32 0, %v3485
      %v3487 = vrot.slane %v3483, %v3486
      %v3488 = vmul.f32 %v3171, %v3487
      %v3489 = vmul.f32 %v3172, %v3487
      %v3490 = vmul.f32 %v3173, %v3487
      %v3491 = vmul.f32 %v3174, %v3487
      %v3492 = vmul.f32 %v3175, %v3487
      %v3493 = vmul.f32 %v3176, %v3487
      %v3494 = vmul.f32 %v3177, %v3487
      %v3495 = vmul.f32 %v3178, %v3487
      %v3496 = vmul.f32 %v3179, %v3487
      %v3497 = vmul.f32 %v3180, %v3487
      %v3498 = vmul.f32 %v3181, %v3487
      %v3499 = vmul.f32 %v3182, %v3487
      %v3500 = vmul.f32 %v3183, %v3487
      %v3501 = vmul.f32 %v3184, %v3487
      %v3502 = vmul.f32 %v3185, %v3487
      %v3503 = vmul.f32 %v3186, %v3487
      %v3504 = vmul.f32 %v3187, %v3487
      %v3505 = vmul.f32 %v3188, %v3487
      %v3506 = vmul.f32 %v3189, %v3487
      %v3507 = vmul.f32 %v3190, %v3487
      %v3508 = vmul.f32 %v3191, %v3487
      %v3509 = vmul.f32 %v3192, %v3487
      %v3510 = vmul.f32 %v3193, %v3487
      %v3511 = vmul.f32 %v3194, %v3487
      %v3512 = vmul.f32 %v3195, %v3487
      %v3513 = vmul.f32 %v3196, %v3487
      %v3514 = vmul.f32 %v3197, %v3487
      %v3515 = vmul.f32 %v3198, %v3487
      %v3516 = vmul.f32 %v3199, %v3487
      %v3517 = vmul.f32 %v3200, %v3487
      %v3518 = vmul.f32 %v3201, %v3487
      %v3519 = vmul.f32 %v3202, %v3487
      %v3520 = vadd.f32 %v3451, %v3488
      %v3521 = vadd.f32 %v3452, %v3489
      %v3522 = vadd.f32 %v3453, %v3490
      %v3523 = vadd.f32 %v3454, %v3491
      %v3524 = vadd.f32 %v3455, %v3492
      %v3525 = vadd.f32 %v3456, %v3493
      %v3526 = vadd.f32 %v3457, %v3494
      %v3527 = vadd.f32 %v3458, %v3495
      %v3528 = vadd.f32 %v3459, %v3496
      %v3529 = vadd.f32 %v3460, %v3497
      %v3530 = vadd.f32 %v3461, %v3498
      %v3531 = vadd.f32 %v3462, %v3499
      %v3532 = vadd.f32 %v3463, %v3500
      %v3533 = vadd.f32 %v3464, %v3501
      %v3534 = vadd.f32 %v3465, %v3502
      %v3535 = vadd.f32 %v3466, %v3503
      %v3536 = vadd.f32 %v3467, %v3504
      %v3537 = vadd.f32 %v3468, %v3505
      %v3538 = vadd.f32 %v3469, %v3506
      %v3539 = vadd.f32 %v3470, %v3507
      %v3540 = vadd.f32 %v3471, %v3508
      %v3541 = vadd.f32 %v3472, %v3509
      %v3542 = vadd.f32 %v3473, %v3510
      %v3543 = vadd.f32 %v3474, %v3511
      %v3544 = vadd.f32 %v3475, %v3512
      %v3545 = vadd.f32 %v3476, %v3513
      %v3546 = vadd.f32 %v3477, %v3514
      %v3547 = vadd.f32 %v3478, %v3515
      %v3548 = vadd.f32 %v3479, %v3516
      %v3549 = vadd.f32 %v3480, %v3517
      %v3550 = vadd.f32 %v3481, %v3518
      %v3551 = vadd.f32 %v3482, %v3519
      %v3552 = vld [vmem:[%s1 + $0x28] sm:$0x1]
      %v3553 = vlaneseq
      %v3554 = vshrl.u32 %v3553, 7
      %v3555 = vsub.s32 0, %v3554
      %v3556 = vrot.slane %v3552, %v3555
      %v3557 = vmul.f32 %v3173, %v3556
      %v3558 = vmul.f32 %v3174, %v3556
      %v3559 = vmul.f32 %v3175, %v3556
      %v3560 = vmul.f32 %v3176, %v3556
      %v3561 = vmul.f32 %v3177, %v3556
      %v3562 = vmul.f32 %v3178, %v3556
      %v3563 = vmul.f32 %v3179, %v3556
      %v3564 = vmul.f32 %v3180, %v3556
      %v3565 = vmul.f32 %v3181, %v3556
      %v3566 = vmul.f32 %v3182, %v3556
      %v3567 = vmul.f32 %v3183, %v3556
      %v3568 = vmul.f32 %v3184, %v3556
      %v3569 = vmul.f32 %v3185, %v3556
      %v3570 = vmul.f32 %v3186, %v3556
      %v3571 = vmul.f32 %v3187, %v3556
      %v3572 = vmul.f32 %v3188, %v3556
      %v3573 = vmul.f32 %v3189, %v3556
      %v3574 = vmul.f32 %v3190, %v3556
      %v3575 = vmul.f32 %v3191, %v3556
      %v3576 = vmul.f32 %v3192, %v3556
      %v3577 = vmul.f32 %v3193, %v3556
      %v3578 = vmul.f32 %v3194, %v3556
      %v3579 = vmul.f32 %v3195, %v3556
      %v3580 = vmul.f32 %v3196, %v3556
      %v3581 = vmul.f32 %v3197, %v3556
      %v3582 = vmul.f32 %v3198, %v3556
      %v3583 = vmul.f32 %v3199, %v3556
      %v3584 = vmul.f32 %v3200, %v3556
      %v3585 = vmul.f32 %v3201, %v3556
      %v3586 = vmul.f32 %v3202, %v3556
      %v3587 = vmul.f32 %v3203, %v3556
      %v3588 = vmul.f32 %v3204, %v3556
      %v3589 = vadd.f32 %v3520, %v3557
      %v3590 = vadd.f32 %v3521, %v3558
      %v3591 = vadd.f32 %v3522, %v3559
      %v3592 = vadd.f32 %v3523, %v3560
      %v3593 = vadd.f32 %v3524, %v3561
      %v3594 = vadd.f32 %v3525, %v3562
      %v3595 = vadd.f32 %v3526, %v3563
      %v3596 = vadd.f32 %v3527, %v3564
      %v3597 = vadd.f32 %v3528, %v3565
      %v3598 = vadd.f32 %v3529, %v3566
      %v3599 = vadd.f32 %v3530, %v3567
      %v3600 = vadd.f32 %v3531, %v3568
      %v3601 = vadd.f32 %v3532, %v3569
      %v3602 = vadd.f32 %v3533, %v3570
      %v3603 = vadd.f32 %v3534, %v3571
      %v3604 = vadd.f32 %v3535, %v3572
      %v3605 = vadd.f32 %v3536, %v3573
      %v3606 = vadd.f32 %v3537, %v3574
      %v3607 = vadd.f32 %v3538, %v3575
      %v3608 = vadd.f32 %v3539, %v3576
      %v3609 = vadd.f32 %v3540, %v3577
      %v3610 = vadd.f32 %v3541, %v3578
      %v3611 = vadd.f32 %v3542, %v3579
      %v3612 = vadd.f32 %v3543, %v3580
      %v3613 = vadd.f32 %v3544, %v3581
      %v3614 = vadd.f32 %v3545, %v3582
      %v3615 = vadd.f32 %v3546, %v3583
      %v3616 = vadd.f32 %v3547, %v3584
      %v3617 = vadd.f32 %v3548, %v3585
      %v3618 = vadd.f32 %v3549, %v3586
      %v3619 = vadd.f32 %v3550, %v3587
      %v3620 = vadd.f32 %v3551, %v3588
      %v3621 = vld [vmem:[%s1 + $0x2f] sm:$0x1]
      %v3622 = vlaneseq
      %v3623 = vshrl.u32 %v3622, 7
      %v3624 = vsub.s32 0, %v3623
      %v3625 = vrot.slane %v3621, %v3624
      %v3626 = vmul.f32 %v3175, %v3625
      %v3627 = vmul.f32 %v3176, %v3625
      %v3628 = vmul.f32 %v3177, %v3625
      %v3629 = vmul.f32 %v3178, %v3625
      %v3630 = vmul.f32 %v3179, %v3625
      %v3631 = vmul.f32 %v3180, %v3625
      %v3632 = vmul.f32 %v3181, %v3625
      %v3633 = vmul.f32 %v3182, %v3625
      %v3634 = vmul.f32 %v3183, %v3625
      %v3635 = vmul.f32 %v3184, %v3625
      %v3636 = vmul.f32 %v3185, %v3625
      %v3637 = vmul.f32 %v3186, %v3625
      %v3638 = vmul.f32 %v3187, %v3625
      %v3639 = vmul.f32 %v3188, %v3625
      %v3640 = vmul.f32 %v3189, %v3625
      %v3641 = vmul.f32 %v3190, %v3625
      %v3642 = vmul.f32 %v3191, %v3625
      %v3643 = vmul.f32 %v3192, %v3625
      %v3644 = vmul.f32 %v3193, %v3625
      %v3645 = vmul.f32 %v3194, %v3625
      %v3646 = vmul.f32 %v3195, %v3625
      %v3647 = vmul.f32 %v3196, %v3625
      %v3648 = vmul.f32 %v3197, %v3625
      %v3649 = vmul.f32 %v3198, %v3625
      %v3650 = vmul.f32 %v3199, %v3625
      %v3651 = vmul.f32 %v3200, %v3625
      %v3652 = vmul.f32 %v3201, %v3625
      %v3653 = vmul.f32 %v3202, %v3625
      %v3654 = vmul.f32 %v3203, %v3625
      %v3655 = vmul.f32 %v3204, %v3625
      %v3656 = vmul.f32 %v3205, %v3625
      %v3657 = vmul.f32 %v3206, %v3625
      %v3658 = vadd.f32 %v3589, %v3626
      %v3659 = vadd.f32 %v3590, %v3627
      %v3660 = vadd.f32 %v3591, %v3628
      %v3661 = vadd.f32 %v3592, %v3629
      %v3662 = vadd.f32 %v3593, %v3630
      %v3663 = vadd.f32 %v3594, %v3631
      %v3664 = vadd.f32 %v3595, %v3632
      %v3665 = vadd.f32 %v3596, %v3633
      %v3666 = vadd.f32 %v3597, %v3634
      %v3667 = vadd.f32 %v3598, %v3635
      %v3668 = vadd.f32 %v3599, %v3636
      %v3669 = vadd.f32 %v3600, %v3637
      %v3670 = vadd.f32 %v3601, %v3638
      %v3671 = vadd.f32 %v3602, %v3639
      %v3672 = vadd.f32 %v3603, %v3640
      %v3673 = vadd.f32 %v3604, %v3641
      %v3674 = vadd.f32 %v3605, %v3642
      %v3675 = vadd.f32 %v3606, %v3643
      %v3676 = vadd.f32 %v3607, %v3644
      %v3677 = vadd.f32 %v3608, %v3645
      %v3678 = vadd.f32 %v3609, %v3646
      %v3679 = vadd.f32 %v3610, %v3647
      %v3680 = vadd.f32 %v3611, %v3648
      %v3681 = vadd.f32 %v3612, %v3649
      %v3682 = vadd.f32 %v3613, %v3650
      %v3683 = vadd.f32 %v3614, %v3651
      %v3684 = vadd.f32 %v3615, %v3652
      %v3685 = vadd.f32 %v3616, %v3653
      %v3686 = vadd.f32 %v3617, %v3654
      %v3687 = vadd.f32 %v3618, %v3655
      %v3688 = vadd.f32 %v3619, %v3656
      %v3689 = vadd.f32 %v3620, %v3657
      %v3690 = vld [vmem:[#allocation2 + $0x6] sm:$0xff]
      %v3691 = vld [vmem:[#allocation2 + $0xe] sm:$0xff]
      %v3692 = vld [vmem:[#allocation2 + $0x1e] sm:$0xff]
      %v3693 = vld [vmem:[#allocation2 + $0x26] sm:$0xff]
      %v3694 = vld [vmem:[#allocation2 + $0x36] sm:$0xff]
      %v3695 = vld [vmem:[#allocation2 + $0x3e] sm:$0xff]
      %v3696 = vld [vmem:[#allocation2 + $0x4e] sm:$0xff]
      %v3697 = vld [vmem:[#allocation2 + $0x56] sm:$0xff]
      %v3698 = vld [vmem:[#allocation2 + $0x66] sm:$0xff]
      %v3699 = vld [vmem:[#allocation2 + $0x6e] sm:$0xff]
      %v3700 = vld [vmem:[#allocation2 + $0x7e] sm:$0xff]
      %v3701 = vld [vmem:[#allocation2 + $0x86] sm:$0xff]
      %v3702 = vld [vmem:[#allocation2 + $0x96] sm:$0xff]
      %v3703 = vld [vmem:[#allocation2 + $0x9e] sm:$0xff]
      %v3704 = vld [vmem:[#allocation2 + $0xae] sm:$0xff]
      %v3705 = vld [vmem:[#allocation2 + $0xb6] sm:$0xff]
      %v3706 = vld [vmem:[#allocation2 + $0xc6] sm:$0xff]
      %v3707 = vld [vmem:[#allocation2 + $0xce] sm:$0xff]
      %v3708 = vld [vmem:[#allocation2 + $0xde] sm:$0xff]
      %v3709 = vld [vmem:[#allocation2 + $0xe6] sm:$0xff]
      %v3710 = vld [vmem:[#allocation2 + $0xf6] sm:$0xff]
      %v3711 = vld [vmem:[#allocation2 + $0xfe] sm:$0xff]
      %v3712 = vld [vmem:[#allocation2 + $0x10e] sm:$0xff]
      %v3713 = vld [vmem:[#allocation2 + $0x116] sm:$0xff]
      %v3714 = vld [vmem:[#allocation2 + $0x126] sm:$0xff]
      %v3715 = vld [vmem:[#allocation2 + $0x12e] sm:$0xff]
      %v3716 = vld [vmem:[#allocation2 + $0x13e] sm:$0xff]
      %v3717 = vld [vmem:[#allocation2 + $0x146] sm:$0xff]
      %v3718 = vld [vmem:[#allocation2 + $0x156] sm:$0xff]
      %v3719 = vld [vmem:[#allocation2 + $0x15e] sm:$0xff]
      %v3720 = vld [vmem:[#allocation2 + $0x16e] sm:$0xff]
      %v3721 = vld [vmem:[#allocation2 + $0x176] sm:$0xff]
      %v3722 = vld [vmem:[#allocation2 + $0x186] sm:$0xff]
      %v3723 = vld [vmem:[#allocation2 + $0x18e] sm:$0xff]
      %v3724 = vld [vmem:[#allocation2 + $0x19e] sm:$0xff]
      %v3725 = vld [vmem:[#allocation2 + $0x1a6] sm:$0xff]
      %v3726 = vld [vmem:[#allocation2 + $0x1b6] sm:$0xff]
      %v3727 = vld [vmem:[#allocation2 + $0x1be] sm:$0xff]
      %v3728 = vld [vmem:[#allocation2 + $0x1ce] sm:$0xff]
      %v3729 = vld [vmem:[#allocation2 + $0x1d6] sm:$0xff]
      %v3730 = vld [vmem:[#allocation2 + $0x1e6] sm:$0xff]
      %v3731 = vld [vmem:[#allocation2 + $0x1ee] sm:$0xff]
      %v3732 = vld [vmem:[#allocation2 + $0x1fe] sm:$0xff]
      %v3733 = vld [vmem:[#allocation2 + $0x206] sm:$0xff]
      %v3734 = vld [vmem:[%s1 + $0x6] sm:$0x1]
      %v3735 = vlaneseq
      %v3736 = vshrl.u32 %v3735, 7
      %v3737 = vsub.s32 0, %v3736
      %v3738 = vrot.slane %v3734, %v3737
      %v3739 = vmul.f32 %v3690, %v3738
      %v3740 = vmul.f32 %v3691, %v3738
      %v3741 = vmul.f32 %v3692, %v3738
      %v3742 = vmul.f32 %v3693, %v3738
      %v3743 = vmul.f32 %v3694, %v3738
      %v3744 = vmul.f32 %v3695, %v3738
      %v3745 = vmul.f32 %v3696, %v3738
      %v3746 = vmul.f32 %v3697, %v3738
      %v3747 = vmul.f32 %v3698, %v3738
      %v3748 = vmul.f32 %v3699, %v3738
      %v3749 = vmul.f32 %v3700, %v3738
      %v3750 = vmul.f32 %v3701, %v3738
      %v3751 = vmul.f32 %v3702, %v3738
      %v3752 = vmul.f32 %v3703, %v3738
      %v3753 = vmul.f32 %v3704, %v3738
      %v3754 = vmul.f32 %v3705, %v3738
      %v3755 = vmul.f32 %v3706, %v3738
      %v3756 = vmul.f32 %v3707, %v3738
      %v3757 = vmul.f32 %v3708, %v3738
      %v3758 = vmul.f32 %v3709, %v3738
      %v3759 = vmul.f32 %v3710, %v3738
      %v3760 = vmul.f32 %v3711, %v3738
      %v3761 = vmul.f32 %v3712, %v3738
      %v3762 = vmul.f32 %v3713, %v3738
      %v3763 = vmul.f32 %v3714, %v3738
      %v3764 = vmul.f32 %v3715, %v3738
      %v3765 = vmul.f32 %v3716, %v3738
      %v3766 = vmul.f32 %v3717, %v3738
      %v3767 = vmul.f32 %v3718, %v3738
      %v3768 = vmul.f32 %v3719, %v3738
      %v3769 = vmul.f32 %v3720, %v3738
      %v3770 = vmul.f32 %v3721, %v3738
      %v3771 = vadd.f32 %v3658, %v3739
      %v3772 = vadd.f32 %v3659, %v3740
      %v3773 = vadd.f32 %v3660, %v3741
      %v3774 = vadd.f32 %v3661, %v3742
      %v3775 = vadd.f32 %v3662, %v3743
      %v3776 = vadd.f32 %v3663, %v3744
      %v3777 = vadd.f32 %v3664, %v3745
      %v3778 = vadd.f32 %v3665, %v3746
      %v3779 = vadd.f32 %v3666, %v3747
      %v3780 = vadd.f32 %v3667, %v3748
      %v3781 = vadd.f32 %v3668, %v3749
      %v3782 = vadd.f32 %v3669, %v3750
      %v3783 = vadd.f32 %v3670, %v3751
      %v3784 = vadd.f32 %v3671, %v3752
      %v3785 = vadd.f32 %v3672, %v3753
      %v3786 = vadd.f32 %v3673, %v3754
      %v3787 = vadd.f32 %v3674, %v3755
      %v3788 = vadd.f32 %v3675, %v3756
      %v3789 = vadd.f32 %v3676, %v3757
      %v3790 = vadd.f32 %v3677, %v3758
      %v3791 = vadd.f32 %v3678, %v3759
      %v3792 = vadd.f32 %v3679, %v3760
      %v3793 = vadd.f32 %v3680, %v3761
      %v3794 = vadd.f32 %v3681, %v3762
      %v3795 = vadd.f32 %v3682, %v3763
      %v3796 = vadd.f32 %v3683, %v3764
      %v3797 = vadd.f32 %v3684, %v3765
      %v3798 = vadd.f32 %v3685, %v3766
      %v3799 = vadd.f32 %v3686, %v3767
      %v3800 = vadd.f32 %v3687, %v3768
      %v3801 = vadd.f32 %v3688, %v3769
      %v3802 = vadd.f32 %v3689, %v3770
      %v3803 = vld [vmem:[%s1 + $0xd] sm:$0x1]
      %v3804 = vlaneseq
      %v3805 = vshrl.u32 %v3804, 7
      %v3806 = vsub.s32 0, %v3805
      %v3807 = vrot.slane %v3803, %v3806
      %v3808 = vmul.f32 %v3692, %v3807
      %v3809 = vmul.f32 %v3693, %v3807
      %v3810 = vmul.f32 %v3694, %v3807
      %v3811 = vmul.f32 %v3695, %v3807
      %v3812 = vmul.f32 %v3696, %v3807
      %v3813 = vmul.f32 %v3697, %v3807
      %v3814 = vmul.f32 %v3698, %v3807
      %v3815 = vmul.f32 %v3699, %v3807
      %v3816 = vmul.f32 %v3700, %v3807
      %v3817 = vmul.f32 %v3701, %v3807
      %v3818 = vmul.f32 %v3702, %v3807
      %v3819 = vmul.f32 %v3703, %v3807
      %v3820 = vmul.f32 %v3704, %v3807
      %v3821 = vmul.f32 %v3705, %v3807
      %v3822 = vmul.f32 %v3706, %v3807
      %v3823 = vmul.f32 %v3707, %v3807
      %v3824 = vmul.f32 %v3708, %v3807
      %v3825 = vmul.f32 %v3709, %v3807
      %v3826 = vmul.f32 %v3710, %v3807
      %v3827 = vmul.f32 %v3711, %v3807
      %v3828 = vmul.f32 %v3712, %v3807
      %v3829 = vmul.f32 %v3713, %v3807
      %v3830 = vmul.f32 %v3714, %v3807
      %v3831 = vmul.f32 %v3715, %v3807
      %v3832 = vmul.f32 %v3716, %v3807
      %v3833 = vmul.f32 %v3717, %v3807
      %v3834 = vmul.f32 %v3718, %v3807
      %v3835 = vmul.f32 %v3719, %v3807
      %v3836 = vmul.f32 %v3720, %v3807
      %v3837 = vmul.f32 %v3721, %v3807
      %v3838 = vmul.f32 %v3722, %v3807
      %v3839 = vmul.f32 %v3723, %v3807
      %v3840 = vadd.f32 %v3771, %v3808
      %v3841 = vadd.f32 %v3772, %v3809
      %v3842 = vadd.f32 %v3773, %v3810
      %v3843 = vadd.f32 %v3774, %v3811
      %v3844 = vadd.f32 %v3775, %v3812
      %v3845 = vadd.f32 %v3776, %v3813
      %v3846 = vadd.f32 %v3777, %v3814
      %v3847 = vadd.f32 %v3778, %v3815
      %v3848 = vadd.f32 %v3779, %v3816
      %v3849 = vadd.f32 %v3780, %v3817
      %v3850 = vadd.f32 %v3781, %v3818
      %v3851 = vadd.f32 %v3782, %v3819
      %v3852 = vadd.f32 %v3783, %v3820
      %v3853 = vadd.f32 %v3784, %v3821
      %v3854 = vadd.f32 %v3785, %v3822
      %v3855 = vadd.f32 %v3786, %v3823
      %v3856 = vadd.f32 %v3787, %v3824
      %v3857 = vadd.f32 %v3788, %v3825
      %v3858 = vadd.f32 %v3789, %v3826
      %v3859 = vadd.f32 %v3790, %v3827
      %v3860 = vadd.f32 %v3791, %v3828
      %v3861 = vadd.f32 %v3792, %v3829
      %v3862 = vadd.f32 %v3793, %v3830
      %v3863 = vadd.f32 %v3794, %v3831
      %v3864 = vadd.f32 %v3795, %v3832
      %v3865 = vadd.f32 %v3796, %v3833
      %v3866 = vadd.f32 %v3797, %v3834
      %v3867 = vadd.f32 %v3798, %v3835
      %v3868 = vadd.f32 %v3799, %v3836
      %v3869 = vadd.f32 %v3800, %v3837
      %v3870 = vadd.f32 %v3801, %v3838
      %v3871 = vadd.f32 %v3802, %v3839
      %v3872 = vld [vmem:[%s1 + $0x14] sm:$0x1]
      %v3873 = vlaneseq
      %v3874 = vshrl.u32 %v3873, 7
      %v3875 = vsub.s32 0, %v3874
      %v3876 = vrot.slane %v3872, %v3875
      %v3877 = vmul.f32 %v3694, %v3876
      %v3878 = vmul.f32 %v3695, %v3876
      %v3879 = vmul.f32 %v3696, %v3876
      %v3880 = vmul.f32 %v3697, %v3876
      %v3881 = vmul.f32 %v3698, %v3876
      %v3882 = vmul.f32 %v3699, %v3876
      %v3883 = vmul.f32 %v3700, %v3876
      %v3884 = vmul.f32 %v3701, %v3876
      %v3885 = vmul.f32 %v3702, %v3876
      %v3886 = vmul.f32 %v3703, %v3876
      %v3887 = vmul.f32 %v3704, %v3876
      %v3888 = vmul.f32 %v3705, %v3876
      %v3889 = vmul.f32 %v3706, %v3876
      %v3890 = vmul.f32 %v3707, %v3876
      %v3891 = vmul.f32 %v3708, %v3876
      %v3892 = vmul.f32 %v3709, %v3876
      %v3893 = vmul.f32 %v3710, %v3876
      %v3894 = vmul.f32 %v3711, %v3876
      %v3895 = vmul.f32 %v3712, %v3876
      %v3896 = vmul.f32 %v3713, %v3876
      %v3897 = vmul.f32 %v3714, %v3876
      %v3898 = vmul.f32 %v3715, %v3876
      %v3899 = vmul.f32 %v3716, %v3876
      %v3900 = vmul.f32 %v3717, %v3876
      %v3901 = vmul.f32 %v3718, %v3876
      %v3902 = vmul.f32 %v3719, %v3876
      %v3903 = vmul.f32 %v3720, %v3876
      %v3904 = vmul.f32 %v3721, %v3876
      %v3905 = vmul.f32 %v3722, %v3876
      %v3906 = vmul.f32 %v3723, %v3876
      %v3907 = vmul.f32 %v3724, %v3876
      %v3908 = vmul.f32 %v3725, %v3876
      %v3909 = vadd.f32 %v3840, %v3877
      %v3910 = vadd.f32 %v3841, %v3878
      %v3911 = vadd.f32 %v3842, %v3879
      %v3912 = vadd.f32 %v3843, %v3880
      %v3913 = vadd.f32 %v3844, %v3881
      %v3914 = vadd.f32 %v3845, %v3882
      %v3915 = vadd.f32 %v3846, %v3883
      %v3916 = vadd.f32 %v3847, %v3884
      %v3917 = vadd.f32 %v3848, %v3885
      %v3918 = vadd.f32 %v3849, %v3886
      %v3919 = vadd.f32 %v3850, %v3887
      %v3920 = vadd.f32 %v3851, %v3888
      %v3921 = vadd.f32 %v3852, %v3889
      %v3922 = vadd.f32 %v3853, %v3890
      %v3923 = vadd.f32 %v3854, %v3891
      %v3924 = vadd.f32 %v3855, %v3892
      %v3925 = vadd.f32 %v3856, %v3893
      %v3926 = vadd.f32 %v3857, %v3894
      %v3927 = vadd.f32 %v3858, %v3895
      %v3928 = vadd.f32 %v3859, %v3896
      %v3929 = vadd.f32 %v3860, %v3897
      %v3930 = vadd.f32 %v3861, %v3898
      %v3931 = vadd.f32 %v3862, %v3899
      %v3932 = vadd.f32 %v3863, %v3900
      %v3933 = vadd.f32 %v3864, %v3901
      %v3934 = vadd.f32 %v3865, %v3902
      %v3935 = vadd.f32 %v3866, %v3903
      %v3936 = vadd.f32 %v3867, %v3904
      %v3937 = vadd.f32 %v3868, %v3905
      %v3938 = vadd.f32 %v3869, %v3906
      %v3939 = vadd.f32 %v3870, %v3907
      %v3940 = vadd.f32 %v3871, %v3908
      %v3941 = vld [vmem:[%s1 + $0x1b] sm:$0x1]
      %v3942 = vlaneseq
      %v3943 = vshrl.u32 %v3942, 7
      %v3944 = vsub.s32 0, %v3943
      %v3945 = vrot.slane %v3941, %v3944
      %v3946 = vmul.f32 %v3696, %v3945
      %v3947 = vmul.f32 %v3697, %v3945
      %v3948 = vmul.f32 %v3698, %v3945
      %v3949 = vmul.f32 %v3699, %v3945
      %v3950 = vmul.f32 %v3700, %v3945
      %v3951 = vmul.f32 %v3701, %v3945
      %v3952 = vmul.f32 %v3702, %v3945
      %v3953 = vmul.f32 %v3703, %v3945
      %v3954 = vmul.f32 %v3704, %v3945
      %v3955 = vmul.f32 %v3705, %v3945
      %v3956 = vmul.f32 %v3706, %v3945
      %v3957 = vmul.f32 %v3707, %v3945
      %v3958 = vmul.f32 %v3708, %v3945
      %v3959 = vmul.f32 %v3709, %v3945
      %v3960 = vmul.f32 %v3710, %v3945
      %v3961 = vmul.f32 %v3711, %v3945
      %v3962 = vmul.f32 %v3712, %v3945
      %v3963 = vmul.f32 %v3713, %v3945
      %v3964 = vmul.f32 %v3714, %v3945
      %v3965 = vmul.f32 %v3715, %v3945
      %v3966 = vmul.f32 %v3716, %v3945
      %v3967 = vmul.f32 %v3717, %v3945
      %v3968 = vmul.f32 %v3718, %v3945
      %v3969 = vmul.f32 %v3719, %v3945
      %v3970 = vmul.f32 %v3720, %v3945
      %v3971 = vmul.f32 %v3721, %v3945
      %v3972 = vmul.f32 %v3722, %v3945
      %v3973 = vmul.f32 %v3723, %v3945
      %v3974 = vmul.f32 %v3724, %v3945
      %v3975 = vmul.f32 %v3725, %v3945
      %v3976 = vmul.f32 %v3726, %v3945
      %v3977 = vmul.f32 %v3727, %v3945
      %v3978 = vadd.f32 %v3909, %v3946
      %v3979 = vadd.f32 %v3910, %v3947
      %v3980 = vadd.f32 %v3911, %v3948
      %v3981 = vadd.f32 %v3912, %v3949
      %v3982 = vadd.f32 %v3913, %v3950
      %v3983 = vadd.f32 %v3914, %v3951
      %v3984 = vadd.f32 %v3915, %v3952
      %v3985 = vadd.f32 %v3916, %v3953
      %v3986 = vadd.f32 %v3917, %v3954
      %v3987 = vadd.f32 %v3918, %v3955
      %v3988 = vadd.f32 %v3919, %v3956
      %v3989 = vadd.f32 %v3920, %v3957
      %v3990 = vadd.f32 %v3921, %v3958
      %v3991 = vadd.f32 %v3922, %v3959
      %v3992 = vadd.f32 %v3923, %v3960
      %v3993 = vadd.f32 %v3924, %v3961
      %v3994 = vadd.f32 %v3925, %v3962
      %v3995 = vadd.f32 %v3926, %v3963
      %v3996 = vadd.f32 %v3927, %v3964
      %v3997 = vadd.f32 %v3928, %v3965
      %v3998 = vadd.f32 %v3929, %v3966
      %v3999 = vadd.f32 %v3930, %v3967
      %v4000 = vadd.f32 %v3931, %v3968
      %v4001 = vadd.f32 %v3932, %v3969
      %v4002 = vadd.f32 %v3933, %v3970
      %v4003 = vadd.f32 %v3934, %v3971
      %v4004 = vadd.f32 %v3935, %v3972
      %v4005 = vadd.f32 %v3936, %v3973
      %v4006 = vadd.f32 %v3937, %v3974
      %v4007 = vadd.f32 %v3938, %v3975
      %v4008 = vadd.f32 %v3939, %v3976
      %v4009 = vadd.f32 %v3940, %v3977
      %v4010 = vld [vmem:[%s1 + $0x22] sm:$0x1]
      %v4011 = vlaneseq
      %v4012 = vshrl.u32 %v4011, 7
      %v4013 = vsub.s32 0, %v4012
      %v4014 = vrot.slane %v4010, %v4013
      %v4015 = vmul.f32 %v3698, %v4014
      %v4016 = vmul.f32 %v3699, %v4014
      %v4017 = vmul.f32 %v3700, %v4014
      %v4018 = vmul.f32 %v3701, %v4014
      %v4019 = vmul.f32 %v3702, %v4014
      %v4020 = vmul.f32 %v3703, %v4014
      %v4021 = vmul.f32 %v3704, %v4014
      %v4022 = vmul.f32 %v3705, %v4014
      %v4023 = vmul.f32 %v3706, %v4014
      %v4024 = vmul.f32 %v3707, %v4014
      %v4025 = vmul.f32 %v3708, %v4014
      %v4026 = vmul.f32 %v3709, %v4014
      %v4027 = vmul.f32 %v3710, %v4014
      %v4028 = vmul.f32 %v3711, %v4014
      %v4029 = vmul.f32 %v3712, %v4014
      %v4030 = vmul.f32 %v3713, %v4014
      %v4031 = vmul.f32 %v3714, %v4014
      %v4032 = vmul.f32 %v3715, %v4014
      %v4033 = vmul.f32 %v3716, %v4014
      %v4034 = vmul.f32 %v3717, %v4014
      %v4035 = vmul.f32 %v3718, %v4014
      %v4036 = vmul.f32 %v3719, %v4014
      %v4037 = vmul.f32 %v3720, %v4014
      %v4038 = vmul.f32 %v3721, %v4014
      %v4039 = vmul.f32 %v3722, %v4014
      %v4040 = vmul.f32 %v3723, %v4014
      %v4041 = vmul.f32 %v3724, %v4014
      %v4042 = vmul.f32 %v3725, %v4014
      %v4043 = vmul.f32 %v3726, %v4014
      %v4044 = vmul.f32 %v3727, %v4014
      %v4045 = vmul.f32 %v3728, %v4014
      %v4046 = vmul.f32 %v3729, %v4014
      %v4047 = vadd.f32 %v3978, %v4015
      %v4048 = vadd.f32 %v3979, %v4016
      %v4049 = vadd.f32 %v3980, %v4017
      %v4050 = vadd.f32 %v3981, %v4018
      %v4051 = vadd.f32 %v3982, %v4019
      %v4052 = vadd.f32 %v3983, %v4020
      %v4053 = vadd.f32 %v3984, %v4021
      %v4054 = vadd.f32 %v3985, %v4022
      %v4055 = vadd.f32 %v3986, %v4023
      %v4056 = vadd.f32 %v3987, %v4024
      %v4057 = vadd.f32 %v3988, %v4025
      %v4058 = vadd.f32 %v3989, %v4026
      %v4059 = vadd.f32 %v3990, %v4027
      %v4060 = vadd.f32 %v3991, %v4028
      %v4061 = vadd.f32 %v3992, %v4029
      %v4062 = vadd.f32 %v3993, %v4030
      %v4063 = vadd.f32 %v3994, %v4031
      %v4064 = vadd.f32 %v3995, %v4032
      %v4065 = vadd.f32 %v3996, %v4033
      %v4066 = vadd.f32 %v3997, %v4034
      %v4067 = vadd.f32 %v3998, %v4035
      %v4068 = vadd.f32 %v3999, %v4036
      %v4069 = vadd.f32 %v4000, %v4037
      %v4070 = vadd.f32 %v4001, %v4038
      %v4071 = vadd.f32 %v4002, %v4039
      %v4072 = vadd.f32 %v4003, %v4040
      %v4073 = vadd.f32 %v4004, %v4041
      %v4074 = vadd.f32 %v4005, %v4042
      %v4075 = vadd.f32 %v4006, %v4043
      %v4076 = vadd.f32 %v4007, %v4044
      %v4077 = vadd.f32 %v4008, %v4045
      %v4078 = vadd.f32 %v4009, %v4046
      %v4079 = vld [vmem:[%s1 + $0x29] sm:$0x1]
      %v4080 = vlaneseq
      %v4081 = vshrl.u32 %v4080, 7
      %v4082 = vsub.s32 0, %v4081
      %v4083 = vrot.slane %v4079, %v4082
      %v4084 = vmul.f32 %v3700, %v4083
      %v4085 = vmul.f32 %v3701, %v4083
      %v4086 = vmul.f32 %v3702, %v4083
      %v4087 = vmul.f32 %v3703, %v4083
      %v4088 = vmul.f32 %v3704, %v4083
      %v4089 = vmul.f32 %v3705, %v4083
      %v4090 = vmul.f32 %v3706, %v4083
      %v4091 = vmul.f32 %v3707, %v4083
      %v4092 = vmul.f32 %v3708, %v4083
      %v4093 = vmul.f32 %v3709, %v4083
      %v4094 = vmul.f32 %v3710, %v4083
      %v4095 = vmul.f32 %v3711, %v4083
      %v4096 = vmul.f32 %v3712, %v4083
      %v4097 = vmul.f32 %v3713, %v4083
      %v4098 = vmul.f32 %v3714, %v4083
      %v4099 = vmul.f32 %v3715, %v4083
      %v4100 = vmul.f32 %v3716, %v4083
      %v4101 = vmul.f32 %v3717, %v4083
      %v4102 = vmul.f32 %v3718, %v4083
      %v4103 = vmul.f32 %v3719, %v4083
      %v4104 = vmul.f32 %v3720, %v4083
      %v4105 = vmul.f32 %v3721, %v4083
      %v4106 = vmul.f32 %v3722, %v4083
      %v4107 = vmul.f32 %v3723, %v4083
      %v4108 = vmul.f32 %v3724, %v4083
      %v4109 = vmul.f32 %v3725, %v4083
      %v4110 = vmul.f32 %v3726, %v4083
      %v4111 = vmul.f32 %v3727, %v4083
      %v4112 = vmul.f32 %v3728, %v4083
      %v4113 = vmul.f32 %v3729, %v4083
      %v4114 = vmul.f32 %v3730, %v4083
      %v4115 = vmul.f32 %v3731, %v4083
      %v4116 = vadd.f32 %v4047, %v4084
      %v4117 = vadd.f32 %v4048, %v4085
      %v4118 = vadd.f32 %v4049, %v4086
      %v4119 = vadd.f32 %v4050, %v4087
      %v4120 = vadd.f32 %v4051, %v4088
      %v4121 = vadd.f32 %v4052, %v4089
      %v4122 = vadd.f32 %v4053, %v4090
      %v4123 = vadd.f32 %v4054, %v4091
      %v4124 = vadd.f32 %v4055, %v4092
      %v4125 = vadd.f32 %v4056, %v4093
      %v4126 = vadd.f32 %v4057, %v4094
      %v4127 = vadd.f32 %v4058, %v4095
      %v4128 = vadd.f32 %v4059, %v4096
      %v4129 = vadd.f32 %v4060, %v4097
      %v4130 = vadd.f32 %v4061, %v4098
      %v4131 = vadd.f32 %v4062, %v4099
      %v4132 = vadd.f32 %v4063, %v4100
      %v4133 = vadd.f32 %v4064, %v4101
      %v4134 = vadd.f32 %v4065, %v4102
      %v4135 = vadd.f32 %v4066, %v4103
      %v4136 = vadd.f32 %v4067, %v4104
      %v4137 = vadd.f32 %v4068, %v4105
      %v4138 = vadd.f32 %v4069, %v4106
      %v4139 = vadd.f32 %v4070, %v4107
      %v4140 = vadd.f32 %v4071, %v4108
      %v4141 = vadd.f32 %v4072, %v4109
      %v4142 = vadd.f32 %v4073, %v4110
      %v4143 = vadd.f32 %v4074, %v4111
      %v4144 = vadd.f32 %v4075, %v4112
      %v4145 = vadd.f32 %v4076, %v4113
      %v4146 = vadd.f32 %v4077, %v4114
      %v4147 = vadd.f32 %v4078, %v4115
      %v4148 = vld [vmem:[%s1 + $0x30] sm:$0x1]
      %v4149 = vlaneseq
      %v4150 = vshrl.u32 %v4149, 7
      %v4151 = vsub.s32 0, %v4150
      %v4152 = vrot.slane %v4148, %v4151
      %v4153 = vmul.f32 %v3702, %v4152
      %v4154 = vmul.f32 %v3703, %v4152
      %v4155 = vmul.f32 %v3704, %v4152
      %v4156 = vmul.f32 %v3705, %v4152
      %v4157 = vmul.f32 %v3706, %v4152
      %v4158 = vmul.f32 %v3707, %v4152
      %v4159 = vmul.f32 %v3708, %v4152
      %v4160 = vmul.f32 %v3709, %v4152
      %v4161 = vmul.f32 %v3710, %v4152
      %v4162 = vmul.f32 %v3711, %v4152
      %v4163 = vmul.f32 %v3712, %v4152
      %v4164 = vmul.f32 %v3713, %v4152
      %v4165 = vmul.f32 %v3714, %v4152
      %v4166 = vmul.f32 %v3715, %v4152
      %v4167 = vmul.f32 %v3716, %v4152
      %v4168 = vmul.f32 %v3717, %v4152
      %v4169 = vmul.f32 %v3718, %v4152
      %v4170 = vmul.f32 %v3719, %v4152
      %v4171 = vmul.f32 %v3720, %v4152
      %v4172 = vmul.f32 %v3721, %v4152
      %v4173 = vmul.f32 %v3722, %v4152
      %v4174 = vmul.f32 %v3723, %v4152
      %v4175 = vmul.f32 %v3724, %v4152
      %v4176 = vmul.f32 %v3725, %v4152
      %v4177 = vmul.f32 %v3726, %v4152
      %v4178 = vmul.f32 %v3727, %v4152
      %v4179 = vmul.f32 %v3728, %v4152
      %v4180 = vmul.f32 %v3729, %v4152
      %v4181 = vmul.f32 %v3730, %v4152
      %v4182 = vmul.f32 %v3731, %v4152
      %v4183 = vmul.f32 %v3732, %v4152
      %v4184 = vmul.f32 %v3733, %v4152
      %v4185 = vadd.f32 %v4116, %v4153
      %v4186 = vadd.f32 %v4117, %v4154
      %v4187 = vadd.f32 %v4118, %v4155
      %v4188 = vadd.f32 %v4119, %v4156
      %v4189 = vadd.f32 %v4120, %v4157
      %v4190 = vadd.f32 %v4121, %v4158
      %v4191 = vadd.f32 %v4122, %v4159
      %v4192 = vadd.f32 %v4123, %v4160
      %v4193 = vadd.f32 %v4124, %v4161
      %v4194 = vadd.f32 %v4125, %v4162
      %v4195 = vadd.f32 %v4126, %v4163
      %v4196 = vadd.f32 %v4127, %v4164
      %v4197 = vadd.f32 %v4128, %v4165
      %v4198 = vadd.f32 %v4129, %v4166
      %v4199 = vadd.f32 %v4130, %v4167
      %v4200 = vadd.f32 %v4131, %v4168
      %v4201 = vadd.f32 %v4132, %v4169
      %v4202 = vadd.f32 %v4133, %v4170
      %v4203 = vadd.f32 %v4134, %v4171
      %v4204 = vadd.f32 %v4135, %v4172
      %v4205 = vadd.f32 %v4136, %v4173
      %v4206 = vadd.f32 %v4137, %v4174
      %v4207 = vadd.f32 %v4138, %v4175
      %v4208 = vadd.f32 %v4139, %v4176
      %v4209 = vadd.f32 %v4140, %v4177
      %v4210 = vadd.f32 %v4141, %v4178
      %v4211 = vadd.f32 %v4142, %v4179
      %v4212 = vadd.f32 %v4143, %v4180
      %v4213 = vadd.f32 %v4144, %v4181
      %v4214 = vadd.f32 %v4145, %v4182
      %v4215 = vadd.f32 %v4146, %v4183
      %v4216 = vadd.f32 %v4147, %v4184
      %v4217 = vsel %vm419, %v4185, 0.0
      %4218 = vadd.xlane.f32.xlu0 %v4217
      %v4219 = vpop.xlane.xlu0 %4218
      %v4220 = vsel %vm419, %v4186, 0.0
      %4221 = vadd.xlane.f32.xlu0 %v4220
      %v4222 = vpop.xlane.xlu0 %4221
      %v4223 = vsel %vm419, %v4187, 0.0
      %4224 = vadd.xlane.f32.xlu0 %v4223
      %v4225 = vpop.xlane.xlu0 %4224
      %v4226 = vsel %vm419, %v4188, 0.0
      %4227 = vadd.xlane.f32.xlu0 %v4226
      %v4228 = vpop.xlane.xlu0 %4227
      %v4229 = vsel %vm419, %v4189, 0.0
      %4230 = vadd.xlane.f32.xlu0 %v4229
      %v4231 = vpop.xlane.xlu0 %4230
      %v4232 = vsel %vm419, %v4190, 0.0
      %4233 = vadd.xlane.f32.xlu0 %v4232
      %v4234 = vpop.xlane.xlu0 %4233
      %v4235 = vsel %vm419, %v4191, 0.0
      %4236 = vadd.xlane.f32.xlu0 %v4235
      %v4237 = vpop.xlane.xlu0 %4236
      %v4238 = vsel %vm419, %v4192, 0.0
      %4239 = vadd.xlane.f32.xlu0 %v4238
      %v4240 = vpop.xlane.xlu0 %4239
      %v4241 = vsel %vm419, %v4193, 0.0
      %4242 = vadd.xlane.f32.xlu0 %v4241
      %v4243 = vpop.xlane.xlu0 %4242
      %v4244 = vsel %vm419, %v4194, 0.0
      %4245 = vadd.xlane.f32.xlu0 %v4244
      %v4246 = vpop.xlane.xlu0 %4245
      %v4247 = vsel %vm419, %v4195, 0.0
      %4248 = vadd.xlane.f32.xlu0 %v4247
      %v4249 = vpop.xlane.xlu0 %4248
      %v4250 = vsel %vm419, %v4196, 0.0
      %4251 = vadd.xlane.f32.xlu0 %v4250
      %v4252 = vpop.xlane.xlu0 %4251
      %v4253 = vsel %vm419, %v4197, 0.0
      %4254 = vadd.xlane.f32.xlu0 %v4253
      %v4255 = vpop.xlane.xlu0 %4254
      %v4256 = vsel %vm419, %v4198, 0.0
      %4257 = vadd.xlane.f32.xlu0 %v4256
      %v4258 = vpop.xlane.xlu0 %4257
      %v4259 = vsel %vm419, %v4199, 0.0
      %4260 = vadd.xlane.f32.xlu0 %v4259
      %v4261 = vpop.xlane.xlu0 %4260
      %v4262 = vsel %vm419, %v4200, 0.0
      %4263 = vadd.xlane.f32.xlu0 %v4262
      %v4264 = vpop.xlane.xlu0 %4263
      %v4265 = vsel %vm419, %v4201, 0.0
      %4266 = vadd.xlane.f32.xlu0 %v4265
      %v4267 = vpop.xlane.xlu0 %4266
      %v4268 = vsel %vm419, %v4202, 0.0
      %4269 = vadd.xlane.f32.xlu0 %v4268
      %v4270 = vpop.xlane.xlu0 %4269
      %v4271 = vsel %vm419, %v4203, 0.0
      %4272 = vadd.xlane.f32.xlu0 %v4271
      %v4273 = vpop.xlane.xlu0 %4272
      %v4274 = vsel %vm419, %v4204, 0.0
      %4275 = vadd.xlane.f32.xlu0 %v4274
      %v4276 = vpop.xlane.xlu0 %4275
      %v4277 = vsel %vm419, %v4205, 0.0
      %4278 = vadd.xlane.f32.xlu0 %v4277
      %v4279 = vpop.xlane.xlu0 %4278
      %v4280 = vsel %vm419, %v4206, 0.0
      %4281 = vadd.xlane.f32.xlu0 %v4280
      %v4282 = vpop.xlane.xlu0 %4281
      %v4283 = vsel %vm419, %v4207, 0.0
      %4284 = vadd.xlane.f32.xlu0 %v4283
      %v4285 = vpop.xlane.xlu0 %4284
      %v4286 = vsel %vm419, %v4208, 0.0
      %4287 = vadd.xlane.f32.xlu0 %v4286
      %v4288 = vpop.xlane.xlu0 %4287
      %v4289 = vsel %vm419, %v4209, 0.0
      %4290 = vadd.xlane.f32.xlu0 %v4289
      %v4291 = vpop.xlane.xlu0 %4290
      %v4292 = vsel %vm419, %v4210, 0.0
      %4293 = vadd.xlane.f32.xlu0 %v4292
      %v4294 = vpop.xlane.xlu0 %4293
      %v4295 = vsel %vm419, %v4211, 0.0
      %4296 = vadd.xlane.f32.xlu0 %v4295
      %v4297 = vpop.xlane.xlu0 %4296
      %v4298 = vsel %vm419, %v4212, 0.0
      %4299 = vadd.xlane.f32.xlu0 %v4298
      %v4300 = vpop.xlane.xlu0 %4299
      %v4301 = vsel %vm419, %v4213, 0.0
      %4302 = vadd.xlane.f32.xlu0 %v4301
      %v4303 = vpop.xlane.xlu0 %4302
      %v4304 = vsel %vm419, %v4214, 0.0
      %4305 = vadd.xlane.f32.xlu0 %v4304
      %v4306 = vpop.xlane.xlu0 %4305
      %v4307 = vsel %vm419, %v4215, 0.0
      %4308 = vadd.xlane.f32.xlu0 %v4307
      %v4309 = vpop.xlane.xlu0 %4308
      %v4310 = vsel %vm419, %v4216, 0.0
      %4311 = vadd.xlane.f32.xlu0 %v4310
      %v4312 = vpop.xlane.xlu0 %4311
      %v4313 = vrcp.pop 4.0
      %v4314 = vmul.f32 %v4219, %v4313
      %v4315 = vmul.f32 %v4222, %v4313
      %v4316 = vmul.f32 %v4225, %v4313
      %v4317 = vmul.f32 %v4228, %v4313
      %v4318 = vmul.f32 %v4231, %v4313
      %v4319 = vmul.f32 %v4234, %v4313
      %v4320 = vmul.f32 %v4237, %v4313
      %v4321 = vmul.f32 %v4240, %v4313
      %v4322 = vmul.f32 %v4243, %v4313
      %v4323 = vmul.f32 %v4246, %v4313
      %v4324 = vmul.f32 %v4249, %v4313
      %v4325 = vmul.f32 %v4252, %v4313
      %v4326 = vmul.f32 %v4255, %v4313
      %v4327 = vmul.f32 %v4258, %v4313
      %v4328 = vmul.f32 %v4261, %v4313
      %v4329 = vmul.f32 %v4264, %v4313
      %v4330 = vmul.f32 %v4267, %v4313
      %v4331 = vmul.f32 %v4270, %v4313
      %v4332 = vmul.f32 %v4273, %v4313
      %v4333 = vmul.f32 %v4276, %v4313
      %v4334 = vmul.f32 %v4279, %v4313
      %v4335 = vmul.f32 %v4282, %v4313
      %v4336 = vmul.f32 %v4285, %v4313
      %v4337 = vmul.f32 %v4288, %v4313
      %v4338 = vmul.f32 %v4291, %v4313
      %v4339 = vmul.f32 %v4294, %v4313
      %v4340 = vmul.f32 %v4297, %v4313
      %v4341 = vmul.f32 %v4300, %v4313
      %v4342 = vmul.f32 %v4303, %v4313
      %v4343 = vmul.f32 %v4306, %v4313
      %v4344 = vmul.f32 %v4309, %v4313
      %v4345 = vmul.f32 %v4312, %v4313
      %v4346 = vsub.f32 %v4185, %v4314
      %v4347 = vsub.f32 %v4186, %v4315
      %v4348 = vsub.f32 %v4187, %v4316
      %v4349 = vsub.f32 %v4188, %v4317
      %v4350 = vsub.f32 %v4189, %v4318
      %v4351 = vsub.f32 %v4190, %v4319
      %v4352 = vsub.f32 %v4191, %v4320
      %v4353 = vsub.f32 %v4192, %v4321
      %v4354 = vsub.f32 %v4193, %v4322
      %v4355 = vsub.f32 %v4194, %v4323
      %v4356 = vsub.f32 %v4195, %v4324
      %v4357 = vsub.f32 %v4196, %v4325
      %v4358 = vsub.f32 %v4197, %v4326
      %v4359 = vsub.f32 %v4198, %v4327
      %v4360 = vsub.f32 %v4199, %v4328
      %v4361 = vsub.f32 %v4200, %v4329
      %v4362 = vsub.f32 %v4201, %v4330
      %v4363 = vsub.f32 %v4202, %v4331
      %v4364 = vsub.f32 %v4203, %v4332
      %v4365 = vsub.f32 %v4204, %v4333
      %v4366 = vsub.f32 %v4205, %v4334
      %v4367 = vsub.f32 %v4206, %v4335
      %v4368 = vsub.f32 %v4207, %v4336
      %v4369 = vsub.f32 %v4208, %v4337
      %v4370 = vsub.f32 %v4209, %v4338
      %v4371 = vsub.f32 %v4210, %v4339
      %v4372 = vsub.f32 %v4211, %v4340
      %v4373 = vsub.f32 %v4212, %v4341
      %v4374 = vsub.f32 %v4213, %v4342
      %v4375 = vsub.f32 %v4214, %v4343
      %v4376 = vsub.f32 %v4215, %v4344
      %v4377 = vsub.f32 %v4216, %v4345
      %v4378 = vmul.f32 %v4346, %v4346
      %v4379 = vmul.f32 %v4347, %v4347
      %v4380 = vmul.f32 %v4348, %v4348
      %v4381 = vmul.f32 %v4349, %v4349
      %v4382 = vmul.f32 %v4350, %v4350
      %v4383 = vmul.f32 %v4351, %v4351
      %v4384 = vmul.f32 %v4352, %v4352
      %v4385 = vmul.f32 %v4353, %v4353
      %v4386 = vmul.f32 %v4354, %v4354
      %v4387 = vmul.f32 %v4355, %v4355
      %v4388 = vmul.f32 %v4356, %v4356
      %v4389 = vmul.f32 %v4357, %v4357
      %v4390 = vmul.f32 %v4358, %v4358
      %v4391 = vmul.f32 %v4359, %v4359
      %v4392 = vmul.f32 %v4360, %v4360
      %v4393 = vmul.f32 %v4361, %v4361
      %v4394 = vmul.f32 %v4362, %v4362
      %v4395 = vmul.f32 %v4363, %v4363
      %v4396 = vmul.f32 %v4364, %v4364
      %v4397 = vmul.f32 %v4365, %v4365
      %v4398 = vmul.f32 %v4366, %v4366
      %v4399 = vmul.f32 %v4367, %v4367
      %v4400 = vmul.f32 %v4368, %v4368
      %v4401 = vmul.f32 %v4369, %v4369
      %v4402 = vmul.f32 %v4370, %v4370
      %v4403 = vmul.f32 %v4371, %v4371
      %v4404 = vmul.f32 %v4372, %v4372
      %v4405 = vmul.f32 %v4373, %v4373
      %v4406 = vmul.f32 %v4374, %v4374
      %v4407 = vmul.f32 %v4375, %v4375
      %v4408 = vmul.f32 %v4376, %v4376
      %v4409 = vmul.f32 %v4377, %v4377
      %v4410 = vsel %vm419, %v4378, 0.0
      %4411 = vadd.xlane.f32.xlu0 %v4410
      %v4412 = vpop.xlane.xlu0 %4411
      %v4413 = vsel %vm419, %v4379, 0.0
      %4414 = vadd.xlane.f32.xlu0 %v4413
      %v4415 = vpop.xlane.xlu0 %4414
      %v4416 = vsel %vm419, %v4380, 0.0
      %4417 = vadd.xlane.f32.xlu0 %v4416
      %v4418 = vpop.xlane.xlu0 %4417
      %v4419 = vsel %vm419, %v4381, 0.0
      %4420 = vadd.xlane.f32.xlu0 %v4419
      %v4421 = vpop.xlane.xlu0 %4420
      %v4422 = vsel %vm419, %v4382, 0.0
      %4423 = vadd.xlane.f32.xlu0 %v4422
      %v4424 = vpop.xlane.xlu0 %4423
      %v4425 = vsel %vm419, %v4383, 0.0
      %4426 = vadd.xlane.f32.xlu0 %v4425
      %v4427 = vpop.xlane.xlu0 %4426
      %v4428 = vsel %vm419, %v4384, 0.0
      %4429 = vadd.xlane.f32.xlu0 %v4428
      %v4430 = vpop.xlane.xlu0 %4429
      %v4431 = vsel %vm419, %v4385, 0.0
      %4432 = vadd.xlane.f32.xlu0 %v4431
      %v4433 = vpop.xlane.xlu0 %4432
      %v4434 = vsel %vm419, %v4386, 0.0
      %4435 = vadd.xlane.f32.xlu0 %v4434
      %v4436 = vpop.xlane.xlu0 %4435
      %v4437 = vsel %vm419, %v4387, 0.0
      %4438 = vadd.xlane.f32.xlu0 %v4437
      %v4439 = vpop.xlane.xlu0 %4438
      %v4440 = vsel %vm419, %v4388, 0.0
      %4441 = vadd.xlane.f32.xlu0 %v4440
      %v4442 = vpop.xlane.xlu0 %4441
      %v4443 = vsel %vm419, %v4389, 0.0
      %4444 = vadd.xlane.f32.xlu0 %v4443
      %v4445 = vpop.xlane.xlu0 %4444
      %v4446 = vsel %vm419, %v4390, 0.0
      %4447 = vadd.xlane.f32.xlu0 %v4446
      %v4448 = vpop.xlane.xlu0 %4447
      %v4449 = vsel %vm419, %v4391, 0.0
      %4450 = vadd.xlane.f32.xlu0 %v4449
      %v4451 = vpop.xlane.xlu0 %4450
      %v4452 = vsel %vm419, %v4392, 0.0
      %4453 = vadd.xlane.f32.xlu0 %v4452
      %v4454 = vpop.xlane.xlu0 %4453
      %v4455 = vsel %vm419, %v4393, 0.0
      %4456 = vadd.xlane.f32.xlu0 %v4455
      %v4457 = vpop.xlane.xlu0 %4456
      %v4458 = vsel %vm419, %v4394, 0.0
      %4459 = vadd.xlane.f32.xlu0 %v4458
      %v4460 = vpop.xlane.xlu0 %4459
      %v4461 = vsel %vm419, %v4395, 0.0
      %4462 = vadd.xlane.f32.xlu0 %v4461
      %v4463 = vpop.xlane.xlu0 %4462
      %v4464 = vsel %vm419, %v4396, 0.0
      %4465 = vadd.xlane.f32.xlu0 %v4464
      %v4466 = vpop.xlane.xlu0 %4465
      %v4467 = vsel %vm419, %v4397, 0.0
      %4468 = vadd.xlane.f32.xlu0 %v4467
      %v4469 = vpop.xlane.xlu0 %4468
      %v4470 = vsel %vm419, %v4398, 0.0
      %4471 = vadd.xlane.f32.xlu0 %v4470
      %v4472 = vpop.xlane.xlu0 %4471
      %v4473 = vsel %vm419, %v4399, 0.0
      %4474 = vadd.xlane.f32.xlu0 %v4473
      %v4475 = vpop.xlane.xlu0 %4474
      %v4476 = vsel %vm419, %v4400, 0.0
      %4477 = vadd.xlane.f32.xlu0 %v4476
      %v4478 = vpop.xlane.xlu0 %4477
      %v4479 = vsel %vm419, %v4401, 0.0
      %4480 = vadd.xlane.f32.xlu0 %v4479
      %v4481 = vpop.xlane.xlu0 %4480
      %v4482 = vsel %vm419, %v4402, 0.0
      %4483 = vadd.xlane.f32.xlu0 %v4482
      %v4484 = vpop.xlane.xlu0 %4483
      %v4485 = vsel %vm419, %v4403, 0.0
      %4486 = vadd.xlane.f32.xlu0 %v4485
      %v4487 = vpop.xlane.xlu0 %4486
      %v4488 = vsel %vm419, %v4404, 0.0
      %4489 = vadd.xlane.f32.xlu0 %v4488
      %v4490 = vpop.xlane.xlu0 %4489
      %v4491 = vsel %vm419, %v4405, 0.0
      %4492 = vadd.xlane.f32.xlu0 %v4491
      %v4493 = vpop.xlane.xlu0 %4492
      %v4494 = vsel %vm419, %v4406, 0.0
      %4495 = vadd.xlane.f32.xlu0 %v4494
      %v4496 = vpop.xlane.xlu0 %4495
      %v4497 = vsel %vm419, %v4407, 0.0
      %4498 = vadd.xlane.f32.xlu0 %v4497
      %v4499 = vpop.xlane.xlu0 %4498
      %v4500 = vsel %vm419, %v4408, 0.0
      %4501 = vadd.xlane.f32.xlu0 %v4500
      %v4502 = vpop.xlane.xlu0 %4501
      %v4503 = vsel %vm419, %v4409, 0.0
      %4504 = vadd.xlane.f32.xlu0 %v4503
      %v4505 = vpop.xlane.xlu0 %4504
      %v4506 = vmul.f32 %v4412, %v4313
      %v4507 = vmul.f32 %v4415, %v4313
      %v4508 = vmul.f32 %v4418, %v4313
      %v4509 = vmul.f32 %v4421, %v4313
      %v4510 = vmul.f32 %v4424, %v4313
      %v4511 = vmul.f32 %v4427, %v4313
      %v4512 = vmul.f32 %v4430, %v4313
      %v4513 = vmul.f32 %v4433, %v4313
      %v4514 = vmul.f32 %v4436, %v4313
      %v4515 = vmul.f32 %v4439, %v4313
      %v4516 = vmul.f32 %v4442, %v4313
      %v4517 = vmul.f32 %v4445, %v4313
      %v4518 = vmul.f32 %v4448, %v4313
      %v4519 = vmul.f32 %v4451, %v4313
      %v4520 = vmul.f32 %v4454, %v4313
      %v4521 = vmul.f32 %v4457, %v4313
      %v4522 = vmul.f32 %v4460, %v4313
      %v4523 = vmul.f32 %v4463, %v4313
      %v4524 = vmul.f32 %v4466, %v4313
      %v4525 = vmul.f32 %v4469, %v4313
      %v4526 = vmul.f32 %v4472, %v4313
      %v4527 = vmul.f32 %v4475, %v4313
      %v4528 = vmul.f32 %v4478, %v4313
      %v4529 = vmul.f32 %v4481, %v4313
      %v4530 = vmul.f32 %v4484, %v4313
      %v4531 = vmul.f32 %v4487, %v4313
      %v4532 = vmul.f32 %v4490, %v4313
      %v4533 = vmul.f32 %v4493, %v4313
      %v4534 = vmul.f32 %v4496, %v4313
      %v4535 = vmul.f32 %v4499, %v4313
      %v4536 = vmul.f32 %v4502, %v4313
      %v4537 = vmul.f32 %v4505, %v4313
      %v4538 = vadd.f32 %v4506, 1e-06
      %v4539 = vadd.f32 %v4507, 1e-06
      %v4540 = vadd.f32 %v4508, 1e-06
      %v4541 = vadd.f32 %v4509, 1e-06
      %v4542 = vadd.f32 %v4510, 1e-06
      %v4543 = vadd.f32 %v4511, 1e-06
      %v4544 = vadd.f32 %v4512, 1e-06
      %v4545 = vadd.f32 %v4513, 1e-06
      %v4546 = vadd.f32 %v4514, 1e-06
      %v4547 = vadd.f32 %v4515, 1e-06
      %v4548 = vadd.f32 %v4516, 1e-06
      %v4549 = vadd.f32 %v4517, 1e-06
      %v4550 = vadd.f32 %v4518, 1e-06
      %v4551 = vadd.f32 %v4519, 1e-06
      %v4552 = vadd.f32 %v4520, 1e-06
      %v4553 = vadd.f32 %v4521, 1e-06
      %v4554 = vadd.f32 %v4522, 1e-06
      %v4555 = vadd.f32 %v4523, 1e-06
      %v4556 = vadd.f32 %v4524, 1e-06
      %v4557 = vadd.f32 %v4525, 1e-06
      %v4558 = vadd.f32 %v4526, 1e-06
      %v4559 = vadd.f32 %v4527, 1e-06
      %v4560 = vadd.f32 %v4528, 1e-06
      %v4561 = vadd.f32 %v4529, 1e-06
      %v4562 = vadd.f32 %v4530, 1e-06
      %v4563 = vadd.f32 %v4531, 1e-06
      %v4564 = vadd.f32 %v4532, 1e-06
      %v4565 = vadd.f32 %v4533, 1e-06
      %v4566 = vadd.f32 %v4534, 1e-06
      %v4567 = vadd.f32 %v4535, 1e-06
      %v4568 = vadd.f32 %v4536, 1e-06
      %v4569 = vadd.f32 %v4537, 1e-06
      %v4570 = vrsqrt.pop %v4538
      %v4571 = vrsqrt.pop %v4539
      %v4572 = vrsqrt.pop %v4540
      %v4573 = vrsqrt.pop %v4541
      %v4574 = vrsqrt.pop %v4542
      %v4575 = vrsqrt.pop %v4543
      %v4576 = vrsqrt.pop %v4544
      %v4577 = vrsqrt.pop %v4545
      %v4578 = vrsqrt.pop %v4546
      %v4579 = vrsqrt.pop %v4547
      %v4580 = vrsqrt.pop %v4548
      %v4581 = vrsqrt.pop %v4549
      %v4582 = vrsqrt.pop %v4550
      %v4583 = vrsqrt.pop %v4551
      %v4584 = vrsqrt.pop %v4552
      %v4585 = vrsqrt.pop %v4553
      %v4586 = vrsqrt.pop %v4554
      %v4587 = vrsqrt.pop %v4555
      %v4588 = vrsqrt.pop %v4556
      %v4589 = vrsqrt.pop %v4557
      %v4590 = vrsqrt.pop %v4558
      %v4591 = vrsqrt.pop %v4559
      %v4592 = vrsqrt.pop %v4560
      %v4593 = vrsqrt.pop %v4561
      %v4594 = vrsqrt.pop %v4562
      %v4595 = vrsqrt.pop %v4563
      %v4596 = vrsqrt.pop %v4564
      %v4597 = vrsqrt.pop %v4565
      %v4598 = vrsqrt.pop %v4566
      %v4599 = vrsqrt.pop %v4567
      %v4600 = vrsqrt.pop %v4568
      %v4601 = vrsqrt.pop %v4569
      %v4602 = vmul.f32 %v4346, %v4570
      %v4603 = vmul.f32 %v4347, %v4571
      %v4604 = vmul.f32 %v4348, %v4572
      %v4605 = vmul.f32 %v4349, %v4573
      %v4606 = vmul.f32 %v4350, %v4574
      %v4607 = vmul.f32 %v4351, %v4575
      %v4608 = vmul.f32 %v4352, %v4576
      %v4609 = vmul.f32 %v4353, %v4577
      %v4610 = vmul.f32 %v4354, %v4578
      %v4611 = vmul.f32 %v4355, %v4579
      %v4612 = vmul.f32 %v4356, %v4580
      %v4613 = vmul.f32 %v4357, %v4581
      %v4614 = vmul.f32 %v4358, %v4582
      %v4615 = vmul.f32 %v4359, %v4583
      %v4616 = vmul.f32 %v4360, %v4584
      %v4617 = vmul.f32 %v4361, %v4585
      %v4618 = vmul.f32 %v4362, %v4586
      %v4619 = vmul.f32 %v4363, %v4587
      %v4620 = vmul.f32 %v4364, %v4588
      %v4621 = vmul.f32 %v4365, %v4589
      %v4622 = vmul.f32 %v4366, %v4590
      %v4623 = vmul.f32 %v4367, %v4591
      %v4624 = vmul.f32 %v4368, %v4592
      %v4625 = vmul.f32 %v4369, %v4593
      %v4626 = vmul.f32 %v4370, %v4594
      %v4627 = vmul.f32 %v4371, %v4595
      %v4628 = vmul.f32 %v4372, %v4596
      %v4629 = vmul.f32 %v4373, %v4597
      %v4630 = vmul.f32 %v4374, %v4598
      %v4631 = vmul.f32 %v4375, %v4599
      %v4632 = vmul.f32 %v4376, %v4600
      %v4633 = vmul.f32 %v4377, %v4601
      %v4634 = vld [vmem:[%s3] sm:$0x1]
      %v4636 = vlaneseq
      %v4637 = vshrl.u32 %v4636, 7
      %v4638 = vsub.s32 0, %v4637
      %v4639 = vrot.slane %v4634, %v4638
      %v4641 = vmul.f32 %v4602, %v4639
      %v4642 = vmul.f32 %v4603, %v4639
      %v4643 = vmul.f32 %v4604, %v4639
      %v4644 = vmul.f32 %v4605, %v4639
      %v4645 = vmul.f32 %v4606, %v4639
      %v4646 = vmul.f32 %v4607, %v4639
      %v4647 = vmul.f32 %v4608, %v4639
      %v4648 = vmul.f32 %v4609, %v4639
      %v4649 = vmul.f32 %v4610, %v4639
      %v4650 = vmul.f32 %v4611, %v4639
      %v4651 = vmul.f32 %v4612, %v4639
      %v4652 = vmul.f32 %v4613, %v4639
      %v4653 = vmul.f32 %v4614, %v4639
      %v4654 = vmul.f32 %v4615, %v4639
      %v4655 = vmul.f32 %v4616, %v4639
      %v4656 = vmul.f32 %v4617, %v4639
      %v4657 = vmul.f32 %v4618, %v4639
      %v4658 = vmul.f32 %v4619, %v4639
      %v4659 = vmul.f32 %v4620, %v4639
      %v4660 = vmul.f32 %v4621, %v4639
      %v4661 = vmul.f32 %v4622, %v4639
      %v4662 = vmul.f32 %v4623, %v4639
      %v4663 = vmul.f32 %v4624, %v4639
      %v4664 = vmul.f32 %v4625, %v4639
      %v4665 = vmul.f32 %v4626, %v4639
      %v4666 = vmul.f32 %v4627, %v4639
      %v4667 = vmul.f32 %v4628, %v4639
      %v4668 = vmul.f32 %v4629, %v4639
      %v4669 = vmul.f32 %v4630, %v4639
      %v4670 = vmul.f32 %v4631, %v4639
      %v4671 = vmul.f32 %v4632, %v4639
      %v4672 = vmul.f32 %v4633, %v4639
      %v4673 = vld [vmem:[%s4] sm:$0x1]
      %v4675 = vlaneseq
      %v4676 = vshrl.u32 %v4675, 7
      %v4677 = vsub.s32 0, %v4676
      %v4678 = vrot.slane %v4673, %v4677
      %v4680 = vadd.f32 %v4641, %v4678
      %v4681 = vadd.f32 %v4642, %v4678
      %v4682 = vadd.f32 %v4643, %v4678
      %v4683 = vadd.f32 %v4644, %v4678
      %v4684 = vadd.f32 %v4645, %v4678
      %v4685 = vadd.f32 %v4646, %v4678
      %v4686 = vadd.f32 %v4647, %v4678
      %v4687 = vadd.f32 %v4648, %v4678
      %v4688 = vadd.f32 %v4649, %v4678
      %v4689 = vadd.f32 %v4650, %v4678
      %v4690 = vadd.f32 %v4651, %v4678
      %v4691 = vadd.f32 %v4652, %v4678
      %v4692 = vadd.f32 %v4653, %v4678
      %v4693 = vadd.f32 %v4654, %v4678
      %v4694 = vadd.f32 %v4655, %v4678
      %v4695 = vadd.f32 %v4656, %v4678
      %v4696 = vadd.f32 %v4657, %v4678
      %v4697 = vadd.f32 %v4658, %v4678
      %v4698 = vadd.f32 %v4659, %v4678
      %v4699 = vadd.f32 %v4660, %v4678
      %v4700 = vadd.f32 %v4661, %v4678
      %v4701 = vadd.f32 %v4662, %v4678
      %v4702 = vadd.f32 %v4663, %v4678
      %v4703 = vadd.f32 %v4664, %v4678
      %v4704 = vadd.f32 %v4665, %v4678
      %v4705 = vadd.f32 %v4666, %v4678
      %v4706 = vadd.f32 %v4667, %v4678
      %v4707 = vadd.f32 %v4668, %v4678
      %v4708 = vadd.f32 %v4669, %v4678
      %v4709 = vadd.f32 %v4670, %v4678
      %v4710 = vadd.f32 %v4671, %v4678
      %v4711 = vadd.f32 %v4672, %v4678
      %v4712 = vld [vmem:[%s5] sm:$0xf]
      %v4713 = vld [vmem:[%s6] sm:$0x1]
      %v4715 = vlaneseq
      %v4716 = vshrl.u32 %v4715, 7
      %v4717 = vsub.s32 0, %v4716
      %v4718 = vrot.slane %v4713, %v4717
      %v4721 = vsel %vm419, %v4680, 0
      %v4724 = vsel %vm419, %v4681, 0
      %v4727 = vsel %vm419, %v4682, 0
      %v4730 = vsel %vm419, %v4683, 0
      %v4733 = vsel %vm419, %v4684, 0
      %v4736 = vsel %vm419, %v4685, 0
      %v4739 = vsel %vm419, %v4686, 0
      %v4742 = vsel %vm419, %v4687, 0
      %v4745 = vsel %vm419, %v4688, 0
      %v4748 = vsel %vm419, %v4689, 0
      %v4751 = vsel %vm419, %v4690, 0
      %v4754 = vsel %vm419, %v4691, 0
      %v4757 = vsel %vm419, %v4692, 0
      %v4760 = vsel %vm419, %v4693, 0
      %v4763 = vsel %vm419, %v4694, 0
      %v4766 = vsel %vm419, %v4695, 0
      %v4769 = vsel %vm419, %v4696, 0
      %v4772 = vsel %vm419, %v4697, 0
      %v4775 = vsel %vm419, %v4698, 0
      %v4778 = vsel %vm419, %v4699, 0
      %v4781 = vsel %vm419, %v4700, 0
      %v4784 = vsel %vm419, %v4701, 0
      %v4787 = vsel %vm419, %v4702, 0
      %v4790 = vsel %vm419, %v4703, 0
      %v4793 = vsel %vm419, %v4704, 0
      %v4796 = vsel %vm419, %v4705, 0
      %v4799 = vsel %vm419, %v4706, 0
      %v4802 = vsel %vm419, %v4707, 0
      %v4805 = vsel %vm419, %v4708, 0
      %v4808 = vsel %vm419, %v4709, 0
      %v4811 = vsel %vm419, %v4710, 0
      %v4814 = vsel %vm419, %v4711, 0
      %vm4816 = vcmask 1043456
      %v4818 = vsel %vm4816, %v4712, 0
      %4820 = vmatprep.subr.mxu0 0.0
      %4821 = vmatpush1.msra.mxu0 0.0
      %4822 = vmatprep.subr.mxu0 0.0
      %4823 = vmatpush1.msra.mxu0 0.0
      %4824 = vmatprep.subr.mxu0 0.0
      %4825 = vmatpush1.msra.mxu0 0.0
      %4826 = vmatprep.subr.mxu0 0.0
      %4827 = vmatpush1.msra.mxu0 0.0
      %4828 = vmatprep.subr.mxu0 0.0
      %4829 = vmatpush1.msra.mxu0 0.0
      %4830 = vmatprep.subr.mxu0 0.0
      %4831 = vmatpush1.msra.mxu0 0.0
      %4832 = vmatprep.subr.mxu0 0.0
      %4833 = vmatpush1.msra.mxu0 0.0
      %4834 = vmatprep.subr.mxu0 0.0
      %4835 = vmatpush1.msra.mxu0 0.0
      %4836 = vmatprep.subr.mxu0 0.0
      %4837 = vmatpush1.msra.mxu0 0.0
      %4838 = vmatprep.subr.mxu0 0.0
      %4839 = vmatpush1.msra.mxu0 0.0
      %4840 = vmatprep.subr.mxu0 0.0
      %4841 = vmatpush1.msra.mxu0 0.0
      %4842 = vmatprep.subr.mxu0 0.0
      %4843 = vmatpush1.msra.mxu0 0.0
      %4844 = vmatprep.subr.mxu0 0.0
      %4845 = vmatpush1.msra.mxu0 0.0
      %4846 = vmatprep.subr.mxu0 0.0
      %4847 = vmatpush1.msra.mxu0 0.0
      %4848 = vmatprep.subr.mxu0 0.0
      %4849 = vmatpush1.msra.mxu0 0.0
      %4850 = vmatprep.subr.mxu0 0.0
      %4851 = vmatpush1.msra.mxu0 %v4818
      %4852 = vmatprep.subr.mxu0 0.0
      %4853 = vmatpush2.msra.mxu0 0.0
      %4854 = vmatprep.subr.mxu0 0.0
      %4855 = vmatpush2.msra.mxu0 0.0
      %4856 = vmatprep.subr.mxu0 0.0
      %4857 = vmatpush2.msra.mxu0 0.0
      %4858 = vmatprep.subr.mxu0 0.0
      %4859 = vmatpush2.msra.mxu0 0.0
      %4860 = vmatprep.subr.mxu0 0.0
      %4861 = vmatpush2.msra.mxu0 0.0
      %4862 = vmatprep.subr.mxu0 0.0
      %4863 = vmatpush2.msra.mxu0 0.0
      %4864 = vmatprep.subr.mxu0 0.0
      %4865 = vmatpush2.msra.mxu0 0.0
      %4866 = vmatprep.subr.mxu0 0.0
      %4867 = vmatpush2.msra.mxu0 0.0
      %4868 = vmatprep.subr.mxu0 0.0
      %4869 = vmatpush2.msra.mxu0 0.0
      %4870 = vmatprep.subr.mxu0 0.0
      %4871 = vmatpush2.msra.mxu0 0.0
      %4872 = vmatprep.subr.mxu0 0.0
      %4873 = vmatpush2.msra.mxu0 0.0
      %4874 = vmatprep.subr.mxu0 0.0
      %4875 = vmatpush2.msra.mxu0 0.0
      %4876 = vmatprep.subr.mxu0 0.0
      %4877 = vmatpush2.msra.mxu0 0.0
      %4878 = vmatprep.subr.mxu0 0.0
      %4879 = vmatpush2.msra.mxu0 0.0
      %4880 = vmatprep.subr.mxu0 0.0
      %4881 = vmatpush2.msra.mxu0 0.0
      %4882 = vmatprep.subr.mxu0 0.0
      %4883 = vmatpush2.msra.mxu0 0.0
      %4884 = vmatprep.mubr.f32.mxu0 0.0
      %4885 = vmatmul.mubr.f32.gmra.mxu0 %v4721
      %v4886 = vpop.f32.mrf.mxu0
      %v4887 = vadd.f32 %v4718, %v4886
      %v4888 = vpop.f32.mrf.mxu0
      %4889 = vmatprep.mubr.f32.mxu0 0.0
      %4890 = vmatmul.mubr.f32.gmra.mxu0 %v4724
      %v4891 = vpop.f32.mrf.mxu0
      %v4892 = vadd.f32 %v4718, %v4891
      %v4893 = vpop.f32.mrf.mxu0
      %4894 = vmatprep.mubr.f32.mxu0 0.0
      %4895 = vmatmul.mubr.f32.gmra.mxu0 %v4727
      %v4896 = vpop.f32.mrf.mxu0
      %v4897 = vadd.f32 %v4718, %v4896
      %v4898 = vpop.f32.mrf.mxu0
      %4899 = vmatprep.mubr.f32.mxu0 0.0
      %4900 = vmatmul.mubr.f32.gmra.mxu0 %v4730
      %v4901 = vpop.f32.mrf.mxu0
      %v4902 = vadd.f32 %v4718, %v4901
      %v4903 = vpop.f32.mrf.mxu0
      %4904 = vmatprep.mubr.f32.mxu0 0.0
      %4905 = vmatmul.mubr.f32.gmra.mxu0 %v4733
      %v4906 = vpop.f32.mrf.mxu0
      %v4907 = vadd.f32 %v4718, %v4906
      %v4908 = vpop.f32.mrf.mxu0
      %4909 = vmatprep.mubr.f32.mxu0 0.0
      %4910 = vmatmul.mubr.f32.gmra.mxu0 %v4736
      %v4911 = vpop.f32.mrf.mxu0
      %v4912 = vadd.f32 %v4718, %v4911
      %v4913 = vpop.f32.mrf.mxu0
      %4914 = vmatprep.mubr.f32.mxu0 0.0
      %4915 = vmatmul.mubr.f32.gmra.mxu0 %v4739
      %v4916 = vpop.f32.mrf.mxu0
      %v4917 = vadd.f32 %v4718, %v4916
      %v4918 = vpop.f32.mrf.mxu0
      %4919 = vmatprep.mubr.f32.mxu0 0.0
      %4920 = vmatmul.mubr.f32.gmra.mxu0 %v4742
      %v4921 = vpop.f32.mrf.mxu0
      %v4922 = vadd.f32 %v4718, %v4921
      %v4923 = vpop.f32.mrf.mxu0
      %4924 = vmatprep.mubr.f32.mxu0 0.0
      %4925 = vmatmul.mubr.f32.gmra.mxu0 %v4745
      %v4926 = vpop.f32.mrf.mxu0
      %v4927 = vadd.f32 %v4718, %v4926
      %v4928 = vpop.f32.mrf.mxu0
      %4929 = vmatprep.mubr.f32.mxu0 0.0
      %4930 = vmatmul.mubr.f32.gmra.mxu0 %v4748
      %v4931 = vpop.f32.mrf.mxu0
      %v4932 = vadd.f32 %v4718, %v4931
      %v4933 = vpop.f32.mrf.mxu0
      %4934 = vmatprep.mubr.f32.mxu0 0.0
      %4935 = vmatmul.mubr.f32.gmra.mxu0 %v4751
      %v4936 = vpop.f32.mrf.mxu0
      %v4937 = vadd.f32 %v4718, %v4936
      %v4938 = vpop.f32.mrf.mxu0
      %4939 = vmatprep.mubr.f32.mxu0 0.0
      %4940 = vmatmul.mubr.f32.gmra.mxu0 %v4754
      %v4941 = vpop.f32.mrf.mxu0
      %v4942 = vadd.f32 %v4718, %v4941
      %v4943 = vpop.f32.mrf.mxu0
      %4944 = vmatprep.mubr.f32.mxu0 0.0
      %4945 = vmatmul.mubr.f32.gmra.mxu0 %v4757
      %v4946 = vpop.f32.mrf.mxu0
      %v4947 = vadd.f32 %v4718, %v4946
      %v4948 = vpop.f32.mrf.mxu0
      %4949 = vmatprep.mubr.f32.mxu0 0.0
      %4950 = vmatmul.mubr.f32.gmra.mxu0 %v4760
      %v4951 = vpop.f32.mrf.mxu0
      %v4952 = vadd.f32 %v4718, %v4951
      %v4953 = vpop.f32.mrf.mxu0
      %4954 = vmatprep.mubr.f32.mxu0 0.0
      %4955 = vmatmul.mubr.f32.gmra.mxu0 %v4763
      %v4956 = vpop.f32.mrf.mxu0
      %v4957 = vadd.f32 %v4718, %v4956
      %v4958 = vpop.f32.mrf.mxu0
      %4959 = vmatprep.mubr.f32.mxu0 0.0
      %4960 = vmatmul.mubr.f32.gmra.mxu0 %v4766
      %v4961 = vpop.f32.mrf.mxu0
      %v4962 = vadd.f32 %v4718, %v4961
      %v4963 = vpop.f32.mrf.mxu0
      %4964 = vmatprep.mubr.f32.mxu0 0.0
      %4965 = vmatmul.mubr.f32.gmra.mxu0 %v4769
      %v4966 = vpop.f32.mrf.mxu0
      %v4967 = vadd.f32 %v4718, %v4966
      %v4968 = vpop.f32.mrf.mxu0
      %4969 = vmatprep.mubr.f32.mxu0 0.0
      %4970 = vmatmul.mubr.f32.gmra.mxu0 %v4772
      %v4971 = vpop.f32.mrf.mxu0
      %v4972 = vadd.f32 %v4718, %v4971
      %v4973 = vpop.f32.mrf.mxu0
      %4974 = vmatprep.mubr.f32.mxu0 0.0
      %4975 = vmatmul.mubr.f32.gmra.mxu0 %v4775
      %v4976 = vpop.f32.mrf.mxu0
      %v4977 = vadd.f32 %v4718, %v4976
      %v4978 = vpop.f32.mrf.mxu0
      %4979 = vmatprep.mubr.f32.mxu0 0.0
      %4980 = vmatmul.mubr.f32.gmra.mxu0 %v4778
      %v4981 = vpop.f32.mrf.mxu0
      %v4982 = vadd.f32 %v4718, %v4981
      %v4983 = vpop.f32.mrf.mxu0
      %4984 = vmatprep.mubr.f32.mxu0 0.0
      %4985 = vmatmul.mubr.f32.gmra.mxu0 %v4781
      %v4986 = vpop.f32.mrf.mxu0
      %v4987 = vadd.f32 %v4718, %v4986
      %v4988 = vpop.f32.mrf.mxu0
      %4989 = vmatprep.mubr.f32.mxu0 0.0
      %4990 = vmatmul.mubr.f32.gmra.mxu0 %v4784
      %v4991 = vpop.f32.mrf.mxu0
      %v4992 = vadd.f32 %v4718, %v4991
      %v4993 = vpop.f32.mrf.mxu0
      %4994 = vmatprep.mubr.f32.mxu0 0.0
      %4995 = vmatmul.mubr.f32.gmra.mxu0 %v4787
      %v4996 = vpop.f32.mrf.mxu0
      %v4997 = vadd.f32 %v4718, %v4996
      %v4998 = vpop.f32.mrf.mxu0
      %4999 = vmatprep.mubr.f32.mxu0 0.0
      %5000 = vmatmul.mubr.f32.gmra.mxu0 %v4790
      %v5001 = vpop.f32.mrf.mxu0
      %v5002 = vadd.f32 %v4718, %v5001
      %v5003 = vpop.f32.mrf.mxu0
      %5004 = vmatprep.mubr.f32.mxu0 0.0
      %5005 = vmatmul.mubr.f32.gmra.mxu0 %v4793
      %v5006 = vpop.f32.mrf.mxu0
      %v5007 = vadd.f32 %v4718, %v5006
      %v5008 = vpop.f32.mrf.mxu0
      %5009 = vmatprep.mubr.f32.mxu0 0.0
      %5010 = vmatmul.mubr.f32.gmra.mxu0 %v4796
      %v5011 = vpop.f32.mrf.mxu0
      %v5012 = vadd.f32 %v4718, %v5011
      %v5013 = vpop.f32.mrf.mxu0
      %5014 = vmatprep.mubr.f32.mxu0 0.0
      %5015 = vmatmul.mubr.f32.gmra.mxu0 %v4799
      %v5016 = vpop.f32.mrf.mxu0
      %v5017 = vadd.f32 %v4718, %v5016
      %v5018 = vpop.f32.mrf.mxu0
      %5019 = vmatprep.mubr.f32.mxu0 0.0
      %5020 = vmatmul.mubr.f32.gmra.mxu0 %v4802
      %v5021 = vpop.f32.mrf.mxu0
      %v5022 = vadd.f32 %v4718, %v5021
      %v5023 = vpop.f32.mrf.mxu0
      %5024 = vmatprep.mubr.f32.mxu0 0.0
      %5025 = vmatmul.mubr.f32.gmra.mxu0 %v4805
      %v5026 = vpop.f32.mrf.mxu0
      %v5027 = vadd.f32 %v4718, %v5026
      %v5028 = vpop.f32.mrf.mxu0
      %5029 = vmatprep.mubr.f32.mxu0 0.0
      %5030 = vmatmul.mubr.f32.gmra.mxu0 %v4808
      %v5031 = vpop.f32.mrf.mxu0
      %v5032 = vadd.f32 %v4718, %v5031
      %v5033 = vpop.f32.mrf.mxu0
      %5034 = vmatprep.mubr.f32.mxu0 0.0
      %5035 = vmatmul.mubr.f32.gmra.mxu0 %v4811
      %v5036 = vpop.f32.mrf.mxu0
      %v5037 = vadd.f32 %v4718, %v5036
      %v5038 = vpop.f32.mrf.mxu0
      %5039 = vmatprep.mubr.f32.mxu0 0.0
      %5040 = vmatmul.mubr.f32.gmra.mxu0 %v4814
      %v5041 = vpop.f32.mrf.mxu0
      %v5042 = vadd.f32 %v4718, %v5041
      %v5043 = vpop.f32.mrf.mxu0
      %5044 = vdwg.mxu0
      %v5045 = vmul.f32 %v4887, 0.5
      %v5046 = vmul.f32 %v4892, 0.5
      %v5047 = vmul.f32 %v4897, 0.5
      %v5048 = vmul.f32 %v4902, 0.5
      %v5049 = vmul.f32 %v4907, 0.5
      %v5050 = vmul.f32 %v4912, 0.5
      %v5051 = vmul.f32 %v4917, 0.5
      %v5052 = vmul.f32 %v4922, 0.5
      %v5053 = vmul.f32 %v4927, 0.5
      %v5054 = vmul.f32 %v4932, 0.5
      %v5055 = vmul.f32 %v4937, 0.5
      %v5056 = vmul.f32 %v4942, 0.5
      %v5057 = vmul.f32 %v4947, 0.5
      %v5058 = vmul.f32 %v4952, 0.5
      %v5059 = vmul.f32 %v4957, 0.5
      %v5060 = vmul.f32 %v4962, 0.5
      %v5061 = vmul.f32 %v4967, 0.5
      %v5062 = vmul.f32 %v4972, 0.5
      %v5063 = vmul.f32 %v4977, 0.5
      %v5064 = vmul.f32 %v4982, 0.5
      %v5065 = vmul.f32 %v4987, 0.5
      %v5066 = vmul.f32 %v4992, 0.5
      %v5067 = vmul.f32 %v4997, 0.5
      %v5068 = vmul.f32 %v5002, 0.5
      %v5069 = vmul.f32 %v5007, 0.5
      %v5070 = vmul.f32 %v5012, 0.5
      %v5071 = vmul.f32 %v5017, 0.5
      %v5072 = vmul.f32 %v5022, 0.5
      %v5073 = vmul.f32 %v5027, 0.5
      %v5074 = vmul.f32 %v5032, 0.5
      %v5075 = vmul.f32 %v5037, 0.5
      %v5076 = vmul.f32 %v5042, 0.5
      %v5077 = vmul.f32 %v4887, 0.70710677
      %v5078 = vmul.f32 %v4892, 0.70710677
      %v5079 = vmul.f32 %v4897, 0.70710677
      %v5080 = vmul.f32 %v4902, 0.70710677
      %v5081 = vmul.f32 %v4907, 0.70710677
      %v5082 = vmul.f32 %v4912, 0.70710677
      %v5083 = vmul.f32 %v4917, 0.70710677
      %v5084 = vmul.f32 %v4922, 0.70710677
      %v5085 = vmul.f32 %v4927, 0.70710677
      %v5086 = vmul.f32 %v4932, 0.70710677
      %v5087 = vmul.f32 %v4937, 0.70710677
      %v5088 = vmul.f32 %v4942, 0.70710677
      %v5089 = vmul.f32 %v4947, 0.70710677
      %v5090 = vmul.f32 %v4952, 0.70710677
      %v5091 = vmul.f32 %v4957, 0.70710677
      %v5092 = vmul.f32 %v4962, 0.70710677
      %v5093 = vmul.f32 %v4967, 0.70710677
      %v5094 = vmul.f32 %v4972, 0.70710677
      %v5095 = vmul.f32 %v4977, 0.70710677
      %v5096 = vmul.f32 %v4982, 0.70710677
      %v5097 = vmul.f32 %v4987, 0.70710677
      %v5098 = vmul.f32 %v4992, 0.70710677
      %v5099 = vmul.f32 %v4997, 0.70710677
      %v5100 = vmul.f32 %v5002, 0.70710677
      %v5101 = vmul.f32 %v5007, 0.70710677
      %v5102 = vmul.f32 %v5012, 0.70710677
      %v5103 = vmul.f32 %v5017, 0.70710677
      %v5104 = vmul.f32 %v5022, 0.70710677
      %v5105 = vmul.f32 %v5027, 0.70710677
      %v5106 = vmul.f32 %v5032, 0.70710677
      %v5107 = vmul.f32 %v5037, 0.70710677
      %v5108 = vmul.f32 %v5042, 0.70710677
      %v5109 = verf.f32.pop %v5077
      %v5110 = verf.f32.pop %v5078
      %v5111 = verf.f32.pop %v5079
      %v5112 = verf.f32.pop %v5080
      %v5113 = verf.f32.pop %v5081
      %v5114 = verf.f32.pop %v5082
      %v5115 = verf.f32.pop %v5083
      %v5116 = verf.f32.pop %v5084
      %v5117 = verf.f32.pop %v5085
      %v5118 = verf.f32.pop %v5086
      %v5119 = verf.f32.pop %v5087
      %v5120 = verf.f32.pop %v5088
      %v5121 = verf.f32.pop %v5089
      %v5122 = verf.f32.pop %v5090
      %v5123 = verf.f32.pop %v5091
      %v5124 = verf.f32.pop %v5092
      %v5125 = verf.f32.pop %v5093
      %v5126 = verf.f32.pop %v5094
      %v5127 = verf.f32.pop %v5095
      %v5128 = verf.f32.pop %v5096
      %v5129 = verf.f32.pop %v5097
      %v5130 = verf.f32.pop %v5098
      %v5131 = verf.f32.pop %v5099
      %v5132 = verf.f32.pop %v5100
      %v5133 = verf.f32.pop %v5101
      %v5134 = verf.f32.pop %v5102
      %v5135 = verf.f32.pop %v5103
      %v5136 = verf.f32.pop %v5104
      %v5137 = verf.f32.pop %v5105
      %v5138 = verf.f32.pop %v5106
      %v5139 = verf.f32.pop %v5107
      %v5140 = verf.f32.pop %v5108
      %v5141 = vadd.f32 %v5109, 1.0
      %v5142 = vadd.f32 %v5110, 1.0
      %v5143 = vadd.f32 %v5111, 1.0
      %v5144 = vadd.f32 %v5112, 1.0
      %v5145 = vadd.f32 %v5113, 1.0
      %v5146 = vadd.f32 %v5114, 1.0
      %v5147 = vadd.f32 %v5115, 1.0
      %v5148 = vadd.f32 %v5116, 1.0
      %v5149 = vadd.f32 %v5117, 1.0
      %v5150 = vadd.f32 %v5118, 1.0
      %v5151 = vadd.f32 %v5119, 1.0
      %v5152 = vadd.f32 %v5120, 1.0
      %v5153 = vadd.f32 %v5121, 1.0
      %v5154 = vadd.f32 %v5122, 1.0
      %v5155 = vadd.f32 %v5123, 1.0
      %v5156 = vadd.f32 %v5124, 1.0
      %v5157 = vadd.f32 %v5125, 1.0
      %v5158 = vadd.f32 %v5126, 1.0
      %v5159 = vadd.f32 %v5127, 1.0
      %v5160 = vadd.f32 %v5128, 1.0
      %v5161 = vadd.f32 %v5129, 1.0
      %v5162 = vadd.f32 %v5130, 1.0
      %v5163 = vadd.f32 %v5131, 1.0
      %v5164 = vadd.f32 %v5132, 1.0
      %v5165 = vadd.f32 %v5133, 1.0
      %v5166 = vadd.f32 %v5134, 1.0
      %v5167 = vadd.f32 %v5135, 1.0
      %v5168 = vadd.f32 %v5136, 1.0
      %v5169 = vadd.f32 %v5137, 1.0
      %v5170 = vadd.f32 %v5138, 1.0
      %v5171 = vadd.f32 %v5139, 1.0
      %v5172 = vadd.f32 %v5140, 1.0
      %v5173 = vmul.f32 %v5045, %v5141
      %v5174 = vmul.f32 %v5046, %v5142
      %v5175 = vmul.f32 %v5047, %v5143
      %v5176 = vmul.f32 %v5048, %v5144
      %v5177 = vmul.f32 %v5049, %v5145
      %v5178 = vmul.f32 %v5050, %v5146
      %v5179 = vmul.f32 %v5051, %v5147
      %v5180 = vmul.f32 %v5052, %v5148
      %v5181 = vmul.f32 %v5053, %v5149
      %v5182 = vmul.f32 %v5054, %v5150
      %v5183 = vmul.f32 %v5055, %v5151
      %v5184 = vmul.f32 %v5056, %v5152
      %v5185 = vmul.f32 %v5057, %v5153
      %v5186 = vmul.f32 %v5058, %v5154
      %v5187 = vmul.f32 %v5059, %v5155
      %v5188 = vmul.f32 %v5060, %v5156
      %v5189 = vmul.f32 %v5061, %v5157
      %v5190 = vmul.f32 %v5062, %v5158
      %v5191 = vmul.f32 %v5063, %v5159
      %v5192 = vmul.f32 %v5064, %v5160
      %v5193 = vmul.f32 %v5065, %v5161
      %v5194 = vmul.f32 %v5066, %v5162
      %v5195 = vmul.f32 %v5067, %v5163
      %v5196 = vmul.f32 %v5068, %v5164
      %v5197 = vmul.f32 %v5069, %v5165
      %v5198 = vmul.f32 %v5070, %v5166
      %v5199 = vmul.f32 %v5071, %v5167
      %v5200 = vmul.f32 %v5072, %v5168
      %v5201 = vmul.f32 %v5073, %v5169
      %v5202 = vmul.f32 %v5074, %v5170
      %v5203 = vmul.f32 %v5075, %v5171
      %v5204 = vmul.f32 %v5076, %v5172
      %v5205 = vmul.f32 %v5173, %v5173
      %v5206 = vmul.f32 %v5174, %v5174
      %v5207 = vmul.f32 %v5175, %v5175
      %v5208 = vmul.f32 %v5176, %v5176
      %v5209 = vmul.f32 %v5177, %v5177
      %v5210 = vmul.f32 %v5178, %v5178
      %v5211 = vmul.f32 %v5179, %v5179
      %v5212 = vmul.f32 %v5180, %v5180
      %v5213 = vmul.f32 %v5181, %v5181
      %v5214 = vmul.f32 %v5182, %v5182
      %v5215 = vmul.f32 %v5183, %v5183
      %v5216 = vmul.f32 %v5184, %v5184
      %v5217 = vmul.f32 %v5185, %v5185
      %v5218 = vmul.f32 %v5186, %v5186
      %v5219 = vmul.f32 %v5187, %v5187
      %v5220 = vmul.f32 %v5188, %v5188
      %v5221 = vmul.f32 %v5189, %v5189
      %v5222 = vmul.f32 %v5190, %v5190
      %v5223 = vmul.f32 %v5191, %v5191
      %v5224 = vmul.f32 %v5192, %v5192
      %v5225 = vmul.f32 %v5193, %v5193
      %v5226 = vmul.f32 %v5194, %v5194
      %v5227 = vmul.f32 %v5195, %v5195
      %v5228 = vmul.f32 %v5196, %v5196
      %v5229 = vmul.f32 %v5197, %v5197
      %v5230 = vmul.f32 %v5198, %v5198
      %v5231 = vmul.f32 %v5199, %v5199
      %v5232 = vmul.f32 %v5200, %v5200
      %v5233 = vmul.f32 %v5201, %v5201
      %v5234 = vmul.f32 %v5202, %v5202
      %v5235 = vmul.f32 %v5203, %v5203
      %v5236 = vmul.f32 %v5204, %v5204
      %vm5237 = vcmask 130048
      %v5238 = vsel %vm5237, %v5205, 0.0
      %v5239 = vsel %vm5237, %v5206, 0.0
      %v5240 = vadd.f32 %v5238, %v5239
      %v5241 = vsel %vm5237, %v5207, 0.0
      %v5242 = vadd.f32 %v5240, %v5241
      %v5243 = vsel %vm5237, %v5208, 0.0
      %v5244 = vadd.f32 %v5242, %v5243
      %v5245 = vsel %vm5237, %v5209, 0.0
      %v5246 = vadd.f32 %v5244, %v5245
      %v5247 = vsel %vm5237, %v5210, 0.0
      %v5248 = vadd.f32 %v5246, %v5247
      %v5249 = vsel %vm5237, %v5211, 0.0
      %v5250 = vadd.f32 %v5248, %v5249
      %v5251 = vsel %vm5237, %v5212, 0.0
      %v5252 = vadd.f32 %v5250, %v5251
      %v5253 = vsel %vm5237, %v5213, 0.0
      %v5254 = vadd.f32 %v5252, %v5253
      %v5255 = vsel %vm5237, %v5214, 0.0
      %v5256 = vadd.f32 %v5254, %v5255
      %v5257 = vsel %vm5237, %v5215, 0.0
      %v5258 = vadd.f32 %v5256, %v5257
      %v5259 = vsel %vm5237, %v5216, 0.0
      %v5260 = vadd.f32 %v5258, %v5259
      %v5261 = vsel %vm5237, %v5217, 0.0
      %v5262 = vadd.f32 %v5260, %v5261
      %v5263 = vsel %vm5237, %v5218, 0.0
      %v5264 = vadd.f32 %v5262, %v5263
      %v5265 = vsel %vm5237, %v5219, 0.0
      %v5266 = vadd.f32 %v5264, %v5265
      %v5267 = vsel %vm5237, %v5220, 0.0
      %v5268 = vadd.f32 %v5266, %v5267
      %v5269 = vsel %vm5237, %v5221, 0.0
      %v5270 = vadd.f32 %v5268, %v5269
      %v5271 = vsel %vm5237, %v5222, 0.0
      %v5272 = vadd.f32 %v5270, %v5271
      %v5273 = vsel %vm5237, %v5223, 0.0
      %v5274 = vadd.f32 %v5272, %v5273
      %v5275 = vsel %vm5237, %v5224, 0.0
      %v5276 = vadd.f32 %v5274, %v5275
      %v5277 = vsel %vm5237, %v5225, 0.0
      %v5278 = vadd.f32 %v5276, %v5277
      %v5279 = vsel %vm5237, %v5226, 0.0
      %v5280 = vadd.f32 %v5278, %v5279
      %v5281 = vsel %vm5237, %v5227, 0.0
      %v5282 = vadd.f32 %v5280, %v5281
      %v5283 = vsel %vm5237, %v5228, 0.0
      %v5284 = vadd.f32 %v5282, %v5283
      %v5285 = vsel %vm5237, %v5229, 0.0
      %v5286 = vadd.f32 %v5284, %v5285
      %v5287 = vsel %vm5237, %v5230, 0.0
      %v5288 = vadd.f32 %v5286, %v5287
      %v5289 = vsel %vm5237, %v5231, 0.0
      %v5290 = vadd.f32 %v5288, %v5289
      %v5291 = vsel %vm5237, %v5232, 0.0
      %v5292 = vadd.f32 %v5290, %v5291
      %v5293 = vsel %vm5237, %v5233, 0.0
      %v5294 = vadd.f32 %v5292, %v5293
      %v5295 = vsel %vm5237, %v5234, 0.0
      %v5296 = vadd.f32 %v5294, %v5295
      %v5297 = vsel %vm5237, %v5235, 0.0
      %v5298 = vadd.f32 %v5296, %v5297
      %v5299 = vsel %vm5237, %v5236, 0.0
      %v5300 = vadd.f32 %v5298, %v5299
      %v5301 = vrot.slane %v5300, 4
      %v5302 = vadd.f32 %v5300, %v5301
      %v5303 = vrot.slane %v5302, 2
      %v5304 = vadd.f32 %v5302, %v5303
      %v5305 = vrot.slane %v5304, 1
      %v5306 = vadd.f32 %v5304, %v5305
      %v5307 = vrsqrt.pop %v5306
      %v5308 = vmul.f32 %v5306, %v5307
      %vm5309 = vcmp.eq.f32.partialorder %v5306, inf
      %v5310 = vsel %vm5309, %v5306, %v5308
      %vm5311 = vcmp.eq.f32.partialorder %v5306, 0.0
      %v5312 = vand.u32 %v5306, 2147483648
      %v5313 = vsel %vm5311, %v5312, %v5310
      %v5314 = vsel %vm5237, %v5313, 0.0
      %5315 = vadd.xlane.f32.xlu0 %v5314
      %v5316 = vpop.xlane.xlu0 %5315
      %v5317 = vrcp.pop 16.0
      %v5318 = vmul.f32 %v5316, %v5317
      %v5319 = vadd.f32 %v5318, 1e-06
      %v5320 = vrcp.pop %v5319
      %v5321 = vmul.f32 %v5313, %v5320
      %v5322 = vld [vmem:[%s7] sm:$0x1]
      %v5323 = vmul.f32 %v5173, %v5321
      %v5324 = vmul.f32 %v5174, %v5321
      %v5325 = vmul.f32 %v5175, %v5321
      %v5326 = vmul.f32 %v5176, %v5321
      %v5327 = vmul.f32 %v5177, %v5321
      %v5328 = vmul.f32 %v5178, %v5321
      %v5329 = vmul.f32 %v5179, %v5321
      %v5330 = vmul.f32 %v5180, %v5321
      %v5331 = vmul.f32 %v5181, %v5321
      %v5332 = vmul.f32 %v5182, %v5321
      %v5333 = vmul.f32 %v5183, %v5321
      %v5334 = vmul.f32 %v5184, %v5321
      %v5335 = vmul.f32 %v5185, %v5321
      %v5336 = vmul.f32 %v5186, %v5321
      %v5337 = vmul.f32 %v5187, %v5321
      %v5338 = vmul.f32 %v5188, %v5321
      %v5339 = vmul.f32 %v5189, %v5321
      %v5340 = vmul.f32 %v5190, %v5321
      %v5341 = vmul.f32 %v5191, %v5321
      %v5342 = vmul.f32 %v5192, %v5321
      %v5343 = vmul.f32 %v5193, %v5321
      %v5344 = vmul.f32 %v5194, %v5321
      %v5345 = vmul.f32 %v5195, %v5321
      %v5346 = vmul.f32 %v5196, %v5321
      %v5347 = vmul.f32 %v5197, %v5321
      %v5348 = vmul.f32 %v5198, %v5321
      %v5349 = vmul.f32 %v5199, %v5321
      %v5350 = vmul.f32 %v5200, %v5321
      %v5351 = vmul.f32 %v5201, %v5321
      %v5352 = vmul.f32 %v5202, %v5321
      %v5353 = vmul.f32 %v5203, %v5321
      %v5354 = vmul.f32 %v5204, %v5321
      %v5356 = vlaneseq
      %v5357 = vshrl.u32 %v5356, 7
      %v5358 = vsub.s32 0, %v5357
      %v5359 = vrot.slane %v5322, %v5358
      %v5361 = vmul.f32 %v5359, %v5323
      %v5362 = vmul.f32 %v5359, %v5324
      %v5363 = vmul.f32 %v5359, %v5325
      %v5364 = vmul.f32 %v5359, %v5326
      %v5365 = vmul.f32 %v5359, %v5327
      %v5366 = vmul.f32 %v5359, %v5328
      %v5367 = vmul.f32 %v5359, %v5329
      %v5368 = vmul.f32 %v5359, %v5330
      %v5369 = vmul.f32 %v5359, %v5331
      %v5370 = vmul.f32 %v5359, %v5332
      %v5371 = vmul.f32 %v5359, %v5333
      %v5372 = vmul.f32 %v5359, %v5334
      %v5373 = vmul.f32 %v5359, %v5335
      %v5374 = vmul.f32 %v5359, %v5336
      %v5375 = vmul.f32 %v5359, %v5337
      %v5376 = vmul.f32 %v5359, %v5338
      %v5377 = vmul.f32 %v5359, %v5339
      %v5378 = vmul.f32 %v5359, %v5340
      %v5379 = vmul.f32 %v5359, %v5341
      %v5380 = vmul.f32 %v5359, %v5342
      %v5381 = vmul.f32 %v5359, %v5343
      %v5382 = vmul.f32 %v5359, %v5344
      %v5383 = vmul.f32 %v5359, %v5345
      %v5384 = vmul.f32 %v5359, %v5346
      %v5385 = vmul.f32 %v5359, %v5347
      %v5386 = vmul.f32 %v5359, %v5348
      %v5387 = vmul.f32 %v5359, %v5349
      %v5388 = vmul.f32 %v5359, %v5350
      %v5389 = vmul.f32 %v5359, %v5351
      %v5390 = vmul.f32 %v5359, %v5352
      %v5391 = vmul.f32 %v5359, %v5353
      %v5392 = vmul.f32 %v5359, %v5354
      %v5393 = vld [vmem:[%s8] sm:$0x1]
      %v5395 = vlaneseq
      %v5396 = vshrl.u32 %v5395, 7
      %v5397 = vsub.s32 0, %v5396
      %v5398 = vrot.slane %v5393, %v5397
      %v5400 = vadd.f32 %v5361, %v5398
      %v5401 = vadd.f32 %v5362, %v5398
      %v5402 = vadd.f32 %v5363, %v5398
      %v5403 = vadd.f32 %v5364, %v5398
      %v5404 = vadd.f32 %v5365, %v5398
      %v5405 = vadd.f32 %v5366, %v5398
      %v5406 = vadd.f32 %v5367, %v5398
      %v5407 = vadd.f32 %v5368, %v5398
      %v5408 = vadd.f32 %v5369, %v5398
      %v5409 = vadd.f32 %v5370, %v5398
      %v5410 = vadd.f32 %v5371, %v5398
      %v5411 = vadd.f32 %v5372, %v5398
      %v5412 = vadd.f32 %v5373, %v5398
      %v5413 = vadd.f32 %v5374, %v5398
      %v5414 = vadd.f32 %v5375, %v5398
      %v5415 = vadd.f32 %v5376, %v5398
      %v5416 = vadd.f32 %v5377, %v5398
      %v5417 = vadd.f32 %v5378, %v5398
      %v5418 = vadd.f32 %v5379, %v5398
      %v5419 = vadd.f32 %v5380, %v5398
      %v5420 = vadd.f32 %v5381, %v5398
      %v5421 = vadd.f32 %v5382, %v5398
      %v5422 = vadd.f32 %v5383, %v5398
      %v5423 = vadd.f32 %v5384, %v5398
      %v5424 = vadd.f32 %v5385, %v5398
      %v5425 = vadd.f32 %v5386, %v5398
      %v5426 = vadd.f32 %v5387, %v5398
      %v5427 = vadd.f32 %v5388, %v5398
      %v5428 = vadd.f32 %v5389, %v5398
      %v5429 = vadd.f32 %v5390, %v5398
      %v5430 = vadd.f32 %v5391, %v5398
      %v5431 = vadd.f32 %v5392, %v5398
      %v5432 = vadd.f32 %v5400, %v5173
      %v5433 = vadd.f32 %v5401, %v5174
      %v5434 = vadd.f32 %v5402, %v5175
      %v5435 = vadd.f32 %v5403, %v5176
      %v5436 = vadd.f32 %v5404, %v5177
      %v5437 = vadd.f32 %v5405, %v5178
      %v5438 = vadd.f32 %v5406, %v5179
      %v5439 = vadd.f32 %v5407, %v5180
      %v5440 = vadd.f32 %v5408, %v5181
      %v5441 = vadd.f32 %v5409, %v5182
      %v5442 = vadd.f32 %v5410, %v5183
      %v5443 = vadd.f32 %v5411, %v5184
      %v5444 = vadd.f32 %v5412, %v5185
      %v5445 = vadd.f32 %v5413, %v5186
      %v5446 = vadd.f32 %v5414, %v5187
      %v5447 = vadd.f32 %v5415, %v5188
      %v5448 = vadd.f32 %v5416, %v5189
      %v5449 = vadd.f32 %v5417, %v5190
      %v5450 = vadd.f32 %v5418, %v5191
      %v5451 = vadd.f32 %v5419, %v5192
      %v5452 = vadd.f32 %v5420, %v5193
      %v5453 = vadd.f32 %v5421, %v5194
      %v5454 = vadd.f32 %v5422, %v5195
      %v5455 = vadd.f32 %v5423, %v5196
      %v5456 = vadd.f32 %v5424, %v5197
      %v5457 = vadd.f32 %v5425, %v5198
      %v5458 = vadd.f32 %v5426, %v5199
      %v5459 = vadd.f32 %v5427, %v5200
      %v5460 = vadd.f32 %v5428, %v5201
      %v5461 = vadd.f32 %v5429, %v5202
      %v5462 = vadd.f32 %v5430, %v5203
      %v5463 = vadd.f32 %v5431, %v5204
      %v5464 = vld [vmem:[%s9] sm:$0xff]
      %v5465 = vld [vmem:[%s9 + $0x8] sm:$0xff]
      %v5466 = vld [vmem:[%s10] sm:$0x1]
      %v5468 = vlaneseq
      %v5469 = vshrl.u32 %v5468, 7
      %v5470 = vsub.s32 0, %v5469
      %v5471 = vrot.slane %v5466, %v5470
      %v5474 = vsel %vm5237, %v5432, 0
      %v5477 = vsel %vm5237, %v5433, 0
      %v5480 = vsel %vm5237, %v5434, 0
      %v5483 = vsel %vm5237, %v5435, 0
      %v5486 = vsel %vm5237, %v5436, 0
      %v5489 = vsel %vm5237, %v5437, 0
      %v5492 = vsel %vm5237, %v5438, 0
      %v5495 = vsel %vm5237, %v5439, 0
      %v5498 = vsel %vm5237, %v5440, 0
      %v5501 = vsel %vm5237, %v5441, 0
      %v5504 = vsel %vm5237, %v5442, 0
      %v5507 = vsel %vm5237, %v5443, 0
      %v5510 = vsel %vm5237, %v5444, 0
      %v5513 = vsel %vm5237, %v5445, 0
      %v5516 = vsel %vm5237, %v5446, 0
      %v5519 = vsel %vm5237, %v5447, 0
      %v5522 = vsel %vm5237, %v5448, 0
      %v5525 = vsel %vm5237, %v5449, 0
      %v5528 = vsel %vm5237, %v5450, 0
      %v5531 = vsel %vm5237, %v5451, 0
      %v5534 = vsel %vm5237, %v5452, 0
      %v5537 = vsel %vm5237, %v5453, 0
      %v5540 = vsel %vm5237, %v5454, 0
      %v5543 = vsel %vm5237, %v5455, 0
      %v5546 = vsel %vm5237, %v5456, 0
      %v5549 = vsel %vm5237, %v5457, 0
      %v5552 = vsel %vm5237, %v5458, 0
      %v5555 = vsel %vm5237, %v5459, 0
      %v5558 = vsel %vm5237, %v5460, 0
      %v5561 = vsel %vm5237, %v5461, 0
      %v5564 = vsel %vm5237, %v5462, 0
      %v5567 = vsel %vm5237, %v5463, 0
      %5569 = vmatprep.subr.mxu0 0.0
      %5570 = vmatpush1.msra.mxu0 0.0
      %5571 = vmatprep.subr.mxu0 0.0
      %5572 = vmatpush1.msra.mxu0 0.0
      %5573 = vmatprep.subr.mxu0 0.0
      %5574 = vmatpush1.msra.mxu0 0.0
      %5575 = vmatprep.subr.mxu0 0.0
      %5576 = vmatpush1.msra.mxu0 0.0
      %5577 = vmatprep.subr.mxu0 0.0
      %5578 = vmatpush1.msra.mxu0 0.0
      %5579 = vmatprep.subr.mxu0 0.0
      %5580 = vmatpush1.msra.mxu0 0.0
      %5581 = vmatprep.subr.mxu0 0.0
      %5582 = vmatpush1.msra.mxu0 0.0
      %5583 = vmatprep.subr.mxu0 0.0
      %5584 = vmatpush1.msra.mxu0 0.0
      %5585 = vmatprep.subr.mxu0 0.0
      %5586 = vmatpush1.msra.mxu0 0.0
      %5587 = vmatprep.subr.mxu0 0.0
      %5588 = vmatpush1.msra.mxu0 0.0
      %5589 = vmatprep.subr.mxu0 0.0
      %5590 = vmatpush1.msra.mxu0 0.0
      %5591 = vmatprep.subr.mxu0 0.0
      %5592 = vmatpush1.msra.mxu0 0.0
      %5593 = vmatprep.subr.mxu0 0.0
      %5594 = vmatpush1.msra.mxu0 0.0
      %5595 = vmatprep.subr.mxu0 0.0
      %5596 = vmatpush1.msra.mxu0 0.0
      %5597 = vmatprep.subr.mxu0 0.0
      %5598 = vmatpush1.msra.mxu0 %v5465
      %5599 = vmatprep.subr.mxu0 0.0
      %5600 = vmatpush1.msra.mxu0 %v5464
      %5601 = vmatprep.subr.mxu0 0.0
      %5602 = vmatpush2.msra.mxu0 0.0
      %5603 = vmatprep.subr.mxu0 0.0
      %5604 = vmatpush2.msra.mxu0 0.0
      %5605 = vmatprep.subr.mxu0 0.0
      %5606 = vmatpush2.msra.mxu0 0.0
      %5607 = vmatprep.subr.mxu0 0.0
      %5608 = vmatpush2.msra.mxu0 0.0
      %5609 = vmatprep.subr.mxu0 0.0
      %5610 = vmatpush2.msra.mxu0 0.0
      %5611 = vmatprep.subr.mxu0 0.0
      %5612 = vmatpush2.msra.mxu0 0.0
      %5613 = vmatprep.subr.mxu0 0.0
      %5614 = vmatpush2.msra.mxu0 0.0
      %5615 = vmatprep.subr.mxu0 0.0
      %5616 = vmatpush2.msra.mxu0 0.0
      %5617 = vmatprep.subr.mxu0 0.0
      %5618 = vmatpush2.msra.mxu0 0.0
      %5619 = vmatprep.subr.mxu0 0.0
      %5620 = vmatpush2.msra.mxu0 0.0
      %5621 = vmatprep.subr.mxu0 0.0
      %5622 = vmatpush2.msra.mxu0 0.0
      %5623 = vmatprep.subr.mxu0 0.0
      %5624 = vmatpush2.msra.mxu0 0.0
      %5625 = vmatprep.subr.mxu0 0.0
      %5626 = vmatpush2.msra.mxu0 0.0
      %5627 = vmatprep.subr.mxu0 0.0
      %5628 = vmatpush2.msra.mxu0 0.0
      %5629 = vmatprep.subr.mxu0 0.0
      %5630 = vmatpush2.msra.mxu0 0.0
      %5631 = vmatprep.subr.mxu0 0.0
      %5632 = vmatpush2.msra.mxu0 0.0
      %5633 = vmatprep.mubr.f32.mxu0 0.0
      %5634 = vmatmul.mubr.f32.gmra.mxu0 %v5474
      %v5635 = vpop.f32.mrf.mxu0
      %v5636 = vadd.f32 %v5471, %v5635
      %v5637 = vpop.f32.mrf.mxu0
      %5638 = vmatprep.mubr.f32.mxu0 0.0
      %5639 = vmatmul.mubr.f32.gmra.mxu0 %v5477
      %v5640 = vpop.f32.mrf.mxu0
      %v5641 = vadd.f32 %v5471, %v5640
      %v5642 = vpop.f32.mrf.mxu0
      %5643 = vmatprep.mubr.f32.mxu0 0.0
      %5644 = vmatmul.mubr.f32.gmra.mxu0 %v5480
      %v5645 = vpop.f32.mrf.mxu0
      %v5646 = vadd.f32 %v5471, %v5645
      %v5647 = vpop.f32.mrf.mxu0
      %5648 = vmatprep.mubr.f32.mxu0 0.0
      %5649 = vmatmul.mubr.f32.gmra.mxu0 %v5483
      %v5650 = vpop.f32.mrf.mxu0
      %v5651 = vadd.f32 %v5471, %v5650
      %v5652 = vpop.f32.mrf.mxu0
      %5653 = vmatprep.mubr.f32.mxu0 0.0
      %5654 = vmatmul.mubr.f32.gmra.mxu0 %v5486
      %v5655 = vpop.f32.mrf.mxu0
      %v5656 = vadd.f32 %v5471, %v5655
      %v5657 = vpop.f32.mrf.mxu0
      %5658 = vmatprep.mubr.f32.mxu0 0.0
      %5659 = vmatmul.mubr.f32.gmra.mxu0 %v5489
      %v5660 = vpop.f32.mrf.mxu0
      %v5661 = vadd.f32 %v5471, %v5660
      %v5662 = vpop.f32.mrf.mxu0
      %5663 = vmatprep.mubr.f32.mxu0 0.0
      %5664 = vmatmul.mubr.f32.gmra.mxu0 %v5492
      %v5665 = vpop.f32.mrf.mxu0
      %v5666 = vadd.f32 %v5471, %v5665
      %v5667 = vpop.f32.mrf.mxu0
      %5668 = vmatprep.mubr.f32.mxu0 0.0
      %5669 = vmatmul.mubr.f32.gmra.mxu0 %v5495
      %v5670 = vpop.f32.mrf.mxu0
      %v5671 = vadd.f32 %v5471, %v5670
      %v5672 = vpop.f32.mrf.mxu0
      %5673 = vmatprep.mubr.f32.mxu0 0.0
      %5674 = vmatmul.mubr.f32.gmra.mxu0 %v5498
      %v5675 = vpop.f32.mrf.mxu0
      %v5676 = vadd.f32 %v5471, %v5675
      %v5677 = vpop.f32.mrf.mxu0
      %5678 = vmatprep.mubr.f32.mxu0 0.0
      %5679 = vmatmul.mubr.f32.gmra.mxu0 %v5501
      %v5680 = vpop.f32.mrf.mxu0
      %v5681 = vadd.f32 %v5471, %v5680
      %v5682 = vpop.f32.mrf.mxu0
      %5683 = vmatprep.mubr.f32.mxu0 0.0
      %5684 = vmatmul.mubr.f32.gmra.mxu0 %v5504
      %v5685 = vpop.f32.mrf.mxu0
      %v5686 = vadd.f32 %v5471, %v5685
      %v5687 = vpop.f32.mrf.mxu0
      %5688 = vmatprep.mubr.f32.mxu0 0.0
      %5689 = vmatmul.mubr.f32.gmra.mxu0 %v5507
      %v5690 = vpop.f32.mrf.mxu0
      %v5691 = vadd.f32 %v5471, %v5690
      %v5692 = vpop.f32.mrf.mxu0
      %5693 = vmatprep.mubr.f32.mxu0 0.0
      %5694 = vmatmul.mubr.f32.gmra.mxu0 %v5510
      %v5695 = vpop.f32.mrf.mxu0
      %v5696 = vadd.f32 %v5471, %v5695
      %v5697 = vpop.f32.mrf.mxu0
      %5698 = vmatprep.mubr.f32.mxu0 0.0
      %5699 = vmatmul.mubr.f32.gmra.mxu0 %v5513
      %v5700 = vpop.f32.mrf.mxu0
      %v5701 = vadd.f32 %v5471, %v5700
      %v5702 = vpop.f32.mrf.mxu0
      %5703 = vmatprep.mubr.f32.mxu0 0.0
      %5704 = vmatmul.mubr.f32.gmra.mxu0 %v5516
      %v5705 = vpop.f32.mrf.mxu0
      %v5706 = vadd.f32 %v5471, %v5705
      %v5707 = vpop.f32.mrf.mxu0
      %5708 = vmatprep.mubr.f32.mxu0 0.0
      %5709 = vmatmul.mubr.f32.gmra.mxu0 %v5519
      %v5710 = vpop.f32.mrf.mxu0
      %v5711 = vadd.f32 %v5471, %v5710
      %v5712 = vpop.f32.mrf.mxu0
      %5713 = vmatprep.mubr.f32.mxu0 0.0
      %5714 = vmatmul.mubr.f32.gmra.mxu0 %v5522
      %v5715 = vpop.f32.mrf.mxu0
      %v5716 = vadd.f32 %v5471, %v5715
      %v5717 = vpop.f32.mrf.mxu0
      %5718 = vmatprep.mubr.f32.mxu0 0.0
      %5719 = vmatmul.mubr.f32.gmra.mxu0 %v5525
      %v5720 = vpop.f32.mrf.mxu0
      %v5721 = vadd.f32 %v5471, %v5720
      %v5722 = vpop.f32.mrf.mxu0
      %5723 = vmatprep.mubr.f32.mxu0 0.0
      %5724 = vmatmul.mubr.f32.gmra.mxu0 %v5528
      %v5725 = vpop.f32.mrf.mxu0
      %v5726 = vadd.f32 %v5471, %v5725
      %v5727 = vpop.f32.mrf.mxu0
      %5728 = vmatprep.mubr.f32.mxu0 0.0
      %5729 = vmatmul.mubr.f32.gmra.mxu0 %v5531
      %v5730 = vpop.f32.mrf.mxu0
      %v5731 = vadd.f32 %v5471, %v5730
      %v5732 = vpop.f32.mrf.mxu0
      %5733 = vmatprep.mubr.f32.mxu0 0.0
      %5734 = vmatmul.mubr.f32.gmra.mxu0 %v5534
      %v5735 = vpop.f32.mrf.mxu0
      %v5736 = vadd.f32 %v5471, %v5735
      %v5737 = vpop.f32.mrf.mxu0
      %5738 = vmatprep.mubr.f32.mxu0 0.0
      %5739 = vmatmul.mubr.f32.gmra.mxu0 %v5537
      %v5740 = vpop.f32.mrf.mxu0
      %v5741 = vadd.f32 %v5471, %v5740
      %v5742 = vpop.f32.mrf.mxu0
      %5743 = vmatprep.mubr.f32.mxu0 0.0
      %5744 = vmatmul.mubr.f32.gmra.mxu0 %v5540
      %v5745 = vpop.f32.mrf.mxu0
      %v5746 = vadd.f32 %v5471, %v5745
      %v5747 = vpop.f32.mrf.mxu0
      %5748 = vmatprep.mubr.f32.mxu0 0.0
      %5749 = vmatmul.mubr.f32.gmra.mxu0 %v5543
      %v5750 = vpop.f32.mrf.mxu0
      %v5751 = vadd.f32 %v5471, %v5750
      %v5752 = vpop.f32.mrf.mxu0
      %5753 = vmatprep.mubr.f32.mxu0 0.0
      %5754 = vmatmul.mubr.f32.gmra.mxu0 %v5546
      %v5755 = vpop.f32.mrf.mxu0
      %v5756 = vadd.f32 %v5471, %v5755
      %v5757 = vpop.f32.mrf.mxu0
      %5758 = vmatprep.mubr.f32.mxu0 0.0
      %5759 = vmatmul.mubr.f32.gmra.mxu0 %v5549
      %v5760 = vpop.f32.mrf.mxu0
      %v5761 = vadd.f32 %v5471, %v5760
      %v5762 = vpop.f32.mrf.mxu0
      %5763 = vmatprep.mubr.f32.mxu0 0.0
      %5764 = vmatmul.mubr.f32.gmra.mxu0 %v5552
      %v5765 = vpop.f32.mrf.mxu0
      %v5766 = vadd.f32 %v5471, %v5765
      %v5767 = vpop.f32.mrf.mxu0
      %5768 = vmatprep.mubr.f32.mxu0 0.0
      %5769 = vmatmul.mubr.f32.gmra.mxu0 %v5555
      %v5770 = vpop.f32.mrf.mxu0
      %v5771 = vadd.f32 %v5471, %v5770
      %v5772 = vpop.f32.mrf.mxu0
      %5773 = vmatprep.mubr.f32.mxu0 0.0
      %5774 = vmatmul.mubr.f32.gmra.mxu0 %v5558
      %v5775 = vpop.f32.mrf.mxu0
      %v5776 = vadd.f32 %v5471, %v5775
      %v5777 = vpop.f32.mrf.mxu0
      %5778 = vmatprep.mubr.f32.mxu0 0.0
      %5779 = vmatmul.mubr.f32.gmra.mxu0 %v5561
      %v5780 = vpop.f32.mrf.mxu0
      %v5781 = vadd.f32 %v5471, %v5780
      %v5782 = vpop.f32.mrf.mxu0
      %5783 = vmatprep.mubr.f32.mxu0 0.0
      %5784 = vmatmul.mubr.f32.gmra.mxu0 %v5564
      %v5785 = vpop.f32.mrf.mxu0
      %v5786 = vadd.f32 %v5471, %v5785
      %v5787 = vpop.f32.mrf.mxu0
      %5788 = vmatprep.mubr.f32.mxu0 0.0
      %5789 = vmatmul.mubr.f32.gmra.mxu0 %v5567
      %v5790 = vpop.f32.mrf.mxu0
      %v5791 = vadd.f32 %v5471, %v5790
      %v5792 = vpop.f32.mrf.mxu0
      %5793 = vdwg.mxu0
      %v5794 = vadd.f32 %v387, %v5636
      %v5795 = vadd.f32 %v388, %v5641
      %v5796 = vadd.f32 %v389, %v5646
      %v5797 = vadd.f32 %v390, %v5651
      %v5798 = vadd.f32 %v391, %v5656
      %v5799 = vadd.f32 %v392, %v5661
      %v5800 = vadd.f32 %v393, %v5666
      %v5801 = vadd.f32 %v394, %v5671
      %v5802 = vadd.f32 %v395, %v5676
      %v5803 = vadd.f32 %v396, %v5681
      %v5804 = vadd.f32 %v397, %v5686
      %v5805 = vadd.f32 %v398, %v5691
      %v5806 = vadd.f32 %v399, %v5696
      %v5807 = vadd.f32 %v400, %v5701
      %v5808 = vadd.f32 %v401, %v5706
      %v5809 = vadd.f32 %v402, %v5711
      %v5810 = vadd.f32 %v403, %v5716
      %v5811 = vadd.f32 %v404, %v5721
      %v5812 = vadd.f32 %v405, %v5726
      %v5813 = vadd.f32 %v406, %v5731
      %v5814 = vadd.f32 %v407, %v5736
      %v5815 = vadd.f32 %v408, %v5741
      %v5816 = vadd.f32 %v409, %v5746
      %v5817 = vadd.f32 %v410, %v5751
      %v5818 = vadd.f32 %v411, %v5756
      %v5819 = vadd.f32 %v412, %v5761
      %v5820 = vadd.f32 %v413, %v5766
      %v5821 = vadd.f32 %v414, %v5771
      %v5822 = vadd.f32 %v415, %v5776
      %v5823 = vadd.f32 %v416, %v5781
      %v5824 = vadd.f32 %v417, %v5786
      %v5825 = vadd.f32 %v418, %v5791
      %5826 = vst.msk [vmem:[%s386] sm:$0xff] %vm419, %v5794
      %5827 = vst.msk [vmem:[%s386 + $0x8] sm:$0xff] %vm419, %v5795
      %5828 = vst.msk [vmem:[%s386 + $0x10] sm:$0xff] %vm419, %v5796
      %5829 = vst.msk [vmem:[%s386 + $0x18] sm:$0xff] %vm419, %v5797
      %5830 = vst.msk [vmem:[%s386 + $0x20] sm:$0xff] %vm419, %v5798
      %5831 = vst.msk [vmem:[%s386 + $0x28] sm:$0xff] %vm419, %v5799
      %5832 = vst.msk [vmem:[%s386 + $0x30] sm:$0xff] %vm419, %v5800
      %5833 = vst.msk [vmem:[%s386 + $0x38] sm:$0xff] %vm419, %v5801
      %5834 = vst.msk [vmem:[%s386 + $0x40] sm:$0xff] %vm419, %v5802
      %5835 = vst.msk [vmem:[%s386 + $0x48] sm:$0xff] %vm419, %v5803
      %5836 = vst.msk [vmem:[%s386 + $0x50] sm:$0xff] %vm419, %v5804
      %5837 = vst.msk [vmem:[%s386 + $0x58] sm:$0xff] %vm419, %v5805
      %5838 = vst.msk [vmem:[%s386 + $0x60] sm:$0xff] %vm419, %v5806
      %5839 = vst.msk [vmem:[%s386 + $0x68] sm:$0xff] %vm419, %v5807
      %5840 = vst.msk [vmem:[%s386 + $0x70] sm:$0xff] %vm419, %v5808
      %5841 = vst.msk [vmem:[%s386 + $0x78] sm:$0xff] %vm419, %v5809
      %5842 = vst.msk [vmem:[%s386 + $0x80] sm:$0xff] %vm419, %v5810
      %5843 = vst.msk [vmem:[%s386 + $0x88] sm:$0xff] %vm419, %v5811
      %5844 = vst.msk [vmem:[%s386 + $0x90] sm:$0xff] %vm419, %v5812
      %5845 = vst.msk [vmem:[%s386 + $0x98] sm:$0xff] %vm419, %v5813
      %5846 = vst.msk [vmem:[%s386 + $0xa0] sm:$0xff] %vm419, %v5814
      %5847 = vst.msk [vmem:[%s386 + $0xa8] sm:$0xff] %vm419, %v5815
      %5848 = vst.msk [vmem:[%s386 + $0xb0] sm:$0xff] %vm419, %v5816
      %5849 = vst.msk [vmem:[%s386 + $0xb8] sm:$0xff] %vm419, %v5817
      %5850 = vst.msk [vmem:[%s386 + $0xc0] sm:$0xff] %vm419, %v5818
      %5851 = vst.msk [vmem:[%s386 + $0xc8] sm:$0xff] %vm419, %v5819
      %5852 = vst.msk [vmem:[%s386 + $0xd0] sm:$0xff] %vm419, %v5820
      %5853 = vst.msk [vmem:[%s386 + $0xd8] sm:$0xff] %vm419, %v5821
      %5854 = vst.msk [vmem:[%s386 + $0xe0] sm:$0xff] %vm419, %v5822
      %5855 = vst.msk [vmem:[%s386 + $0xe8] sm:$0xff] %vm419, %v5823
      %5856 = vst.msk [vmem:[%s386 + $0xf0] sm:$0xff] %vm419, %v5824
      %5857 = vst.msk [vmem:[%s386 + $0xf8] sm:$0xff] %vm419, %v5825
      %p5858 = scmp.lt.s32.totalorder %s22, 1
      %s5859 = scalar_select %p5858, %s22, 1
      %s5860 = smul.addr %s5859, 32
      %s5861 = smul.addr %s5860, 8
      %s5862 = scalar_lea.vmem %s11, %s5861
      // Predicated region
      $region65: #{tpu_custom_call.1} parent=63 // pred_check
        %p5863 = pneg %p276
      $region66: #{tpu_custom_call.1} parent=63 // pred_check_branch
        %5865 = sbr.rel (%p5863) target = $region68
      $region67: #{tpu_custom_call.1} parent=63 // pred_region
        _
      $region68: #{tpu_custom_call.1} parent=63 // pred_fallthru
        _
    $region64: #{tpu_custom_call.1} parent=5 // pred_fallthru
      _
    %p5866 = scmp.le.s32.totalorder 2, %s17
    // Predicated region
    $region69: #{tpu_custom_call.1} parent=5 // pred_check
      %p5867 = pneg %p5866
    $region70: #{tpu_custom_call.1} parent=5 // pred_check_branch
      %5869 = sbr.rel (%p5867) target = $region72
    $region71: #{tpu_custom_call.1} parent=5 // pred_region
      %s5870 = ssub.s32 %s17, 2
      // Predicated region
      $region73: #{tpu_custom_call.1} parent=71 // pred_check
        %p5871 = pneg %p282
      $region74: #{tpu_custom_call.1} parent=71 // pred_check_branch
        %5873 = sbr.rel (%p5871) target = $region76
      $region75: #{tpu_custom_call.1} parent=71 // pred_region
        %p5874 = scmp.lt.s32.totalorder %s23, 1
        %s5875 = scalar_select %p5874, %s23, 1
        %s5876 = smul.addr %s5875, 32
        %s5877 = smul.addr %s5876, 8
        %s5878 = scalar_lea.vmem %s11, %s5877
      $region76: #{tpu_custom_call.1} parent=71 // pred_fallthru
        _
    $region72: #{tpu_custom_call.1} parent=5 // pred_fallthru
      _
  $region6: #{tpu_custom_call.1} parent=0 // loop_footer
    %s21 = sadd.s32 1, %s17
  $region7: #{tpu_custom_call.1} parent=0 // loop_footer_branch
    %16 = sbr.rel target = $region3
  $region8: #{tpu_custom_call.1} parent=0 // loop_exit
    _

</llo_original>
